<compile_context>
chip_gen: v5e
topology: v5e:2x2
jax: 0.10.0
libtpu: 0.0.40
codegen_flags: <defaults>
</compile_context>

<pallas_src>
import jax
import jax.numpy as jnp
from jax import lax
from jax.experimental import pallas as pl
from jax.experimental.pallas import tpu as pltpu

_K = 7            # SpatialGate conv kernel size
_PAD = _K // 2    # 'same' padding
_BN_EPS = 1e-5


def _triplet_attention_kernel(x_ref, w_ref, bn_ref, out_ref,
                              pad_h_ref, pad_w_ref, pad_sp_ref):
    """x_ref: (1, C, H, W) VMEM.  w_ref: (3*2*7*7,) SMEM.  bn_ref: (6,) SMEM."""
    x = x_ref[0]                                  # (C, H, W) f32
    C, H, W = x.shape

    def gate(pooled_max, pooled_mean, pad_ref, gate_idx, transpose_taps):
        # pooled_*: (A, B).  Returns sigmoid(bn(conv7x7_same([max, mean]))): (A, B).
        A, B = pooled_max.shape
        # Zero-padded pooled map lives in a small VMEM scratch.
        pad_ref[...] = jnp.zeros_like(pad_ref)
        pad_ref[0, _PAD:_PAD + A, _PAD:_PAD + B] = pooled_max
        pad_ref[1, _PAD:_PAD + A, _PAD:_PAD + B] = pooled_mean

        acc = jnp.zeros((A, B), jnp.float32)
        base = gate_idx * 2 * _K * _K
        for ci in range(2):
            for i in range(_K):
                for j in range(_K):
                    ti, tj = (j, i) if transpose_taps else (i, j)
                    w = w_ref[base + (ci * _K + ti) * _K + tj]   # SMEM scalar
                    acc = acc + w * pad_ref[ci, i:i + A, j:j + B]

        g = bn_ref[2 * gate_idx]       # folded BN scale
        t = bn_ref[2 * gate_idx + 1]   # folded BN shift
        y = acc * g + t
        return 1.0 / (1.0 + jnp.exp(-y))          # sigmoid

    # ChannelGateH: pool over H -> scale over (C, W).
    s_h = gate(jnp.max(x, axis=1), jnp.mean(x, axis=1), pad_h_ref, 0, False)
    # ChannelGateW: pool over W -> scale over (C, H).  The torch conv runs over
    # the (H, C) spatial plane of the permuted tensor; transposed taps give the
    # identical result directly in (C, H) layout (no data transpose needed).
    s_w = gate(jnp.max(x, axis=2), jnp.mean(x, axis=2), pad_w_ref, 1, True)
    # SpatialGate: pool over C -> scale over (H, W).
    s_sp = gate(jnp.max(x, axis=0), jnp.mean(x, axis=0), pad_sp_ref, 2, False)

    scale = s_sp[None, :, :] + s_h[:, None, :] + s_w[:, :, None]   # (C, H, W)
    out_ref[0] = (x * scale * (1.0 / 3.0)).astype(out_ref.dtype)


def _fold_bn(gamma, beta, rm, rv):
    # Inference-mode BatchNorm folded to y*g + t.
    g = gamma / jnp.sqrt(rv + _BN_EPS)
    t = beta - rm * g
    return g, t


def _pack_params(params):
    """params: ((w, gamma, beta, rmean, rvar) for ChannelGateH, ChannelGateW, SpatialGate)."""
    ws, bns = [], []
    for (w, gamma, beta, rm, rv) in params:
        ws.append(jnp.asarray(w, jnp.float32).reshape(-1))
        g, t = _fold_bn(jnp.asarray(gamma, jnp.float32), jnp.asarray(beta, jnp.float32),
                        jnp.asarray(rm, jnp.float32), jnp.asarray(rv, jnp.float32))
        bns.extend([g.reshape(()), t.reshape(())])
    return jnp.concatenate(ws), jnp.stack(bns)     # (3*2*7*7,), (6,)


@jax.jit
def triplet_attention(x, params):
    """x: (B, C, H, W) float32.  Returns (B, C, H, W)."""
    B, C, H, W = x.shape
    w_flat, bn_flat = _pack_params(params)

    # TODO(synk): BatchNorm is applied in inference mode (running statistics);
    # PyTorch training-mode batch statistics are not implemented.
    return pl.pallas_call(
        _triplet_attention_kernel,
        out_shape=jax.ShapeDtypeStruct((B, C, H, W), x.dtype),
        grid_spec=pltpu.PrefetchScalarGridSpec(
            num_scalar_prefetch=0,
            grid=(B,),
            in_specs=[
                pl.BlockSpec((1, C, H, W), lambda b: (b, 0, 0, 0)),       # x
                pl.BlockSpec(memory_space=pltpu.MemorySpace.SMEM),         # conv weights
                pl.BlockSpec(memory_space=pltpu.MemorySpace.SMEM),         # folded BN
            ],
            out_specs=pl.BlockSpec((1, C, H, W), lambda b: (b, 0, 0, 0)),
            scratch_shapes=[
                pltpu.VMEM((2, C + 2 * _PAD, W + 2 * _PAD), jnp.float32),  # gate-H pad
                pltpu.VMEM((2, C + 2 * _PAD, H + 2 * _PAD), jnp.float32),  # gate-W pad
                pltpu.VMEM((2, H + 2 * _PAD, W + 2 * _PAD), jnp.float32),  # spatial pad
            ],
        ),
        compiler_params=pltpu.CompilerParams(
            dimension_semantics=("parallel",),
            vmem_limit_bytes=48 * 1024 * 1024,
        ),
    )(x, w_flat, bn_flat)


def make_params(key):
    """Parameter sets for (ChannelGateH, ChannelGateW, SpatialGate).
    Each: (conv_w (2,7,7), bn_gamma, bn_beta, bn_running_mean, bn_running_var)."""
    out = []
    for gk in jax.random.split(key, 3):
        kw, kg, kb, km, kv = jax.random.split(gk, 5)
        w = 0.2 * jax.random.normal(kw, (2, _K, _K), jnp.float32)
        gamma = 1.0 + 0.1 * jax.random.normal(kg, (), jnp.float32)
        beta = 0.1 * jax.random.normal(kb, (), jnp.float32)
        rm = 0.1 * jax.random.normal(km, (), jnp.float32)
        rv = 0.5 + jax.random.uniform(kv, (), jnp.float32)
        out.append((w, gamma, beta, rm, rv))
    return tuple(out)


def _spatial_gate_ref(x, w, gamma, beta, rm, rv):
    """Plain-JAX SpatialGate: ChannelPool -> 7x7 conv (no bias) -> BN(eval) -> sigmoid -> scale."""
    maxp = jnp.max(x, axis=1, keepdims=True)
    meanp = jnp.mean(x, axis=1, keepdims=True)
    y = jnp.concatenate([maxp, meanp], axis=1)                       # (B, 2, A, E)
    conv = lax.conv_general_dilated(
        y, w[None, ...],                                             # (1, 2, 7, 7) OIHW
        window_strides=(1, 1), padding=((_PAD, _PAD), (_PAD, _PAD)),
        dimension_numbers=("NCHW", "OIHW", "NCHW"),
        precision=lax.Precision.HIGHEST)
    bn = (conv - rm) / jnp.sqrt(rv + _BN_EPS) * gamma + beta
    return x * jax.nn.sigmoid(bn)


def reference(x, params):
    """Plain-JAX replica of TripletAttention.forward for validation."""
    p_h, p_w, p_sp = params
    x_perm1 = jnp.transpose(x, (0, 2, 1, 3))                         # (B, H, C, W)
    x_out11 = jnp.transpose(_spatial_gate_ref(x_perm1, *p_h), (0, 2, 1, 3))
    x_perm2 = jnp.transpose(x, (0, 3, 2, 1))                         # (B, W, H, C)
    x_out21 = jnp.transpose(_spatial_gate_ref(x_perm2, *p_w), (0, 3, 2, 1))
    x_out = _spatial_gate_ref(x, *p_sp)
    return (x_out + x_out11 + x_out21) * (1.0 / 3.0)


if __name__ == "__main__":
    key = jax.random.PRNGKey(0)
    kx, kp = jax.random.split(key)

    B, C, H, W = 2, 4, 16, 16
    x = jax.random.normal(kx, (B, C, H, W), jnp.float32)
    params = make_params(kp)

    out = jax.block_until_ready(triplet_attention(x, params))
    ref = reference(x, params)

    assert out.shape == (B, C, H, W)
    err = float(jnp.max(jnp.abs(out - ref)))
    assert jnp.allclose(out, ref, atol=1e-4, rtol=1e-4), f"max abs err {err}"

    print("KERNEL_OK")
</pallas_src>

<mosaic_0001>
module attributes {stable_mosaic.version = 11 : i64} {
  func.func @_triplet_attention_kernel(%arg0: i32, %arg1: memref<1x4x16x16xf32, #tpu.memory_space<vmem>>, %arg2: memref<294xf32, #tpu.memory_space<smem>>, %arg3: memref<6xf32, #tpu.memory_space<smem>>, %arg4: memref<1x4x16x16xf32, #tpu.memory_space<vmem>>, %arg5: memref<2x10x22xf32, #tpu.memory_space<vmem>>, %arg6: memref<2x10x22xf32, #tpu.memory_space<vmem>>, %arg7: memref<2x22x22xf32, #tpu.memory_space<vmem>>) attributes {dimension_semantics = [#tpu.dimension_semantics<parallel>], iteration_bounds = array<i64: 2>, scalar_prefetch = 0 : i64, scratch_operands = 3 : i64, tpu.core_type = #tpu.core_type<tc>, window_params = [{transform_indices = @transform_0, window_bounds = array<i64: 1, 4, 16, 16>}, {transform_indices = @transform_1, window_bounds = array<i64: 294>}, {transform_indices = @transform_2, window_bounds = array<i64: 6>}, {transform_indices = @transform_3, window_bounds = array<i64: 1, 4, 16, 16>}]} {
    %c0 = arith.constant 0 : index
    %c0_0 = arith.constant 0 : index
    %c0_1 = arith.constant 0 : index
    %c0_2 = arith.constant 0 : index
    %0 = vector.load %arg1[%c0, %c0_0, %c0_1, %c0_2] : memref<1x4x16x16xf32, #tpu.memory_space<vmem>>, vector<1x4x16x16xf32>
    %1 = vector.shape_cast %0 : vector<1x4x16x16xf32> to vector<4x16x16xf32>
    %cst = arith.constant dense<0xFF800000> : vector<4x16xf32>
    %2 = vector.multi_reduction <maximumf>, %1, %cst [1] : vector<4x16x16xf32> to vector<4x16xf32>
    %cst_3 = arith.constant dense<0.000000e+00> : vector<4x16xf32>
    %3 = vector.multi_reduction <add>, %1, %cst_3 [1] : vector<4x16x16xf32> to vector<4x16xf32>
    %cst_4 = arith.constant 1.600000e+01 : f32
    %4 = vector.broadcast %cst_4 : f32 to vector<4x16xf32>
    %5 = arith.divf %3, %4 : vector<4x16xf32>
    %cst_5 = arith.constant 0.000000e+00 : f32
    %6 = vector.broadcast %cst_5 : f32 to vector<2x10x22xf32>
    %c0_6 = arith.constant 0 : index
    %c0_7 = arith.constant 0 : index
    %c0_8 = arith.constant 0 : index
    %7 = vector.load %arg5[%c0_6, %c0_7, %c0_8] : memref<2x10x22xf32, #tpu.memory_space<vmem>>, vector<2x10x22xf32>
    tpu.vector_store %arg5[%c0_6, %c0_7, %c0_8], %6 {strides = array<i32>} : memref<2x10x22xf32, #tpu.memory_space<vmem>>, vector<2x10x22xf32>,
    %c0_9 = arith.constant 0 : index
    %c3 = arith.constant 3 : index
    %c3_10 = arith.constant 3 : index
    %8 = vector.load %arg5[%c0_9, %c3, %c3_10] : memref<2x10x22xf32, #tpu.memory_space<vmem>>, vector<1x4x16xf32>
    %9 = vector.shape_cast %8 : vector<1x4x16xf32> to vector<4x16xf32>
    %10 = vector.shape_cast %2 : vector<4x16xf32> to vector<1x4x16xf32>
    tpu.vector_store %arg5[%c0_9, %c3, %c3_10], %10 {strides = array<i32>} : memref<2x10x22xf32, #tpu.memory_space<vmem>>, vector<1x4x16xf32>,
    %c1 = arith.constant 1 : index
    %c3_11 = arith.constant 3 : index
    %c3_12 = arith.constant 3 : index
    %11 = vector.load %arg5[%c1, %c3_11, %c3_12] : memref<2x10x22xf32, #tpu.memory_space<vmem>>, vector<1x4x16xf32>
    %12 = vector.shape_cast %11 : vector<1x4x16xf32> to vector<4x16xf32>
    %13 = vector.shape_cast %5 : vector<4x16xf32> to vector<1x4x16xf32>
    tpu.vector_store %arg5[%c1, %c3_11, %c3_12], %13 {strides = array<i32>} : memref<2x10x22xf32, #tpu.memory_space<vmem>>, vector<1x4x16xf32>,
    %cst_13 = arith.constant 0.000000e+00 : f32
    %14 = vector.broadcast %cst_13 : f32 to vector<4x16xf32>
    %c0_14 = arith.constant 0 : index
    %15 = memref.load %arg2[%c0_14] : memref<294xf32, #tpu.memory_space<smem>>
    %c0_15 = arith.constant 0 : index
    %c0_16 = arith.constant 0 : index
    %c0_17 = arith.constant 0 : index
    %16 = vector.load %arg5[%c0_15, %c0_16, %c0_17] : memref<2x10x22xf32, #tpu.memory_space<vmem>>, vector<1x4x16xf32>
    %17 = vector.shape_cast %16 : vector<1x4x16xf32> to vector<4x16xf32>
    %18 = vector.broadcast %15 : f32 to vector<4x16xf32>
    %19 = arith.mulf %18, %17 : vector<4x16xf32>
    %20 = arith.addf %14, %19 : vector<4x16xf32>
    %c1_18 = arith.constant 1 : index
    %21 = memref.load %arg2[%c1_18] : memref<294xf32, #tpu.memory_space<smem>>
    %c0_19 = arith.constant 0 : index
    %c0_20 = arith.constant 0 : index
    %c1_21 = arith.constant 1 : index
    %22 = vector.load %arg5[%c0_19, %c0_20, %c1_21] : memref<2x10x22xf32, #tpu.memory_space<vmem>>, vector<1x4x16xf32>
    %23 = vector.shape_cast %22 : vector<1x4x16xf32> to vector<4x16xf32>
    %24 = vector.broadcast %21 : f32 to vector<4x16xf32>
    %25 = arith.mulf %24, %23 : vector<4x16xf32>
    %26 = arith.addf %20, %25 : vector<4x16xf32>
    %c2 = arith.constant 2 : index
    %27 = memref.load %arg2[%c2] : memref<294xf32, #tpu.memory_space<smem>>
    %c0_22 = arith.constant 0 : index
    %c0_23 = arith.constant 0 : index
    %c2_24 = arith.constant 2 : index
    %28 = vector.load %arg5[%c0_22, %c0_23, %c2_24] : memref<2x10x22xf32, #tpu.memory_space<vmem>>, vector<1x4x16xf32>
    %29 = vector.shape_cast %28 : vector<1x4x16xf32> to vector<4x16xf32>
    %30 = vector.broadcast %27 : f32 to vector<4x16xf32>
    %31 = arith.mulf %30, %29 : vector<4x16xf32>
    %32 = arith.addf %26, %31 : vector<4x16xf32>
    %c3_25 = arith.constant 3 : index
    %33 = memref.load %arg2[%c3_25] : memref<294xf32, #tpu.memory_space<smem>>
    %c0_26 = arith.constant 0 : index
    %c0_27 = arith.constant 0 : index
    %c3_28 = arith.constant 3 : index
    %34 = vector.load %arg5[%c0_26, %c0_27, %c3_28] : memref<2x10x22xf32, #tpu.memory_space<vmem>>, vector<1x4x16xf32>
    %35 = vector.shape_cast %34 : vector<1x4x16xf32> to vector<4x16xf32>
    %36 = vector.broadcast %33 : f32 to vector<4x16xf32>
    %37 = arith.mulf %36, %35 : vector<4x16xf32>
    %38 = arith.addf %32, %37 : vector<4x16xf32>
    %c4 = arith.constant 4 : index
    %39 = memref.load %arg2[%c4] : memref<294xf32, #tpu.memory_space<smem>>
    %c0_29 = arith.constant 0 : index
    %c0_30 = arith.constant 0 : index
    %c4_31 = arith.constant 4 : index
    %40 = vector.load %arg5[%c0_29, %c0_30, %c4_31] : memref<2x10x22xf32, #tpu.memory_space<vmem>>, vector<1x4x16xf32>
    %41 = vector.shape_cast %40 : vector<1x4x16xf32> to vector<4x16xf32>
    %42 = vector.broadcast %39 : f32 to vector<4x16xf32>
    %43 = arith.mulf %42, %41 : vector<4x16xf32>
    %44 = arith.addf %38, %43 : vector<4x16xf32>
    %c5 = arith.constant 5 : index
    %45 = memref.load %arg2[%c5] : memref<294xf32, #tpu.memory_space<smem>>
    %c0_32 = arith.constant 0 : index
    %c0_33 = arith.constant 0 : index
    %c5_34 = arith.constant 5 : index
    %46 = vector.load %arg5[%c0_32, %c0_33, %c5_34] : memref<2x10x22xf32, #tpu.memory_space<vmem>>, vector<1x4x16xf32>
    %47 = vector.shape_cast %46 : vector<1x4x16xf32> to vector<4x16xf32>
    %48 = vector.broadcast %45 : f32 to vector<4x16xf32>
    %49 = arith.mulf %48, %47 : vector<4x16xf32>
    %50 = arith.addf %44, %49 : vector<4x16xf32>
    %c6 = arith.constant 6 : index
    %51 = memref.load %arg2[%c6] : memref<294xf32, #tpu.memory_space<smem>>
    %c0_35 = arith.constant 0 : index
    %c0_36 = arith.constant 0 : index
    %c6_37 = arith.constant 6 : index
    %52 = vector.load %arg5[%c0_35, %c0_36, %c6_37] : memref<2x10x22xf32, #tpu.memory_space<vmem>>, vector<1x4x16xf32>
    %53 = vector.shape_cast %52 : vector<1x4x16xf32> to vector<4x16xf32>
    %54 = vector.broadcast %51 : f32 to vector<4x16xf32>
    %55 = arith.mulf %54, %53 : vector<4x16xf32>
    %56 = arith.addf %50, %55 : vector<4x16xf32>
    %c7 = arith.constant 7 : index
    %57 = memref.load %arg2[%c7] : memref<294xf32, #tpu.memory_space<smem>>
    %c0_38 = arith.constant 0 : index
    %c1_39 = arith.constant 1 : index
    %c0_40 = arith.constant 0 : index
    %58 = vector.load %arg5[%c0_38, %c1_39, %c0_40] : memref<2x10x22xf32, #tpu.memory_space<vmem>>, vector<1x4x16xf32>
    %59 = vector.shape_cast %58 : vector<1x4x16xf32> to vector<4x16xf32>
    %60 = vector.broadcast %57 : f32 to vector<4x16xf32>
    %61 = arith.mulf %60, %59 : vector<4x16xf32>
    %62 = arith.addf %56, %61 : vector<4x16xf32>
    %c8 = arith.constant 8 : index
    %63 = memref.load %arg2[%c8] : memref<294xf32, #tpu.memory_space<smem>>
    %c0_41 = arith.constant 0 : index
    %c1_42 = arith.constant 1 : index
    %c1_43 = arith.constant 1 : index
    %64 = vector.load %arg5[%c0_41, %c1_42, %c1_43] : memref<2x10x22xf32, #tpu.memory_space<vmem>>, vector<1x4x16xf32>
    %65 = vector.shape_cast %64 : vector<1x4x16xf32> to vector<4x16xf32>
    %66 = vector.broadcast %63 : f32 to vector<4x16xf32>
    %67 = arith.mulf %66, %65 : vector<4x16xf32>
    %68 = arith.addf %62, %67 : vector<4x16xf32>
    %c9 = arith.constant 9 : index
    %69 = memref.load %arg2[%c9] : memref<294xf32, #tpu.memory_space<smem>>
    %c0_44 = arith.constant 0 : index
    %c1_45 = arith.constant 1 : index
    %c2_46 = arith.constant 2 : index
    %70 = vector.load %arg5[%c0_44, %c1_45, %c2_46] : memref<2x10x22xf32, #tpu.memory_space<vmem>>, vector<1x4x16xf32>
    %71 = vector.shape_cast %70 : vector<1x4x16xf32> to vector<4x16xf32>
    %72 = vector.broadcast %69 : f32 to vector<4x16xf32>
    %73 = arith.mulf %72, %71 : vector<4x16xf32>
    %74 = arith.addf %68, %73 : vector<4x16xf32>
    %c10 = arith.constant 10 : index
    %75 = memref.load %arg2[%c10] : memref<294xf32, #tpu.memory_space<smem>>
    %c0_47 = arith.constant 0 : index
    %c1_48 = arith.constant 1 : index
    %c3_49 = arith.constant 3 : index
    %76 = vector.load %arg5[%c0_47, %c1_48, %c3_49] : memref<2x10x22xf32, #tpu.memory_space<vmem>>, vector<1x4x16xf32>
    %77 = vector.shape_cast %76 : vector<1x4x16xf32> to vector<4x16xf32>
    %78 = vector.broadcast %75 : f32 to vector<4x16xf32>
    %79 = arith.mulf %78, %77 : vector<4x16xf32>
    %80 = arith.addf %74, %79 : vector<4x16xf32>
    %c11 = arith.constant 11 : index
    %81 = memref.load %arg2[%c11] : memref<294xf32, #tpu.memory_space<smem>>
    %c0_50 = arith.constant 0 : index
    %c1_51 = arith.constant 1 : index
    %c4_52 = arith.constant 4 : index
    %82 = vector.load %arg5[%c0_50, %c1_51, %c4_52] : memref<2x10x22xf32, #tpu.memory_space<vmem>>, vector<1x4x16xf32>
    %83 = vector.shape_cast %82 : vector<1x4x16xf32> to vector<4x16xf32>
    %84 = vector.broadcast %81 : f32 to vector<4x16xf32>
    %85 = arith.mulf %84, %83 : vector<4x16xf32>
    %86 = arith.addf %80, %85 : vector<4x16xf32>
    %c12 = arith.constant 12 : index
    %87 = memref.load %arg2[%c12] : memref<294xf32, #tpu.memory_space<smem>>
    %c0_53 = arith.constant 0 : index
    %c1_54 = arith.constant 1 : index
    %c5_55 = arith.constant 5 : index
    %88 = vector.load %arg5[%c0_53, %c1_54, %c5_55] : memref<2x10x22xf32, #tpu.memory_space<vmem>>, vector<1x4x16xf32>
    %89 = vector.shape_cast %88 : vector<1x4x16xf32> to vector<4x16xf32>
    %90 = vector.broadcast %87 : f32 to vector<4x16xf32>
    %91 = arith.mulf %90, %89 : vector<4x16xf32>
    %92 = arith.addf %86, %91 : vector<4x16xf32>
    %c13 = arith.constant 13 : index
    %93 = memref.load %arg2[%c13] : memref<294xf32, #tpu.memory_space<smem>>
    %c0_56 = arith.constant 0 : index
    %c1_57 = arith.constant 1 : index
    %c6_58 = arith.constant 6 : index
    %94 = vector.load %arg5[%c0_56, %c1_57, %c6_58] : memref<2x10x22xf32, #tpu.memory_space<vmem>>, vector<1x4x16xf32>
    %95 = vector.shape_cast %94 : vector<1x4x16xf32> to vector<4x16xf32>
    %96 = vector.broadcast %93 : f32 to vector<4x16xf32>
    %97 = arith.mulf %96, %95 : vector<4x16xf32>
    %98 = arith.addf %92, %97 : vector<4x16xf32>
    %c14 = arith.constant 14 : index
    %99 = memref.load %arg2[%c14] : memref<294xf32, #tpu.memory_space<smem>>
    %c0_59 = arith.constant 0 : index
    %c2_60 = arith.constant 2 : index
    %c0_61 = arith.constant 0 : index
    %100 = vector.load %arg5[%c0_59, %c2_60, %c0_61] : memref<2x10x22xf32, #tpu.memory_space<vmem>>, vector<1x4x16xf32>
    %101 = vector.shape_cast %100 : vector<1x4x16xf32> to vector<4x16xf32>
    %102 = vector.broadcast %99 : f32 to vector<4x16xf32>
    %103 = arith.mulf %102, %101 : vector<4x16xf32>
    %104 = arith.addf %98, %103 : vector<4x16xf32>
    %c15 = arith.constant 15 : index
    %105 = memref.load %arg2[%c15] : memref<294xf32, #tpu.memory_space<smem>>
    %c0_62 = arith.constant 0 : index
    %c2_63 = arith.constant 2 : index
    %c1_64 = arith.constant 1 : index
    %106 = vector.load %arg5[%c0_62, %c2_63, %c1_64] : memref<2x10x22xf32, #tpu.memory_space<vmem>>, vector<1x4x16xf32>
    %107 = vector.shape_cast %106 : vector<1x4x16xf32> to vector<4x16xf32>
    %108 = vector.broadcast %105 : f32 to vector<4x16xf32>
    %109 = arith.mulf %108, %107 : vector<4x16xf32>
    %110 = arith.addf %104, %109 : vector<4x16xf32>
    %c16 = arith.constant 16 : index
    %111 = memref.load %arg2[%c16] : memref<294xf32, #tpu.memory_space<smem>>
    %c0_65 = arith.constant 0 : index
    %c2_66 = arith.constant 2 : index
    %c2_67 = arith.constant 2 : index
    %112 = vector.load %arg5[%c0_65, %c2_66, %c2_67] : memref<2x10x22xf32, #tpu.memory_space<vmem>>, vector<1x4x16xf32>
    %113 = vector.shape_cast %112 : vector<1x4x16xf32> to vector<4x16xf32>
    %114 = vector.broadcast %111 : f32 to vector<4x16xf32>
    %115 = arith.mulf %114, %113 : vector<4x16xf32>
    %116 = arith.addf %110, %115 : vector<4x16xf32>
    %c17 = arith.constant 17 : index
    %117 = memref.load %arg2[%c17] : memref<294xf32, #tpu.memory_space<smem>>
    %c0_68 = arith.constant 0 : index
    %c2_69 = arith.constant 2 : index
    %c3_70 = arith.constant 3 : index
    %118 = vector.load %arg5[%c0_68, %c2_69, %c3_70] : memref<2x10x22xf32, #tpu.memory_space<vmem>>, vector<1x4x16xf32>
    %119 = vector.shape_cast %118 : vector<1x4x16xf32> to vector<4x16xf32>
    %120 = vector.broadcast %117 : f32 to vector<4x16xf32>
    %121 = arith.mulf %120, %119 : vector<4x16xf32>
    %122 = arith.addf %116, %121 : vector<4x16xf32>
    %c18 = arith.constant 18 : index
    %123 = memref.load %arg2[%c18] : memref<294xf32, #tpu.memory_space<smem>>
    %c0_71 = arith.constant 0 : index
    %c2_72 = arith.constant 2 : index
    %c4_73 = arith.constant 4 : index
    %124 = vector.load %arg5[%c0_71, %c2_72, %c4_73] : memref<2x10x22xf32, #tpu.memory_space<vmem>>, vector<1x4x16xf32>
    %125 = vector.shape_cast %124 : vector<1x4x16xf32> to vector<4x16xf32>
    %126 = vector.broadcast %123 : f32 to vector<4x16xf32>
    %127 = arith.mulf %126, %125 : vector<4x16xf32>
    %128 = arith.addf %122, %127 : vector<4x16xf32>
    %c19 = arith.constant 19 : index
    %129 = memref.load %arg2[%c19] : memref<294xf32, #tpu.memory_space<smem>>
    %c0_74 = arith.constant 0 : index
    %c2_75 = arith.constant 2 : index
    %c5_76 = arith.constant 5 : index
    %130 = vector.load %arg5[%c0_74, %c2_75, %c5_76] : memref<2x10x22xf32, #tpu.memory_space<vmem>>, vector<1x4x16xf32>
    %131 = vector.shape_cast %130 : vector<1x4x16xf32> to vector<4x16xf32>
    %132 = vector.broadcast %129 : f32 to vector<4x16xf32>
    %133 = arith.mulf %132, %131 : vector<4x16xf32>
    %134 = arith.addf %128, %133 : vector<4x16xf32>
    %c20 = arith.constant 20 : index
    %135 = memref.load %arg2[%c20] : memref<294xf32, #tpu.memory_space<smem>>
    %c0_77 = arith.constant 0 : index
    %c2_78 = arith.constant 2 : index
    %c6_79 = arith.constant 6 : index
    %136 = vector.load %arg5[%c0_77, %c2_78, %c6_79] : memref<2x10x22xf32, #tpu.memory_space<vmem>>, vector<1x4x16xf32>
    %137 = vector.shape_cast %136 : vector<1x4x16xf32> to vector<4x16xf32>
    %138 = vector.broadcast %135 : f32 to vector<4x16xf32>
    %139 = arith.mulf %138, %137 : vector<4x16xf32>
    %140 = arith.addf %134, %139 : vector<4x16xf32>
    %c21 = arith.constant 21 : index
    %141 = memref.load %arg2[%c21] : memref<294xf32, #tpu.memory_space<smem>>
    %c0_80 = arith.constant 0 : index
    %c3_81 = arith.constant 3 : index
    %c0_82 = arith.constant 0 : index
    %142 = vector.load %arg5[%c0_80, %c3_81, %c0_82] : memref<2x10x22xf32, #tpu.memory_space<vmem>>, vector<1x4x16xf32>
    %143 = vector.shape_cast %142 : vector<1x4x16xf32> to vector<4x16xf32>
    %144 = vector.broadcast %141 : f32 to vector<4x16xf32>
    %145 = arith.mulf %144, %143 : vector<4x16xf32>
    %146 = arith.addf %140, %145 : vector<4x16xf32>
    %c22 = arith.constant 22 : index
    %147 = memref.load %arg2[%c22] : memref<294xf32, #tpu.memory_space<smem>>
    %c0_83 = arith.constant 0 : index
    %c3_84 = arith.constant 3 : index
    %c1_85 = arith.constant 1 : index
    %148 = vector.load %arg5[%c0_83, %c3_84, %c1_85] : memref<2x10x22xf32, #tpu.memory_space<vmem>>, vector<1x4x16xf32>
    %149 = vector.shape_cast %148 : vector<1x4x16xf32> to vector<4x16xf32>
    %150 = vector.broadcast %147 : f32 to vector<4x16xf32>
    %151 = arith.mulf %150, %149 : vector<4x16xf32>
    %152 = arith.addf %146, %151 : vector<4x16xf32>
    %c23 = arith.constant 23 : index
    %153 = memref.load %arg2[%c23] : memref<294xf32, #tpu.memory_space<smem>>
    %c0_86 = arith.constant 0 : index
    %c3_87 = arith.constant 3 : index
    %c2_88 = arith.constant 2 : index
    %154 = vector.load %arg5[%c0_86, %c3_87, %c2_88] : memref<2x10x22xf32, #tpu.memory_space<vmem>>, vector<1x4x16xf32>
    %155 = vector.shape_cast %154 : vector<1x4x16xf32> to vector<4x16xf32>
    %156 = vector.broadcast %153 : f32 to vector<4x16xf32>
    %157 = arith.mulf %156, %155 : vector<4x16xf32>
    %158 = arith.addf %152, %157 : vector<4x16xf32>
    %c24 = arith.constant 24 : index
    %159 = memref.load %arg2[%c24] : memref<294xf32, #tpu.memory_space<smem>>
    %c0_89 = arith.constant 0 : index
    %c3_90 = arith.constant 3 : index
    %c3_91 = arith.constant 3 : index
    %160 = vector.load %arg5[%c0_89, %c3_90, %c3_91] : memref<2x10x22xf32, #tpu.memory_space<vmem>>, vector<1x4x16xf32>
    %161 = vector.shape_cast %160 : vector<1x4x16xf32> to vector<4x16xf32>
    %162 = vector.broadcast %159 : f32 to vector<4x16xf32>
    %163 = arith.mulf %162, %161 : vector<4x16xf32>
    %164 = arith.addf %158, %163 : vector<4x16xf32>
    %c25 = arith.constant 25 : index
    %165 = memref.load %arg2[%c25] : memref<294xf32, #tpu.memory_space<smem>>
    %c0_92 = arith.constant 0 : index
    %c3_93 = arith.constant 3 : index
    %c4_94 = arith.constant 4 : index
    %166 = vector.load %arg5[%c0_92, %c3_93, %c4_94] : memref<2x10x22xf32, #tpu.memory_space<vmem>>, vector<1x4x16xf32>
    %167 = vector.shape_cast %166 : vector<1x4x16xf32> to vector<4x16xf32>
    %168 = vector.broadcast %165 : f32 to vector<4x16xf32>
    %169 = arith.mulf %168, %167 : vector<4x16xf32>
    %170 = arith.addf %164, %169 : vector<4x16xf32>
    %c26 = arith.constant 26 : index
    %171 = memref.load %arg2[%c26] : memref<294xf32, #tpu.memory_space<smem>>
    %c0_95 = arith.constant 0 : index
    %c3_96 = arith.constant 3 : index
    %c5_97 = arith.constant 5 : index
    %172 = vector.load %arg5[%c0_95, %c3_96, %c5_97] : memref<2x10x22xf32, #tpu.memory_space<vmem>>, vector<1x4x16xf32>
    %173 = vector.shape_cast %172 : vector<1x4x16xf32> to vector<4x16xf32>
    %174 = vector.broadcast %171 : f32 to vector<4x16xf32>
    %175 = arith.mulf %174, %173 : vector<4x16xf32>
    %176 = arith.addf %170, %175 : vector<4x16xf32>
    %c27 = arith.constant 27 : index
    %177 = memref.load %arg2[%c27] : memref<294xf32, #tpu.memory_space<smem>>
    %c0_98 = arith.constant 0 : index
    %c3_99 = arith.constant 3 : index
    %c6_100 = arith.constant 6 : index
    %178 = vector.load %arg5[%c0_98, %c3_99, %c6_100] : memref<2x10x22xf32, #tpu.memory_space<vmem>>, vector<1x4x16xf32>
    %179 = vector.shape_cast %178 : vector<1x4x16xf32> to vector<4x16xf32>
    %180 = vector.broadcast %177 : f32 to vector<4x16xf32>
    %181 = arith.mulf %180, %179 : vector<4x16xf32>
    %182 = arith.addf %176, %181 : vector<4x16xf32>
    %c28 = arith.constant 28 : index
    %183 = memref.load %arg2[%c28] : memref<294xf32, #tpu.memory_space<smem>>
    %c0_101 = arith.constant 0 : index
    %c4_102 = arith.constant 4 : index
    %c0_103 = arith.constant 0 : index
    %184 = vector.load %arg5[%c0_101, %c4_102, %c0_103] : memref<2x10x22xf32, #tpu.memory_space<vmem>>, vector<1x4x16xf32>
    %185 = vector.shape_cast %184 : vector<1x4x16xf32> to vector<4x16xf32>
    %186 = vector.broadcast %183 : f32 to vector<4x16xf32>
    %187 = arith.mulf %186, %185 : vector<4x16xf32>
    %188 = arith.addf %182, %187 : vector<4x16xf32>
    %c29 = arith.constant 29 : index
    %189 = memref.load %arg2[%c29] : memref<294xf32, #tpu.memory_space<smem>>
    %c0_104 = arith.constant 0 : index
    %c4_105 = arith.constant 4 : index
    %c1_106 = arith.constant 1 : index
    %190 = vector.load %arg5[%c0_104, %c4_105, %c1_106] : memref<2x10x22xf32, #tpu.memory_space<vmem>>, vector<1x4x16xf32>
    %191 = vector.shape_cast %190 : vector<1x4x16xf32> to vector<4x16xf32>
    %192 = vector.broadcast %189 : f32 to vector<4x16xf32>
    %193 = arith.mulf %192, %191 : vector<4x16xf32>
    %194 = arith.addf %188, %193 : vector<4x16xf32>
    %c30 = arith.constant 30 : index
    %195 = memref.load %arg2[%c30] : memref<294xf32, #tpu.memory_space<smem>>
    %c0_107 = arith.constant 0 : index
    %c4_108 = arith.constant 4 : index
    %c2_109 = arith.constant 2 : index
    %196 = vector.load %arg5[%c0_107, %c4_108, %c2_109] : memref<2x10x22xf32, #tpu.memory_space<vmem>>, vector<1x4x16xf32>
    %197 = vector.shape_cast %196 : vector<1x4x16xf32> to vector<4x16xf32>
    %198 = vector.broadcast %195 : f32 to vector<4x16xf32>
    %199 = arith.mulf %198, %197 : vector<4x16xf32>
    %200 = arith.addf %194, %199 : vector<4x16xf32>
    %c31 = arith.constant 31 : index
    %201 = memref.load %arg2[%c31] : memref<294xf32, #tpu.memory_space<smem>>
    %c0_110 = arith.constant 0 : index
    %c4_111 = arith.constant 4 : index
    %c3_112 = arith.constant 3 : index
    %202 = vector.load %arg5[%c0_110, %c4_111, %c3_112] : memref<2x10x22xf32, #tpu.memory_space<vmem>>, vector<1x4x16xf32>
    %203 = vector.shape_cast %202 : vector<1x4x16xf32> to vector<4x16xf32>
    %204 = vector.broadcast %201 : f32 to vector<4x16xf32>
    %205 = arith.mulf %204, %203 : vector<4x16xf32>
    %206 = arith.addf %200, %205 : vector<4x16xf32>
    %c32 = arith.constant 32 : index
    %207 = memref.load %arg2[%c32] : memref<294xf32, #tpu.memory_space<smem>>
    %c0_113 = arith.constant 0 : index
    %c4_114 = arith.constant 4 : index
    %c4_115 = arith.constant 4 : index
    %208 = vector.load %arg5[%c0_113, %c4_114, %c4_115] : memref<2x10x22xf32, #tpu.memory_space<vmem>>, vector<1x4x16xf32>
    %209 = vector.shape_cast %208 : vector<1x4x16xf32> to vector<4x16xf32>
    %210 = vector.broadcast %207 : f32 to vector<4x16xf32>
    %211 = arith.mulf %210, %209 : vector<4x16xf32>
    %212 = arith.addf %206, %211 : vector<4x16xf32>
    %c33 = arith.constant 33 : index
    %213 = memref.load %arg2[%c33] : memref<294xf32, #tpu.memory_space<smem>>
    %c0_116 = arith.constant 0 : index
    %c4_117 = arith.constant 4 : index
    %c5_118 = arith.constant 5 : index
    %214 = vector.load %arg5[%c0_116, %c4_117, %c5_118] : memref<2x10x22xf32, #tpu.memory_space<vmem>>, vector<1x4x16xf32>
    %215 = vector.shape_cast %214 : vector<1x4x16xf32> to vector<4x16xf32>
    %216 = vector.broadcast %213 : f32 to vector<4x16xf32>
    %217 = arith.mulf %216, %215 : vector<4x16xf32>
    %218 = arith.addf %212, %217 : vector<4x16xf32>
    %c34 = arith.constant 34 : index
    %219 = memref.load %arg2[%c34] : memref<294xf32, #tpu.memory_space<smem>>
    %c0_119 = arith.constant 0 : index
    %c4_120 = arith.constant 4 : index
    %c6_121 = arith.constant 6 : index
    %220 = vector.load %arg5[%c0_119, %c4_120, %c6_121] : memref<2x10x22xf32, #tpu.memory_space<vmem>>, vector<1x4x16xf32>
    %221 = vector.shape_cast %220 : vector<1x4x16xf32> to vector<4x16xf32>
    %222 = vector.broadcast %219 : f32 to vector<4x16xf32>
    %223 = arith.mulf %222, %221 : vector<4x16xf32>
    %224 = arith.addf %218, %223 : vector<4x16xf32>
    %c35 = arith.constant 35 : index
    %225 = memref.load %arg2[%c35] : memref<294xf32, #tpu.memory_space<smem>>
    %c0_122 = arith.constant 0 : index
    %c5_123 = arith.constant 5 : index
    %c0_124 = arith.constant 0 : index
    %226 = vector.load %arg5[%c0_122, %c5_123, %c0_124] : memref<2x10x22xf32, #tpu.memory_space<vmem>>, vector<1x4x16xf32>
    %227 = vector.shape_cast %226 : vector<1x4x16xf32> to vector<4x16xf32>
    %228 = vector.broadcast %225 : f32 to vector<4x16xf32>
    %229 = arith.mulf %228, %227 : vector<4x16xf32>
    %230 = arith.addf %224, %229 : vector<4x16xf32>
    %c36 = arith.constant 36 : index
    %231 = memref.load %arg2[%c36] : memref<294xf32, #tpu.memory_space<smem>>
    %c0_125 = arith.constant 0 : index
    %c5_126 = arith.constant 5 : index
    %c1_127 = arith.constant 1 : index
    %232 = vector.load %arg5[%c0_125, %c5_126, %c1_127] : memref<2x10x22xf32, #tpu.memory_space<vmem>>, vector<1x4x16xf32>
    %233 = vector.shape_cast %232 : vector<1x4x16xf32> to vector<4x16xf32>
    %234 = vector.broadcast %231 : f32 to vector<4x16xf32>
    %235 = arith.mulf %234, %233 : vector<4x16xf32>
    %236 = arith.addf %230, %235 : vector<4x16xf32>
    %c37 = arith.constant 37 : index
    %237 = memref.load %arg2[%c37] : memref<294xf32, #tpu.memory_space<smem>>
    %c0_128 = arith.constant 0 : index
    %c5_129 = arith.constant 5 : index
    %c2_130 = arith.constant 2 : index
    %238 = vector.load %arg5[%c0_128, %c5_129, %c2_130] : memref<2x10x22xf32, #tpu.memory_space<vmem>>, vector<1x4x16xf32>
    %239 = vector.shape_cast %238 : vector<1x4x16xf32> to vector<4x16xf32>
    %240 = vector.broadcast %237 : f32 to vector<4x16xf32>
    %241 = arith.mulf %240, %239 : vector<4x16xf32>
    %242 = arith.addf %236, %241 : vector<4x16xf32>
    %c38 = arith.constant 38 : index
    %243 = memref.load %arg2[%c38] : memref<294xf32, #tpu.memory_space<smem>>
    %c0_131 = arith.constant 0 : index
    %c5_132 = arith.constant 5 : index
    %c3_133 = arith.constant 3 : index
    %244 = vector.load %arg5[%c0_131, %c5_132, %c3_133] : memref<2x10x22xf32, #tpu.memory_space<vmem>>, vector<1x4x16xf32>
    %245 = vector.shape_cast %244 : vector<1x4x16xf32> to vector<4x16xf32>
    %246 = vector.broadcast %243 : f32 to vector<4x16xf32>
    %247 = arith.mulf %246, %245 : vector<4x16xf32>
    %248 = arith.addf %242, %247 : vector<4x16xf32>
    %c39 = arith.constant 39 : index
    %249 = memref.load %arg2[%c39] : memref<294xf32, #tpu.memory_space<smem>>
    %c0_134 = arith.constant 0 : index
    %c5_135 = arith.constant 5 : index
    %c4_136 = arith.constant 4 : index
    %250 = vector.load %arg5[%c0_134, %c5_135, %c4_136] : memref<2x10x22xf32, #tpu.memory_space<vmem>>, vector<1x4x16xf32>
    %251 = vector.shape_cast %250 : vector<1x4x16xf32> to vector<4x16xf32>
    %252 = vector.broadcast %249 : f32 to vector<4x16xf32>
    %253 = arith.mulf %252, %251 : vector<4x16xf32>
    %254 = arith.addf %248, %253 : vector<4x16xf32>
    %c40 = arith.constant 40 : index
    %255 = memref.load %arg2[%c40] : memref<294xf32, #tpu.memory_space<smem>>
    %c0_137 = arith.constant 0 : index
    %c5_138 = arith.constant 5 : index
    %c5_139 = arith.constant 5 : index
    %256 = vector.load %arg5[%c0_137, %c5_138, %c5_139] : memref<2x10x22xf32, #tpu.memory_space<vmem>>, vector<1x4x16xf32>
    %257 = vector.shape_cast %256 : vector<1x4x16xf32> to vector<4x16xf32>
    %258 = vector.broadcast %255 : f32 to vector<4x16xf32>
    %259 = arith.mulf %258, %257 : vector<4x16xf32>
    %260 = arith.addf %254, %259 : vector<4x16xf32>
    %c41 = arith.constant 41 : index
    %261 = memref.load %arg2[%c41] : memref<294xf32, #tpu.memory_space<smem>>
    %c0_140 = arith.constant 0 : index
    %c5_141 = arith.constant 5 : index
    %c6_142 = arith.constant 6 : index
    %262 = vector.load %arg5[%c0_140, %c5_141, %c6_142] : memref<2x10x22xf32, #tpu.memory_space<vmem>>, vector<1x4x16xf32>
    %263 = vector.shape_cast %262 : vector<1x4x16xf32> to vector<4x16xf32>
    %264 = vector.broadcast %261 : f32 to vector<4x16xf32>
    %265 = arith.mulf %264, %263 : vector<4x16xf32>
    %266 = arith.addf %260, %265 : vector<4x16xf32>
    %c42 = arith.constant 42 : index
    %267 = memref.load %arg2[%c42] : memref<294xf32, #tpu.memory_space<smem>>
    %c0_143 = arith.constant 0 : index
    %c6_144 = arith.constant 6 : index
    %c0_145 = arith.constant 0 : index
    %268 = vector.load %arg5[%c0_143, %c6_144, %c0_145] : memref<2x10x22xf32, #tpu.memory_space<vmem>>, vector<1x4x16xf32>
    %269 = vector.shape_cast %268 : vector<1x4x16xf32> to vector<4x16xf32>
    %270 = vector.broadcast %267 : f32 to vector<4x16xf32>
    %271 = arith.mulf %270, %269 : vector<4x16xf32>
    %272 = arith.addf %266, %271 : vector<4x16xf32>
    %c43 = arith.constant 43 : index
    %273 = memref.load %arg2[%c43] : memref<294xf32, #tpu.memory_space<smem>>
    %c0_146 = arith.constant 0 : index
    %c6_147 = arith.constant 6 : index
    %c1_148 = arith.constant 1 : index
    %274 = vector.load %arg5[%c0_146, %c6_147, %c1_148] : memref<2x10x22xf32, #tpu.memory_space<vmem>>, vector<1x4x16xf32>
    %275 = vector.shape_cast %274 : vector<1x4x16xf32> to vector<4x16xf32>
    %276 = vector.broadcast %273 : f32 to vector<4x16xf32>
    %277 = arith.mulf %276, %275 : vector<4x16xf32>
    %278 = arith.addf %272, %277 : vector<4x16xf32>
    %c44 = arith.constant 44 : index
    %279 = memref.load %arg2[%c44] : memref<294xf32, #tpu.memory_space<smem>>
    %c0_149 = arith.constant 0 : index
    %c6_150 = arith.constant 6 : index
    %c2_151 = arith.constant 2 : index
    %280 = vector.load %arg5[%c0_149, %c6_150, %c2_151] : memref<2x10x22xf32, #tpu.memory_space<vmem>>, vector<1x4x16xf32>
    %281 = vector.shape_cast %280 : vector<1x4x16xf32> to vector<4x16xf32>
    %282 = vector.broadcast %279 : f32 to vector<4x16xf32>
    %283 = arith.mulf %282, %281 : vector<4x16xf32>
    %284 = arith.addf %278, %283 : vector<4x16xf32>
    %c45 = arith.constant 45 : index
    %285 = memref.load %arg2[%c45] : memref<294xf32, #tpu.memory_space<smem>>
    %c0_152 = arith.constant 0 : index
    %c6_153 = arith.constant 6 : index
    %c3_154 = arith.constant 3 : index
    %286 = vector.load %arg5[%c0_152, %c6_153, %c3_154] : memref<2x10x22xf32, #tpu.memory_space<vmem>>, vector<1x4x16xf32>
    %287 = vector.shape_cast %286 : vector<1x4x16xf32> to vector<4x16xf32>
    %288 = vector.broadcast %285 : f32 to vector<4x16xf32>
    %289 = arith.mulf %288, %287 : vector<4x16xf32>
    %290 = arith.addf %284, %289 : vector<4x16xf32>
    %c46 = arith.constant 46 : index
    %291 = memref.load %arg2[%c46] : memref<294xf32, #tpu.memory_space<smem>>
    %c0_155 = arith.constant 0 : index
    %c6_156 = arith.constant 6 : index
    %c4_157 = arith.constant 4 : index
    %292 = vector.load %arg5[%c0_155, %c6_156, %c4_157] : memref<2x10x22xf32, #tpu.memory_space<vmem>>, vector<1x4x16xf32>
    %293 = vector.shape_cast %292 : vector<1x4x16xf32> to vector<4x16xf32>
    %294 = vector.broadcast %291 : f32 to vector<4x16xf32>
    %295 = arith.mulf %294, %293 : vector<4x16xf32>
    %296 = arith.addf %290, %295 : vector<4x16xf32>
    %c47 = arith.constant 47 : index
    %297 = memref.load %arg2[%c47] : memref<294xf32, #tpu.memory_space<smem>>
    %c0_158 = arith.constant 0 : index
    %c6_159 = arith.constant 6 : index
    %c5_160 = arith.constant 5 : index
    %298 = vector.load %arg5[%c0_158, %c6_159, %c5_160] : memref<2x10x22xf32, #tpu.memory_space<vmem>>, vector<1x4x16xf32>
    %299 = vector.shape_cast %298 : vector<1x4x16xf32> to vector<4x16xf32>
    %300 = vector.broadcast %297 : f32 to vector<4x16xf32>
    %301 = arith.mulf %300, %299 : vector<4x16xf32>
    %302 = arith.addf %296, %301 : vector<4x16xf32>
    %c48 = arith.constant 48 : index
    %303 = memref.load %arg2[%c48] : memref<294xf32, #tpu.memory_space<smem>>
    %c0_161 = arith.constant 0 : index
    %c6_162 = arith.constant 6 : index
    %c6_163 = arith.constant 6 : index
    %304 = vector.load %arg5[%c0_161, %c6_162, %c6_163] : memref<2x10x22xf32, #tpu.memory_space<vmem>>, vector<1x4x16xf32>
    %305 = vector.shape_cast %304 : vector<1x4x16xf32> to vector<4x16xf32>
    %306 = vector.broadcast %303 : f32 to vector<4x16xf32>
    %307 = arith.mulf %306, %305 : vector<4x16xf32>
    %308 = arith.addf %302, %307 : vector<4x16xf32>
    %c49 = arith.constant 49 : index
    %309 = memref.load %arg2[%c49] : memref<294xf32, #tpu.memory_space<smem>>
    %c1_164 = arith.constant 1 : index
    %c0_165 = arith.constant 0 : index
    %c0_166 = arith.constant 0 : index
    %310 = vector.load %arg5[%c1_164, %c0_165, %c0_166] : memref<2x10x22xf32, #tpu.memory_space<vmem>>, vector<1x4x16xf32>
    %311 = vector.shape_cast %310 : vector<1x4x16xf32> to vector<4x16xf32>
    %312 = vector.broadcast %309 : f32 to vector<4x16xf32>
    %313 = arith.mulf %312, %311 : vector<4x16xf32>
    %314 = arith.addf %308, %313 : vector<4x16xf32>
    %c50 = arith.constant 50 : index
    %315 = memref.load %arg2[%c50] : memref<294xf32, #tpu.memory_space<smem>>
    %c1_167 = arith.constant 1 : index
    %c0_168 = arith.constant 0 : index
    %c1_169 = arith.constant 1 : index
    %316 = vector.load %arg5[%c1_167, %c0_168, %c1_169] : memref<2x10x22xf32, #tpu.memory_space<vmem>>, vector<1x4x16xf32>
    %317 = vector.shape_cast %316 : vector<1x4x16xf32> to vector<4x16xf32>
    %318 = vector.broadcast %315 : f32 to vector<4x16xf32>
    %319 = arith.mulf %318, %317 : vector<4x16xf32>
    %320 = arith.addf %314, %319 : vector<4x16xf32>
    %c51 = arith.constant 51 : index
    %321 = memref.load %arg2[%c51] : memref<294xf32, #tpu.memory_space<smem>>
    %c1_170 = arith.constant 1 : index
    %c0_171 = arith.constant 0 : index
    %c2_172 = arith.constant 2 : index
    %322 = vector.load %arg5[%c1_170, %c0_171, %c2_172] : memref<2x10x22xf32, #tpu.memory_space<vmem>>, vector<1x4x16xf32>
    %323 = vector.shape_cast %322 : vector<1x4x16xf32> to vector<4x16xf32>
    %324 = vector.broadcast %321 : f32 to vector<4x16xf32>
    %325 = arith.mulf %324, %323 : vector<4x16xf32>
    %326 = arith.addf %320, %325 : vector<4x16xf32>
    %c52 = arith.constant 52 : index
    %327 = memref.load %arg2[%c52] : memref<294xf32, #tpu.memory_space<smem>>
    %c1_173 = arith.constant 1 : index
    %c0_174 = arith.constant 0 : index
    %c3_175 = arith.constant 3 : index
    %328 = vector.load %arg5[%c1_173, %c0_174, %c3_175] : memref<2x10x22xf32, #tpu.memory_space<vmem>>, vector<1x4x16xf32>
    %329 = vector.shape_cast %328 : vector<1x4x16xf32> to vector<4x16xf32>
    %330 = vector.broadcast %327 : f32 to vector<4x16xf32>
    %331 = arith.mulf %330, %329 : vector<4x16xf32>
    %332 = arith.addf %326, %331 : vector<4x16xf32>
    %c53 = arith.constant 53 : index
    %333 = memref.load %arg2[%c53] : memref<294xf32, #tpu.memory_space<smem>>
    %c1_176 = arith.constant 1 : index
    %c0_177 = arith.constant 0 : index
    %c4_178 = arith.constant 4 : index
    %334 = vector.load %arg5[%c1_176, %c0_177, %c4_178] : memref<2x10x22xf32, #tpu.memory_space<vmem>>, vector<1x4x16xf32>
    %335 = vector.shape_cast %334 : vector<1x4x16xf32> to vector<4x16xf32>
    %336 = vector.broadcast %333 : f32 to vector<4x16xf32>
    %337 = arith.mulf %336, %335 : vector<4x16xf32>
    %338 = arith.addf %332, %337 : vector<4x16xf32>
    %c54 = arith.constant 54 : index
    %339 = memref.load %arg2[%c54] : memref<294xf32, #tpu.memory_space<smem>>
    %c1_179 = arith.constant 1 : index
    %c0_180 = arith.constant 0 : index
    %c5_181 = arith.constant 5 : index
    %340 = vector.load %arg5[%c1_179, %c0_180, %c5_181] : memref<2x10x22xf32, #tpu.memory_space<vmem>>, vector<1x4x16xf32>
    %341 = vector.shape_cast %340 : vector<1x4x16xf32> to vector<4x16xf32>
    %342 = vector.broadcast %339 : f32 to vector<4x16xf32>
    %343 = arith.mulf %342, %341 : vector<4x16xf32>
    %344 = arith.addf %338, %343 : vector<4x16xf32>
    %c55 = arith.constant 55 : index
    %345 = memref.load %arg2[%c55] : memref<294xf32, #tpu.memory_space<smem>>
    %c1_182 = arith.constant 1 : index
    %c0_183 = arith.constant 0 : index
    %c6_184 = arith.constant 6 : index
    %346 = vector.load %arg5[%c1_182, %c0_183, %c6_184] : memref<2x10x22xf32, #tpu.memory_space<vmem>>, vector<1x4x16xf32>
    %347 = vector.shape_cast %346 : vector<1x4x16xf32> to vector<4x16xf32>
    %348 = vector.broadcast %345 : f32 to vector<4x16xf32>
    %349 = arith.mulf %348, %347 : vector<4x16xf32>
    %350 = arith.addf %344, %349 : vector<4x16xf32>
    %c56 = arith.constant 56 : index
    %351 = memref.load %arg2[%c56] : memref<294xf32, #tpu.memory_space<smem>>
    %c1_185 = arith.constant 1 : index
    %c1_186 = arith.constant 1 : index
    %c0_187 = arith.constant 0 : index
    %352 = vector.load %arg5[%c1_185, %c1_186, %c0_187] : memref<2x10x22xf32, #tpu.memory_space<vmem>>, vector<1x4x16xf32>
    %353 = vector.shape_cast %352 : vector<1x4x16xf32> to vector<4x16xf32>
    %354 = vector.broadcast %351 : f32 to vector<4x16xf32>
    %355 = arith.mulf %354, %353 : vector<4x16xf32>
    %356 = arith.addf %350, %355 : vector<4x16xf32>
    %c57 = arith.constant 57 : index
    %357 = memref.load %arg2[%c57] : memref<294xf32, #tpu.memory_space<smem>>
    %c1_188 = arith.constant 1 : index
    %c1_189 = arith.constant 1 : index
    %c1_190 = arith.constant 1 : index
    %358 = vector.load %arg5[%c1_188, %c1_189, %c1_190] : memref<2x10x22xf32, #tpu.memory_space<vmem>>, vector<1x4x16xf32>
    %359 = vector.shape_cast %358 : vector<1x4x16xf32> to vector<4x16xf32>
    %360 = vector.broadcast %357 : f32 to vector<4x16xf32>
    %361 = arith.mulf %360, %359 : vector<4x16xf32>
    %362 = arith.addf %356, %361 : vector<4x16xf32>
    %c58 = arith.constant 58 : index
    %363 = memref.load %arg2[%c58] : memref<294xf32, #tpu.memory_space<smem>>
    %c1_191 = arith.constant 1 : index
    %c1_192 = arith.constant 1 : index
    %c2_193 = arith.constant 2 : index
    %364 = vector.load %arg5[%c1_191, %c1_192, %c2_193] : memref<2x10x22xf32, #tpu.memory_space<vmem>>, vector<1x4x16xf32>
    %365 = vector.shape_cast %364 : vector<1x4x16xf32> to vector<4x16xf32>
    %366 = vector.broadcast %363 : f32 to vector<4x16xf32>
    %367 = arith.mulf %366, %365 : vector<4x16xf32>
    %368 = arith.addf %362, %367 : vector<4x16xf32>
    %c59 = arith.constant 59 : index
    %369 = memref.load %arg2[%c59] : memref<294xf32, #tpu.memory_space<smem>>
    %c1_194 = arith.constant 1 : index
    %c1_195 = arith.constant 1 : index
    %c3_196 = arith.constant 3 : index
    %370 = vector.load %arg5[%c1_194, %c1_195, %c3_196] : memref<2x10x22xf32, #tpu.memory_space<vmem>>, vector<1x4x16xf32>
    %371 = vector.shape_cast %370 : vector<1x4x16xf32> to vector<4x16xf32>
    %372 = vector.broadcast %369 : f32 to vector<4x16xf32>
    %373 = arith.mulf %372, %371 : vector<4x16xf32>
    %374 = arith.addf %368, %373 : vector<4x16xf32>
    %c60 = arith.constant 60 : index
    %375 = memref.load %arg2[%c60] : memref<294xf32, #tpu.memory_space<smem>>
    %c1_197 = arith.constant 1 : index
    %c1_198 = arith.constant 1 : index
    %c4_199 = arith.constant 4 : index
    %376 = vector.load %arg5[%c1_197, %c1_198, %c4_199] : memref<2x10x22xf32, #tpu.memory_space<vmem>>, vector<1x4x16xf32>
    %377 = vector.shape_cast %376 : vector<1x4x16xf32> to vector<4x16xf32>
    %378 = vector.broadcast %375 : f32 to vector<4x16xf32>
    %379 = arith.mulf %378, %377 : vector<4x16xf32>
    %380 = arith.addf %374, %379 : vector<4x16xf32>
    %c61 = arith.constant 61 : index
    %381 = memref.load %arg2[%c61] : memref<294xf32, #tpu.memory_space<smem>>
    %c1_200 = arith.constant 1 : index
    %c1_201 = arith.constant 1 : index
    %c5_202 = arith.constant 5 : index
    %382 = vector.load %arg5[%c1_200, %c1_201, %c5_202] : memref<2x10x22xf32, #tpu.memory_space<vmem>>, vector<1x4x16xf32>
    %383 = vector.shape_cast %382 : vector<1x4x16xf32> to vector<4x16xf32>
    %384 = vector.broadcast %381 : f32 to vector<4x16xf32>
    %385 = arith.mulf %384, %383 : vector<4x16xf32>
    %386 = arith.addf %380, %385 : vector<4x16xf32>
    %c62 = arith.constant 62 : index
    %387 = memref.load %arg2[%c62] : memref<294xf32, #tpu.memory_space<smem>>
    %c1_203 = arith.constant 1 : index
    %c1_204 = arith.constant 1 : index
    %c6_205 = arith.constant 6 : index
    %388 = vector.load %arg5[%c1_203, %c1_204, %c6_205] : memref<2x10x22xf32, #tpu.memory_space<vmem>>, vector<1x4x16xf32>
    %389 = vector.shape_cast %388 : vector<1x4x16xf32> to vector<4x16xf32>
    %390 = vector.broadcast %387 : f32 to vector<4x16xf32>
    %391 = arith.mulf %390, %389 : vector<4x16xf32>
    %392 = arith.addf %386, %391 : vector<4x16xf32>
    %c63 = arith.constant 63 : index
    %393 = memref.load %arg2[%c63] : memref<294xf32, #tpu.memory_space<smem>>
    %c1_206 = arith.constant 1 : index
    %c2_207 = arith.constant 2 : index
    %c0_208 = arith.constant 0 : index
    %394 = vector.load %arg5[%c1_206, %c2_207, %c0_208] : memref<2x10x22xf32, #tpu.memory_space<vmem>>, vector<1x4x16xf32>
    %395 = vector.shape_cast %394 : vector<1x4x16xf32> to vector<4x16xf32>
    %396 = vector.broadcast %393 : f32 to vector<4x16xf32>
    %397 = arith.mulf %396, %395 : vector<4x16xf32>
    %398 = arith.addf %392, %397 : vector<4x16xf32>
    %c64 = arith.constant 64 : index
    %399 = memref.load %arg2[%c64] : memref<294xf32, #tpu.memory_space<smem>>
    %c1_209 = arith.constant 1 : index
    %c2_210 = arith.constant 2 : index
    %c1_211 = arith.constant 1 : index
    %400 = vector.load %arg5[%c1_209, %c2_210, %c1_211] : memref<2x10x22xf32, #tpu.memory_space<vmem>>, vector<1x4x16xf32>
    %401 = vector.shape_cast %400 : vector<1x4x16xf32> to vector<4x16xf32>
    %402 = vector.broadcast %399 : f32 to vector<4x16xf32>
    %403 = arith.mulf %402, %401 : vector<4x16xf32>
    %404 = arith.addf %398, %403 : vector<4x16xf32>
    %c65 = arith.constant 65 : index
    %405 = memref.load %arg2[%c65] : memref<294xf32, #tpu.memory_space<smem>>
    %c1_212 = arith.constant 1 : index
    %c2_213 = arith.constant 2 : index
    %c2_214 = arith.constant 2 : index
    %406 = vector.load %arg5[%c1_212, %c2_213, %c2_214] : memref<2x10x22xf32, #tpu.memory_space<vmem>>, vector<1x4x16xf32>
    %407 = vector.shape_cast %406 : vector<1x4x16xf32> to vector<4x16xf32>
    %408 = vector.broadcast %405 : f32 to vector<4x16xf32>
    %409 = arith.mulf %408, %407 : vector<4x16xf32>
    %410 = arith.addf %404, %409 : vector<4x16xf32>
    %c66 = arith.constant 66 : index
    %411 = memref.load %arg2[%c66] : memref<294xf32, #tpu.memory_space<smem>>
    %c1_215 = arith.constant 1 : index
    %c2_216 = arith.constant 2 : index
    %c3_217 = arith.constant 3 : index
    %412 = vector.load %arg5[%c1_215, %c2_216, %c3_217] : memref<2x10x22xf32, #tpu.memory_space<vmem>>, vector<1x4x16xf32>
    %413 = vector.shape_cast %412 : vector<1x4x16xf32> to vector<4x16xf32>
    %414 = vector.broadcast %411 : f32 to vector<4x16xf32>
    %415 = arith.mulf %414, %413 : vector<4x16xf32>
    %416 = arith.addf %410, %415 : vector<4x16xf32>
    %c67 = arith.constant 67 : index
    %417 = memref.load %arg2[%c67] : memref<294xf32, #tpu.memory_space<smem>>
    %c1_218 = arith.constant 1 : index
    %c2_219 = arith.constant 2 : index
    %c4_220 = arith.constant 4 : index
    %418 = vector.load %arg5[%c1_218, %c2_219, %c4_220] : memref<2x10x22xf32, #tpu.memory_space<vmem>>, vector<1x4x16xf32>
    %419 = vector.shape_cast %418 : vector<1x4x16xf32> to vector<4x16xf32>
    %420 = vector.broadcast %417 : f32 to vector<4x16xf32>
    %421 = arith.mulf %420, %419 : vector<4x16xf32>
    %422 = arith.addf %416, %421 : vector<4x16xf32>
    %c68 = arith.constant 68 : index
    %423 = memref.load %arg2[%c68] : memref<294xf32, #tpu.memory_space<smem>>
    %c1_221 = arith.constant 1 : index
    %c2_222 = arith.constant 2 : index
    %c5_223 = arith.constant 5 : index
    %424 = vector.load %arg5[%c1_221, %c2_222, %c5_223] : memref<2x10x22xf32, #tpu.memory_space<vmem>>, vector<1x4x16xf32>
    %425 = vector.shape_cast %424 : vector<1x4x16xf32> to vector<4x16xf32>
    %426 = vector.broadcast %423 : f32 to vector<4x16xf32>
    %427 = arith.mulf %426, %425 : vector<4x16xf32>
    %428 = arith.addf %422, %427 : vector<4x16xf32>
    %c69 = arith.constant 69 : index
    %429 = memref.load %arg2[%c69] : memref<294xf32, #tpu.memory_space<smem>>
    %c1_224 = arith.constant 1 : index
    %c2_225 = arith.constant 2 : index
    %c6_226 = arith.constant 6 : index
    %430 = vector.load %arg5[%c1_224, %c2_225, %c6_226] : memref<2x10x22xf32, #tpu.memory_space<vmem>>, vector<1x4x16xf32>
    %431 = vector.shape_cast %430 : vector<1x4x16xf32> to vector<4x16xf32>
    %432 = vector.broadcast %429 : f32 to vector<4x16xf32>
    %433 = arith.mulf %432, %431 : vector<4x16xf32>
    %434 = arith.addf %428, %433 : vector<4x16xf32>
    %c70 = arith.constant 70 : index
    %435 = memref.load %arg2[%c70] : memref<294xf32, #tpu.memory_space<smem>>
    %c1_227 = arith.constant 1 : index
    %c3_228 = arith.constant 3 : index
    %c0_229 = arith.constant 0 : index
    %436 = vector.load %arg5[%c1_227, %c3_228, %c0_229] : memref<2x10x22xf32, #tpu.memory_space<vmem>>, vector<1x4x16xf32>
    %437 = vector.shape_cast %436 : vector<1x4x16xf32> to vector<4x16xf32>
    %438 = vector.broadcast %435 : f32 to vector<4x16xf32>
    %439 = arith.mulf %438, %437 : vector<4x16xf32>
    %440 = arith.addf %434, %439 : vector<4x16xf32>
    %c71 = arith.constant 71 : index
    %441 = memref.load %arg2[%c71] : memref<294xf32, #tpu.memory_space<smem>>
    %c1_230 = arith.constant 1 : index
    %c3_231 = arith.constant 3 : index
    %c1_232 = arith.constant 1 : index
    %442 = vector.load %arg5[%c1_230, %c3_231, %c1_232] : memref<2x10x22xf32, #tpu.memory_space<vmem>>, vector<1x4x16xf32>
    %443 = vector.shape_cast %442 : vector<1x4x16xf32> to vector<4x16xf32>
    %444 = vector.broadcast %441 : f32 to vector<4x16xf32>
    %445 = arith.mulf %444, %443 : vector<4x16xf32>
    %446 = arith.addf %440, %445 : vector<4x16xf32>
    %c72 = arith.constant 72 : index
    %447 = memref.load %arg2[%c72] : memref<294xf32, #tpu.memory_space<smem>>
    %c1_233 = arith.constant 1 : index
    %c3_234 = arith.constant 3 : index
    %c2_235 = arith.constant 2 : index
    %448 = vector.load %arg5[%c1_233, %c3_234, %c2_235] : memref<2x10x22xf32, #tpu.memory_space<vmem>>, vector<1x4x16xf32>
    %449 = vector.shape_cast %448 : vector<1x4x16xf32> to vector<4x16xf32>
    %450 = vector.broadcast %447 : f32 to vector<4x16xf32>
    %451 = arith.mulf %450, %449 : vector<4x16xf32>
    %452 = arith.addf %446, %451 : vector<4x16xf32>
    %c73 = arith.constant 73 : index
    %453 = memref.load %arg2[%c73] : memref<294xf32, #tpu.memory_space<smem>>
    %c1_236 = arith.constant 1 : index
    %c3_237 = arith.constant 3 : index
    %c3_238 = arith.constant 3 : index
    %454 = vector.load %arg5[%c1_236, %c3_237, %c3_238] : memref<2x10x22xf32, #tpu.memory_space<vmem>>, vector<1x4x16xf32>
    %455 = vector.shape_cast %454 : vector<1x4x16xf32> to vector<4x16xf32>
    %456 = vector.broadcast %453 : f32 to vector<4x16xf32>
    %457 = arith.mulf %456, %455 : vector<4x16xf32>
    %458 = arith.addf %452, %457 : vector<4x16xf32>
    %c74 = arith.constant 74 : index
    %459 = memref.load %arg2[%c74] : memref<294xf32, #tpu.memory_space<smem>>
    %c1_239 = arith.constant 1 : index
    %c3_240 = arith.constant 3 : index
    %c4_241 = arith.constant 4 : index
    %460 = vector.load %arg5[%c1_239, %c3_240, %c4_241] : memref<2x10x22xf32, #tpu.memory_space<vmem>>, vector<1x4x16xf32>
    %461 = vector.shape_cast %460 : vector<1x4x16xf32> to vector<4x16xf32>
    %462 = vector.broadcast %459 : f32 to vector<4x16xf32>
    %463 = arith.mulf %462, %461 : vector<4x16xf32>
    %464 = arith.addf %458, %463 : vector<4x16xf32>
    %c75 = arith.constant 75 : index
    %465 = memref.load %arg2[%c75] : memref<294xf32, #tpu.memory_space<smem>>
    %c1_242 = arith.constant 1 : index
    %c3_243 = arith.constant 3 : index
    %c5_244 = arith.constant 5 : index
    %466 = vector.load %arg5[%c1_242, %c3_243, %c5_244] : memref<2x10x22xf32, #tpu.memory_space<vmem>>, vector<1x4x16xf32>
    %467 = vector.shape_cast %466 : vector<1x4x16xf32> to vector<4x16xf32>
    %468 = vector.broadcast %465 : f32 to vector<4x16xf32>
    %469 = arith.mulf %468, %467 : vector<4x16xf32>
    %470 = arith.addf %464, %469 : vector<4x16xf32>
    %c76 = arith.constant 76 : index
    %471 = memref.load %arg2[%c76] : memref<294xf32, #tpu.memory_space<smem>>
    %c1_245 = arith.constant 1 : index
    %c3_246 = arith.constant 3 : index
    %c6_247 = arith.constant 6 : index
    %472 = vector.load %arg5[%c1_245, %c3_246, %c6_247] : memref<2x10x22xf32, #tpu.memory_space<vmem>>, vector<1x4x16xf32>
    %473 = vector.shape_cast %472 : vector<1x4x16xf32> to vector<4x16xf32>
    %474 = vector.broadcast %471 : f32 to vector<4x16xf32>
    %475 = arith.mulf %474, %473 : vector<4x16xf32>
    %476 = arith.addf %470, %475 : vector<4x16xf32>
    %c77 = arith.constant 77 : index
    %477 = memref.load %arg2[%c77] : memref<294xf32, #tpu.memory_space<smem>>
    %c1_248 = arith.constant 1 : index
    %c4_249 = arith.constant 4 : index
    %c0_250 = arith.constant 0 : index
    %478 = vector.load %arg5[%c1_248, %c4_249, %c0_250] : memref<2x10x22xf32, #tpu.memory_space<vmem>>, vector<1x4x16xf32>
    %479 = vector.shape_cast %478 : vector<1x4x16xf32> to vector<4x16xf32>
    %480 = vector.broadcast %477 : f32 to vector<4x16xf32>
    %481 = arith.mulf %480, %479 : vector<4x16xf32>
    %482 = arith.addf %476, %481 : vector<4x16xf32>
    %c78 = arith.constant 78 : index
    %483 = memref.load %arg2[%c78] : memref<294xf32, #tpu.memory_space<smem>>
    %c1_251 = arith.constant 1 : index
    %c4_252 = arith.constant 4 : index
    %c1_253 = arith.constant 1 : index
    %484 = vector.load %arg5[%c1_251, %c4_252, %c1_253] : memref<2x10x22xf32, #tpu.memory_space<vmem>>, vector<1x4x16xf32>
    %485 = vector.shape_cast %484 : vector<1x4x16xf32> to vector<4x16xf32>
    %486 = vector.broadcast %483 : f32 to vector<4x16xf32>
    %487 = arith.mulf %486, %485 : vector<4x16xf32>
    %488 = arith.addf %482, %487 : vector<4x16xf32>
    %c79 = arith.constant 79 : index
    %489 = memref.load %arg2[%c79] : memref<294xf32, #tpu.memory_space<smem>>
    %c1_254 = arith.constant 1 : index
    %c4_255 = arith.constant 4 : index
    %c2_256 = arith.constant 2 : index
    %490 = vector.load %arg5[%c1_254, %c4_255, %c2_256] : memref<2x10x22xf32, #tpu.memory_space<vmem>>, vector<1x4x16xf32>
    %491 = vector.shape_cast %490 : vector<1x4x16xf32> to vector<4x16xf32>
    %492 = vector.broadcast %489 : f32 to vector<4x16xf32>
    %493 = arith.mulf %492, %491 : vector<4x16xf32>
    %494 = arith.addf %488, %493 : vector<4x16xf32>
    %c80 = arith.constant 80 : index
    %495 = memref.load %arg2[%c80] : memref<294xf32, #tpu.memory_space<smem>>
    %c1_257 = arith.constant 1 : index
    %c4_258 = arith.constant 4 : index
    %c3_259 = arith.constant 3 : index
    %496 = vector.load %arg5[%c1_257, %c4_258, %c3_259] : memref<2x10x22xf32, #tpu.memory_space<vmem>>, vector<1x4x16xf32>
    %497 = vector.shape_cast %496 : vector<1x4x16xf32> to vector<4x16xf32>
    %498 = vector.broadcast %495 : f32 to vector<4x16xf32>
    %499 = arith.mulf %498, %497 : vector<4x16xf32>
    %500 = arith.addf %494, %499 : vector<4x16xf32>
    %c81 = arith.constant 81 : index
    %501 = memref.load %arg2[%c81] : memref<294xf32, #tpu.memory_space<smem>>
    %c1_260 = arith.constant 1 : index
    %c4_261 = arith.constant 4 : index
    %c4_262 = arith.constant 4 : index
    %502 = vector.load %arg5[%c1_260, %c4_261, %c4_262] : memref<2x10x22xf32, #tpu.memory_space<vmem>>, vector<1x4x16xf32>
    %503 = vector.shape_cast %502 : vector<1x4x16xf32> to vector<4x16xf32>
    %504 = vector.broadcast %501 : f32 to vector<4x16xf32>
    %505 = arith.mulf %504, %503 : vector<4x16xf32>
    %506 = arith.addf %500, %505 : vector<4x16xf32>
    %c82 = arith.constant 82 : index
    %507 = memref.load %arg2[%c82] : memref<294xf32, #tpu.memory_space<smem>>
    %c1_263 = arith.constant 1 : index
    %c4_264 = arith.constant 4 : index
    %c5_265 = arith.constant 5 : index
    %508 = vector.load %arg5[%c1_263, %c4_264, %c5_265] : memref<2x10x22xf32, #tpu.memory_space<vmem>>, vector<1x4x16xf32>
    %509 = vector.shape_cast %508 : vector<1x4x16xf32> to vector<4x16xf32>
    %510 = vector.broadcast %507 : f32 to vector<4x16xf32>
    %511 = arith.mulf %510, %509 : vector<4x16xf32>
    %512 = arith.addf %506, %511 : vector<4x16xf32>
    %c83 = arith.constant 83 : index
    %513 = memref.load %arg2[%c83] : memref<294xf32, #tpu.memory_space<smem>>
    %c1_266 = arith.constant 1 : index
    %c4_267 = arith.constant 4 : index
    %c6_268 = arith.constant 6 : index
    %514 = vector.load %arg5[%c1_266, %c4_267, %c6_268] : memref<2x10x22xf32, #tpu.memory_space<vmem>>, vector<1x4x16xf32>
    %515 = vector.shape_cast %514 : vector<1x4x16xf32> to vector<4x16xf32>
    %516 = vector.broadcast %513 : f32 to vector<4x16xf32>
    %517 = arith.mulf %516, %515 : vector<4x16xf32>
    %518 = arith.addf %512, %517 : vector<4x16xf32>
    %c84 = arith.constant 84 : index
    %519 = memref.load %arg2[%c84] : memref<294xf32, #tpu.memory_space<smem>>
    %c1_269 = arith.constant 1 : index
    %c5_270 = arith.constant 5 : index
    %c0_271 = arith.constant 0 : index
    %520 = vector.load %arg5[%c1_269, %c5_270, %c0_271] : memref<2x10x22xf32, #tpu.memory_space<vmem>>, vector<1x4x16xf32>
    %521 = vector.shape_cast %520 : vector<1x4x16xf32> to vector<4x16xf32>
    %522 = vector.broadcast %519 : f32 to vector<4x16xf32>
    %523 = arith.mulf %522, %521 : vector<4x16xf32>
    %524 = arith.addf %518, %523 : vector<4x16xf32>
    %c85 = arith.constant 85 : index
    %525 = memref.load %arg2[%c85] : memref<294xf32, #tpu.memory_space<smem>>
    %c1_272 = arith.constant 1 : index
    %c5_273 = arith.constant 5 : index
    %c1_274 = arith.constant 1 : index
    %526 = vector.load %arg5[%c1_272, %c5_273, %c1_274] : memref<2x10x22xf32, #tpu.memory_space<vmem>>, vector<1x4x16xf32>
    %527 = vector.shape_cast %526 : vector<1x4x16xf32> to vector<4x16xf32>
    %528 = vector.broadcast %525 : f32 to vector<4x16xf32>
    %529 = arith.mulf %528, %527 : vector<4x16xf32>
    %530 = arith.addf %524, %529 : vector<4x16xf32>
    %c86 = arith.constant 86 : index
    %531 = memref.load %arg2[%c86] : memref<294xf32, #tpu.memory_space<smem>>
    %c1_275 = arith.constant 1 : index
    %c5_276 = arith.constant 5 : index
    %c2_277 = arith.constant 2 : index
    %532 = vector.load %arg5[%c1_275, %c5_276, %c2_277] : memref<2x10x22xf32, #tpu.memory_space<vmem>>, vector<1x4x16xf32>
    %533 = vector.shape_cast %532 : vector<1x4x16xf32> to vector<4x16xf32>
    %534 = vector.broadcast %531 : f32 to vector<4x16xf32>
    %535 = arith.mulf %534, %533 : vector<4x16xf32>
    %536 = arith.addf %530, %535 : vector<4x16xf32>
    %c87 = arith.constant 87 : index
    %537 = memref.load %arg2[%c87] : memref<294xf32, #tpu.memory_space<smem>>
    %c1_278 = arith.constant 1 : index
    %c5_279 = arith.constant 5 : index
    %c3_280 = arith.constant 3 : index
    %538 = vector.load %arg5[%c1_278, %c5_279, %c3_280] : memref<2x10x22xf32, #tpu.memory_space<vmem>>, vector<1x4x16xf32>
    %539 = vector.shape_cast %538 : vector<1x4x16xf32> to vector<4x16xf32>
    %540 = vector.broadcast %537 : f32 to vector<4x16xf32>
    %541 = arith.mulf %540, %539 : vector<4x16xf32>
    %542 = arith.addf %536, %541 : vector<4x16xf32>
    %c88 = arith.constant 88 : index
    %543 = memref.load %arg2[%c88] : memref<294xf32, #tpu.memory_space<smem>>
    %c1_281 = arith.constant 1 : index
    %c5_282 = arith.constant 5 : index
    %c4_283 = arith.constant 4 : index
    %544 = vector.load %arg5[%c1_281, %c5_282, %c4_283] : memref<2x10x22xf32, #tpu.memory_space<vmem>>, vector<1x4x16xf32>
    %545 = vector.shape_cast %544 : vector<1x4x16xf32> to vector<4x16xf32>
    %546 = vector.broadcast %543 : f32 to vector<4x16xf32>
    %547 = arith.mulf %546, %545 : vector<4x16xf32>
    %548 = arith.addf %542, %547 : vector<4x16xf32>
    %c89 = arith.constant 89 : index
    %549 = memref.load %arg2[%c89] : memref<294xf32, #tpu.memory_space<smem>>
    %c1_284 = arith.constant 1 : index
    %c5_285 = arith.constant 5 : index
    %c5_286 = arith.constant 5 : index
    %550 = vector.load %arg5[%c1_284, %c5_285, %c5_286] : memref<2x10x22xf32, #tpu.memory_space<vmem>>, vector<1x4x16xf32>
    %551 = vector.shape_cast %550 : vector<1x4x16xf32> to vector<4x16xf32>
    %552 = vector.broadcast %549 : f32 to vector<4x16xf32>
    %553 = arith.mulf %552, %551 : vector<4x16xf32>
    %554 = arith.addf %548, %553 : vector<4x16xf32>
    %c90 = arith.constant 90 : index
    %555 = memref.load %arg2[%c90] : memref<294xf32, #tpu.memory_space<smem>>
    %c1_287 = arith.constant 1 : index
    %c5_288 = arith.constant 5 : index
    %c6_289 = arith.constant 6 : index
    %556 = vector.load %arg5[%c1_287, %c5_288, %c6_289] : memref<2x10x22xf32, #tpu.memory_space<vmem>>, vector<1x4x16xf32>
    %557 = vector.shape_cast %556 : vector<1x4x16xf32> to vector<4x16xf32>
    %558 = vector.broadcast %555 : f32 to vector<4x16xf32>
    %559 = arith.mulf %558, %557 : vector<4x16xf32>
    %560 = arith.addf %554, %559 : vector<4x16xf32>
    %c91 = arith.constant 91 : index
    %561 = memref.load %arg2[%c91] : memref<294xf32, #tpu.memory_space<smem>>
    %c1_290 = arith.constant 1 : index
    %c6_291 = arith.constant 6 : index
    %c0_292 = arith.constant 0 : index
    %562 = vector.load %arg5[%c1_290, %c6_291, %c0_292] : memref<2x10x22xf32, #tpu.memory_space<vmem>>, vector<1x4x16xf32>
    %563 = vector.shape_cast %562 : vector<1x4x16xf32> to vector<4x16xf32>
    %564 = vector.broadcast %561 : f32 to vector<4x16xf32>
    %565 = arith.mulf %564, %563 : vector<4x16xf32>
    %566 = arith.addf %560, %565 : vector<4x16xf32>
    %c92 = arith.constant 92 : index
    %567 = memref.load %arg2[%c92] : memref<294xf32, #tpu.memory_space<smem>>
    %c1_293 = arith.constant 1 : index
    %c6_294 = arith.constant 6 : index
    %c1_295 = arith.constant 1 : index
    %568 = vector.load %arg5[%c1_293, %c6_294, %c1_295] : memref<2x10x22xf32, #tpu.memory_space<vmem>>, vector<1x4x16xf32>
    %569 = vector.shape_cast %568 : vector<1x4x16xf32> to vector<4x16xf32>
    %570 = vector.broadcast %567 : f32 to vector<4x16xf32>
    %571 = arith.mulf %570, %569 : vector<4x16xf32>
    %572 = arith.addf %566, %571 : vector<4x16xf32>
    %c93 = arith.constant 93 : index
    %573 = memref.load %arg2[%c93] : memref<294xf32, #tpu.memory_space<smem>>
    %c1_296 = arith.constant 1 : index
    %c6_297 = arith.constant 6 : index
    %c2_298 = arith.constant 2 : index
    %574 = vector.load %arg5[%c1_296, %c6_297, %c2_298] : memref<2x10x22xf32, #tpu.memory_space<vmem>>, vector<1x4x16xf32>
    %575 = vector.shape_cast %574 : vector<1x4x16xf32> to vector<4x16xf32>
    %576 = vector.broadcast %573 : f32 to vector<4x16xf32>
    %577 = arith.mulf %576, %575 : vector<4x16xf32>
    %578 = arith.addf %572, %577 : vector<4x16xf32>
    %c94 = arith.constant 94 : index
    %579 = memref.load %arg2[%c94] : memref<294xf32, #tpu.memory_space<smem>>
    %c1_299 = arith.constant 1 : index
    %c6_300 = arith.constant 6 : index
    %c3_301 = arith.constant 3 : index
    %580 = vector.load %arg5[%c1_299, %c6_300, %c3_301] : memref<2x10x22xf32, #tpu.memory_space<vmem>>, vector<1x4x16xf32>
    %581 = vector.shape_cast %580 : vector<1x4x16xf32> to vector<4x16xf32>
    %582 = vector.broadcast %579 : f32 to vector<4x16xf32>
    %583 = arith.mulf %582, %581 : vector<4x16xf32>
    %584 = arith.addf %578, %583 : vector<4x16xf32>
    %c95 = arith.constant 95 : index
    %585 = memref.load %arg2[%c95] : memref<294xf32, #tpu.memory_space<smem>>
    %c1_302 = arith.constant 1 : index
    %c6_303 = arith.constant 6 : index
    %c4_304 = arith.constant 4 : index
    %586 = vector.load %arg5[%c1_302, %c6_303, %c4_304] : memref<2x10x22xf32, #tpu.memory_space<vmem>>, vector<1x4x16xf32>
    %587 = vector.shape_cast %586 : vector<1x4x16xf32> to vector<4x16xf32>
    %588 = vector.broadcast %585 : f32 to vector<4x16xf32>
    %589 = arith.mulf %588, %587 : vector<4x16xf32>
    %590 = arith.addf %584, %589 : vector<4x16xf32>
    %c96 = arith.constant 96 : index
    %591 = memref.load %arg2[%c96] : memref<294xf32, #tpu.memory_space<smem>>
    %c1_305 = arith.constant 1 : index
    %c6_306 = arith.constant 6 : index
    %c5_307 = arith.constant 5 : index
    %592 = vector.load %arg5[%c1_305, %c6_306, %c5_307] : memref<2x10x22xf32, #tpu.memory_space<vmem>>, vector<1x4x16xf32>
    %593 = vector.shape_cast %592 : vector<1x4x16xf32> to vector<4x16xf32>
    %594 = vector.broadcast %591 : f32 to vector<4x16xf32>
    %595 = arith.mulf %594, %593 : vector<4x16xf32>
    %596 = arith.addf %590, %595 : vector<4x16xf32>
    %c97 = arith.constant 97 : index
    %597 = memref.load %arg2[%c97] : memref<294xf32, #tpu.memory_space<smem>>
    %c1_308 = arith.constant 1 : index
    %c6_309 = arith.constant 6 : index
    %c6_310 = arith.constant 6 : index
    %598 = vector.load %arg5[%c1_308, %c6_309, %c6_310] : memref<2x10x22xf32, #tpu.memory_space<vmem>>, vector<1x4x16xf32>
    %599 = vector.shape_cast %598 : vector<1x4x16xf32> to vector<4x16xf32>
    %600 = vector.broadcast %597 : f32 to vector<4x16xf32>
    %601 = arith.mulf %600, %599 : vector<4x16xf32>
    %602 = arith.addf %596, %601 : vector<4x16xf32>
    %c0_311 = arith.constant 0 : index
    %603 = memref.load %arg3[%c0_311] : memref<6xf32, #tpu.memory_space<smem>>
    %c1_312 = arith.constant 1 : index
    %604 = memref.load %arg3[%c1_312] : memref<6xf32, #tpu.memory_space<smem>>
    %605 = vector.broadcast %603 : f32 to vector<4x16xf32>
    %606 = arith.mulf %602, %605 : vector<4x16xf32>
    %607 = vector.broadcast %604 : f32 to vector<4x16xf32>
    %608 = arith.addf %606, %607 : vector<4x16xf32>
    %cst_313 = arith.constant 0.000000e+00 : f32
    %609 = vector.broadcast %cst_313 : f32 to vector<4x16xf32>
    %610 = arith.subf %609, %608 : vector<4x16xf32>
    %611 = math.exp %610 : vector<4x16xf32>
    %cst_314 = arith.constant 1.000000e+00 : f32
    %612 = vector.broadcast %cst_314 : f32 to vector<4x16xf32>
    %613 = arith.addf %612, %611 : vector<4x16xf32>
    %cst_315 = arith.constant 1.000000e+00 : f32
    %614 = vector.broadcast %cst_315 : f32 to vector<4x16xf32>
    %615 = arith.divf %614, %613 : vector<4x16xf32>
    %cst_316 = arith.constant dense<0xFF800000> : vector<4x16xf32>
    %616 = vector.multi_reduction <maximumf>, %1, %cst_316 [2] : vector<4x16x16xf32> to vector<4x16xf32>
    %cst_317 = arith.constant dense<0.000000e+00> : vector<4x16xf32>
    %617 = vector.multi_reduction <add>, %1, %cst_317 [2] : vector<4x16x16xf32> to vector<4x16xf32>
    %cst_318 = arith.constant 1.600000e+01 : f32
    %618 = vector.broadcast %cst_318 : f32 to vector<4x16xf32>
    %619 = arith.divf %617, %618 : vector<4x16xf32>
    %cst_319 = arith.constant 0.000000e+00 : f32
    %620 = vector.broadcast %cst_319 : f32 to vector<2x10x22xf32>
    %c0_320 = arith.constant 0 : index
    %c0_321 = arith.constant 0 : index
    %c0_322 = arith.constant 0 : index
    %621 = vector.load %arg6[%c0_320, %c0_321, %c0_322] : memref<2x10x22xf32, #tpu.memory_space<vmem>>, vector<2x10x22xf32>
    tpu.vector_store %arg6[%c0_320, %c0_321, %c0_322], %620 {strides = array<i32>} : memref<2x10x22xf32, #tpu.memory_space<vmem>>, vector<2x10x22xf32>,
    %c0_323 = arith.constant 0 : index
    %c3_324 = arith.constant 3 : index
    %c3_325 = arith.constant 3 : index
    %622 = vector.load %arg6[%c0_323, %c3_324, %c3_325] : memref<2x10x22xf32, #tpu.memory_space<vmem>>, vector<1x4x16xf32>
    %623 = vector.shape_cast %622 : vector<1x4x16xf32> to vector<4x16xf32>
    %624 = vector.shape_cast %616 : vector<4x16xf32> to vector<1x4x16xf32>
    tpu.vector_store %arg6[%c0_323, %c3_324, %c3_325], %624 {strides = array<i32>} : memref<2x10x22xf32, #tpu.memory_space<vmem>>, vector<1x4x16xf32>,
    %c1_326 = arith.constant 1 : index
    %c3_327 = arith.constant 3 : index
    %c3_328 = arith.constant 3 : index
    %625 = vector.load %arg6[%c1_326, %c3_327, %c3_328] : memref<2x10x22xf32, #tpu.memory_space<vmem>>, vector<1x4x16xf32>
    %626 = vector.shape_cast %625 : vector<1x4x16xf32> to vector<4x16xf32>
    %627 = vector.shape_cast %619 : vector<4x16xf32> to vector<1x4x16xf32>
    tpu.vector_store %arg6[%c1_326, %c3_327, %c3_328], %627 {strides = array<i32>} : memref<2x10x22xf32, #tpu.memory_space<vmem>>, vector<1x4x16xf32>,
    %cst_329 = arith.constant 0.000000e+00 : f32
    %628 = vector.broadcast %cst_329 : f32 to vector<4x16xf32>
    %c98 = arith.constant 98 : index
    %629 = memref.load %arg2[%c98] : memref<294xf32, #tpu.memory_space<smem>>
    %c0_330 = arith.constant 0 : index
    %c0_331 = arith.constant 0 : index
    %c0_332 = arith.constant 0 : index
    %630 = vector.load %arg6[%c0_330, %c0_331, %c0_332] : memref<2x10x22xf32, #tpu.memory_space<vmem>>, vector<1x4x16xf32>
    %631 = vector.shape_cast %630 : vector<1x4x16xf32> to vector<4x16xf32>
    %632 = vector.broadcast %629 : f32 to vector<4x16xf32>
    %633 = arith.mulf %632, %631 : vector<4x16xf32>
    %634 = arith.addf %628, %633 : vector<4x16xf32>
    %c105 = arith.constant 105 : index
    %635 = memref.load %arg2[%c105] : memref<294xf32, #tpu.memory_space<smem>>
    %c0_333 = arith.constant 0 : index
    %c0_334 = arith.constant 0 : index
    %c1_335 = arith.constant 1 : index
    %636 = vector.load %arg6[%c0_333, %c0_334, %c1_335] : memref<2x10x22xf32, #tpu.memory_space<vmem>>, vector<1x4x16xf32>
    %637 = vector.shape_cast %636 : vector<1x4x16xf32> to vector<4x16xf32>
    %638 = vector.broadcast %635 : f32 to vector<4x16xf32>
    %639 = arith.mulf %638, %637 : vector<4x16xf32>
    %640 = arith.addf %634, %639 : vector<4x16xf32>
    %c112 = arith.constant 112 : index
    %641 = memref.load %arg2[%c112] : memref<294xf32, #tpu.memory_space<smem>>
    %c0_336 = arith.constant 0 : index
    %c0_337 = arith.constant 0 : index
    %c2_338 = arith.constant 2 : index
    %642 = vector.load %arg6[%c0_336, %c0_337, %c2_338] : memref<2x10x22xf32, #tpu.memory_space<vmem>>, vector<1x4x16xf32>
    %643 = vector.shape_cast %642 : vector<1x4x16xf32> to vector<4x16xf32>
    %644 = vector.broadcast %641 : f32 to vector<4x16xf32>
    %645 = arith.mulf %644, %643 : vector<4x16xf32>
    %646 = arith.addf %640, %645 : vector<4x16xf32>
    %c119 = arith.constant 119 : index
    %647 = memref.load %arg2[%c119] : memref<294xf32, #tpu.memory_space<smem>>
    %c0_339 = arith.constant 0 : index
    %c0_340 = arith.constant 0 : index
    %c3_341 = arith.constant 3 : index
    %648 = vector.load %arg6[%c0_339, %c0_340, %c3_341] : memref<2x10x22xf32, #tpu.memory_space<vmem>>, vector<1x4x16xf32>
    %649 = vector.shape_cast %648 : vector<1x4x16xf32> to vector<4x16xf32>
    %650 = vector.broadcast %647 : f32 to vector<4x16xf32>
    %651 = arith.mulf %650, %649 : vector<4x16xf32>
    %652 = arith.addf %646, %651 : vector<4x16xf32>
    %c126 = arith.constant 126 : index
    %653 = memref.load %arg2[%c126] : memref<294xf32, #tpu.memory_space<smem>>
    %c0_342 = arith.constant 0 : index
    %c0_343 = arith.constant 0 : index
    %c4_344 = arith.constant 4 : index
    %654 = vector.load %arg6[%c0_342, %c0_343, %c4_344] : memref<2x10x22xf32, #tpu.memory_space<vmem>>, vector<1x4x16xf32>
    %655 = vector.shape_cast %654 : vector<1x4x16xf32> to vector<4x16xf32>
    %656 = vector.broadcast %653 : f32 to vector<4x16xf32>
    %657 = arith.mulf %656, %655 : vector<4x16xf32>
    %658 = arith.addf %652, %657 : vector<4x16xf32>
    %c133 = arith.constant 133 : index
    %659 = memref.load %arg2[%c133] : memref<294xf32, #tpu.memory_space<smem>>
    %c0_345 = arith.constant 0 : index
    %c0_346 = arith.constant 0 : index
    %c5_347 = arith.constant 5 : index
    %660 = vector.load %arg6[%c0_345, %c0_346, %c5_347] : memref<2x10x22xf32, #tpu.memory_space<vmem>>, vector<1x4x16xf32>
    %661 = vector.shape_cast %660 : vector<1x4x16xf32> to vector<4x16xf32>
    %662 = vector.broadcast %659 : f32 to vector<4x16xf32>
    %663 = arith.mulf %662, %661 : vector<4x16xf32>
    %664 = arith.addf %658, %663 : vector<4x16xf32>
    %c140 = arith.constant 140 : index
    %665 = memref.load %arg2[%c140] : memref<294xf32, #tpu.memory_space<smem>>
    %c0_348 = arith.constant 0 : index
    %c0_349 = arith.constant 0 : index
    %c6_350 = arith.constant 6 : index
    %666 = vector.load %arg6[%c0_348, %c0_349, %c6_350] : memref<2x10x22xf32, #tpu.memory_space<vmem>>, vector<1x4x16xf32>
    %667 = vector.shape_cast %666 : vector<1x4x16xf32> to vector<4x16xf32>
    %668 = vector.broadcast %665 : f32 to vector<4x16xf32>
    %669 = arith.mulf %668, %667 : vector<4x16xf32>
    %670 = arith.addf %664, %669 : vector<4x16xf32>
    %c99 = arith.constant 99 : index
    %671 = memref.load %arg2[%c99] : memref<294xf32, #tpu.memory_space<smem>>
    %c0_351 = arith.constant 0 : index
    %c1_352 = arith.constant 1 : index
    %c0_353 = arith.constant 0 : index
    %672 = vector.load %arg6[%c0_351, %c1_352, %c0_353] : memref<2x10x22xf32, #tpu.memory_space<vmem>>, vector<1x4x16xf32>
    %673 = vector.shape_cast %672 : vector<1x4x16xf32> to vector<4x16xf32>
    %674 = vector.broadcast %671 : f32 to vector<4x16xf32>
    %675 = arith.mulf %674, %673 : vector<4x16xf32>
    %676 = arith.addf %670, %675 : vector<4x16xf32>
    %c106 = arith.constant 106 : index
    %677 = memref.load %arg2[%c106] : memref<294xf32, #tpu.memory_space<smem>>
    %c0_354 = arith.constant 0 : index
    %c1_355 = arith.constant 1 : index
    %c1_356 = arith.constant 1 : index
    %678 = vector.load %arg6[%c0_354, %c1_355, %c1_356] : memref<2x10x22xf32, #tpu.memory_space<vmem>>, vector<1x4x16xf32>
    %679 = vector.shape_cast %678 : vector<1x4x16xf32> to vector<4x16xf32>
    %680 = vector.broadcast %677 : f32 to vector<4x16xf32>
    %681 = arith.mulf %680, %679 : vector<4x16xf32>
    %682 = arith.addf %676, %681 : vector<4x16xf32>
    %c113 = arith.constant 113 : index
    %683 = memref.load %arg2[%c113] : memref<294xf32, #tpu.memory_space<smem>>
    %c0_357 = arith.constant 0 : index
    %c1_358 = arith.constant 1 : index
    %c2_359 = arith.constant 2 : index
    %684 = vector.load %arg6[%c0_357, %c1_358, %c2_359] : memref<2x10x22xf32, #tpu.memory_space<vmem>>, vector<1x4x16xf32>
    %685 = vector.shape_cast %684 : vector<1x4x16xf32> to vector<4x16xf32>
    %686 = vector.broadcast %683 : f32 to vector<4x16xf32>
    %687 = arith.mulf %686, %685 : vector<4x16xf32>
    %688 = arith.addf %682, %687 : vector<4x16xf32>
    %c120 = arith.constant 120 : index
    %689 = memref.load %arg2[%c120] : memref<294xf32, #tpu.memory_space<smem>>
    %c0_360 = arith.constant 0 : index
    %c1_361 = arith.constant 1 : index
    %c3_362 = arith.constant 3 : index
    %690 = vector.load %arg6[%c0_360, %c1_361, %c3_362] : memref<2x10x22xf32, #tpu.memory_space<vmem>>, vector<1x4x16xf32>
    %691 = vector.shape_cast %690 : vector<1x4x16xf32> to vector<4x16xf32>
    %692 = vector.broadcast %689 : f32 to vector<4x16xf32>
    %693 = arith.mulf %692, %691 : vector<4x16xf32>
    %694 = arith.addf %688, %693 : vector<4x16xf32>
    %c127 = arith.constant 127 : index
    %695 = memref.load %arg2[%c127] : memref<294xf32, #tpu.memory_space<smem>>
    %c0_363 = arith.constant 0 : index
    %c1_364 = arith.constant 1 : index
    %c4_365 = arith.constant 4 : index
    %696 = vector.load %arg6[%c0_363, %c1_364, %c4_365] : memref<2x10x22xf32, #tpu.memory_space<vmem>>, vector<1x4x16xf32>
    %697 = vector.shape_cast %696 : vector<1x4x16xf32> to vector<4x16xf32>
    %698 = vector.broadcast %695 : f32 to vector<4x16xf32>
    %699 = arith.mulf %698, %697 : vector<4x16xf32>
    %700 = arith.addf %694, %699 : vector<4x16xf32>
    %c134 = arith.constant 134 : index
    %701 = memref.load %arg2[%c134] : memref<294xf32, #tpu.memory_space<smem>>
    %c0_366 = arith.constant 0 : index
    %c1_367 = arith.constant 1 : index
    %c5_368 = arith.constant 5 : index
    %702 = vector.load %arg6[%c0_366, %c1_367, %c5_368] : memref<2x10x22xf32, #tpu.memory_space<vmem>>, vector<1x4x16xf32>
    %703 = vector.shape_cast %702 : vector<1x4x16xf32> to vector<4x16xf32>
    %704 = vector.broadcast %701 : f32 to vector<4x16xf32>
    %705 = arith.mulf %704, %703 : vector<4x16xf32>
    %706 = arith.addf %700, %705 : vector<4x16xf32>
    %c141 = arith.constant 141 : index
    %707 = memref.load %arg2[%c141] : memref<294xf32, #tpu.memory_space<smem>>
    %c0_369 = arith.constant 0 : index
    %c1_370 = arith.constant 1 : index
    %c6_371 = arith.constant 6 : index
    %708 = vector.load %arg6[%c0_369, %c1_370, %c6_371] : memref<2x10x22xf32, #tpu.memory_space<vmem>>, vector<1x4x16xf32>
    %709 = vector.shape_cast %708 : vector<1x4x16xf32> to vector<4x16xf32>
    %710 = vector.broadcast %707 : f32 to vector<4x16xf32>
    %711 = arith.mulf %710, %709 : vector<4x16xf32>
    %712 = arith.addf %706, %711 : vector<4x16xf32>
    %c100 = arith.constant 100 : index
    %713 = memref.load %arg2[%c100] : memref<294xf32, #tpu.memory_space<smem>>
    %c0_372 = arith.constant 0 : index
    %c2_373 = arith.constant 2 : index
    %c0_374 = arith.constant 0 : index
    %714 = vector.load %arg6[%c0_372, %c2_373, %c0_374] : memref<2x10x22xf32, #tpu.memory_space<vmem>>, vector<1x4x16xf32>
    %715 = vector.shape_cast %714 : vector<1x4x16xf32> to vector<4x16xf32>
    %716 = vector.broadcast %713 : f32 to vector<4x16xf32>
    %717 = arith.mulf %716, %715 : vector<4x16xf32>
    %718 = arith.addf %712, %717 : vector<4x16xf32>
    %c107 = arith.constant 107 : index
    %719 = memref.load %arg2[%c107] : memref<294xf32, #tpu.memory_space<smem>>
    %c0_375 = arith.constant 0 : index
    %c2_376 = arith.constant 2 : index
    %c1_377 = arith.constant 1 : index
    %720 = vector.load %arg6[%c0_375, %c2_376, %c1_377] : memref<2x10x22xf32, #tpu.memory_space<vmem>>, vector<1x4x16xf32>
    %721 = vector.shape_cast %720 : vector<1x4x16xf32> to vector<4x16xf32>
    %722 = vector.broadcast %719 : f32 to vector<4x16xf32>
    %723 = arith.mulf %722, %721 : vector<4x16xf32>
    %724 = arith.addf %718, %723 : vector<4x16xf32>
    %c114 = arith.constant 114 : index
    %725 = memref.load %arg2[%c114] : memref<294xf32, #tpu.memory_space<smem>>
    %c0_378 = arith.constant 0 : index
    %c2_379 = arith.constant 2 : index
    %c2_380 = arith.constant 2 : index
    %726 = vector.load %arg6[%c0_378, %c2_379, %c2_380] : memref<2x10x22xf32, #tpu.memory_space<vmem>>, vector<1x4x16xf32>
    %727 = vector.shape_cast %726 : vector<1x4x16xf32> to vector<4x16xf32>
    %728 = vector.broadcast %725 : f32 to vector<4x16xf32>
    %729 = arith.mulf %728, %727 : vector<4x16xf32>
    %730 = arith.addf %724, %729 : vector<4x16xf32>
    %c121 = arith.constant 121 : index
    %731 = memref.load %arg2[%c121] : memref<294xf32, #tpu.memory_space<smem>>
    %c0_381 = arith.constant 0 : index
    %c2_382 = arith.constant 2 : index
    %c3_383 = arith.constant 3 : index
    %732 = vector.load %arg6[%c0_381, %c2_382, %c3_383] : memref<2x10x22xf32, #tpu.memory_space<vmem>>, vector<1x4x16xf32>
    %733 = vector.shape_cast %732 : vector<1x4x16xf32> to vector<4x16xf32>
    %734 = vector.broadcast %731 : f32 to vector<4x16xf32>
    %735 = arith.mulf %734, %733 : vector<4x16xf32>
    %736 = arith.addf %730, %735 : vector<4x16xf32>
    %c128 = arith.constant 128 : index
    %737 = memref.load %arg2[%c128] : memref<294xf32, #tpu.memory_space<smem>>
    %c0_384 = arith.constant 0 : index
    %c2_385 = arith.constant 2 : index
    %c4_386 = arith.constant 4 : index
    %738 = vector.load %arg6[%c0_384, %c2_385, %c4_386] : memref<2x10x22xf32, #tpu.memory_space<vmem>>, vector<1x4x16xf32>
    %739 = vector.shape_cast %738 : vector<1x4x16xf32> to vector<4x16xf32>
    %740 = vector.broadcast %737 : f32 to vector<4x16xf32>
    %741 = arith.mulf %740, %739 : vector<4x16xf32>
    %742 = arith.addf %736, %741 : vector<4x16xf32>
    %c135 = arith.constant 135 : index
    %743 = memref.load %arg2[%c135] : memref<294xf32, #tpu.memory_space<smem>>
    %c0_387 = arith.constant 0 : index
    %c2_388 = arith.constant 2 : index
    %c5_389 = arith.constant 5 : index
    %744 = vector.load %arg6[%c0_387, %c2_388, %c5_389] : memref<2x10x22xf32, #tpu.memory_space<vmem>>, vector<1x4x16xf32>
    %745 = vector.shape_cast %744 : vector<1x4x16xf32> to vector<4x16xf32>
    %746 = vector.broadcast %743 : f32 to vector<4x16xf32>
    %747 = arith.mulf %746, %745 : vector<4x16xf32>
    %748 = arith.addf %742, %747 : vector<4x16xf32>
    %c142 = arith.constant 142 : index
    %749 = memref.load %arg2[%c142] : memref<294xf32, #tpu.memory_space<smem>>
    %c0_390 = arith.constant 0 : index
    %c2_391 = arith.constant 2 : index
    %c6_392 = arith.constant 6 : index
    %750 = vector.load %arg6[%c0_390, %c2_391, %c6_392] : memref<2x10x22xf32, #tpu.memory_space<vmem>>, vector<1x4x16xf32>
    %751 = vector.shape_cast %750 : vector<1x4x16xf32> to vector<4x16xf32>
    %752 = vector.broadcast %749 : f32 to vector<4x16xf32>
    %753 = arith.mulf %752, %751 : vector<4x16xf32>
    %754 = arith.addf %748, %753 : vector<4x16xf32>
    %c101 = arith.constant 101 : index
    %755 = memref.load %arg2[%c101] : memref<294xf32, #tpu.memory_space<smem>>
    %c0_393 = arith.constant 0 : index
    %c3_394 = arith.constant 3 : index
    %c0_395 = arith.constant 0 : index
    %756 = vector.load %arg6[%c0_393, %c3_394, %c0_395] : memref<2x10x22xf32, #tpu.memory_space<vmem>>, vector<1x4x16xf32>
    %757 = vector.shape_cast %756 : vector<1x4x16xf32> to vector<4x16xf32>
    %758 = vector.broadcast %755 : f32 to vector<4x16xf32>
    %759 = arith.mulf %758, %757 : vector<4x16xf32>
    %760 = arith.addf %754, %759 : vector<4x16xf32>
    %c108 = arith.constant 108 : index
    %761 = memref.load %arg2[%c108] : memref<294xf32, #tpu.memory_space<smem>>
    %c0_396 = arith.constant 0 : index
    %c3_397 = arith.constant 3 : index
    %c1_398 = arith.constant 1 : index
    %762 = vector.load %arg6[%c0_396, %c3_397, %c1_398] : memref<2x10x22xf32, #tpu.memory_space<vmem>>, vector<1x4x16xf32>
    %763 = vector.shape_cast %762 : vector<1x4x16xf32> to vector<4x16xf32>
    %764 = vector.broadcast %761 : f32 to vector<4x16xf32>
    %765 = arith.mulf %764, %763 : vector<4x16xf32>
    %766 = arith.addf %760, %765 : vector<4x16xf32>
    %c115 = arith.constant 115 : index
    %767 = memref.load %arg2[%c115] : memref<294xf32, #tpu.memory_space<smem>>
    %c0_399 = arith.constant 0 : index
    %c3_400 = arith.constant 3 : index
    %c2_401 = arith.constant 2 : index
    %768 = vector.load %arg6[%c0_399, %c3_400, %c2_401] : memref<2x10x22xf32, #tpu.memory_space<vmem>>, vector<1x4x16xf32>
    %769 = vector.shape_cast %768 : vector<1x4x16xf32> to vector<4x16xf32>
    %770 = vector.broadcast %767 : f32 to vector<4x16xf32>
    %771 = arith.mulf %770, %769 : vector<4x16xf32>
    %772 = arith.addf %766, %771 : vector<4x16xf32>
    %c122 = arith.constant 122 : index
    %773 = memref.load %arg2[%c122] : memref<294xf32, #tpu.memory_space<smem>>
    %c0_402 = arith.constant 0 : index
    %c3_403 = arith.constant 3 : index
    %c3_404 = arith.constant 3 : index
    %774 = vector.load %arg6[%c0_402, %c3_403, %c3_404] : memref<2x10x22xf32, #tpu.memory_space<vmem>>, vector<1x4x16xf32>
    %775 = vector.shape_cast %774 : vector<1x4x16xf32> to vector<4x16xf32>
    %776 = vector.broadcast %773 : f32 to vector<4x16xf32>
    %777 = arith.mulf %776, %775 : vector<4x16xf32>
    %778 = arith.addf %772, %777 : vector<4x16xf32>
    %c129 = arith.constant 129 : index
    %779 = memref.load %arg2[%c129] : memref<294xf32, #tpu.memory_space<smem>>
    %c0_405 = arith.constant 0 : index
    %c3_406 = arith.constant 3 : index
    %c4_407 = arith.constant 4 : index
    %780 = vector.load %arg6[%c0_405, %c3_406, %c4_407] : memref<2x10x22xf32, #tpu.memory_space<vmem>>, vector<1x4x16xf32>
    %781 = vector.shape_cast %780 : vector<1x4x16xf32> to vector<4x16xf32>
    %782 = vector.broadcast %779 : f32 to vector<4x16xf32>
    %783 = arith.mulf %782, %781 : vector<4x16xf32>
    %784 = arith.addf %778, %783 : vector<4x16xf32>
    %c136 = arith.constant 136 : index
    %785 = memref.load %arg2[%c136] : memref<294xf32, #tpu.memory_space<smem>>
    %c0_408 = arith.constant 0 : index
    %c3_409 = arith.constant 3 : index
    %c5_410 = arith.constant 5 : index
    %786 = vector.load %arg6[%c0_408, %c3_409, %c5_410] : memref<2x10x22xf32, #tpu.memory_space<vmem>>, vector<1x4x16xf32>
    %787 = vector.shape_cast %786 : vector<1x4x16xf32> to vector<4x16xf32>
    %788 = vector.broadcast %785 : f32 to vector<4x16xf32>
    %789 = arith.mulf %788, %787 : vector<4x16xf32>
    %790 = arith.addf %784, %789 : vector<4x16xf32>
    %c143 = arith.constant 143 : index
    %791 = memref.load %arg2[%c143] : memref<294xf32, #tpu.memory_space<smem>>
    %c0_411 = arith.constant 0 : index
    %c3_412 = arith.constant 3 : index
    %c6_413 = arith.constant 6 : index
    %792 = vector.load %arg6[%c0_411, %c3_412, %c6_413] : memref<2x10x22xf32, #tpu.memory_space<vmem>>, vector<1x4x16xf32>
    %793 = vector.shape_cast %792 : vector<1x4x16xf32> to vector<4x16xf32>
    %794 = vector.broadcast %791 : f32 to vector<4x16xf32>
    %795 = arith.mulf %794, %793 : vector<4x16xf32>
    %796 = arith.addf %790, %795 : vector<4x16xf32>
    %c102 = arith.constant 102 : index
    %797 = memref.load %arg2[%c102] : memref<294xf32, #tpu.memory_space<smem>>
    %c0_414 = arith.constant 0 : index
    %c4_415 = arith.constant 4 : index
    %c0_416 = arith.constant 0 : index
    %798 = vector.load %arg6[%c0_414, %c4_415, %c0_416] : memref<2x10x22xf32, #tpu.memory_space<vmem>>, vector<1x4x16xf32>
    %799 = vector.shape_cast %798 : vector<1x4x16xf32> to vector<4x16xf32>
    %800 = vector.broadcast %797 : f32 to vector<4x16xf32>
    %801 = arith.mulf %800, %799 : vector<4x16xf32>
    %802 = arith.addf %796, %801 : vector<4x16xf32>
    %c109 = arith.constant 109 : index
    %803 = memref.load %arg2[%c109] : memref<294xf32, #tpu.memory_space<smem>>
    %c0_417 = arith.constant 0 : index
    %c4_418 = arith.constant 4 : index
    %c1_419 = arith.constant 1 : index
    %804 = vector.load %arg6[%c0_417, %c4_418, %c1_419] : memref<2x10x22xf32, #tpu.memory_space<vmem>>, vector<1x4x16xf32>
    %805 = vector.shape_cast %804 : vector<1x4x16xf32> to vector<4x16xf32>
    %806 = vector.broadcast %803 : f32 to vector<4x16xf32>
    %807 = arith.mulf %806, %805 : vector<4x16xf32>
    %808 = arith.addf %802, %807 : vector<4x16xf32>
    %c116 = arith.constant 116 : index
    %809 = memref.load %arg2[%c116] : memref<294xf32, #tpu.memory_space<smem>>
    %c0_420 = arith.constant 0 : index
    %c4_421 = arith.constant 4 : index
    %c2_422 = arith.constant 2 : index
    %810 = vector.load %arg6[%c0_420, %c4_421, %c2_422] : memref<2x10x22xf32, #tpu.memory_space<vmem>>, vector<1x4x16xf32>
    %811 = vector.shape_cast %810 : vector<1x4x16xf32> to vector<4x16xf32>
    %812 = vector.broadcast %809 : f32 to vector<4x16xf32>
    %813 = arith.mulf %812, %811 : vector<4x16xf32>
    %814 = arith.addf %808, %813 : vector<4x16xf32>
    %c123 = arith.constant 123 : index
    %815 = memref.load %arg2[%c123] : memref<294xf32, #tpu.memory_space<smem>>
    %c0_423 = arith.constant 0 : index
    %c4_424 = arith.constant 4 : index
    %c3_425 = arith.constant 3 : index
    %816 = vector.load %arg6[%c0_423, %c4_424, %c3_425] : memref<2x10x22xf32, #tpu.memory_space<vmem>>, vector<1x4x16xf32>
    %817 = vector.shape_cast %816 : vector<1x4x16xf32> to vector<4x16xf32>
    %818 = vector.broadcast %815 : f32 to vector<4x16xf32>
    %819 = arith.mulf %818, %817 : vector<4x16xf32>
    %820 = arith.addf %814, %819 : vector<4x16xf32>
    %c130 = arith.constant 130 : index
    %821 = memref.load %arg2[%c130] : memref<294xf32, #tpu.memory_space<smem>>
    %c0_426 = arith.constant 0 : index
    %c4_427 = arith.constant 4 : index
    %c4_428 = arith.constant 4 : index
    %822 = vector.load %arg6[%c0_426, %c4_427, %c4_428] : memref<2x10x22xf32, #tpu.memory_space<vmem>>, vector<1x4x16xf32>
    %823 = vector.shape_cast %822 : vector<1x4x16xf32> to vector<4x16xf32>
    %824 = vector.broadcast %821 : f32 to vector<4x16xf32>
    %825 = arith.mulf %824, %823 : vector<4x16xf32>
    %826 = arith.addf %820, %825 : vector<4x16xf32>
    %c137 = arith.constant 137 : index
    %827 = memref.load %arg2[%c137] : memref<294xf32, #tpu.memory_space<smem>>
    %c0_429 = arith.constant 0 : index
    %c4_430 = arith.constant 4 : index
    %c5_431 = arith.constant 5 : index
    %828 = vector.load %arg6[%c0_429, %c4_430, %c5_431] : memref<2x10x22xf32, #tpu.memory_space<vmem>>, vector<1x4x16xf32>
    %829 = vector.shape_cast %828 : vector<1x4x16xf32> to vector<4x16xf32>
    %830 = vector.broadcast %827 : f32 to vector<4x16xf32>
    %831 = arith.mulf %830, %829 : vector<4x16xf32>
    %832 = arith.addf %826, %831 : vector<4x16xf32>
    %c144 = arith.constant 144 : index
    %833 = memref.load %arg2[%c144] : memref<294xf32, #tpu.memory_space<smem>>
    %c0_432 = arith.constant 0 : index
    %c4_433 = arith.constant 4 : index
    %c6_434 = arith.constant 6 : index
    %834 = vector.load %arg6[%c0_432, %c4_433, %c6_434] : memref<2x10x22xf32, #tpu.memory_space<vmem>>, vector<1x4x16xf32>
    %835 = vector.shape_cast %834 : vector<1x4x16xf32> to vector<4x16xf32>
    %836 = vector.broadcast %833 : f32 to vector<4x16xf32>
    %837 = arith.mulf %836, %835 : vector<4x16xf32>
    %838 = arith.addf %832, %837 : vector<4x16xf32>
    %c103 = arith.constant 103 : index
    %839 = memref.load %arg2[%c103] : memref<294xf32, #tpu.memory_space<smem>>
    %c0_435 = arith.constant 0 : index
    %c5_436 = arith.constant 5 : index
    %c0_437 = arith.constant 0 : index
    %840 = vector.load %arg6[%c0_435, %c5_436, %c0_437] : memref<2x10x22xf32, #tpu.memory_space<vmem>>, vector<1x4x16xf32>
    %841 = vector.shape_cast %840 : vector<1x4x16xf32> to vector<4x16xf32>
    %842 = vector.broadcast %839 : f32 to vector<4x16xf32>
    %843 = arith.mulf %842, %841 : vector<4x16xf32>
    %844 = arith.addf %838, %843 : vector<4x16xf32>
    %c110 = arith.constant 110 : index
    %845 = memref.load %arg2[%c110] : memref<294xf32, #tpu.memory_space<smem>>
    %c0_438 = arith.constant 0 : index
    %c5_439 = arith.constant 5 : index
    %c1_440 = arith.constant 1 : index
    %846 = vector.load %arg6[%c0_438, %c5_439, %c1_440] : memref<2x10x22xf32, #tpu.memory_space<vmem>>, vector<1x4x16xf32>
    %847 = vector.shape_cast %846 : vector<1x4x16xf32> to vector<4x16xf32>
    %848 = vector.broadcast %845 : f32 to vector<4x16xf32>
    %849 = arith.mulf %848, %847 : vector<4x16xf32>
    %850 = arith.addf %844, %849 : vector<4x16xf32>
    %c117 = arith.constant 117 : index
    %851 = memref.load %arg2[%c117] : memref<294xf32, #tpu.memory_space<smem>>
    %c0_441 = arith.constant 0 : index
    %c5_442 = arith.constant 5 : index
    %c2_443 = arith.constant 2 : index
    %852 = vector.load %arg6[%c0_441, %c5_442, %c2_443] : memref<2x10x22xf32, #tpu.memory_space<vmem>>, vector<1x4x16xf32>
    %853 = vector.shape_cast %852 : vector<1x4x16xf32> to vector<4x16xf32>
    %854 = vector.broadcast %851 : f32 to vector<4x16xf32>
    %855 = arith.mulf %854, %853 : vector<4x16xf32>
    %856 = arith.addf %850, %855 : vector<4x16xf32>
    %c124 = arith.constant 124 : index
    %857 = memref.load %arg2[%c124] : memref<294xf32, #tpu.memory_space<smem>>
    %c0_444 = arith.constant 0 : index
    %c5_445 = arith.constant 5 : index
    %c3_446 = arith.constant 3 : index
    %858 = vector.load %arg6[%c0_444, %c5_445, %c3_446] : memref<2x10x22xf32, #tpu.memory_space<vmem>>, vector<1x4x16xf32>
    %859 = vector.shape_cast %858 : vector<1x4x16xf32> to vector<4x16xf32>
    %860 = vector.broadcast %857 : f32 to vector<4x16xf32>
    %861 = arith.mulf %860, %859 : vector<4x16xf32>
    %862 = arith.addf %856, %861 : vector<4x16xf32>
    %c131 = arith.constant 131 : index
    %863 = memref.load %arg2[%c131] : memref<294xf32, #tpu.memory_space<smem>>
    %c0_447 = arith.constant 0 : index
    %c5_448 = arith.constant 5 : index
    %c4_449 = arith.constant 4 : index
    %864 = vector.load %arg6[%c0_447, %c5_448, %c4_449] : memref<2x10x22xf32, #tpu.memory_space<vmem>>, vector<1x4x16xf32>
    %865 = vector.shape_cast %864 : vector<1x4x16xf32> to vector<4x16xf32>
    %866 = vector.broadcast %863 : f32 to vector<4x16xf32>
    %867 = arith.mulf %866, %865 : vector<4x16xf32>
    %868 = arith.addf %862, %867 : vector<4x16xf32>
    %c138 = arith.constant 138 : index
    %869 = memref.load %arg2[%c138] : memref<294xf32, #tpu.memory_space<smem>>
    %c0_450 = arith.constant 0 : index
    %c5_451 = arith.constant 5 : index
    %c5_452 = arith.constant 5 : index
    %870 = vector.load %arg6[%c0_450, %c5_451, %c5_452] : memref<2x10x22xf32, #tpu.memory_space<vmem>>, vector<1x4x16xf32>
    %871 = vector.shape_cast %870 : vector<1x4x16xf32> to vector<4x16xf32>
    %872 = vector.broadcast %869 : f32 to vector<4x16xf32>
    %873 = arith.mulf %872, %871 : vector<4x16xf32>
    %874 = arith.addf %868, %873 : vector<4x16xf32>
    %c145 = arith.constant 145 : index
    %875 = memref.load %arg2[%c145] : memref<294xf32, #tpu.memory_space<smem>>
    %c0_453 = arith.constant 0 : index
    %c5_454 = arith.constant 5 : index
    %c6_455 = arith.constant 6 : index
    %876 = vector.load %arg6[%c0_453, %c5_454, %c6_455] : memref<2x10x22xf32, #tpu.memory_space<vmem>>, vector<1x4x16xf32>
    %877 = vector.shape_cast %876 : vector<1x4x16xf32> to vector<4x16xf32>
    %878 = vector.broadcast %875 : f32 to vector<4x16xf32>
    %879 = arith.mulf %878, %877 : vector<4x16xf32>
    %880 = arith.addf %874, %879 : vector<4x16xf32>
    %c104 = arith.constant 104 : index
    %881 = memref.load %arg2[%c104] : memref<294xf32, #tpu.memory_space<smem>>
    %c0_456 = arith.constant 0 : index
    %c6_457 = arith.constant 6 : index
    %c0_458 = arith.constant 0 : index
    %882 = vector.load %arg6[%c0_456, %c6_457, %c0_458] : memref<2x10x22xf32, #tpu.memory_space<vmem>>, vector<1x4x16xf32>
    %883 = vector.shape_cast %882 : vector<1x4x16xf32> to vector<4x16xf32>
    %884 = vector.broadcast %881 : f32 to vector<4x16xf32>
    %885 = arith.mulf %884, %883 : vector<4x16xf32>
    %886 = arith.addf %880, %885 : vector<4x16xf32>
    %c111 = arith.constant 111 : index
    %887 = memref.load %arg2[%c111] : memref<294xf32, #tpu.memory_space<smem>>
    %c0_459 = arith.constant 0 : index
    %c6_460 = arith.constant 6 : index
    %c1_461 = arith.constant 1 : index
    %888 = vector.load %arg6[%c0_459, %c6_460, %c1_461] : memref<2x10x22xf32, #tpu.memory_space<vmem>>, vector<1x4x16xf32>
    %889 = vector.shape_cast %888 : vector<1x4x16xf32> to vector<4x16xf32>
    %890 = vector.broadcast %887 : f32 to vector<4x16xf32>
    %891 = arith.mulf %890, %889 : vector<4x16xf32>
    %892 = arith.addf %886, %891 : vector<4x16xf32>
    %c118 = arith.constant 118 : index
    %893 = memref.load %arg2[%c118] : memref<294xf32, #tpu.memory_space<smem>>
    %c0_462 = arith.constant 0 : index
    %c6_463 = arith.constant 6 : index
    %c2_464 = arith.constant 2 : index
    %894 = vector.load %arg6[%c0_462, %c6_463, %c2_464] : memref<2x10x22xf32, #tpu.memory_space<vmem>>, vector<1x4x16xf32>
    %895 = vector.shape_cast %894 : vector<1x4x16xf32> to vector<4x16xf32>
    %896 = vector.broadcast %893 : f32 to vector<4x16xf32>
    %897 = arith.mulf %896, %895 : vector<4x16xf32>
    %898 = arith.addf %892, %897 : vector<4x16xf32>
    %c125 = arith.constant 125 : index
    %899 = memref.load %arg2[%c125] : memref<294xf32, #tpu.memory_space<smem>>
    %c0_465 = arith.constant 0 : index
    %c6_466 = arith.constant 6 : index
    %c3_467 = arith.constant 3 : index
    %900 = vector.load %arg6[%c0_465, %c6_466, %c3_467] : memref<2x10x22xf32, #tpu.memory_space<vmem>>, vector<1x4x16xf32>
    %901 = vector.shape_cast %900 : vector<1x4x16xf32> to vector<4x16xf32>
    %902 = vector.broadcast %899 : f32 to vector<4x16xf32>
    %903 = arith.mulf %902, %901 : vector<4x16xf32>
    %904 = arith.addf %898, %903 : vector<4x16xf32>
    %c132 = arith.constant 132 : index
    %905 = memref.load %arg2[%c132] : memref<294xf32, #tpu.memory_space<smem>>
    %c0_468 = arith.constant 0 : index
    %c6_469 = arith.constant 6 : index
    %c4_470 = arith.constant 4 : index
    %906 = vector.load %arg6[%c0_468, %c6_469, %c4_470] : memref<2x10x22xf32, #tpu.memory_space<vmem>>, vector<1x4x16xf32>
    %907 = vector.shape_cast %906 : vector<1x4x16xf32> to vector<4x16xf32>
    %908 = vector.broadcast %905 : f32 to vector<4x16xf32>
    %909 = arith.mulf %908, %907 : vector<4x16xf32>
    %910 = arith.addf %904, %909 : vector<4x16xf32>
    %c139 = arith.constant 139 : index
    %911 = memref.load %arg2[%c139] : memref<294xf32, #tpu.memory_space<smem>>
    %c0_471 = arith.constant 0 : index
    %c6_472 = arith.constant 6 : index
    %c5_473 = arith.constant 5 : index
    %912 = vector.load %arg6[%c0_471, %c6_472, %c5_473] : memref<2x10x22xf32, #tpu.memory_space<vmem>>, vector<1x4x16xf32>
    %913 = vector.shape_cast %912 : vector<1x4x16xf32> to vector<4x16xf32>
    %914 = vector.broadcast %911 : f32 to vector<4x16xf32>
    %915 = arith.mulf %914, %913 : vector<4x16xf32>
    %916 = arith.addf %910, %915 : vector<4x16xf32>
    %c146 = arith.constant 146 : index
    %917 = memref.load %arg2[%c146] : memref<294xf32, #tpu.memory_space<smem>>
    %c0_474 = arith.constant 0 : index
    %c6_475 = arith.constant 6 : index
    %c6_476 = arith.constant 6 : index
    %918 = vector.load %arg6[%c0_474, %c6_475, %c6_476] : memref<2x10x22xf32, #tpu.memory_space<vmem>>, vector<1x4x16xf32>
    %919 = vector.shape_cast %918 : vector<1x4x16xf32> to vector<4x16xf32>
    %920 = vector.broadcast %917 : f32 to vector<4x16xf32>
    %921 = arith.mulf %920, %919 : vector<4x16xf32>
    %922 = arith.addf %916, %921 : vector<4x16xf32>
    %c147 = arith.constant 147 : index
    %923 = memref.load %arg2[%c147] : memref<294xf32, #tpu.memory_space<smem>>
    %c1_477 = arith.constant 1 : index
    %c0_478 = arith.constant 0 : index
    %c0_479 = arith.constant 0 : index
    %924 = vector.load %arg6[%c1_477, %c0_478, %c0_479] : memref<2x10x22xf32, #tpu.memory_space<vmem>>, vector<1x4x16xf32>
    %925 = vector.shape_cast %924 : vector<1x4x16xf32> to vector<4x16xf32>
    %926 = vector.broadcast %923 : f32 to vector<4x16xf32>
    %927 = arith.mulf %926, %925 : vector<4x16xf32>
    %928 = arith.addf %922, %927 : vector<4x16xf32>
    %c154 = arith.constant 154 : index
    %929 = memref.load %arg2[%c154] : memref<294xf32, #tpu.memory_space<smem>>
    %c1_480 = arith.constant 1 : index
    %c0_481 = arith.constant 0 : index
    %c1_482 = arith.constant 1 : index
    %930 = vector.load %arg6[%c1_480, %c0_481, %c1_482] : memref<2x10x22xf32, #tpu.memory_space<vmem>>, vector<1x4x16xf32>
    %931 = vector.shape_cast %930 : vector<1x4x16xf32> to vector<4x16xf32>
    %932 = vector.broadcast %929 : f32 to vector<4x16xf32>
    %933 = arith.mulf %932, %931 : vector<4x16xf32>
    %934 = arith.addf %928, %933 : vector<4x16xf32>
    %c161 = arith.constant 161 : index
    %935 = memref.load %arg2[%c161] : memref<294xf32, #tpu.memory_space<smem>>
    %c1_483 = arith.constant 1 : index
    %c0_484 = arith.constant 0 : index
    %c2_485 = arith.constant 2 : index
    %936 = vector.load %arg6[%c1_483, %c0_484, %c2_485] : memref<2x10x22xf32, #tpu.memory_space<vmem>>, vector<1x4x16xf32>
    %937 = vector.shape_cast %936 : vector<1x4x16xf32> to vector<4x16xf32>
    %938 = vector.broadcast %935 : f32 to vector<4x16xf32>
    %939 = arith.mulf %938, %937 : vector<4x16xf32>
    %940 = arith.addf %934, %939 : vector<4x16xf32>
    %c168 = arith.constant 168 : index
    %941 = memref.load %arg2[%c168] : memref<294xf32, #tpu.memory_space<smem>>
    %c1_486 = arith.constant 1 : index
    %c0_487 = arith.constant 0 : index
    %c3_488 = arith.constant 3 : index
    %942 = vector.load %arg6[%c1_486, %c0_487, %c3_488] : memref<2x10x22xf32, #tpu.memory_space<vmem>>, vector<1x4x16xf32>
    %943 = vector.shape_cast %942 : vector<1x4x16xf32> to vector<4x16xf32>
    %944 = vector.broadcast %941 : f32 to vector<4x16xf32>
    %945 = arith.mulf %944, %943 : vector<4x16xf32>
    %946 = arith.addf %940, %945 : vector<4x16xf32>
    %c175 = arith.constant 175 : index
    %947 = memref.load %arg2[%c175] : memref<294xf32, #tpu.memory_space<smem>>
    %c1_489 = arith.constant 1 : index
    %c0_490 = arith.constant 0 : index
    %c4_491 = arith.constant 4 : index
    %948 = vector.load %arg6[%c1_489, %c0_490, %c4_491] : memref<2x10x22xf32, #tpu.memory_space<vmem>>, vector<1x4x16xf32>
    %949 = vector.shape_cast %948 : vector<1x4x16xf32> to vector<4x16xf32>
    %950 = vector.broadcast %947 : f32 to vector<4x16xf32>
    %951 = arith.mulf %950, %949 : vector<4x16xf32>
    %952 = arith.addf %946, %951 : vector<4x16xf32>
    %c182 = arith.constant 182 : index
    %953 = memref.load %arg2[%c182] : memref<294xf32, #tpu.memory_space<smem>>
    %c1_492 = arith.constant 1 : index
    %c0_493 = arith.constant 0 : index
    %c5_494 = arith.constant 5 : index
    %954 = vector.load %arg6[%c1_492, %c0_493, %c5_494] : memref<2x10x22xf32, #tpu.memory_space<vmem>>, vector<1x4x16xf32>
    %955 = vector.shape_cast %954 : vector<1x4x16xf32> to vector<4x16xf32>
    %956 = vector.broadcast %953 : f32 to vector<4x16xf32>
    %957 = arith.mulf %956, %955 : vector<4x16xf32>
    %958 = arith.addf %952, %957 : vector<4x16xf32>
    %c189 = arith.constant 189 : index
    %959 = memref.load %arg2[%c189] : memref<294xf32, #tpu.memory_space<smem>>
    %c1_495 = arith.constant 1 : index
    %c0_496 = arith.constant 0 : index
    %c6_497 = arith.constant 6 : index
    %960 = vector.load %arg6[%c1_495, %c0_496, %c6_497] : memref<2x10x22xf32, #tpu.memory_space<vmem>>, vector<1x4x16xf32>
    %961 = vector.shape_cast %960 : vector<1x4x16xf32> to vector<4x16xf32>
    %962 = vector.broadcast %959 : f32 to vector<4x16xf32>
    %963 = arith.mulf %962, %961 : vector<4x16xf32>
    %964 = arith.addf %958, %963 : vector<4x16xf32>
    %c148 = arith.constant 148 : index
    %965 = memref.load %arg2[%c148] : memref<294xf32, #tpu.memory_space<smem>>
    %c1_498 = arith.constant 1 : index
    %c1_499 = arith.constant 1 : index
    %c0_500 = arith.constant 0 : index
    %966 = vector.load %arg6[%c1_498, %c1_499, %c0_500] : memref<2x10x22xf32, #tpu.memory_space<vmem>>, vector<1x4x16xf32>
    %967 = vector.shape_cast %966 : vector<1x4x16xf32> to vector<4x16xf32>
    %968 = vector.broadcast %965 : f32 to vector<4x16xf32>
    %969 = arith.mulf %968, %967 : vector<4x16xf32>
    %970 = arith.addf %964, %969 : vector<4x16xf32>
    %c155 = arith.constant 155 : index
    %971 = memref.load %arg2[%c155] : memref<294xf32, #tpu.memory_space<smem>>
    %c1_501 = arith.constant 1 : index
    %c1_502 = arith.constant 1 : index
    %c1_503 = arith.constant 1 : index
    %972 = vector.load %arg6[%c1_501, %c1_502, %c1_503] : memref<2x10x22xf32, #tpu.memory_space<vmem>>, vector<1x4x16xf32>
    %973 = vector.shape_cast %972 : vector<1x4x16xf32> to vector<4x16xf32>
    %974 = vector.broadcast %971 : f32 to vector<4x16xf32>
    %975 = arith.mulf %974, %973 : vector<4x16xf32>
    %976 = arith.addf %970, %975 : vector<4x16xf32>
    %c162 = arith.constant 162 : index
    %977 = memref.load %arg2[%c162] : memref<294xf32, #tpu.memory_space<smem>>
    %c1_504 = arith.constant 1 : index
    %c1_505 = arith.constant 1 : index
    %c2_506 = arith.constant 2 : index
    %978 = vector.load %arg6[%c1_504, %c1_505, %c2_506] : memref<2x10x22xf32, #tpu.memory_space<vmem>>, vector<1x4x16xf32>
    %979 = vector.shape_cast %978 : vector<1x4x16xf32> to vector<4x16xf32>
    %980 = vector.broadcast %977 : f32 to vector<4x16xf32>
    %981 = arith.mulf %980, %979 : vector<4x16xf32>
    %982 = arith.addf %976, %981 : vector<4x16xf32>
    %c169 = arith.constant 169 : index
    %983 = memref.load %arg2[%c169] : memref<294xf32, #tpu.memory_space<smem>>
    %c1_507 = arith.constant 1 : index
    %c1_508 = arith.constant 1 : index
    %c3_509 = arith.constant 3 : index
    %984 = vector.load %arg6[%c1_507, %c1_508, %c3_509] : memref<2x10x22xf32, #tpu.memory_space<vmem>>, vector<1x4x16xf32>
    %985 = vector.shape_cast %984 : vector<1x4x16xf32> to vector<4x16xf32>
    %986 = vector.broadcast %983 : f32 to vector<4x16xf32>
    %987 = arith.mulf %986, %985 : vector<4x16xf32>
    %988 = arith.addf %982, %987 : vector<4x16xf32>
    %c176 = arith.constant 176 : index
    %989 = memref.load %arg2[%c176] : memref<294xf32, #tpu.memory_space<smem>>
    %c1_510 = arith.constant 1 : index
    %c1_511 = arith.constant 1 : index
    %c4_512 = arith.constant 4 : index
    %990 = vector.load %arg6[%c1_510, %c1_511, %c4_512] : memref<2x10x22xf32, #tpu.memory_space<vmem>>, vector<1x4x16xf32>
    %991 = vector.shape_cast %990 : vector<1x4x16xf32> to vector<4x16xf32>
    %992 = vector.broadcast %989 : f32 to vector<4x16xf32>
    %993 = arith.mulf %992, %991 : vector<4x16xf32>
    %994 = arith.addf %988, %993 : vector<4x16xf32>
    %c183 = arith.constant 183 : index
    %995 = memref.load %arg2[%c183] : memref<294xf32, #tpu.memory_space<smem>>
    %c1_513 = arith.constant 1 : index
    %c1_514 = arith.constant 1 : index
    %c5_515 = arith.constant 5 : index
    %996 = vector.load %arg6[%c1_513, %c1_514, %c5_515] : memref<2x10x22xf32, #tpu.memory_space<vmem>>, vector<1x4x16xf32>
    %997 = vector.shape_cast %996 : vector<1x4x16xf32> to vector<4x16xf32>
    %998 = vector.broadcast %995 : f32 to vector<4x16xf32>
    %999 = arith.mulf %998, %997 : vector<4x16xf32>
    %1000 = arith.addf %994, %999 : vector<4x16xf32>
    %c190 = arith.constant 190 : index
    %1001 = memref.load %arg2[%c190] : memref<294xf32, #tpu.memory_space<smem>>
    %c1_516 = arith.constant 1 : index
    %c1_517 = arith.constant 1 : index
    %c6_518 = arith.constant 6 : index
    %1002 = vector.load %arg6[%c1_516, %c1_517, %c6_518] : memref<2x10x22xf32, #tpu.memory_space<vmem>>, vector<1x4x16xf32>
    %1003 = vector.shape_cast %1002 : vector<1x4x16xf32> to vector<4x16xf32>
    %1004 = vector.broadcast %1001 : f32 to vector<4x16xf32>
    %1005 = arith.mulf %1004, %1003 : vector<4x16xf32>
    %1006 = arith.addf %1000, %1005 : vector<4x16xf32>
    %c149 = arith.constant 149 : index
    %1007 = memref.load %arg2[%c149] : memref<294xf32, #tpu.memory_space<smem>>
    %c1_519 = arith.constant 1 : index
    %c2_520 = arith.constant 2 : index
    %c0_521 = arith.constant 0 : index
    %1008 = vector.load %arg6[%c1_519, %c2_520, %c0_521] : memref<2x10x22xf32, #tpu.memory_space<vmem>>, vector<1x4x16xf32>
    %1009 = vector.shape_cast %1008 : vector<1x4x16xf32> to vector<4x16xf32>
    %1010 = vector.broadcast %1007 : f32 to vector<4x16xf32>
    %1011 = arith.mulf %1010, %1009 : vector<4x16xf32>
    %1012 = arith.addf %1006, %1011 : vector<4x16xf32>
    %c156 = arith.constant 156 : index
    %1013 = memref.load %arg2[%c156] : memref<294xf32, #tpu.memory_space<smem>>
    %c1_522 = arith.constant 1 : index
    %c2_523 = arith.constant 2 : index
    %c1_524 = arith.constant 1 : index
    %1014 = vector.load %arg6[%c1_522, %c2_523, %c1_524] : memref<2x10x22xf32, #tpu.memory_space<vmem>>, vector<1x4x16xf32>
    %1015 = vector.shape_cast %1014 : vector<1x4x16xf32> to vector<4x16xf32>
    %1016 = vector.broadcast %1013 : f32 to vector<4x16xf32>
    %1017 = arith.mulf %1016, %1015 : vector<4x16xf32>
    %1018 = arith.addf %1012, %1017 : vector<4x16xf32>
    %c163 = arith.constant 163 : index
    %1019 = memref.load %arg2[%c163] : memref<294xf32, #tpu.memory_space<smem>>
    %c1_525 = arith.constant 1 : index
    %c2_526 = arith.constant 2 : index
    %c2_527 = arith.constant 2 : index
    %1020 = vector.load %arg6[%c1_525, %c2_526, %c2_527] : memref<2x10x22xf32, #tpu.memory_space<vmem>>, vector<1x4x16xf32>
    %1021 = vector.shape_cast %1020 : vector<1x4x16xf32> to vector<4x16xf32>
    %1022 = vector.broadcast %1019 : f32 to vector<4x16xf32>
    %1023 = arith.mulf %1022, %1021 : vector<4x16xf32>
    %1024 = arith.addf %1018, %1023 : vector<4x16xf32>
    %c170 = arith.constant 170 : index
    %1025 = memref.load %arg2[%c170] : memref<294xf32, #tpu.memory_space<smem>>
    %c1_528 = arith.constant 1 : index
    %c2_529 = arith.constant 2 : index
    %c3_530 = arith.constant 3 : index
    %1026 = vector.load %arg6[%c1_528, %c2_529, %c3_530] : memref<2x10x22xf32, #tpu.memory_space<vmem>>, vector<1x4x16xf32>
    %1027 = vector.shape_cast %1026 : vector<1x4x16xf32> to vector<4x16xf32>
    %1028 = vector.broadcast %1025 : f32 to vector<4x16xf32>
    %1029 = arith.mulf %1028, %1027 : vector<4x16xf32>
    %1030 = arith.addf %1024, %1029 : vector<4x16xf32>
    %c177 = arith.constant 177 : index
    %1031 = memref.load %arg2[%c177] : memref<294xf32, #tpu.memory_space<smem>>
    %c1_531 = arith.constant 1 : index
    %c2_532 = arith.constant 2 : index
    %c4_533 = arith.constant 4 : index
    %1032 = vector.load %arg6[%c1_531, %c2_532, %c4_533] : memref<2x10x22xf32, #tpu.memory_space<vmem>>, vector<1x4x16xf32>
    %1033 = vector.shape_cast %1032 : vector<1x4x16xf32> to vector<4x16xf32>
    %1034 = vector.broadcast %1031 : f32 to vector<4x16xf32>
    %1035 = arith.mulf %1034, %1033 : vector<4x16xf32>
    %1036 = arith.addf %1030, %1035 : vector<4x16xf32>
    %c184 = arith.constant 184 : index
    %1037 = memref.load %arg2[%c184] : memref<294xf32, #tpu.memory_space<smem>>
    %c1_534 = arith.constant 1 : index
    %c2_535 = arith.constant 2 : index
    %c5_536 = arith.constant 5 : index
    %1038 = vector.load %arg6[%c1_534, %c2_535, %c5_536] : memref<2x10x22xf32, #tpu.memory_space<vmem>>, vector<1x4x16xf32>
    %1039 = vector.shape_cast %1038 : vector<1x4x16xf32> to vector<4x16xf32>
    %1040 = vector.broadcast %1037 : f32 to vector<4x16xf32>
    %1041 = arith.mulf %1040, %1039 : vector<4x16xf32>
    %1042 = arith.addf %1036, %1041 : vector<4x16xf32>
    %c191 = arith.constant 191 : index
    %1043 = memref.load %arg2[%c191] : memref<294xf32, #tpu.memory_space<smem>>
    %c1_537 = arith.constant 1 : index
    %c2_538 = arith.constant 2 : index
    %c6_539 = arith.constant 6 : index
    %1044 = vector.load %arg6[%c1_537, %c2_538, %c6_539] : memref<2x10x22xf32, #tpu.memory_space<vmem>>, vector<1x4x16xf32>
    %1045 = vector.shape_cast %1044 : vector<1x4x16xf32> to vector<4x16xf32>
    %1046 = vector.broadcast %1043 : f32 to vector<4x16xf32>
    %1047 = arith.mulf %1046, %1045 : vector<4x16xf32>
    %1048 = arith.addf %1042, %1047 : vector<4x16xf32>
    %c150 = arith.constant 150 : index
    %1049 = memref.load %arg2[%c150] : memref<294xf32, #tpu.memory_space<smem>>
    %c1_540 = arith.constant 1 : index
    %c3_541 = arith.constant 3 : index
    %c0_542 = arith.constant 0 : index
    %1050 = vector.load %arg6[%c1_540, %c3_541, %c0_542] : memref<2x10x22xf32, #tpu.memory_space<vmem>>, vector<1x4x16xf32>
    %1051 = vector.shape_cast %1050 : vector<1x4x16xf32> to vector<4x16xf32>
    %1052 = vector.broadcast %1049 : f32 to vector<4x16xf32>
    %1053 = arith.mulf %1052, %1051 : vector<4x16xf32>
    %1054 = arith.addf %1048, %1053 : vector<4x16xf32>
    %c157 = arith.constant 157 : index
    %1055 = memref.load %arg2[%c157] : memref<294xf32, #tpu.memory_space<smem>>
    %c1_543 = arith.constant 1 : index
    %c3_544 = arith.constant 3 : index
    %c1_545 = arith.constant 1 : index
    %1056 = vector.load %arg6[%c1_543, %c3_544, %c1_545] : memref<2x10x22xf32, #tpu.memory_space<vmem>>, vector<1x4x16xf32>
    %1057 = vector.shape_cast %1056 : vector<1x4x16xf32> to vector<4x16xf32>
    %1058 = vector.broadcast %1055 : f32 to vector<4x16xf32>
    %1059 = arith.mulf %1058, %1057 : vector<4x16xf32>
    %1060 = arith.addf %1054, %1059 : vector<4x16xf32>
    %c164 = arith.constant 164 : index
    %1061 = memref.load %arg2[%c164] : memref<294xf32, #tpu.memory_space<smem>>
    %c1_546 = arith.constant 1 : index
    %c3_547 = arith.constant 3 : index
    %c2_548 = arith.constant 2 : index
    %1062 = vector.load %arg6[%c1_546, %c3_547, %c2_548] : memref<2x10x22xf32, #tpu.memory_space<vmem>>, vector<1x4x16xf32>
    %1063 = vector.shape_cast %1062 : vector<1x4x16xf32> to vector<4x16xf32>
    %1064 = vector.broadcast %1061 : f32 to vector<4x16xf32>
    %1065 = arith.mulf %1064, %1063 : vector<4x16xf32>
    %1066 = arith.addf %1060, %1065 : vector<4x16xf32>
    %c171 = arith.constant 171 : index
    %1067 = memref.load %arg2[%c171] : memref<294xf32, #tpu.memory_space<smem>>
    %c1_549 = arith.constant 1 : index
    %c3_550 = arith.constant 3 : index
    %c3_551 = arith.constant 3 : index
    %1068 = vector.load %arg6[%c1_549, %c3_550, %c3_551] : memref<2x10x22xf32, #tpu.memory_space<vmem>>, vector<1x4x16xf32>
    %1069 = vector.shape_cast %1068 : vector<1x4x16xf32> to vector<4x16xf32>
    %1070 = vector.broadcast %1067 : f32 to vector<4x16xf32>
    %1071 = arith.mulf %1070, %1069 : vector<4x16xf32>
    %1072 = arith.addf %1066, %1071 : vector<4x16xf32>
    %c178 = arith.constant 178 : index
    %1073 = memref.load %arg2[%c178] : memref<294xf32, #tpu.memory_space<smem>>
    %c1_552 = arith.constant 1 : index
    %c3_553 = arith.constant 3 : index
    %c4_554 = arith.constant 4 : index
    %1074 = vector.load %arg6[%c1_552, %c3_553, %c4_554] : memref<2x10x22xf32, #tpu.memory_space<vmem>>, vector<1x4x16xf32>
    %1075 = vector.shape_cast %1074 : vector<1x4x16xf32> to vector<4x16xf32>
    %1076 = vector.broadcast %1073 : f32 to vector<4x16xf32>
    %1077 = arith.mulf %1076, %1075 : vector<4x16xf32>
    %1078 = arith.addf %1072, %1077 : vector<4x16xf32>
    %c185 = arith.constant 185 : index
    %1079 = memref.load %arg2[%c185] : memref<294xf32, #tpu.memory_space<smem>>
    %c1_555 = arith.constant 1 : index
    %c3_556 = arith.constant 3 : index
    %c5_557 = arith.constant 5 : index
    %1080 = vector.load %arg6[%c1_555, %c3_556, %c5_557] : memref<2x10x22xf32, #tpu.memory_space<vmem>>, vector<1x4x16xf32>
    %1081 = vector.shape_cast %1080 : vector<1x4x16xf32> to vector<4x16xf32>
    %1082 = vector.broadcast %1079 : f32 to vector<4x16xf32>
    %1083 = arith.mulf %1082, %1081 : vector<4x16xf32>
    %1084 = arith.addf %1078, %1083 : vector<4x16xf32>
    %c192 = arith.constant 192 : index
    %1085 = memref.load %arg2[%c192] : memref<294xf32, #tpu.memory_space<smem>>
    %c1_558 = arith.constant 1 : index
    %c3_559 = arith.constant 3 : index
    %c6_560 = arith.constant 6 : index
    %1086 = vector.load %arg6[%c1_558, %c3_559, %c6_560] : memref<2x10x22xf32, #tpu.memory_space<vmem>>, vector<1x4x16xf32>
    %1087 = vector.shape_cast %1086 : vector<1x4x16xf32> to vector<4x16xf32>
    %1088 = vector.broadcast %1085 : f32 to vector<4x16xf32>
    %1089 = arith.mulf %1088, %1087 : vector<4x16xf32>
    %1090 = arith.addf %1084, %1089 : vector<4x16xf32>
    %c151 = arith.constant 151 : index
    %1091 = memref.load %arg2[%c151] : memref<294xf32, #tpu.memory_space<smem>>
    %c1_561 = arith.constant 1 : index
    %c4_562 = arith.constant 4 : index
    %c0_563 = arith.constant 0 : index
    %1092 = vector.load %arg6[%c1_561, %c4_562, %c0_563] : memref<2x10x22xf32, #tpu.memory_space<vmem>>, vector<1x4x16xf32>
    %1093 = vector.shape_cast %1092 : vector<1x4x16xf32> to vector<4x16xf32>
    %1094 = vector.broadcast %1091 : f32 to vector<4x16xf32>
    %1095 = arith.mulf %1094, %1093 : vector<4x16xf32>
    %1096 = arith.addf %1090, %1095 : vector<4x16xf32>
    %c158 = arith.constant 158 : index
    %1097 = memref.load %arg2[%c158] : memref<294xf32, #tpu.memory_space<smem>>
    %c1_564 = arith.constant 1 : index
    %c4_565 = arith.constant 4 : index
    %c1_566 = arith.constant 1 : index
    %1098 = vector.load %arg6[%c1_564, %c4_565, %c1_566] : memref<2x10x22xf32, #tpu.memory_space<vmem>>, vector<1x4x16xf32>
    %1099 = vector.shape_cast %1098 : vector<1x4x16xf32> to vector<4x16xf32>
    %1100 = vector.broadcast %1097 : f32 to vector<4x16xf32>
    %1101 = arith.mulf %1100, %1099 : vector<4x16xf32>
    %1102 = arith.addf %1096, %1101 : vector<4x16xf32>
    %c165 = arith.constant 165 : index
    %1103 = memref.load %arg2[%c165] : memref<294xf32, #tpu.memory_space<smem>>
    %c1_567 = arith.constant 1 : index
    %c4_568 = arith.constant 4 : index
    %c2_569 = arith.constant 2 : index
    %1104 = vector.load %arg6[%c1_567, %c4_568, %c2_569] : memref<2x10x22xf32, #tpu.memory_space<vmem>>, vector<1x4x16xf32>
    %1105 = vector.shape_cast %1104 : vector<1x4x16xf32> to vector<4x16xf32>
    %1106 = vector.broadcast %1103 : f32 to vector<4x16xf32>
    %1107 = arith.mulf %1106, %1105 : vector<4x16xf32>
    %1108 = arith.addf %1102, %1107 : vector<4x16xf32>
    %c172 = arith.constant 172 : index
    %1109 = memref.load %arg2[%c172] : memref<294xf32, #tpu.memory_space<smem>>
    %c1_570 = arith.constant 1 : index
    %c4_571 = arith.constant 4 : index
    %c3_572 = arith.constant 3 : index
    %1110 = vector.load %arg6[%c1_570, %c4_571, %c3_572] : memref<2x10x22xf32, #tpu.memory_space<vmem>>, vector<1x4x16xf32>
    %1111 = vector.shape_cast %1110 : vector<1x4x16xf32> to vector<4x16xf32>
    %1112 = vector.broadcast %1109 : f32 to vector<4x16xf32>
    %1113 = arith.mulf %1112, %1111 : vector<4x16xf32>
    %1114 = arith.addf %1108, %1113 : vector<4x16xf32>
    %c179 = arith.constant 179 : index
    %1115 = memref.load %arg2[%c179] : memref<294xf32, #tpu.memory_space<smem>>
    %c1_573 = arith.constant 1 : index
    %c4_574 = arith.constant 4 : index
    %c4_575 = arith.constant 4 : index
    %1116 = vector.load %arg6[%c1_573, %c4_574, %c4_575] : memref<2x10x22xf32, #tpu.memory_space<vmem>>, vector<1x4x16xf32>
    %1117 = vector.shape_cast %1116 : vector<1x4x16xf32> to vector<4x16xf32>
    %1118 = vector.broadcast %1115 : f32 to vector<4x16xf32>
    %1119 = arith.mulf %1118, %1117 : vector<4x16xf32>
    %1120 = arith.addf %1114, %1119 : vector<4x16xf32>
    %c186 = arith.constant 186 : index
    %1121 = memref.load %arg2[%c186] : memref<294xf32, #tpu.memory_space<smem>>
    %c1_576 = arith.constant 1 : index
    %c4_577 = arith.constant 4 : index
    %c5_578 = arith.constant 5 : index
    %1122 = vector.load %arg6[%c1_576, %c4_577, %c5_578] : memref<2x10x22xf32, #tpu.memory_space<vmem>>, vector<1x4x16xf32>
    %1123 = vector.shape_cast %1122 : vector<1x4x16xf32> to vector<4x16xf32>
    %1124 = vector.broadcast %1121 : f32 to vector<4x16xf32>
    %1125 = arith.mulf %1124, %1123 : vector<4x16xf32>
    %1126 = arith.addf %1120, %1125 : vector<4x16xf32>
    %c193 = arith.constant 193 : index
    %1127 = memref.load %arg2[%c193] : memref<294xf32, #tpu.memory_space<smem>>
    %c1_579 = arith.constant 1 : index
    %c4_580 = arith.constant 4 : index
    %c6_581 = arith.constant 6 : index
    %1128 = vector.load %arg6[%c1_579, %c4_580, %c6_581] : memref<2x10x22xf32, #tpu.memory_space<vmem>>, vector<1x4x16xf32>
    %1129 = vector.shape_cast %1128 : vector<1x4x16xf32> to vector<4x16xf32>
    %1130 = vector.broadcast %1127 : f32 to vector<4x16xf32>
    %1131 = arith.mulf %1130, %1129 : vector<4x16xf32>
    %1132 = arith.addf %1126, %1131 : vector<4x16xf32>
    %c152 = arith.constant 152 : index
    %1133 = memref.load %arg2[%c152] : memref<294xf32, #tpu.memory_space<smem>>
    %c1_582 = arith.constant 1 : index
    %c5_583 = arith.constant 5 : index
    %c0_584 = arith.constant 0 : index
    %1134 = vector.load %arg6[%c1_582, %c5_583, %c0_584] : memref<2x10x22xf32, #tpu.memory_space<vmem>>, vector<1x4x16xf32>
    %1135 = vector.shape_cast %1134 : vector<1x4x16xf32> to vector<4x16xf32>
    %1136 = vector.broadcast %1133 : f32 to vector<4x16xf32>
    %1137 = arith.mulf %1136, %1135 : vector<4x16xf32>
    %1138 = arith.addf %1132, %1137 : vector<4x16xf32>
    %c159 = arith.constant 159 : index
    %1139 = memref.load %arg2[%c159] : memref<294xf32, #tpu.memory_space<smem>>
    %c1_585 = arith.constant 1 : index
    %c5_586 = arith.constant 5 : index
    %c1_587 = arith.constant 1 : index
    %1140 = vector.load %arg6[%c1_585, %c5_586, %c1_587] : memref<2x10x22xf32, #tpu.memory_space<vmem>>, vector<1x4x16xf32>
    %1141 = vector.shape_cast %1140 : vector<1x4x16xf32> to vector<4x16xf32>
    %1142 = vector.broadcast %1139 : f32 to vector<4x16xf32>
    %1143 = arith.mulf %1142, %1141 : vector<4x16xf32>
    %1144 = arith.addf %1138, %1143 : vector<4x16xf32>
    %c166 = arith.constant 166 : index
    %1145 = memref.load %arg2[%c166] : memref<294xf32, #tpu.memory_space<smem>>
    %c1_588 = arith.constant 1 : index
    %c5_589 = arith.constant 5 : index
    %c2_590 = arith.constant 2 : index
    %1146 = vector.load %arg6[%c1_588, %c5_589, %c2_590] : memref<2x10x22xf32, #tpu.memory_space<vmem>>, vector<1x4x16xf32>
    %1147 = vector.shape_cast %1146 : vector<1x4x16xf32> to vector<4x16xf32>
    %1148 = vector.broadcast %1145 : f32 to vector<4x16xf32>
    %1149 = arith.mulf %1148, %1147 : vector<4x16xf32>
    %1150 = arith.addf %1144, %1149 : vector<4x16xf32>
    %c173 = arith.constant 173 : index
    %1151 = memref.load %arg2[%c173] : memref<294xf32, #tpu.memory_space<smem>>
    %c1_591 = arith.constant 1 : index
    %c5_592 = arith.constant 5 : index
    %c3_593 = arith.constant 3 : index
    %1152 = vector.load %arg6[%c1_591, %c5_592, %c3_593] : memref<2x10x22xf32, #tpu.memory_space<vmem>>, vector<1x4x16xf32>
    %1153 = vector.shape_cast %1152 : vector<1x4x16xf32> to vector<4x16xf32>
    %1154 = vector.broadcast %1151 : f32 to vector<4x16xf32>
    %1155 = arith.mulf %1154, %1153 : vector<4x16xf32>
    %1156 = arith.addf %1150, %1155 : vector<4x16xf32>
    %c180 = arith.constant 180 : index
    %1157 = memref.load %arg2[%c180] : memref<294xf32, #tpu.memory_space<smem>>
    %c1_594 = arith.constant 1 : index
    %c5_595 = arith.constant 5 : index
    %c4_596 = arith.constant 4 : index
    %1158 = vector.load %arg6[%c1_594, %c5_595, %c4_596] : memref<2x10x22xf32, #tpu.memory_space<vmem>>, vector<1x4x16xf32>
    %1159 = vector.shape_cast %1158 : vector<1x4x16xf32> to vector<4x16xf32>
    %1160 = vector.broadcast %1157 : f32 to vector<4x16xf32>
    %1161 = arith.mulf %1160, %1159 : vector<4x16xf32>
    %1162 = arith.addf %1156, %1161 : vector<4x16xf32>
    %c187 = arith.constant 187 : index
    %1163 = memref.load %arg2[%c187] : memref<294xf32, #tpu.memory_space<smem>>
    %c1_597 = arith.constant 1 : index
    %c5_598 = arith.constant 5 : index
    %c5_599 = arith.constant 5 : index
    %1164 = vector.load %arg6[%c1_597, %c5_598, %c5_599] : memref<2x10x22xf32, #tpu.memory_space<vmem>>, vector<1x4x16xf32>
    %1165 = vector.shape_cast %1164 : vector<1x4x16xf32> to vector<4x16xf32>
    %1166 = vector.broadcast %1163 : f32 to vector<4x16xf32>
    %1167 = arith.mulf %1166, %1165 : vector<4x16xf32>
    %1168 = arith.addf %1162, %1167 : vector<4x16xf32>
    %c194 = arith.constant 194 : index
    %1169 = memref.load %arg2[%c194] : memref<294xf32, #tpu.memory_space<smem>>
    %c1_600 = arith.constant 1 : index
    %c5_601 = arith.constant 5 : index
    %c6_602 = arith.constant 6 : index
    %1170 = vector.load %arg6[%c1_600, %c5_601, %c6_602] : memref<2x10x22xf32, #tpu.memory_space<vmem>>, vector<1x4x16xf32>
    %1171 = vector.shape_cast %1170 : vector<1x4x16xf32> to vector<4x16xf32>
    %1172 = vector.broadcast %1169 : f32 to vector<4x16xf32>
    %1173 = arith.mulf %1172, %1171 : vector<4x16xf32>
    %1174 = arith.addf %1168, %1173 : vector<4x16xf32>
    %c153 = arith.constant 153 : index
    %1175 = memref.load %arg2[%c153] : memref<294xf32, #tpu.memory_space<smem>>
    %c1_603 = arith.constant 1 : index
    %c6_604 = arith.constant 6 : index
    %c0_605 = arith.constant 0 : index
    %1176 = vector.load %arg6[%c1_603, %c6_604, %c0_605] : memref<2x10x22xf32, #tpu.memory_space<vmem>>, vector<1x4x16xf32>
    %1177 = vector.shape_cast %1176 : vector<1x4x16xf32> to vector<4x16xf32>
    %1178 = vector.broadcast %1175 : f32 to vector<4x16xf32>
    %1179 = arith.mulf %1178, %1177 : vector<4x16xf32>
    %1180 = arith.addf %1174, %1179 : vector<4x16xf32>
    %c160 = arith.constant 160 : index
    %1181 = memref.load %arg2[%c160] : memref<294xf32, #tpu.memory_space<smem>>
    %c1_606 = arith.constant 1 : index
    %c6_607 = arith.constant 6 : index
    %c1_608 = arith.constant 1 : index
    %1182 = vector.load %arg6[%c1_606, %c6_607, %c1_608] : memref<2x10x22xf32, #tpu.memory_space<vmem>>, vector<1x4x16xf32>
    %1183 = vector.shape_cast %1182 : vector<1x4x16xf32> to vector<4x16xf32>
    %1184 = vector.broadcast %1181 : f32 to vector<4x16xf32>
    %1185 = arith.mulf %1184, %1183 : vector<4x16xf32>
    %1186 = arith.addf %1180, %1185 : vector<4x16xf32>
    %c167 = arith.constant 167 : index
    %1187 = memref.load %arg2[%c167] : memref<294xf32, #tpu.memory_space<smem>>
    %c1_609 = arith.constant 1 : index
    %c6_610 = arith.constant 6 : index
    %c2_611 = arith.constant 2 : index
    %1188 = vector.load %arg6[%c1_609, %c6_610, %c2_611] : memref<2x10x22xf32, #tpu.memory_space<vmem>>, vector<1x4x16xf32>
    %1189 = vector.shape_cast %1188 : vector<1x4x16xf32> to vector<4x16xf32>
    %1190 = vector.broadcast %1187 : f32 to vector<4x16xf32>
    %1191 = arith.mulf %1190, %1189 : vector<4x16xf32>
    %1192 = arith.addf %1186, %1191 : vector<4x16xf32>
    %c174 = arith.constant 174 : index
    %1193 = memref.load %arg2[%c174] : memref<294xf32, #tpu.memory_space<smem>>
    %c1_612 = arith.constant 1 : index
    %c6_613 = arith.constant 6 : index
    %c3_614 = arith.constant 3 : index
    %1194 = vector.load %arg6[%c1_612, %c6_613, %c3_614] : memref<2x10x22xf32, #tpu.memory_space<vmem>>, vector<1x4x16xf32>
    %1195 = vector.shape_cast %1194 : vector<1x4x16xf32> to vector<4x16xf32>
    %1196 = vector.broadcast %1193 : f32 to vector<4x16xf32>
    %1197 = arith.mulf %1196, %1195 : vector<4x16xf32>
    %1198 = arith.addf %1192, %1197 : vector<4x16xf32>
    %c181 = arith.constant 181 : index
    %1199 = memref.load %arg2[%c181] : memref<294xf32, #tpu.memory_space<smem>>
    %c1_615 = arith.constant 1 : index
    %c6_616 = arith.constant 6 : index
    %c4_617 = arith.constant 4 : index
    %1200 = vector.load %arg6[%c1_615, %c6_616, %c4_617] : memref<2x10x22xf32, #tpu.memory_space<vmem>>, vector<1x4x16xf32>
    %1201 = vector.shape_cast %1200 : vector<1x4x16xf32> to vector<4x16xf32>
    %1202 = vector.broadcast %1199 : f32 to vector<4x16xf32>
    %1203 = arith.mulf %1202, %1201 : vector<4x16xf32>
    %1204 = arith.addf %1198, %1203 : vector<4x16xf32>
    %c188 = arith.constant 188 : index
    %1205 = memref.load %arg2[%c188] : memref<294xf32, #tpu.memory_space<smem>>
    %c1_618 = arith.constant 1 : index
    %c6_619 = arith.constant 6 : index
    %c5_620 = arith.constant 5 : index
    %1206 = vector.load %arg6[%c1_618, %c6_619, %c5_620] : memref<2x10x22xf32, #tpu.memory_space<vmem>>, vector<1x4x16xf32>
    %1207 = vector.shape_cast %1206 : vector<1x4x16xf32> to vector<4x16xf32>
    %1208 = vector.broadcast %1205 : f32 to vector<4x16xf32>
    %1209 = arith.mulf %1208, %1207 : vector<4x16xf32>
    %1210 = arith.addf %1204, %1209 : vector<4x16xf32>
    %c195 = arith.constant 195 : index
    %1211 = memref.load %arg2[%c195] : memref<294xf32, #tpu.memory_space<smem>>
    %c1_621 = arith.constant 1 : index
    %c6_622 = arith.constant 6 : index
    %c6_623 = arith.constant 6 : index
    %1212 = vector.load %arg6[%c1_621, %c6_622, %c6_623] : memref<2x10x22xf32, #tpu.memory_space<vmem>>, vector<1x4x16xf32>
    %1213 = vector.shape_cast %1212 : vector<1x4x16xf32> to vector<4x16xf32>
    %1214 = vector.broadcast %1211 : f32 to vector<4x16xf32>
    %1215 = arith.mulf %1214, %1213 : vector<4x16xf32>
    %1216 = arith.addf %1210, %1215 : vector<4x16xf32>
    %c2_624 = arith.constant 2 : index
    %1217 = memref.load %arg3[%c2_624] : memref<6xf32, #tpu.memory_space<smem>>
    %c3_625 = arith.constant 3 : index
    %1218 = memref.load %arg3[%c3_625] : memref<6xf32, #tpu.memory_space<smem>>
    %1219 = vector.broadcast %1217 : f32 to vector<4x16xf32>
    %1220 = arith.mulf %1216, %1219 : vector<4x16xf32>
    %1221 = vector.broadcast %1218 : f32 to vector<4x16xf32>
    %1222 = arith.addf %1220, %1221 : vector<4x16xf32>
    %cst_626 = arith.constant 0.000000e+00 : f32
    %1223 = vector.broadcast %cst_626 : f32 to vector<4x16xf32>
    %1224 = arith.subf %1223, %1222 : vector<4x16xf32>
    %1225 = math.exp %1224 : vector<4x16xf32>
    %cst_627 = arith.constant 1.000000e+00 : f32
    %1226 = vector.broadcast %cst_627 : f32 to vector<4x16xf32>
    %1227 = arith.addf %1226, %1225 : vector<4x16xf32>
    %cst_628 = arith.constant 1.000000e+00 : f32
    %1228 = vector.broadcast %cst_628 : f32 to vector<4x16xf32>
    %1229 = arith.divf %1228, %1227 : vector<4x16xf32>
    %cst_629 = arith.constant dense<0xFF800000> : vector<16x16xf32>
    %1230 = vector.multi_reduction <maximumf>, %1, %cst_629 [0] : vector<4x16x16xf32> to vector<16x16xf32>
    %cst_630 = arith.constant dense<0.000000e+00> : vector<16x16xf32>
    %1231 = vector.multi_reduction <add>, %1, %cst_630 [0] : vector<4x16x16xf32> to vector<16x16xf32>
    %cst_631 = arith.constant 4.000000e+00 : f32
    %1232 = vector.broadcast %cst_631 : f32 to vector<16x16xf32>
    %1233 = arith.divf %1231, %1232 : vector<16x16xf32>
    %cst_632 = arith.constant 0.000000e+00 : f32
    %1234 = vector.broadcast %cst_632 : f32 to vector<2x22x22xf32>
    %c0_633 = arith.constant 0 : index
    %c0_634 = arith.constant 0 : index
    %c0_635 = arith.constant 0 : index
    %1235 = vector.load %arg7[%c0_633, %c0_634, %c0_635] : memref<2x22x22xf32, #tpu.memory_space<vmem>>, vector<2x22x22xf32>
    tpu.vector_store %arg7[%c0_633, %c0_634, %c0_635], %1234 {strides = array<i32>} : memref<2x22x22xf32, #tpu.memory_space<vmem>>, vector<2x22x22xf32>,
    %c0_636 = arith.constant 0 : index
    %c3_637 = arith.constant 3 : index
    %c3_638 = arith.constant 3 : index
    %1236 = vector.load %arg7[%c0_636, %c3_637, %c3_638] : memref<2x22x22xf32, #tpu.memory_space<vmem>>, vector<1x16x16xf32>
    %1237 = vector.shape_cast %1236 : vector<1x16x16xf32> to vector<16x16xf32>
    %1238 = vector.shape_cast %1230 : vector<16x16xf32> to vector<1x16x16xf32>
    tpu.vector_store %arg7[%c0_636, %c3_637, %c3_638], %1238 {strides = array<i32>} : memref<2x22x22xf32, #tpu.memory_space<vmem>>, vector<1x16x16xf32>,
    %c1_639 = arith.constant 1 : index
    %c3_640 = arith.constant 3 : index
    %c3_641 = arith.constant 3 : index
    %1239 = vector.load %arg7[%c1_639, %c3_640, %c3_641] : memref<2x22x22xf32, #tpu.memory_space<vmem>>, vector<1x16x16xf32>
    %1240 = vector.shape_cast %1239 : vector<1x16x16xf32> to vector<16x16xf32>
    %1241 = vector.shape_cast %1233 : vector<16x16xf32> to vector<1x16x16xf32>
    tpu.vector_store %arg7[%c1_639, %c3_640, %c3_641], %1241 {strides = array<i32>} : memref<2x22x22xf32, #tpu.memory_space<vmem>>, vector<1x16x16xf32>,
    %cst_642 = arith.constant 0.000000e+00 : f32
    %1242 = vector.broadcast %cst_642 : f32 to vector<16x16xf32>
    %c196 = arith.constant 196 : index
    %1243 = memref.load %arg2[%c196] : memref<294xf32, #tpu.memory_space<smem>>
    %c0_643 = arith.constant 0 : index
    %c0_644 = arith.constant 0 : index
    %c0_645 = arith.constant 0 : index
    %1244 = vector.load %arg7[%c0_643, %c0_644, %c0_645] : memref<2x22x22xf32, #tpu.memory_space<vmem>>, vector<1x16x16xf32>
    %1245 = vector.shape_cast %1244 : vector<1x16x16xf32> to vector<16x16xf32>
    %1246 = vector.broadcast %1243 : f32 to vector<16x16xf32>
    %1247 = arith.mulf %1246, %1245 : vector<16x16xf32>
    %1248 = arith.addf %1242, %1247 : vector<16x16xf32>
    %c197 = arith.constant 197 : index
    %1249 = memref.load %arg2[%c197] : memref<294xf32, #tpu.memory_space<smem>>
    %c0_646 = arith.constant 0 : index
    %c0_647 = arith.constant 0 : index
    %c1_648 = arith.constant 1 : index
    %1250 = vector.load %arg7[%c0_646, %c0_647, %c1_648] : memref<2x22x22xf32, #tpu.memory_space<vmem>>, vector<1x16x16xf32>
    %1251 = vector.shape_cast %1250 : vector<1x16x16xf32> to vector<16x16xf32>
    %1252 = vector.broadcast %1249 : f32 to vector<16x16xf32>
    %1253 = arith.mulf %1252, %1251 : vector<16x16xf32>
    %1254 = arith.addf %1248, %1253 : vector<16x16xf32>
    %c198 = arith.constant 198 : index
    %1255 = memref.load %arg2[%c198] : memref<294xf32, #tpu.memory_space<smem>>
    %c0_649 = arith.constant 0 : index
    %c0_650 = arith.constant 0 : index
    %c2_651 = arith.constant 2 : index
    %1256 = vector.load %arg7[%c0_649, %c0_650, %c2_651] : memref<2x22x22xf32, #tpu.memory_space<vmem>>, vector<1x16x16xf32>
    %1257 = vector.shape_cast %1256 : vector<1x16x16xf32> to vector<16x16xf32>
    %1258 = vector.broadcast %1255 : f32 to vector<16x16xf32>
    %1259 = arith.mulf %1258, %1257 : vector<16x16xf32>
    %1260 = arith.addf %1254, %1259 : vector<16x16xf32>
    %c199 = arith.constant 199 : index
    %1261 = memref.load %arg2[%c199] : memref<294xf32, #tpu.memory_space<smem>>
    %c0_652 = arith.constant 0 : index
    %c0_653 = arith.constant 0 : index
    %c3_654 = arith.constant 3 : index
    %1262 = vector.load %arg7[%c0_652, %c0_653, %c3_654] : memref<2x22x22xf32, #tpu.memory_space<vmem>>, vector<1x16x16xf32>
    %1263 = vector.shape_cast %1262 : vector<1x16x16xf32> to vector<16x16xf32>
    %1264 = vector.broadcast %1261 : f32 to vector<16x16xf32>
    %1265 = arith.mulf %1264, %1263 : vector<16x16xf32>
    %1266 = arith.addf %1260, %1265 : vector<16x16xf32>
    %c200 = arith.constant 200 : index
    %1267 = memref.load %arg2[%c200] : memref<294xf32, #tpu.memory_space<smem>>
    %c0_655 = arith.constant 0 : index
    %c0_656 = arith.constant 0 : index
    %c4_657 = arith.constant 4 : index
    %1268 = vector.load %arg7[%c0_655, %c0_656, %c4_657] : memref<2x22x22xf32, #tpu.memory_space<vmem>>, vector<1x16x16xf32>
    %1269 = vector.shape_cast %1268 : vector<1x16x16xf32> to vector<16x16xf32>
    %1270 = vector.broadcast %1267 : f32 to vector<16x16xf32>
    %1271 = arith.mulf %1270, %1269 : vector<16x16xf32>
    %1272 = arith.addf %1266, %1271 : vector<16x16xf32>
    %c201 = arith.constant 201 : index
    %1273 = memref.load %arg2[%c201] : memref<294xf32, #tpu.memory_space<smem>>
    %c0_658 = arith.constant 0 : index
    %c0_659 = arith.constant 0 : index
    %c5_660 = arith.constant 5 : index
    %1274 = vector.load %arg7[%c0_658, %c0_659, %c5_660] : memref<2x22x22xf32, #tpu.memory_space<vmem>>, vector<1x16x16xf32>
    %1275 = vector.shape_cast %1274 : vector<1x16x16xf32> to vector<16x16xf32>
    %1276 = vector.broadcast %1273 : f32 to vector<16x16xf32>
    %1277 = arith.mulf %1276, %1275 : vector<16x16xf32>
    %1278 = arith.addf %1272, %1277 : vector<16x16xf32>
    %c202 = arith.constant 202 : index
    %1279 = memref.load %arg2[%c202] : memref<294xf32, #tpu.memory_space<smem>>
    %c0_661 = arith.constant 0 : index
    %c0_662 = arith.constant 0 : index
    %c6_663 = arith.constant 6 : index
    %1280 = vector.load %arg7[%c0_661, %c0_662, %c6_663] : memref<2x22x22xf32, #tpu.memory_space<vmem>>, vector<1x16x16xf32>
    %1281 = vector.shape_cast %1280 : vector<1x16x16xf32> to vector<16x16xf32>
    %1282 = vector.broadcast %1279 : f32 to vector<16x16xf32>
    %1283 = arith.mulf %1282, %1281 : vector<16x16xf32>
    %1284 = arith.addf %1278, %1283 : vector<16x16xf32>
    %c203 = arith.constant 203 : index
    %1285 = memref.load %arg2[%c203] : memref<294xf32, #tpu.memory_space<smem>>
    %c0_664 = arith.constant 0 : index
    %c1_665 = arith.constant 1 : index
    %c0_666 = arith.constant 0 : index
    %1286 = vector.load %arg7[%c0_664, %c1_665, %c0_666] : memref<2x22x22xf32, #tpu.memory_space<vmem>>, vector<1x16x16xf32>
    %1287 = vector.shape_cast %1286 : vector<1x16x16xf32> to vector<16x16xf32>
    %1288 = vector.broadcast %1285 : f32 to vector<16x16xf32>
    %1289 = arith.mulf %1288, %1287 : vector<16x16xf32>
    %1290 = arith.addf %1284, %1289 : vector<16x16xf32>
    %c204 = arith.constant 204 : index
    %1291 = memref.load %arg2[%c204] : memref<294xf32, #tpu.memory_space<smem>>
    %c0_667 = arith.constant 0 : index
    %c1_668 = arith.constant 1 : index
    %c1_669 = arith.constant 1 : index
    %1292 = vector.load %arg7[%c0_667, %c1_668, %c1_669] : memref<2x22x22xf32, #tpu.memory_space<vmem>>, vector<1x16x16xf32>
    %1293 = vector.shape_cast %1292 : vector<1x16x16xf32> to vector<16x16xf32>
    %1294 = vector.broadcast %1291 : f32 to vector<16x16xf32>
    %1295 = arith.mulf %1294, %1293 : vector<16x16xf32>
    %1296 = arith.addf %1290, %1295 : vector<16x16xf32>
    %c205 = arith.constant 205 : index
    %1297 = memref.load %arg2[%c205] : memref<294xf32, #tpu.memory_space<smem>>
    %c0_670 = arith.constant 0 : index
    %c1_671 = arith.constant 1 : index
    %c2_672 = arith.constant 2 : index
    %1298 = vector.load %arg7[%c0_670, %c1_671, %c2_672] : memref<2x22x22xf32, #tpu.memory_space<vmem>>, vector<1x16x16xf32>
    %1299 = vector.shape_cast %1298 : vector<1x16x16xf32> to vector<16x16xf32>
    %1300 = vector.broadcast %1297 : f32 to vector<16x16xf32>
    %1301 = arith.mulf %1300, %1299 : vector<16x16xf32>
    %1302 = arith.addf %1296, %1301 : vector<16x16xf32>
    %c206 = arith.constant 206 : index
    %1303 = memref.load %arg2[%c206] : memref<294xf32, #tpu.memory_space<smem>>
    %c0_673 = arith.constant 0 : index
    %c1_674 = arith.constant 1 : index
    %c3_675 = arith.constant 3 : index
    %1304 = vector.load %arg7[%c0_673, %c1_674, %c3_675] : memref<2x22x22xf32, #tpu.memory_space<vmem>>, vector<1x16x16xf32>
    %1305 = vector.shape_cast %1304 : vector<1x16x16xf32> to vector<16x16xf32>
    %1306 = vector.broadcast %1303 : f32 to vector<16x16xf32>
    %1307 = arith.mulf %1306, %1305 : vector<16x16xf32>
    %1308 = arith.addf %1302, %1307 : vector<16x16xf32>
    %c207 = arith.constant 207 : index
    %1309 = memref.load %arg2[%c207] : memref<294xf32, #tpu.memory_space<smem>>
    %c0_676 = arith.constant 0 : index
    %c1_677 = arith.constant 1 : index
    %c4_678 = arith.constant 4 : index
    %1310 = vector.load %arg7[%c0_676, %c1_677, %c4_678] : memref<2x22x22xf32, #tpu.memory_space<vmem>>, vector<1x16x16xf32>
    %1311 = vector.shape_cast %1310 : vector<1x16x16xf32> to vector<16x16xf32>
    %1312 = vector.broadcast %1309 : f32 to vector<16x16xf32>
    %1313 = arith.mulf %1312, %1311 : vector<16x16xf32>
    %1314 = arith.addf %1308, %1313 : vector<16x16xf32>
    %c208 = arith.constant 208 : index
    %1315 = memref.load %arg2[%c208] : memref<294xf32, #tpu.memory_space<smem>>
    %c0_679 = arith.constant 0 : index
    %c1_680 = arith.constant 1 : index
    %c5_681 = arith.constant 5 : index
    %1316 = vector.load %arg7[%c0_679, %c1_680, %c5_681] : memref<2x22x22xf32, #tpu.memory_space<vmem>>, vector<1x16x16xf32>
    %1317 = vector.shape_cast %1316 : vector<1x16x16xf32> to vector<16x16xf32>
    %1318 = vector.broadcast %1315 : f32 to vector<16x16xf32>
    %1319 = arith.mulf %1318, %1317 : vector<16x16xf32>
    %1320 = arith.addf %1314, %1319 : vector<16x16xf32>
    %c209 = arith.constant 209 : index
    %1321 = memref.load %arg2[%c209] : memref<294xf32, #tpu.memory_space<smem>>
    %c0_682 = arith.constant 0 : index
    %c1_683 = arith.constant 1 : index
    %c6_684 = arith.constant 6 : index
    %1322 = vector.load %arg7[%c0_682, %c1_683, %c6_684] : memref<2x22x22xf32, #tpu.memory_space<vmem>>, vector<1x16x16xf32>
    %1323 = vector.shape_cast %1322 : vector<1x16x16xf32> to vector<16x16xf32>
    %1324 = vector.broadcast %1321 : f32 to vector<16x16xf32>
    %1325 = arith.mulf %1324, %1323 : vector<16x16xf32>
    %1326 = arith.addf %1320, %1325 : vector<16x16xf32>
    %c210 = arith.constant 210 : index
    %1327 = memref.load %arg2[%c210] : memref<294xf32, #tpu.memory_space<smem>>
    %c0_685 = arith.constant 0 : index
    %c2_686 = arith.constant 2 : index
    %c0_687 = arith.constant 0 : index
    %1328 = vector.load %arg7[%c0_685, %c2_686, %c0_687] : memref<2x22x22xf32, #tpu.memory_space<vmem>>, vector<1x16x16xf32>
    %1329 = vector.shape_cast %1328 : vector<1x16x16xf32> to vector<16x16xf32>
    %1330 = vector.broadcast %1327 : f32 to vector<16x16xf32>
    %1331 = arith.mulf %1330, %1329 : vector<16x16xf32>
    %1332 = arith.addf %1326, %1331 : vector<16x16xf32>
    %c211 = arith.constant 211 : index
    %1333 = memref.load %arg2[%c211] : memref<294xf32, #tpu.memory_space<smem>>
    %c0_688 = arith.constant 0 : index
    %c2_689 = arith.constant 2 : index
    %c1_690 = arith.constant 1 : index
    %1334 = vector.load %arg7[%c0_688, %c2_689, %c1_690] : memref<2x22x22xf32, #tpu.memory_space<vmem>>, vector<1x16x16xf32>
    %1335 = vector.shape_cast %1334 : vector<1x16x16xf32> to vector<16x16xf32>
    %1336 = vector.broadcast %1333 : f32 to vector<16x16xf32>
    %1337 = arith.mulf %1336, %1335 : vector<16x16xf32>
    %1338 = arith.addf %1332, %1337 : vector<16x16xf32>
    %c212 = arith.constant 212 : index
    %1339 = memref.load %arg2[%c212] : memref<294xf32, #tpu.memory_space<smem>>
    %c0_691 = arith.constant 0 : index
    %c2_692 = arith.constant 2 : index
    %c2_693 = arith.constant 2 : index
    %1340 = vector.load %arg7[%c0_691, %c2_692, %c2_693] : memref<2x22x22xf32, #tpu.memory_space<vmem>>, vector<1x16x16xf32>
    %1341 = vector.shape_cast %1340 : vector<1x16x16xf32> to vector<16x16xf32>
    %1342 = vector.broadcast %1339 : f32 to vector<16x16xf32>
    %1343 = arith.mulf %1342, %1341 : vector<16x16xf32>
    %1344 = arith.addf %1338, %1343 : vector<16x16xf32>
    %c213 = arith.constant 213 : index
    %1345 = memref.load %arg2[%c213] : memref<294xf32, #tpu.memory_space<smem>>
    %c0_694 = arith.constant 0 : index
    %c2_695 = arith.constant 2 : index
    %c3_696 = arith.constant 3 : index
    %1346 = vector.load %arg7[%c0_694, %c2_695, %c3_696] : memref<2x22x22xf32, #tpu.memory_space<vmem>>, vector<1x16x16xf32>
    %1347 = vector.shape_cast %1346 : vector<1x16x16xf32> to vector<16x16xf32>
    %1348 = vector.broadcast %1345 : f32 to vector<16x16xf32>
    %1349 = arith.mulf %1348, %1347 : vector<16x16xf32>
    %1350 = arith.addf %1344, %1349 : vector<16x16xf32>
    %c214 = arith.constant 214 : index
    %1351 = memref.load %arg2[%c214] : memref<294xf32, #tpu.memory_space<smem>>
    %c0_697 = arith.constant 0 : index
    %c2_698 = arith.constant 2 : index
    %c4_699 = arith.constant 4 : index
    %1352 = vector.load %arg7[%c0_697, %c2_698, %c4_699] : memref<2x22x22xf32, #tpu.memory_space<vmem>>, vector<1x16x16xf32>
    %1353 = vector.shape_cast %1352 : vector<1x16x16xf32> to vector<16x16xf32>
    %1354 = vector.broadcast %1351 : f32 to vector<16x16xf32>
    %1355 = arith.mulf %1354, %1353 : vector<16x16xf32>
    %1356 = arith.addf %1350, %1355 : vector<16x16xf32>
    %c215 = arith.constant 215 : index
    %1357 = memref.load %arg2[%c215] : memref<294xf32, #tpu.memory_space<smem>>
    %c0_700 = arith.constant 0 : index
    %c2_701 = arith.constant 2 : index
    %c5_702 = arith.constant 5 : index
    %1358 = vector.load %arg7[%c0_700, %c2_701, %c5_702] : memref<2x22x22xf32, #tpu.memory_space<vmem>>, vector<1x16x16xf32>
    %1359 = vector.shape_cast %1358 : vector<1x16x16xf32> to vector<16x16xf32>
    %1360 = vector.broadcast %1357 : f32 to vector<16x16xf32>
    %1361 = arith.mulf %1360, %1359 : vector<16x16xf32>
    %1362 = arith.addf %1356, %1361 : vector<16x16xf32>
    %c216 = arith.constant 216 : index
    %1363 = memref.load %arg2[%c216] : memref<294xf32, #tpu.memory_space<smem>>
    %c0_703 = arith.constant 0 : index
    %c2_704 = arith.constant 2 : index
    %c6_705 = arith.constant 6 : index
    %1364 = vector.load %arg7[%c0_703, %c2_704, %c6_705] : memref<2x22x22xf32, #tpu.memory_space<vmem>>, vector<1x16x16xf32>
    %1365 = vector.shape_cast %1364 : vector<1x16x16xf32> to vector<16x16xf32>
    %1366 = vector.broadcast %1363 : f32 to vector<16x16xf32>
    %1367 = arith.mulf %1366, %1365 : vector<16x16xf32>
    %1368 = arith.addf %1362, %1367 : vector<16x16xf32>
    %c217 = arith.constant 217 : index
    %1369 = memref.load %arg2[%c217] : memref<294xf32, #tpu.memory_space<smem>>
    %c0_706 = arith.constant 0 : index
    %c3_707 = arith.constant 3 : index
    %c0_708 = arith.constant 0 : index
    %1370 = vector.load %arg7[%c0_706, %c3_707, %c0_708] : memref<2x22x22xf32, #tpu.memory_space<vmem>>, vector<1x16x16xf32>
    %1371 = vector.shape_cast %1370 : vector<1x16x16xf32> to vector<16x16xf32>
    %1372 = vector.broadcast %1369 : f32 to vector<16x16xf32>
    %1373 = arith.mulf %1372, %1371 : vector<16x16xf32>
    %1374 = arith.addf %1368, %1373 : vector<16x16xf32>
    %c218 = arith.constant 218 : index
    %1375 = memref.load %arg2[%c218] : memref<294xf32, #tpu.memory_space<smem>>
    %c0_709 = arith.constant 0 : index
    %c3_710 = arith.constant 3 : index
    %c1_711 = arith.constant 1 : index
    %1376 = vector.load %arg7[%c0_709, %c3_710, %c1_711] : memref<2x22x22xf32, #tpu.memory_space<vmem>>, vector<1x16x16xf32>
    %1377 = vector.shape_cast %1376 : vector<1x16x16xf32> to vector<16x16xf32>
    %1378 = vector.broadcast %1375 : f32 to vector<16x16xf32>
    %1379 = arith.mulf %1378, %1377 : vector<16x16xf32>
    %1380 = arith.addf %1374, %1379 : vector<16x16xf32>
    %c219 = arith.constant 219 : index
    %1381 = memref.load %arg2[%c219] : memref<294xf32, #tpu.memory_space<smem>>
    %c0_712 = arith.constant 0 : index
    %c3_713 = arith.constant 3 : index
    %c2_714 = arith.constant 2 : index
    %1382 = vector.load %arg7[%c0_712, %c3_713, %c2_714] : memref<2x22x22xf32, #tpu.memory_space<vmem>>, vector<1x16x16xf32>
    %1383 = vector.shape_cast %1382 : vector<1x16x16xf32> to vector<16x16xf32>
    %1384 = vector.broadcast %1381 : f32 to vector<16x16xf32>
    %1385 = arith.mulf %1384, %1383 : vector<16x16xf32>
    %1386 = arith.addf %1380, %1385 : vector<16x16xf32>
    %c220 = arith.constant 220 : index
    %1387 = memref.load %arg2[%c220] : memref<294xf32, #tpu.memory_space<smem>>
    %c0_715 = arith.constant 0 : index
    %c3_716 = arith.constant 3 : index
    %c3_717 = arith.constant 3 : index
    %1388 = vector.load %arg7[%c0_715, %c3_716, %c3_717] : memref<2x22x22xf32, #tpu.memory_space<vmem>>, vector<1x16x16xf32>
    %1389 = vector.shape_cast %1388 : vector<1x16x16xf32> to vector<16x16xf32>
    %1390 = vector.broadcast %1387 : f32 to vector<16x16xf32>
    %1391 = arith.mulf %1390, %1389 : vector<16x16xf32>
    %1392 = arith.addf %1386, %1391 : vector<16x16xf32>
    %c221 = arith.constant 221 : index
    %1393 = memref.load %arg2[%c221] : memref<294xf32, #tpu.memory_space<smem>>
    %c0_718 = arith.constant 0 : index
    %c3_719 = arith.constant 3 : index
    %c4_720 = arith.constant 4 : index
    %1394 = vector.load %arg7[%c0_718, %c3_719, %c4_720] : memref<2x22x22xf32, #tpu.memory_space<vmem>>, vector<1x16x16xf32>
    %1395 = vector.shape_cast %1394 : vector<1x16x16xf32> to vector<16x16xf32>
    %1396 = vector.broadcast %1393 : f32 to vector<16x16xf32>
    %1397 = arith.mulf %1396, %1395 : vector<16x16xf32>
    %1398 = arith.addf %1392, %1397 : vector<16x16xf32>
    %c222 = arith.constant 222 : index
    %1399 = memref.load %arg2[%c222] : memref<294xf32, #tpu.memory_space<smem>>
    %c0_721 = arith.constant 0 : index
    %c3_722 = arith.constant 3 : index
    %c5_723 = arith.constant 5 : index
    %1400 = vector.load %arg7[%c0_721, %c3_722, %c5_723] : memref<2x22x22xf32, #tpu.memory_space<vmem>>, vector<1x16x16xf32>
    %1401 = vector.shape_cast %1400 : vector<1x16x16xf32> to vector<16x16xf32>
    %1402 = vector.broadcast %1399 : f32 to vector<16x16xf32>
    %1403 = arith.mulf %1402, %1401 : vector<16x16xf32>
    %1404 = arith.addf %1398, %1403 : vector<16x16xf32>
    %c223 = arith.constant 223 : index
    %1405 = memref.load %arg2[%c223] : memref<294xf32, #tpu.memory_space<smem>>
    %c0_724 = arith.constant 0 : index
    %c3_725 = arith.constant 3 : index
    %c6_726 = arith.constant 6 : index
    %1406 = vector.load %arg7[%c0_724, %c3_725, %c6_726] : memref<2x22x22xf32, #tpu.memory_space<vmem>>, vector<1x16x16xf32>
    %1407 = vector.shape_cast %1406 : vector<1x16x16xf32> to vector<16x16xf32>
    %1408 = vector.broadcast %1405 : f32 to vector<16x16xf32>
    %1409 = arith.mulf %1408, %1407 : vector<16x16xf32>
    %1410 = arith.addf %1404, %1409 : vector<16x16xf32>
    %c224 = arith.constant 224 : index
    %1411 = memref.load %arg2[%c224] : memref<294xf32, #tpu.memory_space<smem>>
    %c0_727 = arith.constant 0 : index
    %c4_728 = arith.constant 4 : index
    %c0_729 = arith.constant 0 : index
    %1412 = vector.load %arg7[%c0_727, %c4_728, %c0_729] : memref<2x22x22xf32, #tpu.memory_space<vmem>>, vector<1x16x16xf32>
    %1413 = vector.shape_cast %1412 : vector<1x16x16xf32> to vector<16x16xf32>
    %1414 = vector.broadcast %1411 : f32 to vector<16x16xf32>
    %1415 = arith.mulf %1414, %1413 : vector<16x16xf32>
    %1416 = arith.addf %1410, %1415 : vector<16x16xf32>
    %c225 = arith.constant 225 : index
    %1417 = memref.load %arg2[%c225] : memref<294xf32, #tpu.memory_space<smem>>
    %c0_730 = arith.constant 0 : index
    %c4_731 = arith.constant 4 : index
    %c1_732 = arith.constant 1 : index
    %1418 = vector.load %arg7[%c0_730, %c4_731, %c1_732] : memref<2x22x22xf32, #tpu.memory_space<vmem>>, vector<1x16x16xf32>
    %1419 = vector.shape_cast %1418 : vector<1x16x16xf32> to vector<16x16xf32>
    %1420 = vector.broadcast %1417 : f32 to vector<16x16xf32>
    %1421 = arith.mulf %1420, %1419 : vector<16x16xf32>
    %1422 = arith.addf %1416, %1421 : vector<16x16xf32>
    %c226 = arith.constant 226 : index
    %1423 = memref.load %arg2[%c226] : memref<294xf32, #tpu.memory_space<smem>>
    %c0_733 = arith.constant 0 : index
    %c4_734 = arith.constant 4 : index
    %c2_735 = arith.constant 2 : index
    %1424 = vector.load %arg7[%c0_733, %c4_734, %c2_735] : memref<2x22x22xf32, #tpu.memory_space<vmem>>, vector<1x16x16xf32>
    %1425 = vector.shape_cast %1424 : vector<1x16x16xf32> to vector<16x16xf32>
    %1426 = vector.broadcast %1423 : f32 to vector<16x16xf32>
    %1427 = arith.mulf %1426, %1425 : vector<16x16xf32>
    %1428 = arith.addf %1422, %1427 : vector<16x16xf32>
    %c227 = arith.constant 227 : index
    %1429 = memref.load %arg2[%c227] : memref<294xf32, #tpu.memory_space<smem>>
    %c0_736 = arith.constant 0 : index
    %c4_737 = arith.constant 4 : index
    %c3_738 = arith.constant 3 : index
    %1430 = vector.load %arg7[%c0_736, %c4_737, %c3_738] : memref<2x22x22xf32, #tpu.memory_space<vmem>>, vector<1x16x16xf32>
    %1431 = vector.shape_cast %1430 : vector<1x16x16xf32> to vector<16x16xf32>
    %1432 = vector.broadcast %1429 : f32 to vector<16x16xf32>
    %1433 = arith.mulf %1432, %1431 : vector<16x16xf32>
    %1434 = arith.addf %1428, %1433 : vector<16x16xf32>
    %c228 = arith.constant 228 : index
    %1435 = memref.load %arg2[%c228] : memref<294xf32, #tpu.memory_space<smem>>
    %c0_739 = arith.constant 0 : index
    %c4_740 = arith.constant 4 : index
    %c4_741 = arith.constant 4 : index
    %1436 = vector.load %arg7[%c0_739, %c4_740, %c4_741] : memref<2x22x22xf32, #tpu.memory_space<vmem>>, vector<1x16x16xf32>
    %1437 = vector.shape_cast %1436 : vector<1x16x16xf32> to vector<16x16xf32>
    %1438 = vector.broadcast %1435 : f32 to vector<16x16xf32>
    %1439 = arith.mulf %1438, %1437 : vector<16x16xf32>
    %1440 = arith.addf %1434, %1439 : vector<16x16xf32>
    %c229 = arith.constant 229 : index
    %1441 = memref.load %arg2[%c229] : memref<294xf32, #tpu.memory_space<smem>>
    %c0_742 = arith.constant 0 : index
    %c4_743 = arith.constant 4 : index
    %c5_744 = arith.constant 5 : index
    %1442 = vector.load %arg7[%c0_742, %c4_743, %c5_744] : memref<2x22x22xf32, #tpu.memory_space<vmem>>, vector<1x16x16xf32>
    %1443 = vector.shape_cast %1442 : vector<1x16x16xf32> to vector<16x16xf32>
    %1444 = vector.broadcast %1441 : f32 to vector<16x16xf32>
    %1445 = arith.mulf %1444, %1443 : vector<16x16xf32>
    %1446 = arith.addf %1440, %1445 : vector<16x16xf32>
    %c230 = arith.constant 230 : index
    %1447 = memref.load %arg2[%c230] : memref<294xf32, #tpu.memory_space<smem>>
    %c0_745 = arith.constant 0 : index
    %c4_746 = arith.constant 4 : index
    %c6_747 = arith.constant 6 : index
    %1448 = vector.load %arg7[%c0_745, %c4_746, %c6_747] : memref<2x22x22xf32, #tpu.memory_space<vmem>>, vector<1x16x16xf32>
    %1449 = vector.shape_cast %1448 : vector<1x16x16xf32> to vector<16x16xf32>
    %1450 = vector.broadcast %1447 : f32 to vector<16x16xf32>
    %1451 = arith.mulf %1450, %1449 : vector<16x16xf32>
    %1452 = arith.addf %1446, %1451 : vector<16x16xf32>
    %c231 = arith.constant 231 : index
    %1453 = memref.load %arg2[%c231] : memref<294xf32, #tpu.memory_space<smem>>
    %c0_748 = arith.constant 0 : index
    %c5_749 = arith.constant 5 : index
    %c0_750 = arith.constant 0 : index
    %1454 = vector.load %arg7[%c0_748, %c5_749, %c0_750] : memref<2x22x22xf32, #tpu.memory_space<vmem>>, vector<1x16x16xf32>
    %1455 = vector.shape_cast %1454 : vector<1x16x16xf32> to vector<16x16xf32>
    %1456 = vector.broadcast %1453 : f32 to vector<16x16xf32>
    %1457 = arith.mulf %1456, %1455 : vector<16x16xf32>
    %1458 = arith.addf %1452, %1457 : vector<16x16xf32>
    %c232 = arith.constant 232 : index
    %1459 = memref.load %arg2[%c232] : memref<294xf32, #tpu.memory_space<smem>>
    %c0_751 = arith.constant 0 : index
    %c5_752 = arith.constant 5 : index
    %c1_753 = arith.constant 1 : index
    %1460 = vector.load %arg7[%c0_751, %c5_752, %c1_753] : memref<2x22x22xf32, #tpu.memory_space<vmem>>, vector<1x16x16xf32>
    %1461 = vector.shape_cast %1460 : vector<1x16x16xf32> to vector<16x16xf32>
    %1462 = vector.broadcast %1459 : f32 to vector<16x16xf32>
    %1463 = arith.mulf %1462, %1461 : vector<16x16xf32>
    %1464 = arith.addf %1458, %1463 : vector<16x16xf32>
    %c233 = arith.constant 233 : index
    %1465 = memref.load %arg2[%c233] : memref<294xf32, #tpu.memory_space<smem>>
    %c0_754 = arith.constant 0 : index
    %c5_755 = arith.constant 5 : index
    %c2_756 = arith.constant 2 : index
    %1466 = vector.load %arg7[%c0_754, %c5_755, %c2_756] : memref<2x22x22xf32, #tpu.memory_space<vmem>>, vector<1x16x16xf32>
    %1467 = vector.shape_cast %1466 : vector<1x16x16xf32> to vector<16x16xf32>
    %1468 = vector.broadcast %1465 : f32 to vector<16x16xf32>
    %1469 = arith.mulf %1468, %1467 : vector<16x16xf32>
    %1470 = arith.addf %1464, %1469 : vector<16x16xf32>
    %c234 = arith.constant 234 : index
    %1471 = memref.load %arg2[%c234] : memref<294xf32, #tpu.memory_space<smem>>
    %c0_757 = arith.constant 0 : index
    %c5_758 = arith.constant 5 : index
    %c3_759 = arith.constant 3 : index
    %1472 = vector.load %arg7[%c0_757, %c5_758, %c3_759] : memref<2x22x22xf32, #tpu.memory_space<vmem>>, vector<1x16x16xf32>
    %1473 = vector.shape_cast %1472 : vector<1x16x16xf32> to vector<16x16xf32>
    %1474 = vector.broadcast %1471 : f32 to vector<16x16xf32>
    %1475 = arith.mulf %1474, %1473 : vector<16x16xf32>
    %1476 = arith.addf %1470, %1475 : vector<16x16xf32>
    %c235 = arith.constant 235 : index
    %1477 = memref.load %arg2[%c235] : memref<294xf32, #tpu.memory_space<smem>>
    %c0_760 = arith.constant 0 : index
    %c5_761 = arith.constant 5 : index
    %c4_762 = arith.constant 4 : index
    %1478 = vector.load %arg7[%c0_760, %c5_761, %c4_762] : memref<2x22x22xf32, #tpu.memory_space<vmem>>, vector<1x16x16xf32>
    %1479 = vector.shape_cast %1478 : vector<1x16x16xf32> to vector<16x16xf32>
    %1480 = vector.broadcast %1477 : f32 to vector<16x16xf32>
    %1481 = arith.mulf %1480, %1479 : vector<16x16xf32>
    %1482 = arith.addf %1476, %1481 : vector<16x16xf32>
    %c236 = arith.constant 236 : index
    %1483 = memref.load %arg2[%c236] : memref<294xf32, #tpu.memory_space<smem>>
    %c0_763 = arith.constant 0 : index
    %c5_764 = arith.constant 5 : index
    %c5_765 = arith.constant 5 : index
    %1484 = vector.load %arg7[%c0_763, %c5_764, %c5_765] : memref<2x22x22xf32, #tpu.memory_space<vmem>>, vector<1x16x16xf32>
    %1485 = vector.shape_cast %1484 : vector<1x16x16xf32> to vector<16x16xf32>
    %1486 = vector.broadcast %1483 : f32 to vector<16x16xf32>
    %1487 = arith.mulf %1486, %1485 : vector<16x16xf32>
    %1488 = arith.addf %1482, %1487 : vector<16x16xf32>
    %c237 = arith.constant 237 : index
    %1489 = memref.load %arg2[%c237] : memref<294xf32, #tpu.memory_space<smem>>
    %c0_766 = arith.constant 0 : index
    %c5_767 = arith.constant 5 : index
    %c6_768 = arith.constant 6 : index
    %1490 = vector.load %arg7[%c0_766, %c5_767, %c6_768] : memref<2x22x22xf32, #tpu.memory_space<vmem>>, vector<1x16x16xf32>
    %1491 = vector.shape_cast %1490 : vector<1x16x16xf32> to vector<16x16xf32>
    %1492 = vector.broadcast %1489 : f32 to vector<16x16xf32>
    %1493 = arith.mulf %1492, %1491 : vector<16x16xf32>
    %1494 = arith.addf %1488, %1493 : vector<16x16xf32>
    %c238 = arith.constant 238 : index
    %1495 = memref.load %arg2[%c238] : memref<294xf32, #tpu.memory_space<smem>>
    %c0_769 = arith.constant 0 : index
    %c6_770 = arith.constant 6 : index
    %c0_771 = arith.constant 0 : index
    %1496 = vector.load %arg7[%c0_769, %c6_770, %c0_771] : memref<2x22x22xf32, #tpu.memory_space<vmem>>, vector<1x16x16xf32>
    %1497 = vector.shape_cast %1496 : vector<1x16x16xf32> to vector<16x16xf32>
    %1498 = vector.broadcast %1495 : f32 to vector<16x16xf32>
    %1499 = arith.mulf %1498, %1497 : vector<16x16xf32>
    %1500 = arith.addf %1494, %1499 : vector<16x16xf32>
    %c239 = arith.constant 239 : index
    %1501 = memref.load %arg2[%c239] : memref<294xf32, #tpu.memory_space<smem>>
    %c0_772 = arith.constant 0 : index
    %c6_773 = arith.constant 6 : index
    %c1_774 = arith.constant 1 : index
    %1502 = vector.load %arg7[%c0_772, %c6_773, %c1_774] : memref<2x22x22xf32, #tpu.memory_space<vmem>>, vector<1x16x16xf32>
    %1503 = vector.shape_cast %1502 : vector<1x16x16xf32> to vector<16x16xf32>
    %1504 = vector.broadcast %1501 : f32 to vector<16x16xf32>
    %1505 = arith.mulf %1504, %1503 : vector<16x16xf32>
    %1506 = arith.addf %1500, %1505 : vector<16x16xf32>
    %c240 = arith.constant 240 : index
    %1507 = memref.load %arg2[%c240] : memref<294xf32, #tpu.memory_space<smem>>
    %c0_775 = arith.constant 0 : index
    %c6_776 = arith.constant 6 : index
    %c2_777 = arith.constant 2 : index
    %1508 = vector.load %arg7[%c0_775, %c6_776, %c2_777] : memref<2x22x22xf32, #tpu.memory_space<vmem>>, vector<1x16x16xf32>
    %1509 = vector.shape_cast %1508 : vector<1x16x16xf32> to vector<16x16xf32>
    %1510 = vector.broadcast %1507 : f32 to vector<16x16xf32>
    %1511 = arith.mulf %1510, %1509 : vector<16x16xf32>
    %1512 = arith.addf %1506, %1511 : vector<16x16xf32>
    %c241 = arith.constant 241 : index
    %1513 = memref.load %arg2[%c241] : memref<294xf32, #tpu.memory_space<smem>>
    %c0_778 = arith.constant 0 : index
    %c6_779 = arith.constant 6 : index
    %c3_780 = arith.constant 3 : index
    %1514 = vector.load %arg7[%c0_778, %c6_779, %c3_780] : memref<2x22x22xf32, #tpu.memory_space<vmem>>, vector<1x16x16xf32>
    %1515 = vector.shape_cast %1514 : vector<1x16x16xf32> to vector<16x16xf32>
    %1516 = vector.broadcast %1513 : f32 to vector<16x16xf32>
    %1517 = arith.mulf %1516, %1515 : vector<16x16xf32>
    %1518 = arith.addf %1512, %1517 : vector<16x16xf32>
    %c242 = arith.constant 242 : index
    %1519 = memref.load %arg2[%c242] : memref<294xf32, #tpu.memory_space<smem>>
    %c0_781 = arith.constant 0 : index
    %c6_782 = arith.constant 6 : index
    %c4_783 = arith.constant 4 : index
    %1520 = vector.load %arg7[%c0_781, %c6_782, %c4_783] : memref<2x22x22xf32, #tpu.memory_space<vmem>>, vector<1x16x16xf32>
    %1521 = vector.shape_cast %1520 : vector<1x16x16xf32> to vector<16x16xf32>
    %1522 = vector.broadcast %1519 : f32 to vector<16x16xf32>
    %1523 = arith.mulf %1522, %1521 : vector<16x16xf32>
    %1524 = arith.addf %1518, %1523 : vector<16x16xf32>
    %c243 = arith.constant 243 : index
    %1525 = memref.load %arg2[%c243] : memref<294xf32, #tpu.memory_space<smem>>
    %c0_784 = arith.constant 0 : index
    %c6_785 = arith.constant 6 : index
    %c5_786 = arith.constant 5 : index
    %1526 = vector.load %arg7[%c0_784, %c6_785, %c5_786] : memref<2x22x22xf32, #tpu.memory_space<vmem>>, vector<1x16x16xf32>
    %1527 = vector.shape_cast %1526 : vector<1x16x16xf32> to vector<16x16xf32>
    %1528 = vector.broadcast %1525 : f32 to vector<16x16xf32>
    %1529 = arith.mulf %1528, %1527 : vector<16x16xf32>
    %1530 = arith.addf %1524, %1529 : vector<16x16xf32>
    %c244 = arith.constant 244 : index
    %1531 = memref.load %arg2[%c244] : memref<294xf32, #tpu.memory_space<smem>>
    %c0_787 = arith.constant 0 : index
    %c6_788 = arith.constant 6 : index
    %c6_789 = arith.constant 6 : index
    %1532 = vector.load %arg7[%c0_787, %c6_788, %c6_789] : memref<2x22x22xf32, #tpu.memory_space<vmem>>, vector<1x16x16xf32>
    %1533 = vector.shape_cast %1532 : vector<1x16x16xf32> to vector<16x16xf32>
    %1534 = vector.broadcast %1531 : f32 to vector<16x16xf32>
    %1535 = arith.mulf %1534, %1533 : vector<16x16xf32>
    %1536 = arith.addf %1530, %1535 : vector<16x16xf32>
    %c245 = arith.constant 245 : index
    %1537 = memref.load %arg2[%c245] : memref<294xf32, #tpu.memory_space<smem>>
    %c1_790 = arith.constant 1 : index
    %c0_791 = arith.constant 0 : index
    %c0_792 = arith.constant 0 : index
    %1538 = vector.load %arg7[%c1_790, %c0_791, %c0_792] : memref<2x22x22xf32, #tpu.memory_space<vmem>>, vector<1x16x16xf32>
    %1539 = vector.shape_cast %1538 : vector<1x16x16xf32> to vector<16x16xf32>
    %1540 = vector.broadcast %1537 : f32 to vector<16x16xf32>
    %1541 = arith.mulf %1540, %1539 : vector<16x16xf32>
    %1542 = arith.addf %1536, %1541 : vector<16x16xf32>
    %c246 = arith.constant 246 : index
    %1543 = memref.load %arg2[%c246] : memref<294xf32, #tpu.memory_space<smem>>
    %c1_793 = arith.constant 1 : index
    %c0_794 = arith.constant 0 : index
    %c1_795 = arith.constant 1 : index
    %1544 = vector.load %arg7[%c1_793, %c0_794, %c1_795] : memref<2x22x22xf32, #tpu.memory_space<vmem>>, vector<1x16x16xf32>
    %1545 = vector.shape_cast %1544 : vector<1x16x16xf32> to vector<16x16xf32>
    %1546 = vector.broadcast %1543 : f32 to vector<16x16xf32>
    %1547 = arith.mulf %1546, %1545 : vector<16x16xf32>
    %1548 = arith.addf %1542, %1547 : vector<16x16xf32>
    %c247 = arith.constant 247 : index
    %1549 = memref.load %arg2[%c247] : memref<294xf32, #tpu.memory_space<smem>>
    %c1_796 = arith.constant 1 : index
    %c0_797 = arith.constant 0 : index
    %c2_798 = arith.constant 2 : index
    %1550 = vector.load %arg7[%c1_796, %c0_797, %c2_798] : memref<2x22x22xf32, #tpu.memory_space<vmem>>, vector<1x16x16xf32>
    %1551 = vector.shape_cast %1550 : vector<1x16x16xf32> to vector<16x16xf32>
    %1552 = vector.broadcast %1549 : f32 to vector<16x16xf32>
    %1553 = arith.mulf %1552, %1551 : vector<16x16xf32>
    %1554 = arith.addf %1548, %1553 : vector<16x16xf32>
    %c248 = arith.constant 248 : index
    %1555 = memref.load %arg2[%c248] : memref<294xf32, #tpu.memory_space<smem>>
    %c1_799 = arith.constant 1 : index
    %c0_800 = arith.constant 0 : index
    %c3_801 = arith.constant 3 : index
    %1556 = vector.load %arg7[%c1_799, %c0_800, %c3_801] : memref<2x22x22xf32, #tpu.memory_space<vmem>>, vector<1x16x16xf32>
    %1557 = vector.shape_cast %1556 : vector<1x16x16xf32> to vector<16x16xf32>
    %1558 = vector.broadcast %1555 : f32 to vector<16x16xf32>
    %1559 = arith.mulf %1558, %1557 : vector<16x16xf32>
    %1560 = arith.addf %1554, %1559 : vector<16x16xf32>
    %c249 = arith.constant 249 : index
    %1561 = memref.load %arg2[%c249] : memref<294xf32, #tpu.memory_space<smem>>
    %c1_802 = arith.constant 1 : index
    %c0_803 = arith.constant 0 : index
    %c4_804 = arith.constant 4 : index
    %1562 = vector.load %arg7[%c1_802, %c0_803, %c4_804] : memref<2x22x22xf32, #tpu.memory_space<vmem>>, vector<1x16x16xf32>
    %1563 = vector.shape_cast %1562 : vector<1x16x16xf32> to vector<16x16xf32>
    %1564 = vector.broadcast %1561 : f32 to vector<16x16xf32>
    %1565 = arith.mulf %1564, %1563 : vector<16x16xf32>
    %1566 = arith.addf %1560, %1565 : vector<16x16xf32>
    %c250 = arith.constant 250 : index
    %1567 = memref.load %arg2[%c250] : memref<294xf32, #tpu.memory_space<smem>>
    %c1_805 = arith.constant 1 : index
    %c0_806 = arith.constant 0 : index
    %c5_807 = arith.constant 5 : index
    %1568 = vector.load %arg7[%c1_805, %c0_806, %c5_807] : memref<2x22x22xf32, #tpu.memory_space<vmem>>, vector<1x16x16xf32>
    %1569 = vector.shape_cast %1568 : vector<1x16x16xf32> to vector<16x16xf32>
    %1570 = vector.broadcast %1567 : f32 to vector<16x16xf32>
    %1571 = arith.mulf %1570, %1569 : vector<16x16xf32>
    %1572 = arith.addf %1566, %1571 : vector<16x16xf32>
    %c251 = arith.constant 251 : index
    %1573 = memref.load %arg2[%c251] : memref<294xf32, #tpu.memory_space<smem>>
    %c1_808 = arith.constant 1 : index
    %c0_809 = arith.constant 0 : index
    %c6_810 = arith.constant 6 : index
    %1574 = vector.load %arg7[%c1_808, %c0_809, %c6_810] : memref<2x22x22xf32, #tpu.memory_space<vmem>>, vector<1x16x16xf32>
    %1575 = vector.shape_cast %1574 : vector<1x16x16xf32> to vector<16x16xf32>
    %1576 = vector.broadcast %1573 : f32 to vector<16x16xf32>
    %1577 = arith.mulf %1576, %1575 : vector<16x16xf32>
    %1578 = arith.addf %1572, %1577 : vector<16x16xf32>
    %c252 = arith.constant 252 : index
    %1579 = memref.load %arg2[%c252] : memref<294xf32, #tpu.memory_space<smem>>
    %c1_811 = arith.constant 1 : index
    %c1_812 = arith.constant 1 : index
    %c0_813 = arith.constant 0 : index
    %1580 = vector.load %arg7[%c1_811, %c1_812, %c0_813] : memref<2x22x22xf32, #tpu.memory_space<vmem>>, vector<1x16x16xf32>
    %1581 = vector.shape_cast %1580 : vector<1x16x16xf32> to vector<16x16xf32>
    %1582 = vector.broadcast %1579 : f32 to vector<16x16xf32>
    %1583 = arith.mulf %1582, %1581 : vector<16x16xf32>
    %1584 = arith.addf %1578, %1583 : vector<16x16xf32>
    %c253 = arith.constant 253 : index
    %1585 = memref.load %arg2[%c253] : memref<294xf32, #tpu.memory_space<smem>>
    %c1_814 = arith.constant 1 : index
    %c1_815 = arith.constant 1 : index
    %c1_816 = arith.constant 1 : index
    %1586 = vector.load %arg7[%c1_814, %c1_815, %c1_816] : memref<2x22x22xf32, #tpu.memory_space<vmem>>, vector<1x16x16xf32>
    %1587 = vector.shape_cast %1586 : vector<1x16x16xf32> to vector<16x16xf32>
    %1588 = vector.broadcast %1585 : f32 to vector<16x16xf32>
    %1589 = arith.mulf %1588, %1587 : vector<16x16xf32>
    %1590 = arith.addf %1584, %1589 : vector<16x16xf32>
    %c254 = arith.constant 254 : index
    %1591 = memref.load %arg2[%c254] : memref<294xf32, #tpu.memory_space<smem>>
    %c1_817 = arith.constant 1 : index
    %c1_818 = arith.constant 1 : index
    %c2_819 = arith.constant 2 : index
    %1592 = vector.load %arg7[%c1_817, %c1_818, %c2_819] : memref<2x22x22xf32, #tpu.memory_space<vmem>>, vector<1x16x16xf32>
    %1593 = vector.shape_cast %1592 : vector<1x16x16xf32> to vector<16x16xf32>
    %1594 = vector.broadcast %1591 : f32 to vector<16x16xf32>
    %1595 = arith.mulf %1594, %1593 : vector<16x16xf32>
    %1596 = arith.addf %1590, %1595 : vector<16x16xf32>
    %c255 = arith.constant 255 : index
    %1597 = memref.load %arg2[%c255] : memref<294xf32, #tpu.memory_space<smem>>
    %c1_820 = arith.constant 1 : index
    %c1_821 = arith.constant 1 : index
    %c3_822 = arith.constant 3 : index
    %1598 = vector.load %arg7[%c1_820, %c1_821, %c3_822] : memref<2x22x22xf32, #tpu.memory_space<vmem>>, vector<1x16x16xf32>
    %1599 = vector.shape_cast %1598 : vector<1x16x16xf32> to vector<16x16xf32>
    %1600 = vector.broadcast %1597 : f32 to vector<16x16xf32>
    %1601 = arith.mulf %1600, %1599 : vector<16x16xf32>
    %1602 = arith.addf %1596, %1601 : vector<16x16xf32>
    %c256 = arith.constant 256 : index
    %1603 = memref.load %arg2[%c256] : memref<294xf32, #tpu.memory_space<smem>>
    %c1_823 = arith.constant 1 : index
    %c1_824 = arith.constant 1 : index
    %c4_825 = arith.constant 4 : index
    %1604 = vector.load %arg7[%c1_823, %c1_824, %c4_825] : memref<2x22x22xf32, #tpu.memory_space<vmem>>, vector<1x16x16xf32>
    %1605 = vector.shape_cast %1604 : vector<1x16x16xf32> to vector<16x16xf32>
    %1606 = vector.broadcast %1603 : f32 to vector<16x16xf32>
    %1607 = arith.mulf %1606, %1605 : vector<16x16xf32>
    %1608 = arith.addf %1602, %1607 : vector<16x16xf32>
    %c257 = arith.constant 257 : index
    %1609 = memref.load %arg2[%c257] : memref<294xf32, #tpu.memory_space<smem>>
    %c1_826 = arith.constant 1 : index
    %c1_827 = arith.constant 1 : index
    %c5_828 = arith.constant 5 : index
    %1610 = vector.load %arg7[%c1_826, %c1_827, %c5_828] : memref<2x22x22xf32, #tpu.memory_space<vmem>>, vector<1x16x16xf32>
    %1611 = vector.shape_cast %1610 : vector<1x16x16xf32> to vector<16x16xf32>
    %1612 = vector.broadcast %1609 : f32 to vector<16x16xf32>
    %1613 = arith.mulf %1612, %1611 : vector<16x16xf32>
    %1614 = arith.addf %1608, %1613 : vector<16x16xf32>
    %c258 = arith.constant 258 : index
    %1615 = memref.load %arg2[%c258] : memref<294xf32, #tpu.memory_space<smem>>
    %c1_829 = arith.constant 1 : index
    %c1_830 = arith.constant 1 : index
    %c6_831 = arith.constant 6 : index
    %1616 = vector.load %arg7[%c1_829, %c1_830, %c6_831] : memref<2x22x22xf32, #tpu.memory_space<vmem>>, vector<1x16x16xf32>
    %1617 = vector.shape_cast %1616 : vector<1x16x16xf32> to vector<16x16xf32>
    %1618 = vector.broadcast %1615 : f32 to vector<16x16xf32>
    %1619 = arith.mulf %1618, %1617 : vector<16x16xf32>
    %1620 = arith.addf %1614, %1619 : vector<16x16xf32>
    %c259 = arith.constant 259 : index
    %1621 = memref.load %arg2[%c259] : memref<294xf32, #tpu.memory_space<smem>>
    %c1_832 = arith.constant 1 : index
    %c2_833 = arith.constant 2 : index
    %c0_834 = arith.constant 0 : index
    %1622 = vector.load %arg7[%c1_832, %c2_833, %c0_834] : memref<2x22x22xf32, #tpu.memory_space<vmem>>, vector<1x16x16xf32>
    %1623 = vector.shape_cast %1622 : vector<1x16x16xf32> to vector<16x16xf32>
    %1624 = vector.broadcast %1621 : f32 to vector<16x16xf32>
    %1625 = arith.mulf %1624, %1623 : vector<16x16xf32>
    %1626 = arith.addf %1620, %1625 : vector<16x16xf32>
    %c260 = arith.constant 260 : index
    %1627 = memref.load %arg2[%c260] : memref<294xf32, #tpu.memory_space<smem>>
    %c1_835 = arith.constant 1 : index
    %c2_836 = arith.constant 2 : index
    %c1_837 = arith.constant 1 : index
    %1628 = vector.load %arg7[%c1_835, %c2_836, %c1_837] : memref<2x22x22xf32, #tpu.memory_space<vmem>>, vector<1x16x16xf32>
    %1629 = vector.shape_cast %1628 : vector<1x16x16xf32> to vector<16x16xf32>
    %1630 = vector.broadcast %1627 : f32 to vector<16x16xf32>
    %1631 = arith.mulf %1630, %1629 : vector<16x16xf32>
    %1632 = arith.addf %1626, %1631 : vector<16x16xf32>
    %c261 = arith.constant 261 : index
    %1633 = memref.load %arg2[%c261] : memref<294xf32, #tpu.memory_space<smem>>
    %c1_838 = arith.constant 1 : index
    %c2_839 = arith.constant 2 : index
    %c2_840 = arith.constant 2 : index
    %1634 = vector.load %arg7[%c1_838, %c2_839, %c2_840] : memref<2x22x22xf32, #tpu.memory_space<vmem>>, vector<1x16x16xf32>
    %1635 = vector.shape_cast %1634 : vector<1x16x16xf32> to vector<16x16xf32>
    %1636 = vector.broadcast %1633 : f32 to vector<16x16xf32>
    %1637 = arith.mulf %1636, %1635 : vector<16x16xf32>
    %1638 = arith.addf %1632, %1637 : vector<16x16xf32>
    %c262 = arith.constant 262 : index
    %1639 = memref.load %arg2[%c262] : memref<294xf32, #tpu.memory_space<smem>>
    %c1_841 = arith.constant 1 : index
    %c2_842 = arith.constant 2 : index
    %c3_843 = arith.constant 3 : index
    %1640 = vector.load %arg7[%c1_841, %c2_842, %c3_843] : memref<2x22x22xf32, #tpu.memory_space<vmem>>, vector<1x16x16xf32>
    %1641 = vector.shape_cast %1640 : vector<1x16x16xf32> to vector<16x16xf32>
    %1642 = vector.broadcast %1639 : f32 to vector<16x16xf32>
    %1643 = arith.mulf %1642, %1641 : vector<16x16xf32>
    %1644 = arith.addf %1638, %1643 : vector<16x16xf32>
    %c263 = arith.constant 263 : index
    %1645 = memref.load %arg2[%c263] : memref<294xf32, #tpu.memory_space<smem>>
    %c1_844 = arith.constant 1 : index
    %c2_845 = arith.constant 2 : index
    %c4_846 = arith.constant 4 : index
    %1646 = vector.load %arg7[%c1_844, %c2_845, %c4_846] : memref<2x22x22xf32, #tpu.memory_space<vmem>>, vector<1x16x16xf32>
    %1647 = vector.shape_cast %1646 : vector<1x16x16xf32> to vector<16x16xf32>
    %1648 = vector.broadcast %1645 : f32 to vector<16x16xf32>
    %1649 = arith.mulf %1648, %1647 : vector<16x16xf32>
    %1650 = arith.addf %1644, %1649 : vector<16x16xf32>
    %c264 = arith.constant 264 : index
    %1651 = memref.load %arg2[%c264] : memref<294xf32, #tpu.memory_space<smem>>
    %c1_847 = arith.constant 1 : index
    %c2_848 = arith.constant 2 : index
    %c5_849 = arith.constant 5 : index
    %1652 = vector.load %arg7[%c1_847, %c2_848, %c5_849] : memref<2x22x22xf32, #tpu.memory_space<vmem>>, vector<1x16x16xf32>
    %1653 = vector.shape_cast %1652 : vector<1x16x16xf32> to vector<16x16xf32>
    %1654 = vector.broadcast %1651 : f32 to vector<16x16xf32>
    %1655 = arith.mulf %1654, %1653 : vector<16x16xf32>
    %1656 = arith.addf %1650, %1655 : vector<16x16xf32>
    %c265 = arith.constant 265 : index
    %1657 = memref.load %arg2[%c265] : memref<294xf32, #tpu.memory_space<smem>>
    %c1_850 = arith.constant 1 : index
    %c2_851 = arith.constant 2 : index
    %c6_852 = arith.constant 6 : index
    %1658 = vector.load %arg7[%c1_850, %c2_851, %c6_852] : memref<2x22x22xf32, #tpu.memory_space<vmem>>, vector<1x16x16xf32>
    %1659 = vector.shape_cast %1658 : vector<1x16x16xf32> to vector<16x16xf32>
    %1660 = vector.broadcast %1657 : f32 to vector<16x16xf32>
    %1661 = arith.mulf %1660, %1659 : vector<16x16xf32>
    %1662 = arith.addf %1656, %1661 : vector<16x16xf32>
    %c266 = arith.constant 266 : index
    %1663 = memref.load %arg2[%c266] : memref<294xf32, #tpu.memory_space<smem>>
    %c1_853 = arith.constant 1 : index
    %c3_854 = arith.constant 3 : index
    %c0_855 = arith.constant 0 : index
    %1664 = vector.load %arg7[%c1_853, %c3_854, %c0_855] : memref<2x22x22xf32, #tpu.memory_space<vmem>>, vector<1x16x16xf32>
    %1665 = vector.shape_cast %1664 : vector<1x16x16xf32> to vector<16x16xf32>
    %1666 = vector.broadcast %1663 : f32 to vector<16x16xf32>
    %1667 = arith.mulf %1666, %1665 : vector<16x16xf32>
    %1668 = arith.addf %1662, %1667 : vector<16x16xf32>
    %c267 = arith.constant 267 : index
    %1669 = memref.load %arg2[%c267] : memref<294xf32, #tpu.memory_space<smem>>
    %c1_856 = arith.constant 1 : index
    %c3_857 = arith.constant 3 : index
    %c1_858 = arith.constant 1 : index
    %1670 = vector.load %arg7[%c1_856, %c3_857, %c1_858] : memref<2x22x22xf32, #tpu.memory_space<vmem>>, vector<1x16x16xf32>
    %1671 = vector.shape_cast %1670 : vector<1x16x16xf32> to vector<16x16xf32>
    %1672 = vector.broadcast %1669 : f32 to vector<16x16xf32>
    %1673 = arith.mulf %1672, %1671 : vector<16x16xf32>
    %1674 = arith.addf %1668, %1673 : vector<16x16xf32>
    %c268 = arith.constant 268 : index
    %1675 = memref.load %arg2[%c268] : memref<294xf32, #tpu.memory_space<smem>>
    %c1_859 = arith.constant 1 : index
    %c3_860 = arith.constant 3 : index
    %c2_861 = arith.constant 2 : index
    %1676 = vector.load %arg7[%c1_859, %c3_860, %c2_861] : memref<2x22x22xf32, #tpu.memory_space<vmem>>, vector<1x16x16xf32>
    %1677 = vector.shape_cast %1676 : vector<1x16x16xf32> to vector<16x16xf32>
    %1678 = vector.broadcast %1675 : f32 to vector<16x16xf32>
    %1679 = arith.mulf %1678, %1677 : vector<16x16xf32>
    %1680 = arith.addf %1674, %1679 : vector<16x16xf32>
    %c269 = arith.constant 269 : index
    %1681 = memref.load %arg2[%c269] : memref<294xf32, #tpu.memory_space<smem>>
    %c1_862 = arith.constant 1 : index
    %c3_863 = arith.constant 3 : index
    %c3_864 = arith.constant 3 : index
    %1682 = vector.load %arg7[%c1_862, %c3_863, %c3_864] : memref<2x22x22xf32, #tpu.memory_space<vmem>>, vector<1x16x16xf32>
    %1683 = vector.shape_cast %1682 : vector<1x16x16xf32> to vector<16x16xf32>
    %1684 = vector.broadcast %1681 : f32 to vector<16x16xf32>
    %1685 = arith.mulf %1684, %1683 : vector<16x16xf32>
    %1686 = arith.addf %1680, %1685 : vector<16x16xf32>
    %c270 = arith.constant 270 : index
    %1687 = memref.load %arg2[%c270] : memref<294xf32, #tpu.memory_space<smem>>
    %c1_865 = arith.constant 1 : index
    %c3_866 = arith.constant 3 : index
    %c4_867 = arith.constant 4 : index
    %1688 = vector.load %arg7[%c1_865, %c3_866, %c4_867] : memref<2x22x22xf32, #tpu.memory_space<vmem>>, vector<1x16x16xf32>
    %1689 = vector.shape_cast %1688 : vector<1x16x16xf32> to vector<16x16xf32>
    %1690 = vector.broadcast %1687 : f32 to vector<16x16xf32>
    %1691 = arith.mulf %1690, %1689 : vector<16x16xf32>
    %1692 = arith.addf %1686, %1691 : vector<16x16xf32>
    %c271 = arith.constant 271 : index
    %1693 = memref.load %arg2[%c271] : memref<294xf32, #tpu.memory_space<smem>>
    %c1_868 = arith.constant 1 : index
    %c3_869 = arith.constant 3 : index
    %c5_870 = arith.constant 5 : index
    %1694 = vector.load %arg7[%c1_868, %c3_869, %c5_870] : memref<2x22x22xf32, #tpu.memory_space<vmem>>, vector<1x16x16xf32>
    %1695 = vector.shape_cast %1694 : vector<1x16x16xf32> to vector<16x16xf32>
    %1696 = vector.broadcast %1693 : f32 to vector<16x16xf32>
    %1697 = arith.mulf %1696, %1695 : vector<16x16xf32>
    %1698 = arith.addf %1692, %1697 : vector<16x16xf32>
    %c272 = arith.constant 272 : index
    %1699 = memref.load %arg2[%c272] : memref<294xf32, #tpu.memory_space<smem>>
    %c1_871 = arith.constant 1 : index
    %c3_872 = arith.constant 3 : index
    %c6_873 = arith.constant 6 : index
    %1700 = vector.load %arg7[%c1_871, %c3_872, %c6_873] : memref<2x22x22xf32, #tpu.memory_space<vmem>>, vector<1x16x16xf32>
    %1701 = vector.shape_cast %1700 : vector<1x16x16xf32> to vector<16x16xf32>
    %1702 = vector.broadcast %1699 : f32 to vector<16x16xf32>
    %1703 = arith.mulf %1702, %1701 : vector<16x16xf32>
    %1704 = arith.addf %1698, %1703 : vector<16x16xf32>
    %c273 = arith.constant 273 : index
    %1705 = memref.load %arg2[%c273] : memref<294xf32, #tpu.memory_space<smem>>
    %c1_874 = arith.constant 1 : index
    %c4_875 = arith.constant 4 : index
    %c0_876 = arith.constant 0 : index
    %1706 = vector.load %arg7[%c1_874, %c4_875, %c0_876] : memref<2x22x22xf32, #tpu.memory_space<vmem>>, vector<1x16x16xf32>
    %1707 = vector.shape_cast %1706 : vector<1x16x16xf32> to vector<16x16xf32>
    %1708 = vector.broadcast %1705 : f32 to vector<16x16xf32>
    %1709 = arith.mulf %1708, %1707 : vector<16x16xf32>
    %1710 = arith.addf %1704, %1709 : vector<16x16xf32>
    %c274 = arith.constant 274 : index
    %1711 = memref.load %arg2[%c274] : memref<294xf32, #tpu.memory_space<smem>>
    %c1_877 = arith.constant 1 : index
    %c4_878 = arith.constant 4 : index
    %c1_879 = arith.constant 1 : index
    %1712 = vector.load %arg7[%c1_877, %c4_878, %c1_879] : memref<2x22x22xf32, #tpu.memory_space<vmem>>, vector<1x16x16xf32>
    %1713 = vector.shape_cast %1712 : vector<1x16x16xf32> to vector<16x16xf32>
    %1714 = vector.broadcast %1711 : f32 to vector<16x16xf32>
    %1715 = arith.mulf %1714, %1713 : vector<16x16xf32>
    %1716 = arith.addf %1710, %1715 : vector<16x16xf32>
    %c275 = arith.constant 275 : index
    %1717 = memref.load %arg2[%c275] : memref<294xf32, #tpu.memory_space<smem>>
    %c1_880 = arith.constant 1 : index
    %c4_881 = arith.constant 4 : index
    %c2_882 = arith.constant 2 : index
    %1718 = vector.load %arg7[%c1_880, %c4_881, %c2_882] : memref<2x22x22xf32, #tpu.memory_space<vmem>>, vector<1x16x16xf32>
    %1719 = vector.shape_cast %1718 : vector<1x16x16xf32> to vector<16x16xf32>
    %1720 = vector.broadcast %1717 : f32 to vector<16x16xf32>
    %1721 = arith.mulf %1720, %1719 : vector<16x16xf32>
    %1722 = arith.addf %1716, %1721 : vector<16x16xf32>
    %c276 = arith.constant 276 : index
    %1723 = memref.load %arg2[%c276] : memref<294xf32, #tpu.memory_space<smem>>
    %c1_883 = arith.constant 1 : index
    %c4_884 = arith.constant 4 : index
    %c3_885 = arith.constant 3 : index
    %1724 = vector.load %arg7[%c1_883, %c4_884, %c3_885] : memref<2x22x22xf32, #tpu.memory_space<vmem>>, vector<1x16x16xf32>
    %1725 = vector.shape_cast %1724 : vector<1x16x16xf32> to vector<16x16xf32>
    %1726 = vector.broadcast %1723 : f32 to vector<16x16xf32>
    %1727 = arith.mulf %1726, %1725 : vector<16x16xf32>
    %1728 = arith.addf %1722, %1727 : vector<16x16xf32>
    %c277 = arith.constant 277 : index
    %1729 = memref.load %arg2[%c277] : memref<294xf32, #tpu.memory_space<smem>>
    %c1_886 = arith.constant 1 : index
    %c4_887 = arith.constant 4 : index
    %c4_888 = arith.constant 4 : index
    %1730 = vector.load %arg7[%c1_886, %c4_887, %c4_888] : memref<2x22x22xf32, #tpu.memory_space<vmem>>, vector<1x16x16xf32>
    %1731 = vector.shape_cast %1730 : vector<1x16x16xf32> to vector<16x16xf32>
    %1732 = vector.broadcast %1729 : f32 to vector<16x16xf32>
    %1733 = arith.mulf %1732, %1731 : vector<16x16xf32>
    %1734 = arith.addf %1728, %1733 : vector<16x16xf32>
    %c278 = arith.constant 278 : index
    %1735 = memref.load %arg2[%c278] : memref<294xf32, #tpu.memory_space<smem>>
    %c1_889 = arith.constant 1 : index
    %c4_890 = arith.constant 4 : index
    %c5_891 = arith.constant 5 : index
    %1736 = vector.load %arg7[%c1_889, %c4_890, %c5_891] : memref<2x22x22xf32, #tpu.memory_space<vmem>>, vector<1x16x16xf32>
    %1737 = vector.shape_cast %1736 : vector<1x16x16xf32> to vector<16x16xf32>
    %1738 = vector.broadcast %1735 : f32 to vector<16x16xf32>
    %1739 = arith.mulf %1738, %1737 : vector<16x16xf32>
    %1740 = arith.addf %1734, %1739 : vector<16x16xf32>
    %c279 = arith.constant 279 : index
    %1741 = memref.load %arg2[%c279] : memref<294xf32, #tpu.memory_space<smem>>
    %c1_892 = arith.constant 1 : index
    %c4_893 = arith.constant 4 : index
    %c6_894 = arith.constant 6 : index
    %1742 = vector.load %arg7[%c1_892, %c4_893, %c6_894] : memref<2x22x22xf32, #tpu.memory_space<vmem>>, vector<1x16x16xf32>
    %1743 = vector.shape_cast %1742 : vector<1x16x16xf32> to vector<16x16xf32>
    %1744 = vector.broadcast %1741 : f32 to vector<16x16xf32>
    %1745 = arith.mulf %1744, %1743 : vector<16x16xf32>
    %1746 = arith.addf %1740, %1745 : vector<16x16xf32>
    %c280 = arith.constant 280 : index
    %1747 = memref.load %arg2[%c280] : memref<294xf32, #tpu.memory_space<smem>>
    %c1_895 = arith.constant 1 : index
    %c5_896 = arith.constant 5 : index
    %c0_897 = arith.constant 0 : index
    %1748 = vector.load %arg7[%c1_895, %c5_896, %c0_897] : memref<2x22x22xf32, #tpu.memory_space<vmem>>, vector<1x16x16xf32>
    %1749 = vector.shape_cast %1748 : vector<1x16x16xf32> to vector<16x16xf32>
    %1750 = vector.broadcast %1747 : f32 to vector<16x16xf32>
    %1751 = arith.mulf %1750, %1749 : vector<16x16xf32>
    %1752 = arith.addf %1746, %1751 : vector<16x16xf32>
    %c281 = arith.constant 281 : index
    %1753 = memref.load %arg2[%c281] : memref<294xf32, #tpu.memory_space<smem>>
    %c1_898 = arith.constant 1 : index
    %c5_899 = arith.constant 5 : index
    %c1_900 = arith.constant 1 : index
    %1754 = vector.load %arg7[%c1_898, %c5_899, %c1_900] : memref<2x22x22xf32, #tpu.memory_space<vmem>>, vector<1x16x16xf32>
    %1755 = vector.shape_cast %1754 : vector<1x16x16xf32> to vector<16x16xf32>
    %1756 = vector.broadcast %1753 : f32 to vector<16x16xf32>
    %1757 = arith.mulf %1756, %1755 : vector<16x16xf32>
    %1758 = arith.addf %1752, %1757 : vector<16x16xf32>
    %c282 = arith.constant 282 : index
    %1759 = memref.load %arg2[%c282] : memref<294xf32, #tpu.memory_space<smem>>
    %c1_901 = arith.constant 1 : index
    %c5_902 = arith.constant 5 : index
    %c2_903 = arith.constant 2 : index
    %1760 = vector.load %arg7[%c1_901, %c5_902, %c2_903] : memref<2x22x22xf32, #tpu.memory_space<vmem>>, vector<1x16x16xf32>
    %1761 = vector.shape_cast %1760 : vector<1x16x16xf32> to vector<16x16xf32>
    %1762 = vector.broadcast %1759 : f32 to vector<16x16xf32>
    %1763 = arith.mulf %1762, %1761 : vector<16x16xf32>
    %1764 = arith.addf %1758, %1763 : vector<16x16xf32>
    %c283 = arith.constant 283 : index
    %1765 = memref.load %arg2[%c283] : memref<294xf32, #tpu.memory_space<smem>>
    %c1_904 = arith.constant 1 : index
    %c5_905 = arith.constant 5 : index
    %c3_906 = arith.constant 3 : index
    %1766 = vector.load %arg7[%c1_904, %c5_905, %c3_906] : memref<2x22x22xf32, #tpu.memory_space<vmem>>, vector<1x16x16xf32>
    %1767 = vector.shape_cast %1766 : vector<1x16x16xf32> to vector<16x16xf32>
    %1768 = vector.broadcast %1765 : f32 to vector<16x16xf32>
    %1769 = arith.mulf %1768, %1767 : vector<16x16xf32>
    %1770 = arith.addf %1764, %1769 : vector<16x16xf32>
    %c284 = arith.constant 284 : index
    %1771 = memref.load %arg2[%c284] : memref<294xf32, #tpu.memory_space<smem>>
    %c1_907 = arith.constant 1 : index
    %c5_908 = arith.constant 5 : index
    %c4_909 = arith.constant 4 : index
    %1772 = vector.load %arg7[%c1_907, %c5_908, %c4_909] : memref<2x22x22xf32, #tpu.memory_space<vmem>>, vector<1x16x16xf32>
    %1773 = vector.shape_cast %1772 : vector<1x16x16xf32> to vector<16x16xf32>
    %1774 = vector.broadcast %1771 : f32 to vector<16x16xf32>
    %1775 = arith.mulf %1774, %1773 : vector<16x16xf32>
    %1776 = arith.addf %1770, %1775 : vector<16x16xf32>
    %c285 = arith.constant 285 : index
    %1777 = memref.load %arg2[%c285] : memref<294xf32, #tpu.memory_space<smem>>
    %c1_910 = arith.constant 1 : index
    %c5_911 = arith.constant 5 : index
    %c5_912 = arith.constant 5 : index
    %1778 = vector.load %arg7[%c1_910, %c5_911, %c5_912] : memref<2x22x22xf32, #tpu.memory_space<vmem>>, vector<1x16x16xf32>
    %1779 = vector.shape_cast %1778 : vector<1x16x16xf32> to vector<16x16xf32>
    %1780 = vector.broadcast %1777 : f32 to vector<16x16xf32>
    %1781 = arith.mulf %1780, %1779 : vector<16x16xf32>
    %1782 = arith.addf %1776, %1781 : vector<16x16xf32>
    %c286 = arith.constant 286 : index
    %1783 = memref.load %arg2[%c286] : memref<294xf32, #tpu.memory_space<smem>>
    %c1_913 = arith.constant 1 : index
    %c5_914 = arith.constant 5 : index
    %c6_915 = arith.constant 6 : index
    %1784 = vector.load %arg7[%c1_913, %c5_914, %c6_915] : memref<2x22x22xf32, #tpu.memory_space<vmem>>, vector<1x16x16xf32>
    %1785 = vector.shape_cast %1784 : vector<1x16x16xf32> to vector<16x16xf32>
    %1786 = vector.broadcast %1783 : f32 to vector<16x16xf32>
    %1787 = arith.mulf %1786, %1785 : vector<16x16xf32>
    %1788 = arith.addf %1782, %1787 : vector<16x16xf32>
    %c287 = arith.constant 287 : index
    %1789 = memref.load %arg2[%c287] : memref<294xf32, #tpu.memory_space<smem>>
    %c1_916 = arith.constant 1 : index
    %c6_917 = arith.constant 6 : index
    %c0_918 = arith.constant 0 : index
    %1790 = vector.load %arg7[%c1_916, %c6_917, %c0_918] : memref<2x22x22xf32, #tpu.memory_space<vmem>>, vector<1x16x16xf32>
    %1791 = vector.shape_cast %1790 : vector<1x16x16xf32> to vector<16x16xf32>
    %1792 = vector.broadcast %1789 : f32 to vector<16x16xf32>
    %1793 = arith.mulf %1792, %1791 : vector<16x16xf32>
    %1794 = arith.addf %1788, %1793 : vector<16x16xf32>
    %c288 = arith.constant 288 : index
    %1795 = memref.load %arg2[%c288] : memref<294xf32, #tpu.memory_space<smem>>
    %c1_919 = arith.constant 1 : index
    %c6_920 = arith.constant 6 : index
    %c1_921 = arith.constant 1 : index
    %1796 = vector.load %arg7[%c1_919, %c6_920, %c1_921] : memref<2x22x22xf32, #tpu.memory_space<vmem>>, vector<1x16x16xf32>
    %1797 = vector.shape_cast %1796 : vector<1x16x16xf32> to vector<16x16xf32>
    %1798 = vector.broadcast %1795 : f32 to vector<16x16xf32>
    %1799 = arith.mulf %1798, %1797 : vector<16x16xf32>
    %1800 = arith.addf %1794, %1799 : vector<16x16xf32>
    %c289 = arith.constant 289 : index
    %1801 = memref.load %arg2[%c289] : memref<294xf32, #tpu.memory_space<smem>>
    %c1_922 = arith.constant 1 : index
    %c6_923 = arith.constant 6 : index
    %c2_924 = arith.constant 2 : index
    %1802 = vector.load %arg7[%c1_922, %c6_923, %c2_924] : memref<2x22x22xf32, #tpu.memory_space<vmem>>, vector<1x16x16xf32>
    %1803 = vector.shape_cast %1802 : vector<1x16x16xf32> to vector<16x16xf32>
    %1804 = vector.broadcast %1801 : f32 to vector<16x16xf32>
    %1805 = arith.mulf %1804, %1803 : vector<16x16xf32>
    %1806 = arith.addf %1800, %1805 : vector<16x16xf32>
    %c290 = arith.constant 290 : index
    %1807 = memref.load %arg2[%c290] : memref<294xf32, #tpu.memory_space<smem>>
    %c1_925 = arith.constant 1 : index
    %c6_926 = arith.constant 6 : index
    %c3_927 = arith.constant 3 : index
    %1808 = vector.load %arg7[%c1_925, %c6_926, %c3_927] : memref<2x22x22xf32, #tpu.memory_space<vmem>>, vector<1x16x16xf32>
    %1809 = vector.shape_cast %1808 : vector<1x16x16xf32> to vector<16x16xf32>
    %1810 = vector.broadcast %1807 : f32 to vector<16x16xf32>
    %1811 = arith.mulf %1810, %1809 : vector<16x16xf32>
    %1812 = arith.addf %1806, %1811 : vector<16x16xf32>
    %c291 = arith.constant 291 : index
    %1813 = memref.load %arg2[%c291] : memref<294xf32, #tpu.memory_space<smem>>
    %c1_928 = arith.constant 1 : index
    %c6_929 = arith.constant 6 : index
    %c4_930 = arith.constant 4 : index
    %1814 = vector.load %arg7[%c1_928, %c6_929, %c4_930] : memref<2x22x22xf32, #tpu.memory_space<vmem>>, vector<1x16x16xf32>
    %1815 = vector.shape_cast %1814 : vector<1x16x16xf32> to vector<16x16xf32>
    %1816 = vector.broadcast %1813 : f32 to vector<16x16xf32>
    %1817 = arith.mulf %1816, %1815 : vector<16x16xf32>
    %1818 = arith.addf %1812, %1817 : vector<16x16xf32>
    %c292 = arith.constant 292 : index
    %1819 = memref.load %arg2[%c292] : memref<294xf32, #tpu.memory_space<smem>>
    %c1_931 = arith.constant 1 : index
    %c6_932 = arith.constant 6 : index
    %c5_933 = arith.constant 5 : index
    %1820 = vector.load %arg7[%c1_931, %c6_932, %c5_933] : memref<2x22x22xf32, #tpu.memory_space<vmem>>, vector<1x16x16xf32>
    %1821 = vector.shape_cast %1820 : vector<1x16x16xf32> to vector<16x16xf32>
    %1822 = vector.broadcast %1819 : f32 to vector<16x16xf32>
    %1823 = arith.mulf %1822, %1821 : vector<16x16xf32>
    %1824 = arith.addf %1818, %1823 : vector<16x16xf32>
    %c293 = arith.constant 293 : index
    %1825 = memref.load %arg2[%c293] : memref<294xf32, #tpu.memory_space<smem>>
    %c1_934 = arith.constant 1 : index
    %c6_935 = arith.constant 6 : index
    %c6_936 = arith.constant 6 : index
    %1826 = vector.load %arg7[%c1_934, %c6_935, %c6_936] : memref<2x22x22xf32, #tpu.memory_space<vmem>>, vector<1x16x16xf32>
    %1827 = vector.shape_cast %1826 : vector<1x16x16xf32> to vector<16x16xf32>
    %1828 = vector.broadcast %1825 : f32 to vector<16x16xf32>
    %1829 = arith.mulf %1828, %1827 : vector<16x16xf32>
    %1830 = arith.addf %1824, %1829 : vector<16x16xf32>
    %c4_937 = arith.constant 4 : index
    %1831 = memref.load %arg3[%c4_937] : memref<6xf32, #tpu.memory_space<smem>>
    %c5_938 = arith.constant 5 : index
    %1832 = memref.load %arg3[%c5_938] : memref<6xf32, #tpu.memory_space<smem>>
    %1833 = vector.broadcast %1831 : f32 to vector<16x16xf32>
    %1834 = arith.mulf %1830, %1833 : vector<16x16xf32>
    %1835 = vector.broadcast %1832 : f32 to vector<16x16xf32>
    %1836 = arith.addf %1834, %1835 : vector<16x16xf32>
    %cst_939 = arith.constant 0.000000e+00 : f32
    %1837 = vector.broadcast %cst_939 : f32 to vector<16x16xf32>
    %1838 = arith.subf %1837, %1836 : vector<16x16xf32>
    %1839 = math.exp %1838 : vector<16x16xf32>
    %cst_940 = arith.constant 1.000000e+00 : f32
    %1840 = vector.broadcast %cst_940 : f32 to vector<16x16xf32>
    %1841 = arith.addf %1840, %1839 : vector<16x16xf32>
    %cst_941 = arith.constant 1.000000e+00 : f32
    %1842 = vector.broadcast %cst_941 : f32 to vector<16x16xf32>
    %1843 = arith.divf %1842, %1841 : vector<16x16xf32>
    %1844 = vector.shape_cast %1843 : vector<16x16xf32> to vector<1x16x16xf32>
    %1845 = vector.shape_cast %615 : vector<4x16xf32> to vector<4x1x16xf32>
    %1846 = vector.broadcast %1844 : vector<1x16x16xf32> to vector<4x16x16xf32>
    %1847 = vector.broadcast %1845 : vector<4x1x16xf32> to vector<4x16x16xf32>
    %1848 = arith.addf %1846, %1847 : vector<4x16x16xf32>
    %1849 = vector.shape_cast %1229 : vector<4x16xf32> to vector<4x16x1xf32>
    %1850 = vector.broadcast %1849 : vector<4x16x1xf32> to vector<4x16x16xf32>
    %1851 = arith.addf %1848, %1850 : vector<4x16x16xf32>
    %1852 = arith.mulf %1, %1851 : vector<4x16x16xf32>
    %cst_942 = arith.constant 0.333333343 : f32
    %1853 = vector.broadcast %cst_942 : f32 to vector<4x16x16xf32>
    %1854 = arith.mulf %1852, %1853 : vector<4x16x16xf32>
    %c0_943 = arith.constant 0 : index
    %c0_944 = arith.constant 0 : index
    %c0_945 = arith.constant 0 : index
    %c0_946 = arith.constant 0 : index
    %1855 = vector.load %arg4[%c0_943, %c0_944, %c0_945, %c0_946] : memref<1x4x16x16xf32, #tpu.memory_space<vmem>>, vector<1x4x16x16xf32>
    %1856 = vector.shape_cast %1855 : vector<1x4x16x16xf32> to vector<4x16x16xf32>
    %1857 = vector.shape_cast %1854 : vector<4x16x16xf32> to vector<1x4x16x16xf32>
    tpu.vector_store %arg4[%c0_943, %c0_944, %c0_945, %c0_946], %1857 {strides = array<i32>} : memref<1x4x16x16xf32, #tpu.memory_space<vmem>>, vector<1x4x16x16xf32>,
    return
  }
  func.func @transform_0(%arg0: i32) -> (i32, i32, i32, i32) {
    %c0_i32 = arith.constant 0 : i32
    %c0_i32_0 = arith.constant 0 : i32
    %c0_i32_1 = arith.constant 0 : i32
    %c0_i32_2 = arith.constant 0 : i32
    return %arg0, %c0_i32, %c0_i32_0, %c0_i32_1 : i32, i32, i32, i32
  }
  func.func @transform_1(%arg0: i32) -> i32 {
    %c0_i32 = arith.constant 0 : i32
    %c0_i32_0 = arith.constant 0 : i32
    return %c0_i32 : i32
  }
  func.func @transform_2(%arg0: i32) -> i32 {
    %c0_i32 = arith.constant 0 : i32
    %c0_i32_0 = arith.constant 0 : i32
    return %c0_i32 : i32
  }
  func.func @transform_3(%arg0: i32) -> (i32, i32, i32, i32) {
    %c0_i32 = arith.constant 0 : i32
    %c0_i32_0 = arith.constant 0 : i32
    %c0_i32_1 = arith.constant 0 : i32
    %c0_i32_2 = arith.constant 0 : i32
    return %arg0, %c0_i32, %c0_i32_0, %c0_i32_1 : i32, i32, i32, i32
  }
}

</mosaic_0001>

<llo_original>
// kernel: triplet_attention.1
$region0: #{triplet_attention.1}
  #allocation0 [shape = 'u32[]', space=smem, size = 0x4, offset = 0x4, fixed_abs, tag = 'smem constant byte address 0x4 - core index']
  #allocation1 [shape = 'u32[72,128]{1,0:T(1,128)}', space=vmem, size = 0x9000, scoped, tag = 'internal scratch']
  #allocation2 [shape = 'f32[2,10,22]{2,1,0:T(8,128)}', space=vmem, size = 0x4000, scoped, tag = 'scratch operand']
  #allocation3 [shape = 'f32[2,10,22]{2,1,0:T(8,128)}', space=vmem, size = 0x4000, scoped, tag = 'scratch operand']
  #allocation4 [shape = 'f32[2,22,22]{2,1,0:T(8,128)}', space=vmem, size = 0x6000, scoped, tag = 'scratch operand']
  %s0 = inlined_call_operand.hbm [shape: f32[2,4,16,16], index: 0, kind: input, shape index: {}]
  %s1 = inlined_call_operand.vmem [shape: f32[294], index: 1, kind: input, shape index: {}]
  %s2 = inlined_call_operand.vmem [shape: f32[6], index: 2, kind: input, shape index: {}]
  %s3 = inlined_call_operand.hbm [shape: f32[2,4,16,16], index: 3, kind: output, shape index: {}]
  %s4 = sld [smem:[#allocation0]]
  $region57: #{triplet_attention.1} parent=0
    _
  %s6 = ssub.s32 1, %s4
  %s7 = scalar_select 0, %s6, %s4
  $region1: #{triplet_attention.1} parent=0
    #allocation5 [shape = 'u8[65536]{0}', space=vmem, size = 0x10000, scoped, tag = 'input window, operand 0']
    #allocation6 [shape = 's32[2]{0}', space=sflag, size = 0x8, scoped, tag = 'scoped memory for triplet_attention.1']
    #allocation7 [shape = 's32[2]{0}', space=sflag, size = 0x8, scoped, tag = 'scoped memory for triplet_attention.1']
    #allocation8 [shape = 's32[2]{0}', space=sflag, size = 0x8, scoped, tag = 'scoped memory for triplet_attention.1']
    #allocation9 [shape = 'u8[1536]{0}', space=smem, size = 0x600, scoped, tag = 'input window, operand 1, single buffered']
    #allocation10 [shape = 'u8[512]{0}', space=smem, size = 0x200, scoped, tag = 'input window, operand 2, single buffered']
    #allocation11 [shape = 's32[1]{0}', space=sflag, size = 0x4, scoped, tag = 'scoped memory for triplet_attention.1']
    #allocation12 [shape = 'u8[65536]{0}', space=vmem, size = 0x10000, scoped, tag = 'output window, operand 0']
    %8 = vsyncpa [#allocation6], 0
    %s9 = scalar_lea.sflag [#allocation6], 1
    %10 = vsyncpa %s9, 0
    %11 = vsyncpa [#allocation8], 0
    %12 = vsyncpa [#allocation11], 0
    %13 = vsyncpa [#allocation7], 0
    %s14 = scalar_lea.sflag [#allocation7], 1
    %15 = vsyncpa %s14, 0
    loop: start=0, step=1, limit=4
    $region2: #{triplet_attention.1} parent=1 // loop_pre_header
      _
    $region3: #{triplet_attention.1} parent=1 // loop_header
      %s17 = sphi 0, %s21
      %p18 = scmp.ge.s32.totalorder %s17, 4
      %s27 = sphi 0, %s29
      %s30 = sphi 0, %s27
      %s31 = sphi 0, %s30
      %s47 = sphi 0, %s31
      %s51 = sphi 0, %s51
      %s53 = sphi 0, %s51
      %s54 = sphi 0, %s53
      %s68 = sphi 0, %s54
      %s72 = sphi 0, %s72
      %s74 = sphi 0, %s72
      %s75 = sphi 0, %s74
      %s89 = sphi 0, %s75
      %s95 = sphi 0, %s97
      %s98 = sphi 0, %s95
      %s99 = sphi 0, %s98
      %s115 = sphi 0, %s99
    $region4: #{triplet_attention.1} parent=1 // loop_header_branch
      %20 = sbr.rel (%p18) target = $region8
    $region5: #{triplet_attention.1} parent=1 // loop_body
      %s22 = ssub.s32 %s17, 1
      %s23 = ssub.s32 %s17, 2
      %s24 = sadd.s32 %s17, 1
      %s25 = ssub.s32 %s17, %s24
      %p26 = scmp.eq.s32.totalorder %s25, 0
      %s28 = sadd.s32 %s27, 1
      %s29 = scalar_select %p26, %s27, %s28
      %p32 = pneg %p26
      %p33 = scmp.eq.s32.totalorder %s17, 1
      %p34 = por %p32, %p33
      %p35 = scmp.ne.s32.totalorder %s27, %s30
      %p36 = scmp.eq.s32.totalorder %s17, 0
      %p37 = por %p35, %p36
      %p38 = scmp.ne.s32.totalorder %s27, %s30
      %p39 = scmp.eq.s32.totalorder %s22, 1
      %p40 = por %p38, %p39
      %p41 = scmp.ne.s32.totalorder %s30, %s31
      %p42 = scmp.eq.s32.totalorder %s22, 0
      %p43 = por %p41, %p42
      %p44 = scmp.ne.s32.totalorder %s30, %s31
      %p45 = scmp.eq.s32.totalorder %s23, 1
      %p46 = por %p44, %p45
      %p48 = scmp.ne.s32.totalorder %s31, %s47
      %p49 = scmp.eq.s32.totalorder %s23, 0
      %p50 = por %p48, %p49
      %s52 = sadd.s32 %s51, 1
      %p55 = scmp.eq.s32.totalorder %s17, 1
      %p56 = scmp.ne.s32.totalorder %s51, %s53
      %p57 = scmp.eq.s32.totalorder %s17, 0
      %p58 = por %p56, %p57
      %p59 = scmp.ne.s32.totalorder %s51, %s53
      %p60 = scmp.eq.s32.totalorder %s22, 1
      %p61 = por %p59, %p60
      %p62 = scmp.ne.s32.totalorder %s53, %s54
      %p63 = scmp.eq.s32.totalorder %s22, 0
      %p64 = por %p62, %p63
      %p65 = scmp.ne.s32.totalorder %s53, %s54
      %p66 = scmp.eq.s32.totalorder %s23, 1
      %p67 = por %p65, %p66
      %p69 = scmp.ne.s32.totalorder %s54, %s68
      %p70 = scmp.eq.s32.totalorder %s23, 0
      %p71 = por %p69, %p70
      %s73 = sadd.s32 %s72, 1
      %p76 = scmp.eq.s32.totalorder %s17, 1
      %p77 = scmp.ne.s32.totalorder %s72, %s74
      %p78 = scmp.eq.s32.totalorder %s17, 0
      %p79 = por %p77, %p78
      %p80 = scmp.ne.s32.totalorder %s72, %s74
      %p81 = scmp.eq.s32.totalorder %s22, 1
      %p82 = por %p80, %p81
      %p83 = scmp.ne.s32.totalorder %s74, %s75
      %p84 = scmp.eq.s32.totalorder %s22, 0
      %p85 = por %p83, %p84
      %p86 = scmp.ne.s32.totalorder %s74, %s75
      %p87 = scmp.eq.s32.totalorder %s23, 1
      %p88 = por %p86, %p87
      %p90 = scmp.ne.s32.totalorder %s75, %s89
      %p91 = scmp.eq.s32.totalorder %s23, 0
      %p92 = por %p90, %p91
      %s93 = ssub.s32 %s17, %s24
      %p94 = scmp.eq.s32.totalorder %s93, 0
      %s96 = sadd.s32 %s95, 1
      %s97 = scalar_select %p94, %s95, %s96
      %p100 = pneg %p94
      %p101 = scmp.eq.s32.totalorder %s17, 1
      %p102 = por %p100, %p101
      %p103 = scmp.ne.s32.totalorder %s95, %s98
      %p104 = scmp.eq.s32.totalorder %s17, 0
      %p105 = por %p103, %p104
      %p106 = scmp.ne.s32.totalorder %s95, %s98
      %p107 = scmp.eq.s32.totalorder %s22, 1
      %p108 = por %p106, %p107
      %p109 = scmp.ne.s32.totalorder %s98, %s99
      %p110 = scmp.eq.s32.totalorder %s22, 0
      %p111 = por %p109, %p110
      %p112 = scmp.ne.s32.totalorder %s98, %s99
      %p113 = scmp.eq.s32.totalorder %s23, 1
      %p114 = por %p112, %p113
      %p116 = scmp.ne.s32.totalorder %s99, %s115
      %p117 = scmp.eq.s32.totalorder %s23, 0
      %p118 = por %p116, %p117
      %p119 = scmp.le.s32.totalorder 1, %s17
      %p120 = scmp.lt.s32.totalorder %s17, 3
      %p121 = pnand %p119, %p120
      %p122 = pneg %p121
      // Predicated region
      $region9: #{triplet_attention.1} parent=5 // pred_check
        _
      $region10: #{triplet_attention.1} parent=5 // pred_check_branch
        %124 = sbr.rel (%p121) target = $region12
      $region11: #{triplet_attention.1} parent=5 // pred_region
        %s125 = ssub.s32 %s17, 1
        // Predicated region
        $region13: #{triplet_attention.1} parent=11 // pred_check
          %p126 = pneg %p64
        $region14: #{triplet_attention.1} parent=11 // pred_check_branch
          %128 = sbr.rel (%p126) target = $region16
        $region15: #{triplet_attention.1} parent=11 // pred_region
          %130 = vsyncadd [#allocation8], 0
          %s132 = sshll.u32 %s1, 4
          %s133 = int_to_ptr.vmem [resolvable:$true] %s132
          %135 = dma.vmem_to_smem %s133, 48, [#allocation9], [#allocation8]
        $region16: #{triplet_attention.1} parent=11 // pred_fallthru
          _
        // Predicated region
        $region17: #{triplet_attention.1} parent=11 // pred_check
          %p136 = pneg %p85
        $region18: #{triplet_attention.1} parent=11 // pred_check_branch
          %138 = sbr.rel (%p136) target = $region20
        $region19: #{triplet_attention.1} parent=11 // pred_region
          %140 = vsyncadd [#allocation11], 0
          %s142 = sshll.u32 %s2, 4
          %s143 = int_to_ptr.vmem [resolvable:$true] %s142
          %145 = dma.vmem_to_smem %s143, 16, [#allocation10], [#allocation11]
        $region20: #{triplet_attention.1} parent=11 // pred_fallthru
          _
      $region12: #{triplet_attention.1} parent=5 // pred_fallthru
        _
      %p146 = scmp.lt.s32.totalorder %s17, 2
      // Predicated region
      $region21: #{triplet_attention.1} parent=5 // pred_check
        %p147 = pneg %p146
      $region22: #{triplet_attention.1} parent=5 // pred_check_branch
        %149 = sbr.rel (%p147) target = $region24
      $region23: #{triplet_attention.1} parent=5 // pred_region
        // Predicated region
        $region25: #{triplet_attention.1} parent=23 // pred_check
          %p150 = pneg %p37
        $region26: #{triplet_attention.1} parent=23 // pred_check_branch
          %152 = sbr.rel (%p150) target = $region28
        $region27: #{triplet_attention.1} parent=23 // pred_region
          %s153 = sand.u32 %s27, 1
          %s154 = scalar_lea.sflag [#allocation6], %s153
          %s155 = sand.u32 %s27, 1
          %s156 = smul.addr %s155, 64
          %s157 = scalar_lea.vmem [#allocation5], %s156
          %159 = vsyncadd %s154, 0
          %s160 = smul.addr %s17, 8
          %s161 = smul.addr %s160, 8
          %s162 = scalar_lea.hbm %s0, %s161
          %s163 = sshll.u32 %s162, 4
          %s164 = int_to_ptr.hbm [resolvable:$true] %s163
          %s165 = sshll.u32 %s157, 4
          %s166 = int_to_ptr.vmem [resolvable:$true] %s165
          %171 = dma.hbm_to_vmem [thread:$0]  %s164, 1024, %s166, %s154, 128, 128, 8
        $region28: #{triplet_attention.1} parent=23 // pred_fallthru
          _
      $region24: #{triplet_attention.1} parent=5 // pred_fallthru
        _
      %p172 = scmp.le.s32.totalorder 1, %s17
      %p173 = scmp.lt.s32.totalorder %s17, 3
      %p174 = pnand %p172, %p173
      %p175 = pneg %p174
      // Predicated region
      $region29: #{triplet_attention.1} parent=5 // pred_check
        _
      $region30: #{triplet_attention.1} parent=5 // pred_check_branch
        %177 = sbr.rel (%p174) target = $region32
      $region31: #{triplet_attention.1} parent=5 // pred_region
        %s178 = ssub.s32 %s17, 1
        %s179 = sand.u32 %s30, 1
        %s180 = scalar_lea.sflag [#allocation6], %s179
        %s181 = sand.u32 %s30, 1
        %s182 = smul.addr %s181, 64
        %s183 = scalar_lea.vmem [#allocation5], %s182
        // Predicated region
        $region33: #{triplet_attention.1} parent=31 // pred_check
          %p184 = pneg %p43
        $region34: #{triplet_attention.1} parent=31 // pred_check_branch
          %186 = sbr.rel (%p184) target = $region36
        $region35: #{triplet_attention.1} parent=31 // pred_region
          %188 = dma.done %s180, 1024
        $region36: #{triplet_attention.1} parent=31 // pred_fallthru
          _
        // Predicated region
        $region37: #{triplet_attention.1} parent=31 // pred_check
          %p189 = pneg %p64
        $region38: #{triplet_attention.1} parent=31 // pred_check_branch
          %191 = sbr.rel (%p189) target = $region40
        $region39: #{triplet_attention.1} parent=31 // pred_region
          %193 = dma.done [#allocation8], 48
        $region40: #{triplet_attention.1} parent=31 // pred_fallthru
          _
        // Predicated region
        $region41: #{triplet_attention.1} parent=31 // pred_check
          %p194 = pneg %p85
        $region42: #{triplet_attention.1} parent=31 // pred_check_branch
          %196 = sbr.rel (%p194) target = $region44
        $region43: #{triplet_attention.1} parent=31 // pred_region
          %198 = dma.done [#allocation11], 16
        $region44: #{triplet_attention.1} parent=31 // pred_fallthru
          _
        %199 = sfence
        %s200 = sand.u32 %s30, 1
        %s201 = scalar_lea.sflag [#allocation6], %s200
        %s202 = sand.u32 %s30, 1
        %s203 = smul.addr %s202, 64
        %s204 = scalar_lea.vmem [#allocation5], %s203
        %p205 = pneg %p43
        %p206 = pneg %p40
        %p207 = pneg %p64
        %p208 = pneg %p61
        %p209 = pneg %p85
        %p210 = pneg %p82
        %p211 = pneg %p111
        %p212 = pneg %p108
        %s213 = sand.u32 %s98, 1
        %s214 = scalar_lea.sflag [#allocation7], %s213
        %s215 = sand.u32 %s98, 1
        %s216 = smul.addr %s215, 64
        %s217 = scalar_lea.vmem [#allocation12], %s216
        %v218 = vld [vmem:[%s183] sm:$0xff]
        %v219 = vld [vmem:[%s183 + $0x8] sm:$0xff]
        %v220 = vld [vmem:[%s183 + $0x10] sm:$0xff]
        %v221 = vld [vmem:[%s183 + $0x18] sm:$0xff]
        %v222 = vld [vmem:[%s183 + $0x20] sm:$0xff]
        %v223 = vld [vmem:[%s183 + $0x28] sm:$0xff]
        %v224 = vld [vmem:[%s183 + $0x30] sm:$0xff]
        %v225 = vld [vmem:[%s183 + $0x38] sm:$0xff]
        %vm226 = vcmask 130048
        %v227 = vsel %vm226, %v218, -inf
        %v228 = vsel %vm226, %v219, -inf
        %v229 = vmax.f32 %v227, %v228
        %v230 = vrot.slane %v229, 4
        %v231 = vmax.f32 %v229, %v230
        %v232 = vrot.slane %v231, 2
        %v233 = vmax.f32 %v231, %v232
        %v234 = vrot.slane %v233, 1
        %v235 = vmax.f32 %v233, %v234
        %v236 = vsel %vm226, %v220, -inf
        %v237 = vsel %vm226, %v221, -inf
        %v238 = vmax.f32 %v236, %v237
        %v239 = vrot.slane %v238, 4
        %v240 = vmax.f32 %v238, %v239
        %v241 = vrot.slane %v240, 2
        %v242 = vmax.f32 %v240, %v241
        %v243 = vrot.slane %v242, 1
        %v244 = vmax.f32 %v242, %v243
        %v245 = vsel %vm226, %v222, -inf
        %v246 = vsel %vm226, %v223, -inf
        %v247 = vmax.f32 %v245, %v246
        %v248 = vrot.slane %v247, 4
        %v249 = vmax.f32 %v247, %v248
        %v250 = vrot.slane %v249, 2
        %v251 = vmax.f32 %v249, %v250
        %v252 = vrot.slane %v251, 1
        %v253 = vmax.f32 %v251, %v252
        %v254 = vsel %vm226, %v224, -inf
        %v255 = vsel %vm226, %v225, -inf
        %v256 = vmax.f32 %v254, %v255
        %v257 = vrot.slane %v256, 4
        %v258 = vmax.f32 %v256, %v257
        %v259 = vrot.slane %v258, 2
        %v260 = vmax.f32 %v258, %v259
        %v261 = vrot.slane %v260, 1
        %v262 = vmax.f32 %v260, %v261
        %v263 = vsel %vm226, %v218, 0.0
        %v264 = vsel %vm226, %v219, 0.0
        %v265 = vadd.f32 %v263, %v264
        %v266 = vrot.slane %v265, 4
        %v267 = vadd.f32 %v265, %v266
        %v268 = vrot.slane %v267, 2
        %v269 = vadd.f32 %v267, %v268
        %v270 = vrot.slane %v269, 1
        %v271 = vadd.f32 %v269, %v270
        %v272 = vsel %vm226, %v220, 0.0
        %v273 = vsel %vm226, %v221, 0.0
        %v274 = vadd.f32 %v272, %v273
        %v275 = vrot.slane %v274, 4
        %v276 = vadd.f32 %v274, %v275
        %v277 = vrot.slane %v276, 2
        %v278 = vadd.f32 %v276, %v277
        %v279 = vrot.slane %v278, 1
        %v280 = vadd.f32 %v278, %v279
        %v281 = vsel %vm226, %v222, 0.0
        %v282 = vsel %vm226, %v223, 0.0
        %v283 = vadd.f32 %v281, %v282
        %v284 = vrot.slane %v283, 4
        %v285 = vadd.f32 %v283, %v284
        %v286 = vrot.slane %v285, 2
        %v287 = vadd.f32 %v285, %v286
        %v288 = vrot.slane %v287, 1
        %v289 = vadd.f32 %v287, %v288
        %v290 = vsel %vm226, %v224, 0.0
        %v291 = vsel %vm226, %v225, 0.0
        %v292 = vadd.f32 %v290, %v291
        %v293 = vrot.slane %v292, 4
        %v294 = vadd.f32 %v292, %v293
        %v295 = vrot.slane %v294, 2
        %v296 = vadd.f32 %v294, %v295
        %v297 = vrot.slane %v296, 1
        %v298 = vadd.f32 %v296, %v297
        %v299 = vrcp.pop 16.0
        %v300 = vmul.f32 16.0, %v299
        %v301 = vsub.f32 1.0, %v300
        %v302 = vmul.f32 %v299, %v301
        %v303 = vadd.f32 %v299, %v302
        %vm304 = vweird.f32 %v299
        %v305 = vsel %vm304, %v299, %v303
        %v306 = vmul.f32 %v271, %v305
        %v307 = vmul.f32 %v280, %v305
        %v308 = vmul.f32 %v289, %v305
        %v309 = vmul.f32 %v298, %v305
        %vm310 = vcmask 179200
        %311 = vst.msk [vmem:[#allocation2] sm:$0xff] %vm310, 0.0
        %vm312 = vcmask 173056
        %313 = vst.msk [vmem:[#allocation2 + $0x8] sm:$0x3] %vm312, 0.0
        %314 = vst.msk [vmem:[#allocation2 + $0x10] sm:$0xff] %vm310, 0.0
        %315 = vst.msk [vmem:[#allocation2 + $0x18] sm:$0x3] %vm312, 0.0
        %vm320 = vcmask 1041409
        %v321 = vsel %vm320, %v244, %v235
        %vm322 = vcmask 1042434
        %v323 = vsel %vm322, %v253, %v321
        %vm324 = vcmask 1043459
        %v325 = vsel %vm324, %v262, %v323
        %326 = vrot.lane.b32.xlu0 %v325, 3
        %v327 = vpop.permute.xlu0 %326
        %vm329 = vcmask 150552
        %330 = vst.msk [vmem:[#allocation2 + $0x3] sm:$0xf] %vm329, %v327
        %v335 = vsel %vm320, %v307, %v306
        %v336 = vsel %vm322, %v308, %v335
        %v337 = vsel %vm324, %v309, %v336
        %338 = vrot.lane.b32.xlu0 %v337, 3
        %v339 = vpop.permute.xlu0 %338
        %s341 = scalar_lea.vmem [#allocation2], 16
        %342 = vst.msk [vmem:[%s341 + $0x3] sm:$0xf] %vm329, %v339
        %s343 = sld [smem:[#allocation9]]
        %v344 = vld [vmem:[#allocation2] sm:$0xf]
        %v345 = vstv %s343
        %v346 = vmul.f32 %v345, %v344
        %v347 = vadd.f32 %v346, 0.0
        %s348 = sld [smem:[#allocation9 + $0x1]]
        %v349 = vstv %s348
        %v350 = vmul.f32 %v349, %v344
        %352 = vrot.lane.b32.xlu0 %v350, 127
        %v353 = vpop.permute.xlu0 %352
        %v355 = vadd.f32 %v347, %v353
        %s356 = sld [smem:[#allocation9 + $0x2]]
        %v357 = vstv %s356
        %v358 = vmul.f32 %v357, %v344
        %360 = vrot.lane.b32.xlu0 %v358, 126
        %v361 = vpop.permute.xlu0 %360
        %v363 = vadd.f32 %v355, %v361
        %s364 = sld [smem:[#allocation9 + $0x3]]
        %v365 = vstv %s364
        %v366 = vmul.f32 %v365, %v344
        %368 = vrot.lane.b32.xlu0 %v366, 125
        %v369 = vpop.permute.xlu0 %368
        %v371 = vadd.f32 %v363, %v369
        %s372 = sld [smem:[#allocation9 + $0x4]]
        %v373 = vstv %s372
        %v374 = vmul.f32 %v373, %v344
        %376 = vrot.lane.b32.xlu0 %v374, 124
        %v377 = vpop.permute.xlu0 %376
        %v379 = vadd.f32 %v371, %v377
        %s380 = sld [smem:[#allocation9 + $0x5]]
        %v381 = vstv %s380
        %v382 = vmul.f32 %v381, %v344
        %384 = vrot.lane.b32.xlu0 %v382, 123
        %v385 = vpop.permute.xlu0 %384
        %v387 = vadd.f32 %v379, %v385
        %s388 = sld [smem:[#allocation9 + $0x6]]
        %v389 = vstv %s388
        %v390 = vmul.f32 %v389, %v344
        %392 = vrot.lane.b32.xlu0 %v390, 122
        %v393 = vpop.permute.xlu0 %392
        %v395 = vadd.f32 %v387, %v393
        %s396 = sld [smem:[#allocation9 + $0x7]]
        %v397 = vld [vmem:[#allocation2 + $0x1] sm:$0xf]
        %v398 = vstv %s396
        %v399 = vmul.f32 %v398, %v397
        %v400 = vadd.f32 %v395, %v399
        %s401 = sld [smem:[#allocation9 + $0x8]]
        %v402 = vstv %s401
        %v403 = vmul.f32 %v402, %v397
        %405 = vrot.lane.b32.xlu0 %v403, 127
        %v406 = vpop.permute.xlu0 %405
        %v408 = vadd.f32 %v400, %v406
        %s409 = sld [smem:[#allocation9 + $0x9]]
        %v410 = vstv %s409
        %v411 = vmul.f32 %v410, %v397
        %413 = vrot.lane.b32.xlu0 %v411, 126
        %v414 = vpop.permute.xlu0 %413
        %v416 = vadd.f32 %v408, %v414
        %s417 = sld [smem:[#allocation9 + $0xa]]
        %v418 = vstv %s417
        %v419 = vmul.f32 %v418, %v397
        %421 = vrot.lane.b32.xlu0 %v419, 125
        %v422 = vpop.permute.xlu0 %421
        %v424 = vadd.f32 %v416, %v422
        %s425 = sld [smem:[#allocation9 + $0xb]]
        %v426 = vstv %s425
        %v427 = vmul.f32 %v426, %v397
        %429 = vrot.lane.b32.xlu0 %v427, 124
        %v430 = vpop.permute.xlu0 %429
        %v432 = vadd.f32 %v424, %v430
        %s433 = sld [smem:[#allocation9 + $0xc]]
        %v434 = vstv %s433
        %v435 = vmul.f32 %v434, %v397
        %437 = vrot.lane.b32.xlu0 %v435, 123
        %v438 = vpop.permute.xlu0 %437
        %v440 = vadd.f32 %v432, %v438
        %s441 = sld [smem:[#allocation9 + $0xd]]
        %v442 = vstv %s441
        %v443 = vmul.f32 %v442, %v397
        %445 = vrot.lane.b32.xlu0 %v443, 122
        %v446 = vpop.permute.xlu0 %445
        %v448 = vadd.f32 %v440, %v446
        %s449 = sld [smem:[#allocation9 + $0xe]]
        %v450 = vld [vmem:[#allocation2 + $0x2] sm:$0xf]
        %v451 = vstv %s449
        %v452 = vmul.f32 %v451, %v450
        %v453 = vadd.f32 %v448, %v452
        %s454 = sld [smem:[#allocation9 + $0xf]]
        %v455 = vstv %s454
        %v456 = vmul.f32 %v455, %v450
        %458 = vrot.lane.b32.xlu0 %v456, 127
        %v459 = vpop.permute.xlu0 %458
        %v461 = vadd.f32 %v453, %v459
        %s462 = sld [smem:[#allocation9 + $0x10]]
        %v463 = vstv %s462
        %v464 = vmul.f32 %v463, %v450
        %466 = vrot.lane.b32.xlu0 %v464, 126
        %v467 = vpop.permute.xlu0 %466
        %v469 = vadd.f32 %v461, %v467
        %s470 = sld [smem:[#allocation9 + $0x11]]
        %v471 = vstv %s470
        %v472 = vmul.f32 %v471, %v450
        %474 = vrot.lane.b32.xlu0 %v472, 125
        %v475 = vpop.permute.xlu0 %474
        %v477 = vadd.f32 %v469, %v475
        %s478 = sld [smem:[#allocation9 + $0x12]]
        %v479 = vstv %s478
        %v480 = vmul.f32 %v479, %v450
        %482 = vrot.lane.b32.xlu0 %v480, 124
        %v483 = vpop.permute.xlu0 %482
        %v485 = vadd.f32 %v477, %v483
        %s486 = sld [smem:[#allocation9 + $0x13]]
        %v487 = vstv %s486
        %v488 = vmul.f32 %v487, %v450
        %490 = vrot.lane.b32.xlu0 %v488, 123
        %v491 = vpop.permute.xlu0 %490
        %v493 = vadd.f32 %v485, %v491
        %s494 = sld [smem:[#allocation9 + $0x14]]
        %v495 = vstv %s494
        %v496 = vmul.f32 %v495, %v450
        %498 = vrot.lane.b32.xlu0 %v496, 122
        %v499 = vpop.permute.xlu0 %498
        %v501 = vadd.f32 %v493, %v499
        %s502 = sld [smem:[#allocation9 + $0x15]]
        %v503 = vld [vmem:[#allocation2 + $0x3] sm:$0xf]
        %v504 = vstv %s502
        %v505 = vmul.f32 %v504, %v503
        %v506 = vadd.f32 %v501, %v505
        %s507 = sld [smem:[#allocation9 + $0x16]]
        %v508 = vstv %s507
        %v509 = vmul.f32 %v508, %v503
        %511 = vrot.lane.b32.xlu0 %v509, 127
        %v512 = vpop.permute.xlu0 %511
        %v514 = vadd.f32 %v506, %v512
        %s515 = sld [smem:[#allocation9 + $0x17]]
        %v516 = vstv %s515
        %v517 = vmul.f32 %v516, %v503
        %519 = vrot.lane.b32.xlu0 %v517, 126
        %v520 = vpop.permute.xlu0 %519
        %v522 = vadd.f32 %v514, %v520
        %s523 = sld [smem:[#allocation9 + $0x18]]
        %v524 = vstv %s523
        %v525 = vmul.f32 %v524, %v503
        %527 = vrot.lane.b32.xlu0 %v525, 125
        %v528 = vpop.permute.xlu0 %527
        %v530 = vadd.f32 %v522, %v528
        %s531 = sld [smem:[#allocation9 + $0x19]]
        %v532 = vstv %s531
        %v533 = vmul.f32 %v532, %v503
        %535 = vrot.lane.b32.xlu0 %v533, 124
        %v536 = vpop.permute.xlu0 %535
        %v538 = vadd.f32 %v530, %v536
        %s539 = sld [smem:[#allocation9 + $0x1a]]
        %v540 = vstv %s539
        %v541 = vmul.f32 %v540, %v503
        %543 = vrot.lane.b32.xlu0 %v541, 123
        %v544 = vpop.permute.xlu0 %543
        %v546 = vadd.f32 %v538, %v544
        %s547 = sld [smem:[#allocation9 + $0x1b]]
        %v548 = vstv %s547
        %v549 = vmul.f32 %v548, %v503
        %551 = vrot.lane.b32.xlu0 %v549, 122
        %v552 = vpop.permute.xlu0 %551
        %v554 = vadd.f32 %v546, %v552
        %s555 = sld [smem:[#allocation9 + $0x1c]]
        %v556 = vld [vmem:[#allocation2 + $0x4] sm:$0xf]
        %v557 = vstv %s555
        %v558 = vmul.f32 %v557, %v556
        %v559 = vadd.f32 %v554, %v558
        %s560 = sld [smem:[#allocation9 + $0x1d]]
        %v561 = vstv %s560
        %v562 = vmul.f32 %v561, %v556
        %564 = vrot.lane.b32.xlu0 %v562, 127
        %v565 = vpop.permute.xlu0 %564
        %v567 = vadd.f32 %v559, %v565
        %s568 = sld [smem:[#allocation9 + $0x1e]]
        %v569 = vstv %s568
        %v570 = vmul.f32 %v569, %v556
        %572 = vrot.lane.b32.xlu0 %v570, 126
        %v573 = vpop.permute.xlu0 %572
        %v575 = vadd.f32 %v567, %v573
        %s576 = sld [smem:[#allocation9 + $0x1f]]
        %v577 = vstv %s576
        %v578 = vmul.f32 %v577, %v556
        %580 = vrot.lane.b32.xlu0 %v578, 125
        %v581 = vpop.permute.xlu0 %580
        %v583 = vadd.f32 %v575, %v581
        %s584 = sld [smem:[#allocation9 + $0x20]]
        %v585 = vstv %s584
        %v586 = vmul.f32 %v585, %v556
        %588 = vrot.lane.b32.xlu0 %v586, 124
        %v589 = vpop.permute.xlu0 %588
        %v591 = vadd.f32 %v583, %v589
        %s592 = sld [smem:[#allocation9 + $0x21]]
        %v593 = vstv %s592
        %v594 = vmul.f32 %v593, %v556
        %596 = vrot.lane.b32.xlu0 %v594, 123
        %v597 = vpop.permute.xlu0 %596
        %v599 = vadd.f32 %v591, %v597
        %s600 = sld [smem:[#allocation9 + $0x22]]
        %v601 = vstv %s600
        %v602 = vmul.f32 %v601, %v556
        %604 = vrot.lane.b32.xlu0 %v602, 122
        %v605 = vpop.permute.xlu0 %604
        %v607 = vadd.f32 %v599, %v605
        %s608 = sld [smem:[#allocation9 + $0x23]]
        %v609 = vld [vmem:[#allocation2 + $0x5] sm:$0xf]
        %v610 = vstv %s608
        %v611 = vmul.f32 %v610, %v609
        %v612 = vadd.f32 %v607, %v611
        %s613 = sld [smem:[#allocation9 + $0x24]]
        %v614 = vstv %s613
        %v615 = vmul.f32 %v614, %v609
        %617 = vrot.lane.b32.xlu0 %v615, 127
        %v618 = vpop.permute.xlu0 %617
        %v620 = vadd.f32 %v612, %v618
        %s621 = sld [smem:[#allocation9 + $0x25]]
        %v622 = vstv %s621
        %v623 = vmul.f32 %v622, %v609
        %625 = vrot.lane.b32.xlu0 %v623, 126
        %v626 = vpop.permute.xlu0 %625
        %v628 = vadd.f32 %v620, %v626
        %s629 = sld [smem:[#allocation9 + $0x26]]
        %v630 = vstv %s629
        %v631 = vmul.f32 %v630, %v609
        %633 = vrot.lane.b32.xlu0 %v631, 125
        %v634 = vpop.permute.xlu0 %633
        %v636 = vadd.f32 %v628, %v634
        %s637 = sld [smem:[#allocation9 + $0x27]]
        %v638 = vstv %s637
        %v639 = vmul.f32 %v638, %v609
        %641 = vrot.lane.b32.xlu0 %v639, 124
        %v642 = vpop.permute.xlu0 %641
        %v644 = vadd.f32 %v636, %v642
        %s645 = sld [smem:[#allocation9 + $0x28]]
        %v646 = vstv %s645
        %v647 = vmul.f32 %v646, %v609
        %649 = vrot.lane.b32.xlu0 %v647, 123
        %v650 = vpop.permute.xlu0 %649
        %v652 = vadd.f32 %v644, %v650
        %s653 = sld [smem:[#allocation9 + $0x29]]
        %v654 = vstv %s653
        %v655 = vmul.f32 %v654, %v609
        %657 = vrot.lane.b32.xlu0 %v655, 122
        %v658 = vpop.permute.xlu0 %657
        %v660 = vadd.f32 %v652, %v658
        %s661 = sld [smem:[#allocation9 + $0x2a]]
        %v662 = vld [vmem:[#allocation2 + $0x6] sm:$0xf]
        %v663 = vstv %s661
        %v664 = vmul.f32 %v663, %v662
        %v665 = vadd.f32 %v660, %v664
        %s666 = sld [smem:[#allocation9 + $0x2b]]
        %v667 = vstv %s666
        %v668 = vmul.f32 %v667, %v662
        %670 = vrot.lane.b32.xlu0 %v668, 127
        %v671 = vpop.permute.xlu0 %670
        %v673 = vadd.f32 %v665, %v671
        %s674 = sld [smem:[#allocation9 + $0x2c]]
        %v675 = vstv %s674
        %v676 = vmul.f32 %v675, %v662
        %678 = vrot.lane.b32.xlu0 %v676, 126
        %v679 = vpop.permute.xlu0 %678
        %v681 = vadd.f32 %v673, %v679
        %s682 = sld [smem:[#allocation9 + $0x2d]]
        %v683 = vstv %s682
        %v684 = vmul.f32 %v683, %v662
        %686 = vrot.lane.b32.xlu0 %v684, 125
        %v687 = vpop.permute.xlu0 %686
        %v689 = vadd.f32 %v681, %v687
        %s690 = sld [smem:[#allocation9 + $0x2e]]
        %v691 = vstv %s690
        %v692 = vmul.f32 %v691, %v662
        %694 = vrot.lane.b32.xlu0 %v692, 124
        %v695 = vpop.permute.xlu0 %694
        %v697 = vadd.f32 %v689, %v695
        %s698 = sld [smem:[#allocation9 + $0x2f]]
        %v699 = vstv %s698
        %v700 = vmul.f32 %v699, %v662
        %702 = vrot.lane.b32.xlu0 %v700, 123
        %v703 = vpop.permute.xlu0 %702
        %v705 = vadd.f32 %v697, %v703
        %s706 = sld [smem:[#allocation9 + $0x30]]
        %v707 = vstv %s706
        %v708 = vmul.f32 %v707, %v662
        %710 = vrot.lane.b32.xlu0 %v708, 122
        %v711 = vpop.permute.xlu0 %710
        %v713 = vadd.f32 %v705, %v711
        %s714 = sld [smem:[#allocation9 + $0x31]]
        %v715 = vld [vmem:[%s341] sm:$0xf]
        %v716 = vstv %s714
        %v717 = vmul.f32 %v716, %v715
        %v718 = vadd.f32 %v713, %v717
        %s719 = sld [smem:[#allocation9 + $0x32]]
        %v720 = vstv %s719
        %v721 = vmul.f32 %v720, %v715
        %723 = vrot.lane.b32.xlu0 %v721, 127
        %v724 = vpop.permute.xlu0 %723
        %v726 = vadd.f32 %v718, %v724
        %s727 = sld [smem:[#allocation9 + $0x33]]
        %v728 = vstv %s727
        %v729 = vmul.f32 %v728, %v715
        %731 = vrot.lane.b32.xlu0 %v729, 126
        %v732 = vpop.permute.xlu0 %731
        %v734 = vadd.f32 %v726, %v732
        %s735 = sld [smem:[#allocation9 + $0x34]]
        %v736 = vstv %s735
        %v737 = vmul.f32 %v736, %v715
        %739 = vrot.lane.b32.xlu0 %v737, 125
        %v740 = vpop.permute.xlu0 %739
        %v742 = vadd.f32 %v734, %v740
        %s743 = sld [smem:[#allocation9 + $0x35]]
        %v744 = vstv %s743
        %v745 = vmul.f32 %v744, %v715
        %747 = vrot.lane.b32.xlu0 %v745, 124
        %v748 = vpop.permute.xlu0 %747
        %v750 = vadd.f32 %v742, %v748
        %s751 = sld [smem:[#allocation9 + $0x36]]
        %v752 = vstv %s751
        %v753 = vmul.f32 %v752, %v715
        %755 = vrot.lane.b32.xlu0 %v753, 123
        %v756 = vpop.permute.xlu0 %755
        %v758 = vadd.f32 %v750, %v756
        %s759 = sld [smem:[#allocation9 + $0x37]]
        %v760 = vstv %s759
        %v761 = vmul.f32 %v760, %v715
        %763 = vrot.lane.b32.xlu0 %v761, 122
        %v764 = vpop.permute.xlu0 %763
        %v766 = vadd.f32 %v758, %v764
        %s767 = sld [smem:[#allocation9 + $0x38]]
        %v768 = vld [vmem:[%s341 + $0x1] sm:$0xf]
        %v769 = vstv %s767
        %v770 = vmul.f32 %v769, %v768
        %v771 = vadd.f32 %v766, %v770
        %s772 = sld [smem:[#allocation9 + $0x39]]
        %v773 = vstv %s772
        %v774 = vmul.f32 %v773, %v768
        %776 = vrot.lane.b32.xlu0 %v774, 127
        %v777 = vpop.permute.xlu0 %776
        %v779 = vadd.f32 %v771, %v777
        %s780 = sld [smem:[#allocation9 + $0x3a]]
        %v781 = vstv %s780
        %v782 = vmul.f32 %v781, %v768
        %784 = vrot.lane.b32.xlu0 %v782, 126
        %v785 = vpop.permute.xlu0 %784
        %v787 = vadd.f32 %v779, %v785
        %s788 = sld [smem:[#allocation9 + $0x3b]]
        %v789 = vstv %s788
        %v790 = vmul.f32 %v789, %v768
        %792 = vrot.lane.b32.xlu0 %v790, 125
        %v793 = vpop.permute.xlu0 %792
        %v795 = vadd.f32 %v787, %v793
        %s796 = sld [smem:[#allocation9 + $0x3c]]
        %v797 = vstv %s796
        %v798 = vmul.f32 %v797, %v768
        %800 = vrot.lane.b32.xlu0 %v798, 124
        %v801 = vpop.permute.xlu0 %800
        %v803 = vadd.f32 %v795, %v801
        %s804 = sld [smem:[#allocation9 + $0x3d]]
        %v805 = vstv %s804
        %v806 = vmul.f32 %v805, %v768
        %808 = vrot.lane.b32.xlu0 %v806, 123
        %v809 = vpop.permute.xlu0 %808
        %v811 = vadd.f32 %v803, %v809
        %s812 = sld [smem:[#allocation9 + $0x3e]]
        %v813 = vstv %s812
        %v814 = vmul.f32 %v813, %v768
        %816 = vrot.lane.b32.xlu0 %v814, 122
        %v817 = vpop.permute.xlu0 %816
        %v819 = vadd.f32 %v811, %v817
        %s820 = sld [smem:[#allocation9 + $0x3f]]
        %v821 = vld [vmem:[%s341 + $0x2] sm:$0xf]
        %v822 = vstv %s820
        %v823 = vmul.f32 %v822, %v821
        %v824 = vadd.f32 %v819, %v823
        %s825 = sld [smem:[#allocation9 + $0x40]]
        %v826 = vstv %s825
        %v827 = vmul.f32 %v826, %v821
        %829 = vrot.lane.b32.xlu0 %v827, 127
        %v830 = vpop.permute.xlu0 %829
        %v832 = vadd.f32 %v824, %v830
        %s833 = sld [smem:[#allocation9 + $0x41]]
        %v834 = vstv %s833
        %v835 = vmul.f32 %v834, %v821
        %837 = vrot.lane.b32.xlu0 %v835, 126
        %v838 = vpop.permute.xlu0 %837
        %v840 = vadd.f32 %v832, %v838
        %s841 = sld [smem:[#allocation9 + $0x42]]
        %v842 = vstv %s841
        %v843 = vmul.f32 %v842, %v821
        %845 = vrot.lane.b32.xlu0 %v843, 125
        %v846 = vpop.permute.xlu0 %845
        %v848 = vadd.f32 %v840, %v846
        %s849 = sld [smem:[#allocation9 + $0x43]]
        %v850 = vstv %s849
        %v851 = vmul.f32 %v850, %v821
        %853 = vrot.lane.b32.xlu0 %v851, 124
        %v854 = vpop.permute.xlu0 %853
        %v856 = vadd.f32 %v848, %v854
        %s857 = sld [smem:[#allocation9 + $0x44]]
        %v858 = vstv %s857
        %v859 = vmul.f32 %v858, %v821
        %861 = vrot.lane.b32.xlu0 %v859, 123
        %v862 = vpop.permute.xlu0 %861
        %v864 = vadd.f32 %v856, %v862
        %s865 = sld [smem:[#allocation9 + $0x45]]
        %v866 = vstv %s865
        %v867 = vmul.f32 %v866, %v821
        %869 = vrot.lane.b32.xlu0 %v867, 122
        %v870 = vpop.permute.xlu0 %869
        %v872 = vadd.f32 %v864, %v870
        %s873 = sld [smem:[#allocation9 + $0x46]]
        %v874 = vld [vmem:[%s341 + $0x3] sm:$0xf]
        %v875 = vstv %s873
        %v876 = vmul.f32 %v875, %v874
        %v877 = vadd.f32 %v872, %v876
        %s878 = sld [smem:[#allocation9 + $0x47]]
        %v879 = vstv %s878
        %v880 = vmul.f32 %v879, %v874
        %882 = vrot.lane.b32.xlu0 %v880, 127
        %v883 = vpop.permute.xlu0 %882
        %v885 = vadd.f32 %v877, %v883
        %s886 = sld [smem:[#allocation9 + $0x48]]
        %v887 = vstv %s886
        %v888 = vmul.f32 %v887, %v874
        %890 = vrot.lane.b32.xlu0 %v888, 126
        %v891 = vpop.permute.xlu0 %890
        %v893 = vadd.f32 %v885, %v891
        %s894 = sld [smem:[#allocation9 + $0x49]]
        %v895 = vstv %s894
        %v896 = vmul.f32 %v895, %v874
        %898 = vrot.lane.b32.xlu0 %v896, 125
        %v899 = vpop.permute.xlu0 %898
        %v901 = vadd.f32 %v893, %v899
        %s902 = sld [smem:[#allocation9 + $0x4a]]
        %v903 = vstv %s902
        %v904 = vmul.f32 %v903, %v874
        %906 = vrot.lane.b32.xlu0 %v904, 124
        %v907 = vpop.permute.xlu0 %906
        %v909 = vadd.f32 %v901, %v907
        %s910 = sld [smem:[#allocation9 + $0x4b]]
        %v911 = vstv %s910
        %v912 = vmul.f32 %v911, %v874
        %914 = vrot.lane.b32.xlu0 %v912, 123
        %v915 = vpop.permute.xlu0 %914
        %v917 = vadd.f32 %v909, %v915
        %s918 = sld [smem:[#allocation9 + $0x4c]]
        %v919 = vstv %s918
        %v920 = vmul.f32 %v919, %v874
        %922 = vrot.lane.b32.xlu0 %v920, 122
        %v923 = vpop.permute.xlu0 %922
        %v925 = vadd.f32 %v917, %v923
        %s926 = sld [smem:[#allocation9 + $0x4d]]
        %v927 = vld [vmem:[%s341 + $0x4] sm:$0xf]
        %v928 = vstv %s926
        %v929 = vmul.f32 %v928, %v927
        %v930 = vadd.f32 %v925, %v929
        %s931 = sld [smem:[#allocation9 + $0x4e]]
        %v932 = vstv %s931
        %v933 = vmul.f32 %v932, %v927
        %935 = vrot.lane.b32.xlu0 %v933, 127
        %v936 = vpop.permute.xlu0 %935
        %v938 = vadd.f32 %v930, %v936
        %s939 = sld [smem:[#allocation9 + $0x4f]]
        %v940 = vstv %s939
        %v941 = vmul.f32 %v940, %v927
        %943 = vrot.lane.b32.xlu0 %v941, 126
        %v944 = vpop.permute.xlu0 %943
        %v946 = vadd.f32 %v938, %v944
        %s947 = sld [smem:[#allocation9 + $0x50]]
        %v948 = vstv %s947
        %v949 = vmul.f32 %v948, %v927
        %951 = vrot.lane.b32.xlu0 %v949, 125
        %v952 = vpop.permute.xlu0 %951
        %v954 = vadd.f32 %v946, %v952
        %s955 = sld [smem:[#allocation9 + $0x51]]
        %v956 = vstv %s955
        %v957 = vmul.f32 %v956, %v927
        %959 = vrot.lane.b32.xlu0 %v957, 124
        %v960 = vpop.permute.xlu0 %959
        %v962 = vadd.f32 %v954, %v960
        %s963 = sld [smem:[#allocation9 + $0x52]]
        %v964 = vstv %s963
        %v965 = vmul.f32 %v964, %v927
        %967 = vrot.lane.b32.xlu0 %v965, 123
        %v968 = vpop.permute.xlu0 %967
        %v970 = vadd.f32 %v962, %v968
        %s971 = sld [smem:[#allocation9 + $0x53]]
        %v972 = vstv %s971
        %v973 = vmul.f32 %v972, %v927
        %975 = vrot.lane.b32.xlu0 %v973, 122
        %v976 = vpop.permute.xlu0 %975
        %v978 = vadd.f32 %v970, %v976
        %s979 = sld [smem:[#allocation9 + $0x54]]
        %v980 = vld [vmem:[%s341 + $0x5] sm:$0xf]
        %v981 = vstv %s979
        %v982 = vmul.f32 %v981, %v980
        %v983 = vadd.f32 %v978, %v982
        %s984 = sld [smem:[#allocation9 + $0x55]]
        %v985 = vstv %s984
        %v986 = vmul.f32 %v985, %v980
        %988 = vrot.lane.b32.xlu0 %v986, 127
        %v989 = vpop.permute.xlu0 %988
        %v991 = vadd.f32 %v983, %v989
        %s992 = sld [smem:[#allocation9 + $0x56]]
        %v993 = vstv %s992
        %v994 = vmul.f32 %v993, %v980
        %996 = vrot.lane.b32.xlu0 %v994, 126
        %v997 = vpop.permute.xlu0 %996
        %v999 = vadd.f32 %v991, %v997
        %s1000 = sld [smem:[#allocation9 + $0x57]]
        %v1001 = vstv %s1000
        %v1002 = vmul.f32 %v1001, %v980
        %1004 = vrot.lane.b32.xlu0 %v1002, 125
        %v1005 = vpop.permute.xlu0 %1004
        %v1007 = vadd.f32 %v999, %v1005
        %s1008 = sld [smem:[#allocation9 + $0x58]]
        %v1009 = vstv %s1008
        %v1010 = vmul.f32 %v1009, %v980
        %1012 = vrot.lane.b32.xlu0 %v1010, 124
        %v1013 = vpop.permute.xlu0 %1012
        %v1015 = vadd.f32 %v1007, %v1013
        %s1016 = sld [smem:[#allocation9 + $0x59]]
        %v1017 = vstv %s1016
        %v1018 = vmul.f32 %v1017, %v980
        %1020 = vrot.lane.b32.xlu0 %v1018, 123
        %v1021 = vpop.permute.xlu0 %1020
        %v1023 = vadd.f32 %v1015, %v1021
        %s1024 = sld [smem:[#allocation9 + $0x5a]]
        %v1025 = vstv %s1024
        %v1026 = vmul.f32 %v1025, %v980
        %1028 = vrot.lane.b32.xlu0 %v1026, 122
        %v1029 = vpop.permute.xlu0 %1028
        %v1031 = vadd.f32 %v1023, %v1029
        %s1032 = sld [smem:[#allocation9 + $0x5b]]
        %v1033 = vld [vmem:[%s341 + $0x6] sm:$0xf]
        %v1034 = vstv %s1032
        %v1035 = vmul.f32 %v1034, %v1033
        %v1036 = vadd.f32 %v1031, %v1035
        %s1037 = sld [smem:[#allocation9 + $0x5c]]
        %v1038 = vstv %s1037
        %v1039 = vmul.f32 %v1038, %v1033
        %1041 = vrot.lane.b32.xlu0 %v1039, 127
        %v1042 = vpop.permute.xlu0 %1041
        %v1044 = vadd.f32 %v1036, %v1042
        %s1045 = sld [smem:[#allocation9 + $0x5d]]
        %v1046 = vstv %s1045
        %v1047 = vmul.f32 %v1046, %v1033
        %1049 = vrot.lane.b32.xlu0 %v1047, 126
        %v1050 = vpop.permute.xlu0 %1049
        %v1052 = vadd.f32 %v1044, %v1050
        %s1053 = sld [smem:[#allocation9 + $0x5e]]
        %v1054 = vstv %s1053
        %v1055 = vmul.f32 %v1054, %v1033
        %1057 = vrot.lane.b32.xlu0 %v1055, 125
        %v1058 = vpop.permute.xlu0 %1057
        %v1060 = vadd.f32 %v1052, %v1058
        %s1061 = sld [smem:[#allocation9 + $0x5f]]
        %v1062 = vstv %s1061
        %v1063 = vmul.f32 %v1062, %v1033
        %1065 = vrot.lane.b32.xlu0 %v1063, 124
        %v1066 = vpop.permute.xlu0 %1065
        %v1068 = vadd.f32 %v1060, %v1066
        %s1069 = sld [smem:[#allocation9 + $0x60]]
        %v1070 = vstv %s1069
        %v1071 = vmul.f32 %v1070, %v1033
        %1073 = vrot.lane.b32.xlu0 %v1071, 123
        %v1074 = vpop.permute.xlu0 %1073
        %v1076 = vadd.f32 %v1068, %v1074
        %s1077 = sld [smem:[#allocation9 + $0x61]]
        %v1078 = vstv %s1077
        %v1079 = vmul.f32 %v1078, %v1033
        %1081 = vrot.lane.b32.xlu0 %v1079, 122
        %v1082 = vpop.permute.xlu0 %1081
        %v1084 = vadd.f32 %v1076, %v1082
        %s1085 = sld [smem:[#allocation10]]
        %s1086 = sld [smem:[#allocation10 + $0x1]]
        %v1087 = vstv %s1085
        %v1088 = vmul.f32 %v1084, %v1087
        %v1089 = vstv %s1086
        %v1090 = vadd.f32 %v1088, %v1089
        %v1091 = vsub.f32 0.0, %v1090
        %v1092 = vmul.f32 %v1091, 1.442695
        %v1093 = vpow.pop %v1092
        %v1094 = vadd.f32 %v1093, 1.0
        %v1095 = vrcp.pop %v1094
        %v1096 = vmul.f32 %v1094, %v1095
        %v1097 = vsub.f32 1.0, %v1096
        %v1098 = vmul.f32 %v1095, %v1097
        %v1099 = vadd.f32 %v1095, %v1098
        %vm1100 = vweird.f32 %v1094
        %vm1101 = vweird.f32 %v1095
        %vm1102 = vmor %vm1100, %vm1101
        %v1103 = vsel %vm1102, %v1095, %v1099
        %v1104 = vand.u32 2147483647, %v1094
        %vm1105 = vcmp.eq.f32.partialorder %v1104, 8.507059e+37
        %v1106 = vand.u32 %v1094, 2147483648
        %v1107 = vor.u32 1.1754944e-38, %v1106
        %v1108 = vsel %vm1105, %v1107, %v1103
        %v1109 = vmul.f32 1.0, %v1108
        %1110 = vmax.xlane.f32.xlu0 %v227
        %v1111 = vpop.xlane.xlu0 %1110
        %1112 = vmax.xlane.f32.xlu0 %v228
        %v1113 = vpop.xlane.xlu0 %1112
        %1114 = vmax.xlane.f32.xlu0 %v236
        %v1115 = vpop.xlane.xlu0 %1114
        %1116 = vmax.xlane.f32.xlu0 %v237
        %v1117 = vpop.xlane.xlu0 %1116
        %1118 = vmax.xlane.f32.xlu0 %v245
        %v1119 = vpop.xlane.xlu0 %1118
        %1120 = vmax.xlane.f32.xlu0 %v246
        %v1121 = vpop.xlane.xlu0 %1120
        %1122 = vmax.xlane.f32.xlu0 %v254
        %v1123 = vpop.xlane.xlu0 %1122
        %1124 = vmax.xlane.f32.xlu0 %v255
        %v1125 = vpop.xlane.xlu0 %1124
        %1126 = vadd.xlane.f32.xlu0 %v263
        %v1127 = vpop.xlane.xlu0 %1126
        %1128 = vadd.xlane.f32.xlu0 %v264
        %v1129 = vpop.xlane.xlu0 %1128
        %1130 = vadd.xlane.f32.xlu0 %v272
        %v1131 = vpop.xlane.xlu0 %1130
        %1132 = vadd.xlane.f32.xlu0 %v273
        %v1133 = vpop.xlane.xlu0 %1132
        %1134 = vadd.xlane.f32.xlu0 %v281
        %v1135 = vpop.xlane.xlu0 %1134
        %1136 = vadd.xlane.f32.xlu0 %v282
        %v1137 = vpop.xlane.xlu0 %1136
        %1138 = vadd.xlane.f32.xlu0 %v290
        %v1139 = vpop.xlane.xlu0 %1138
        %1140 = vadd.xlane.f32.xlu0 %v291
        %v1141 = vpop.xlane.xlu0 %1140
        %v1142 = vmul.f32 %v1127, %v305
        %v1143 = vmul.f32 %v1129, %v305
        %v1144 = vmul.f32 %v1131, %v305
        %v1145 = vmul.f32 %v1133, %v305
        %v1146 = vmul.f32 %v1135, %v305
        %v1147 = vmul.f32 %v1137, %v305
        %v1148 = vmul.f32 %v1139, %v305
        %v1149 = vmul.f32 %v1141, %v305
        %1150 = vst.msk [vmem:[#allocation3] sm:$0xff] %vm310, 0.0
        %1151 = vst.msk [vmem:[#allocation3 + $0x8] sm:$0x3] %vm312, 0.0
        %1152 = vst.msk [vmem:[#allocation3 + $0x10] sm:$0xff] %vm310, 0.0
        %1153 = vst.msk [vmem:[#allocation3 + $0x18] sm:$0x3] %vm312, 0.0
        %v1162 = vlaneseq
        %v1163 = vand.u32 %v1162, 127
        %v1164 = vadd.s32 %v1163, 4294967293
        %v1165 = vperm.slane %v1111, %v1164
        %v1166 = vadd.s32 %v1163, 4294967285
        %v1167 = vperm.slane %v1113, %v1166
        %vm1168 = vcmask 154712
        %v1169 = vsel %vm1168, %v1167, %v1165
        %v1170 = vperm.slane %v1115, %v1164
        %v1171 = vperm.slane %v1117, %v1166
        %v1172 = vsel %vm1168, %v1171, %v1170
        %v1173 = vperm.slane %v1119, %v1164
        %v1174 = vperm.slane %v1121, %v1166
        %v1175 = vsel %vm1168, %v1174, %v1173
        %v1176 = vperm.slane %v1123, %v1164
        %v1177 = vperm.slane %v1125, %v1166
        %v1178 = vsel %vm1168, %v1177, %v1176
        %v1179 = vsel %vm320, %v1172, %v1169
        %v1180 = vsel %vm322, %v1175, %v1179
        %v1181 = vsel %vm324, %v1178, %v1180
        %1183 = vst.msk [vmem:[#allocation3 + $0x3] sm:$0xf] %vm329, %v1181
        %v1192 = vperm.slane %v1142, %v1164
        %v1193 = vperm.slane %v1143, %v1166
        %v1194 = vsel %vm1168, %v1193, %v1192
        %v1195 = vperm.slane %v1144, %v1164
        %v1196 = vperm.slane %v1145, %v1166
        %v1197 = vsel %vm1168, %v1196, %v1195
        %v1198 = vperm.slane %v1146, %v1164
        %v1199 = vperm.slane %v1147, %v1166
        %v1200 = vsel %vm1168, %v1199, %v1198
        %v1201 = vperm.slane %v1148, %v1164
        %v1202 = vperm.slane %v1149, %v1166
        %v1203 = vsel %vm1168, %v1202, %v1201
        %v1204 = vsel %vm320, %v1197, %v1194
        %v1205 = vsel %vm322, %v1200, %v1204
        %v1206 = vsel %vm324, %v1203, %v1205
        %s1208 = scalar_lea.vmem [#allocation3], 16
        %1209 = vst.msk [vmem:[%s1208 + $0x3] sm:$0xf] %vm329, %v1206
        %s1210 = sld [smem:[#allocation9 + $0x62]]
        %v1211 = vld [vmem:[#allocation3] sm:$0xf]
        %v1212 = vstv %s1210
        %v1213 = vmul.f32 %v1212, %v1211
        %v1214 = vadd.f32 %v1213, 0.0
        %s1215 = sld [smem:[#allocation9 + $0x69]]
        %v1216 = vstv %s1215
        %v1217 = vmul.f32 %v1216, %v1211
        %1219 = vrot.lane.b32.xlu0 %v1217, 127
        %v1220 = vpop.permute.xlu0 %1219
        %v1222 = vadd.f32 %v1214, %v1220
        %s1223 = sld [smem:[#allocation9 + $0x70]]
        %v1224 = vstv %s1223
        %v1225 = vmul.f32 %v1224, %v1211
        %1227 = vrot.lane.b32.xlu0 %v1225, 126
        %v1228 = vpop.permute.xlu0 %1227
        %v1230 = vadd.f32 %v1222, %v1228
        %s1231 = sld [smem:[#allocation9 + $0x77]]
        %v1232 = vstv %s1231
        %v1233 = vmul.f32 %v1232, %v1211
        %1235 = vrot.lane.b32.xlu0 %v1233, 125
        %v1236 = vpop.permute.xlu0 %1235
        %v1238 = vadd.f32 %v1230, %v1236
        %s1239 = sld [smem:[#allocation9 + $0x7e]]
        %v1240 = vstv %s1239
        %v1241 = vmul.f32 %v1240, %v1211
        %1243 = vrot.lane.b32.xlu0 %v1241, 124
        %v1244 = vpop.permute.xlu0 %1243
        %v1246 = vadd.f32 %v1238, %v1244
        %s1247 = sld [smem:[#allocation9 + $0x85]]
        %v1248 = vstv %s1247
        %v1249 = vmul.f32 %v1248, %v1211
        %1251 = vrot.lane.b32.xlu0 %v1249, 123
        %v1252 = vpop.permute.xlu0 %1251
        %v1254 = vadd.f32 %v1246, %v1252
        %s1255 = sld [smem:[#allocation9 + $0x8c]]
        %v1256 = vstv %s1255
        %v1257 = vmul.f32 %v1256, %v1211
        %1259 = vrot.lane.b32.xlu0 %v1257, 122
        %v1260 = vpop.permute.xlu0 %1259
        %v1262 = vadd.f32 %v1254, %v1260
        %s1263 = sld [smem:[#allocation9 + $0x63]]
        %v1264 = vld [vmem:[#allocation3 + $0x1] sm:$0xf]
        %v1265 = vstv %s1263
        %v1266 = vmul.f32 %v1265, %v1264
        %v1267 = vadd.f32 %v1262, %v1266
        %s1268 = sld [smem:[#allocation9 + $0x6a]]
        %v1269 = vstv %s1268
        %v1270 = vmul.f32 %v1269, %v1264
        %1272 = vrot.lane.b32.xlu0 %v1270, 127
        %v1273 = vpop.permute.xlu0 %1272
        %v1275 = vadd.f32 %v1267, %v1273
        %s1276 = sld [smem:[#allocation9 + $0x71]]
        %v1277 = vstv %s1276
        %v1278 = vmul.f32 %v1277, %v1264
        %1280 = vrot.lane.b32.xlu0 %v1278, 126
        %v1281 = vpop.permute.xlu0 %1280
        %v1283 = vadd.f32 %v1275, %v1281
        %s1284 = sld [smem:[#allocation9 + $0x78]]
        %v1285 = vstv %s1284
        %v1286 = vmul.f32 %v1285, %v1264
        %1288 = vrot.lane.b32.xlu0 %v1286, 125
        %v1289 = vpop.permute.xlu0 %1288
        %v1291 = vadd.f32 %v1283, %v1289
        %s1292 = sld [smem:[#allocation9 + $0x7f]]
        %v1293 = vstv %s1292
        %v1294 = vmul.f32 %v1293, %v1264
        %1296 = vrot.lane.b32.xlu0 %v1294, 124
        %v1297 = vpop.permute.xlu0 %1296
        %v1299 = vadd.f32 %v1291, %v1297
        %s1300 = sld [smem:[#allocation9 + $0x86]]
        %v1301 = vstv %s1300
        %v1302 = vmul.f32 %v1301, %v1264
        %1304 = vrot.lane.b32.xlu0 %v1302, 123
        %v1305 = vpop.permute.xlu0 %1304
        %v1307 = vadd.f32 %v1299, %v1305
        %s1308 = sld [smem:[#allocation9 + $0x8d]]
        %v1309 = vstv %s1308
        %v1310 = vmul.f32 %v1309, %v1264
        %1312 = vrot.lane.b32.xlu0 %v1310, 122
        %v1313 = vpop.permute.xlu0 %1312
        %v1315 = vadd.f32 %v1307, %v1313
        %s1316 = sld [smem:[#allocation9 + $0x64]]
        %v1317 = vld [vmem:[#allocation3 + $0x2] sm:$0xf]
        %v1318 = vstv %s1316
        %v1319 = vmul.f32 %v1318, %v1317
        %v1320 = vadd.f32 %v1315, %v1319
        %s1321 = sld [smem:[#allocation9 + $0x6b]]
        %v1322 = vstv %s1321
        %v1323 = vmul.f32 %v1322, %v1317
        %1325 = vrot.lane.b32.xlu0 %v1323, 127
        %v1326 = vpop.permute.xlu0 %1325
        %v1328 = vadd.f32 %v1320, %v1326
        %s1329 = sld [smem:[#allocation9 + $0x72]]
        %v1330 = vstv %s1329
        %v1331 = vmul.f32 %v1330, %v1317
        %1333 = vrot.lane.b32.xlu0 %v1331, 126
        %v1334 = vpop.permute.xlu0 %1333
        %v1336 = vadd.f32 %v1328, %v1334
        %s1337 = sld [smem:[#allocation9 + $0x79]]
        %v1338 = vstv %s1337
        %v1339 = vmul.f32 %v1338, %v1317
        %1341 = vrot.lane.b32.xlu0 %v1339, 125
        %v1342 = vpop.permute.xlu0 %1341
        %v1344 = vadd.f32 %v1336, %v1342
        %s1345 = sld [smem:[#allocation9 + $0x80]]
        %v1346 = vstv %s1345
        %v1347 = vmul.f32 %v1346, %v1317
        %1349 = vrot.lane.b32.xlu0 %v1347, 124
        %v1350 = vpop.permute.xlu0 %1349
        %v1352 = vadd.f32 %v1344, %v1350
        %s1353 = sld [smem:[#allocation9 + $0x87]]
        %v1354 = vstv %s1353
        %v1355 = vmul.f32 %v1354, %v1317
        %1357 = vrot.lane.b32.xlu0 %v1355, 123
        %v1358 = vpop.permute.xlu0 %1357
        %v1360 = vadd.f32 %v1352, %v1358
        %s1361 = sld [smem:[#allocation9 + $0x8e]]
        %v1362 = vstv %s1361
        %v1363 = vmul.f32 %v1362, %v1317
        %1365 = vrot.lane.b32.xlu0 %v1363, 122
        %v1366 = vpop.permute.xlu0 %1365
        %v1368 = vadd.f32 %v1360, %v1366
        %s1369 = sld [smem:[#allocation9 + $0x65]]
        %v1370 = vld [vmem:[#allocation3 + $0x3] sm:$0xf]
        %v1371 = vstv %s1369
        %v1372 = vmul.f32 %v1371, %v1370
        %v1373 = vadd.f32 %v1368, %v1372
        %s1374 = sld [smem:[#allocation9 + $0x6c]]
        %v1375 = vstv %s1374
        %v1376 = vmul.f32 %v1375, %v1370
        %1378 = vrot.lane.b32.xlu0 %v1376, 127
        %v1379 = vpop.permute.xlu0 %1378
        %v1381 = vadd.f32 %v1373, %v1379
        %s1382 = sld [smem:[#allocation9 + $0x73]]
        %v1383 = vstv %s1382
        %v1384 = vmul.f32 %v1383, %v1370
        %1386 = vrot.lane.b32.xlu0 %v1384, 126
        %v1387 = vpop.permute.xlu0 %1386
        %v1389 = vadd.f32 %v1381, %v1387
        %s1390 = sld [smem:[#allocation9 + $0x7a]]
        %v1391 = vstv %s1390
        %v1392 = vmul.f32 %v1391, %v1370
        %1394 = vrot.lane.b32.xlu0 %v1392, 125
        %v1395 = vpop.permute.xlu0 %1394
        %v1397 = vadd.f32 %v1389, %v1395
        %s1398 = sld [smem:[#allocation9 + $0x81]]
        %v1399 = vstv %s1398
        %v1400 = vmul.f32 %v1399, %v1370
        %1402 = vrot.lane.b32.xlu0 %v1400, 124
        %v1403 = vpop.permute.xlu0 %1402
        %v1405 = vadd.f32 %v1397, %v1403
        %s1406 = sld [smem:[#allocation9 + $0x88]]
        %v1407 = vstv %s1406
        %v1408 = vmul.f32 %v1407, %v1370
        %1410 = vrot.lane.b32.xlu0 %v1408, 123
        %v1411 = vpop.permute.xlu0 %1410
        %v1413 = vadd.f32 %v1405, %v1411
        %s1414 = sld [smem:[#allocation9 + $0x8f]]
        %v1415 = vstv %s1414
        %v1416 = vmul.f32 %v1415, %v1370
        %1418 = vrot.lane.b32.xlu0 %v1416, 122
        %v1419 = vpop.permute.xlu0 %1418
        %v1421 = vadd.f32 %v1413, %v1419
        %s1422 = sld [smem:[#allocation9 + $0x66]]
        %v1423 = vld [vmem:[#allocation3 + $0x4] sm:$0xf]
        %v1424 = vstv %s1422
        %v1425 = vmul.f32 %v1424, %v1423
        %v1426 = vadd.f32 %v1421, %v1425
        %s1427 = sld [smem:[#allocation9 + $0x6d]]
        %v1428 = vstv %s1427
        %v1429 = vmul.f32 %v1428, %v1423
        %1431 = vrot.lane.b32.xlu0 %v1429, 127
        %v1432 = vpop.permute.xlu0 %1431
        %v1434 = vadd.f32 %v1426, %v1432
        %s1435 = sld [smem:[#allocation9 + $0x74]]
        %v1436 = vstv %s1435
        %v1437 = vmul.f32 %v1436, %v1423
        %1439 = vrot.lane.b32.xlu0 %v1437, 126
        %v1440 = vpop.permute.xlu0 %1439
        %v1442 = vadd.f32 %v1434, %v1440
        %s1443 = sld [smem:[#allocation9 + $0x7b]]
        %v1444 = vstv %s1443
        %v1445 = vmul.f32 %v1444, %v1423
        %1447 = vrot.lane.b32.xlu0 %v1445, 125
        %v1448 = vpop.permute.xlu0 %1447
        %v1450 = vadd.f32 %v1442, %v1448
        %s1451 = sld [smem:[#allocation9 + $0x82]]
        %v1452 = vstv %s1451
        %v1453 = vmul.f32 %v1452, %v1423
        %1455 = vrot.lane.b32.xlu0 %v1453, 124
        %v1456 = vpop.permute.xlu0 %1455
        %v1458 = vadd.f32 %v1450, %v1456
        %s1459 = sld [smem:[#allocation9 + $0x89]]
        %v1460 = vstv %s1459
        %v1461 = vmul.f32 %v1460, %v1423
        %1463 = vrot.lane.b32.xlu0 %v1461, 123
        %v1464 = vpop.permute.xlu0 %1463
        %v1466 = vadd.f32 %v1458, %v1464
        %s1467 = sld [smem:[#allocation9 + $0x90]]
        %v1468 = vstv %s1467
        %v1469 = vmul.f32 %v1468, %v1423
        %1471 = vrot.lane.b32.xlu0 %v1469, 122
        %v1472 = vpop.permute.xlu0 %1471
        %v1474 = vadd.f32 %v1466, %v1472
        %s1475 = sld [smem:[#allocation9 + $0x67]]
        %v1476 = vld [vmem:[#allocation3 + $0x5] sm:$0xf]
        %v1477 = vstv %s1475
        %v1478 = vmul.f32 %v1477, %v1476
        %v1479 = vadd.f32 %v1474, %v1478
        %s1480 = sld [smem:[#allocation9 + $0x6e]]
        %v1481 = vstv %s1480
        %v1482 = vmul.f32 %v1481, %v1476
        %1484 = vrot.lane.b32.xlu0 %v1482, 127
        %v1485 = vpop.permute.xlu0 %1484
        %v1487 = vadd.f32 %v1479, %v1485
        %s1488 = sld [smem:[#allocation9 + $0x75]]
        %v1489 = vstv %s1488
        %v1490 = vmul.f32 %v1489, %v1476
        %1492 = vrot.lane.b32.xlu0 %v1490, 126
        %v1493 = vpop.permute.xlu0 %1492
        %v1495 = vadd.f32 %v1487, %v1493
        %s1496 = sld [smem:[#allocation9 + $0x7c]]
        %v1497 = vstv %s1496
        %v1498 = vmul.f32 %v1497, %v1476
        %1500 = vrot.lane.b32.xlu0 %v1498, 125
        %v1501 = vpop.permute.xlu0 %1500
        %v1503 = vadd.f32 %v1495, %v1501
        %s1504 = sld [smem:[#allocation9 + $0x83]]
        %v1505 = vstv %s1504
        %v1506 = vmul.f32 %v1505, %v1476
        %1508 = vrot.lane.b32.xlu0 %v1506, 124
        %v1509 = vpop.permute.xlu0 %1508
        %v1511 = vadd.f32 %v1503, %v1509
        %s1512 = sld [smem:[#allocation9 + $0x8a]]
        %v1513 = vstv %s1512
        %v1514 = vmul.f32 %v1513, %v1476
        %1516 = vrot.lane.b32.xlu0 %v1514, 123
        %v1517 = vpop.permute.xlu0 %1516
        %v1519 = vadd.f32 %v1511, %v1517
        %s1520 = sld [smem:[#allocation9 + $0x91]]
        %v1521 = vstv %s1520
        %v1522 = vmul.f32 %v1521, %v1476
        %1524 = vrot.lane.b32.xlu0 %v1522, 122
        %v1525 = vpop.permute.xlu0 %1524
        %v1527 = vadd.f32 %v1519, %v1525
        %s1528 = sld [smem:[#allocation9 + $0x68]]
        %v1529 = vld [vmem:[#allocation3 + $0x6] sm:$0xf]
        %v1530 = vstv %s1528
        %v1531 = vmul.f32 %v1530, %v1529
        %v1532 = vadd.f32 %v1527, %v1531
        %s1533 = sld [smem:[#allocation9 + $0x6f]]
        %v1534 = vstv %s1533
        %v1535 = vmul.f32 %v1534, %v1529
        %1537 = vrot.lane.b32.xlu0 %v1535, 127
        %v1538 = vpop.permute.xlu0 %1537
        %v1540 = vadd.f32 %v1532, %v1538
        %s1541 = sld [smem:[#allocation9 + $0x76]]
        %v1542 = vstv %s1541
        %v1543 = vmul.f32 %v1542, %v1529
        %1545 = vrot.lane.b32.xlu0 %v1543, 126
        %v1546 = vpop.permute.xlu0 %1545
        %v1548 = vadd.f32 %v1540, %v1546
        %s1549 = sld [smem:[#allocation9 + $0x7d]]
        %v1550 = vstv %s1549
        %v1551 = vmul.f32 %v1550, %v1529
        %1553 = vrot.lane.b32.xlu0 %v1551, 125
        %v1554 = vpop.permute.xlu0 %1553
        %v1556 = vadd.f32 %v1548, %v1554
        %s1557 = sld [smem:[#allocation9 + $0x84]]
        %v1558 = vstv %s1557
        %v1559 = vmul.f32 %v1558, %v1529
        %1561 = vrot.lane.b32.xlu0 %v1559, 124
        %v1562 = vpop.permute.xlu0 %1561
        %v1564 = vadd.f32 %v1556, %v1562
        %s1565 = sld [smem:[#allocation9 + $0x8b]]
        %v1566 = vstv %s1565
        %v1567 = vmul.f32 %v1566, %v1529
        %1569 = vrot.lane.b32.xlu0 %v1567, 123
        %v1570 = vpop.permute.xlu0 %1569
        %v1572 = vadd.f32 %v1564, %v1570
        %s1573 = sld [smem:[#allocation9 + $0x92]]
        %v1574 = vstv %s1573
        %v1575 = vmul.f32 %v1574, %v1529
        %1577 = vrot.lane.b32.xlu0 %v1575, 122
        %v1578 = vpop.permute.xlu0 %1577
        %v1580 = vadd.f32 %v1572, %v1578
        %s1581 = sld [smem:[#allocation9 + $0x93]]
        %v1582 = vld [vmem:[%s1208] sm:$0xf]
        %v1583 = vstv %s1581
        %v1584 = vmul.f32 %v1583, %v1582
        %v1585 = vadd.f32 %v1580, %v1584
        %s1586 = sld [smem:[#allocation9 + $0x9a]]
        %v1587 = vstv %s1586
        %v1588 = vmul.f32 %v1587, %v1582
        %1590 = vrot.lane.b32.xlu0 %v1588, 127
        %v1591 = vpop.permute.xlu0 %1590
        %v1593 = vadd.f32 %v1585, %v1591
        %s1594 = sld [smem:[#allocation9 + $0xa1]]
        %v1595 = vstv %s1594
        %v1596 = vmul.f32 %v1595, %v1582
        %1598 = vrot.lane.b32.xlu0 %v1596, 126
        %v1599 = vpop.permute.xlu0 %1598
        %v1601 = vadd.f32 %v1593, %v1599
        %s1602 = sld [smem:[#allocation9 + $0xa8]]
        %v1603 = vstv %s1602
        %v1604 = vmul.f32 %v1603, %v1582
        %1606 = vrot.lane.b32.xlu0 %v1604, 125
        %v1607 = vpop.permute.xlu0 %1606
        %v1609 = vadd.f32 %v1601, %v1607
        %s1610 = sld [smem:[#allocation9 + $0xaf]]
        %v1611 = vstv %s1610
        %v1612 = vmul.f32 %v1611, %v1582
        %1614 = vrot.lane.b32.xlu0 %v1612, 124
        %v1615 = vpop.permute.xlu0 %1614
        %v1617 = vadd.f32 %v1609, %v1615
        %s1618 = sld [smem:[#allocation9 + $0xb6]]
        %v1619 = vstv %s1618
        %v1620 = vmul.f32 %v1619, %v1582
        %1622 = vrot.lane.b32.xlu0 %v1620, 123
        %v1623 = vpop.permute.xlu0 %1622
        %v1625 = vadd.f32 %v1617, %v1623
        %s1626 = sld [smem:[#allocation9 + $0xbd]]
        %v1627 = vstv %s1626
        %v1628 = vmul.f32 %v1627, %v1582
        %1630 = vrot.lane.b32.xlu0 %v1628, 122
        %v1631 = vpop.permute.xlu0 %1630
        %v1633 = vadd.f32 %v1625, %v1631
        %s1634 = sld [smem:[#allocation9 + $0x94]]
        %v1635 = vld [vmem:[%s1208 + $0x1] sm:$0xf]
        %v1636 = vstv %s1634
        %v1637 = vmul.f32 %v1636, %v1635
        %v1638 = vadd.f32 %v1633, %v1637
        %s1639 = sld [smem:[#allocation9 + $0x9b]]
        %v1640 = vstv %s1639
        %v1641 = vmul.f32 %v1640, %v1635
        %1643 = vrot.lane.b32.xlu0 %v1641, 127
        %v1644 = vpop.permute.xlu0 %1643
        %v1646 = vadd.f32 %v1638, %v1644
        %s1647 = sld [smem:[#allocation9 + $0xa2]]
        %v1648 = vstv %s1647
        %v1649 = vmul.f32 %v1648, %v1635
        %1651 = vrot.lane.b32.xlu0 %v1649, 126
        %v1652 = vpop.permute.xlu0 %1651
        %v1654 = vadd.f32 %v1646, %v1652
        %s1655 = sld [smem:[#allocation9 + $0xa9]]
        %v1656 = vstv %s1655
        %v1657 = vmul.f32 %v1656, %v1635
        %1659 = vrot.lane.b32.xlu0 %v1657, 125
        %v1660 = vpop.permute.xlu0 %1659
        %v1662 = vadd.f32 %v1654, %v1660
        %s1663 = sld [smem:[#allocation9 + $0xb0]]
        %v1664 = vstv %s1663
        %v1665 = vmul.f32 %v1664, %v1635
        %1667 = vrot.lane.b32.xlu0 %v1665, 124
        %v1668 = vpop.permute.xlu0 %1667
        %v1670 = vadd.f32 %v1662, %v1668
        %s1671 = sld [smem:[#allocation9 + $0xb7]]
        %v1672 = vstv %s1671
        %v1673 = vmul.f32 %v1672, %v1635
        %1675 = vrot.lane.b32.xlu0 %v1673, 123
        %v1676 = vpop.permute.xlu0 %1675
        %v1678 = vadd.f32 %v1670, %v1676
        %s1679 = sld [smem:[#allocation9 + $0xbe]]
        %v1680 = vstv %s1679
        %v1681 = vmul.f32 %v1680, %v1635
        %1683 = vrot.lane.b32.xlu0 %v1681, 122
        %v1684 = vpop.permute.xlu0 %1683
        %v1686 = vadd.f32 %v1678, %v1684
        %s1687 = sld [smem:[#allocation9 + $0x95]]
        %v1688 = vld [vmem:[%s1208 + $0x2] sm:$0xf]
        %v1689 = vstv %s1687
        %v1690 = vmul.f32 %v1689, %v1688
        %v1691 = vadd.f32 %v1686, %v1690
        %s1692 = sld [smem:[#allocation9 + $0x9c]]
        %v1693 = vstv %s1692
        %v1694 = vmul.f32 %v1693, %v1688
        %1696 = vrot.lane.b32.xlu0 %v1694, 127
        %v1697 = vpop.permute.xlu0 %1696
        %v1699 = vadd.f32 %v1691, %v1697
        %s1700 = sld [smem:[#allocation9 + $0xa3]]
        %v1701 = vstv %s1700
        %v1702 = vmul.f32 %v1701, %v1688
        %1704 = vrot.lane.b32.xlu0 %v1702, 126
        %v1705 = vpop.permute.xlu0 %1704
        %v1707 = vadd.f32 %v1699, %v1705
        %s1708 = sld [smem:[#allocation9 + $0xaa]]
        %v1709 = vstv %s1708
        %v1710 = vmul.f32 %v1709, %v1688
        %1712 = vrot.lane.b32.xlu0 %v1710, 125
        %v1713 = vpop.permute.xlu0 %1712
        %v1715 = vadd.f32 %v1707, %v1713
        %s1716 = sld [smem:[#allocation9 + $0xb1]]
        %v1717 = vstv %s1716
        %v1718 = vmul.f32 %v1717, %v1688
        %1720 = vrot.lane.b32.xlu0 %v1718, 124
        %v1721 = vpop.permute.xlu0 %1720
        %v1723 = vadd.f32 %v1715, %v1721
        %s1724 = sld [smem:[#allocation9 + $0xb8]]
        %v1725 = vstv %s1724
        %v1726 = vmul.f32 %v1725, %v1688
        %1728 = vrot.lane.b32.xlu0 %v1726, 123
        %v1729 = vpop.permute.xlu0 %1728
        %v1731 = vadd.f32 %v1723, %v1729
        %s1732 = sld [smem:[#allocation9 + $0xbf]]
        %v1733 = vstv %s1732
        %v1734 = vmul.f32 %v1733, %v1688
        %1736 = vrot.lane.b32.xlu0 %v1734, 122
        %v1737 = vpop.permute.xlu0 %1736
        %v1739 = vadd.f32 %v1731, %v1737
        %s1740 = sld [smem:[#allocation9 + $0x96]]
        %v1741 = vld [vmem:[%s1208 + $0x3] sm:$0xf]
        %v1742 = vstv %s1740
        %v1743 = vmul.f32 %v1742, %v1741
        %v1744 = vadd.f32 %v1739, %v1743
        %s1745 = sld [smem:[#allocation9 + $0x9d]]
        %v1746 = vstv %s1745
        %v1747 = vmul.f32 %v1746, %v1741
        %1749 = vrot.lane.b32.xlu0 %v1747, 127
        %v1750 = vpop.permute.xlu0 %1749
        %v1752 = vadd.f32 %v1744, %v1750
        %s1753 = sld [smem:[#allocation9 + $0xa4]]
        %v1754 = vstv %s1753
        %v1755 = vmul.f32 %v1754, %v1741
        %1757 = vrot.lane.b32.xlu0 %v1755, 126
        %v1758 = vpop.permute.xlu0 %1757
        %v1760 = vadd.f32 %v1752, %v1758
        %s1761 = sld [smem:[#allocation9 + $0xab]]
        %v1762 = vstv %s1761
        %v1763 = vmul.f32 %v1762, %v1741
        %1765 = vrot.lane.b32.xlu0 %v1763, 125
        %v1766 = vpop.permute.xlu0 %1765
        %v1768 = vadd.f32 %v1760, %v1766
        %s1769 = sld [smem:[#allocation9 + $0xb2]]
        %v1770 = vstv %s1769
        %v1771 = vmul.f32 %v1770, %v1741
        %1773 = vrot.lane.b32.xlu0 %v1771, 124
        %v1774 = vpop.permute.xlu0 %1773
        %v1776 = vadd.f32 %v1768, %v1774
        %s1777 = sld [smem:[#allocation9 + $0xb9]]
        %v1778 = vstv %s1777
        %v1779 = vmul.f32 %v1778, %v1741
        %1781 = vrot.lane.b32.xlu0 %v1779, 123
        %v1782 = vpop.permute.xlu0 %1781
        %v1784 = vadd.f32 %v1776, %v1782
        %s1785 = sld [smem:[#allocation9 + $0xc0]]
        %v1786 = vstv %s1785
        %v1787 = vmul.f32 %v1786, %v1741
        %1789 = vrot.lane.b32.xlu0 %v1787, 122
        %v1790 = vpop.permute.xlu0 %1789
        %v1792 = vadd.f32 %v1784, %v1790
        %s1793 = sld [smem:[#allocation9 + $0x97]]
        %v1794 = vld [vmem:[%s1208 + $0x4] sm:$0xf]
        %v1795 = vstv %s1793
        %v1796 = vmul.f32 %v1795, %v1794
        %v1797 = vadd.f32 %v1792, %v1796
        %s1798 = sld [smem:[#allocation9 + $0x9e]]
        %v1799 = vstv %s1798
        %v1800 = vmul.f32 %v1799, %v1794
        %1802 = vrot.lane.b32.xlu0 %v1800, 127
        %v1803 = vpop.permute.xlu0 %1802
        %v1805 = vadd.f32 %v1797, %v1803
        %s1806 = sld [smem:[#allocation9 + $0xa5]]
        %v1807 = vstv %s1806
        %v1808 = vmul.f32 %v1807, %v1794
        %1810 = vrot.lane.b32.xlu0 %v1808, 126
        %v1811 = vpop.permute.xlu0 %1810
        %v1813 = vadd.f32 %v1805, %v1811
        %s1814 = sld [smem:[#allocation9 + $0xac]]
        %v1815 = vstv %s1814
        %v1816 = vmul.f32 %v1815, %v1794
        %1818 = vrot.lane.b32.xlu0 %v1816, 125
        %v1819 = vpop.permute.xlu0 %1818
        %v1821 = vadd.f32 %v1813, %v1819
        %s1822 = sld [smem:[#allocation9 + $0xb3]]
        %v1823 = vstv %s1822
        %v1824 = vmul.f32 %v1823, %v1794
        %1826 = vrot.lane.b32.xlu0 %v1824, 124
        %v1827 = vpop.permute.xlu0 %1826
        %v1829 = vadd.f32 %v1821, %v1827
        %s1830 = sld [smem:[#allocation9 + $0xba]]
        %v1831 = vstv %s1830
        %v1832 = vmul.f32 %v1831, %v1794
        %1834 = vrot.lane.b32.xlu0 %v1832, 123
        %v1835 = vpop.permute.xlu0 %1834
        %v1837 = vadd.f32 %v1829, %v1835
        %s1838 = sld [smem:[#allocation9 + $0xc1]]
        %v1839 = vstv %s1838
        %v1840 = vmul.f32 %v1839, %v1794
        %1842 = vrot.lane.b32.xlu0 %v1840, 122
        %v1843 = vpop.permute.xlu0 %1842
        %v1845 = vadd.f32 %v1837, %v1843
        %s1846 = sld [smem:[#allocation9 + $0x98]]
        %v1847 = vld [vmem:[%s1208 + $0x5] sm:$0xf]
        %v1848 = vstv %s1846
        %v1849 = vmul.f32 %v1848, %v1847
        %v1850 = vadd.f32 %v1845, %v1849
        %s1851 = sld [smem:[#allocation9 + $0x9f]]
        %v1852 = vstv %s1851
        %v1853 = vmul.f32 %v1852, %v1847
        %1855 = vrot.lane.b32.xlu0 %v1853, 127
        %v1856 = vpop.permute.xlu0 %1855
        %v1858 = vadd.f32 %v1850, %v1856
        %s1859 = sld [smem:[#allocation9 + $0xa6]]
        %v1860 = vstv %s1859
        %v1861 = vmul.f32 %v1860, %v1847
        %1863 = vrot.lane.b32.xlu0 %v1861, 126
        %v1864 = vpop.permute.xlu0 %1863
        %v1866 = vadd.f32 %v1858, %v1864
        %s1867 = sld [smem:[#allocation9 + $0xad]]
        %v1868 = vstv %s1867
        %v1869 = vmul.f32 %v1868, %v1847
        %1871 = vrot.lane.b32.xlu0 %v1869, 125
        %v1872 = vpop.permute.xlu0 %1871
        %v1874 = vadd.f32 %v1866, %v1872
        %s1875 = sld [smem:[#allocation9 + $0xb4]]
        %v1876 = vstv %s1875
        %v1877 = vmul.f32 %v1876, %v1847
        %1879 = vrot.lane.b32.xlu0 %v1877, 124
        %v1880 = vpop.permute.xlu0 %1879
        %v1882 = vadd.f32 %v1874, %v1880
        %s1883 = sld [smem:[#allocation9 + $0xbb]]
        %v1884 = vstv %s1883
        %v1885 = vmul.f32 %v1884, %v1847
        %1887 = vrot.lane.b32.xlu0 %v1885, 123
        %v1888 = vpop.permute.xlu0 %1887
        %v1890 = vadd.f32 %v1882, %v1888
        %s1891 = sld [smem:[#allocation9 + $0xc2]]
        %v1892 = vstv %s1891
        %v1893 = vmul.f32 %v1892, %v1847
        %1895 = vrot.lane.b32.xlu0 %v1893, 122
        %v1896 = vpop.permute.xlu0 %1895
        %v1898 = vadd.f32 %v1890, %v1896
        %s1899 = sld [smem:[#allocation9 + $0x99]]
        %v1900 = vld [vmem:[%s1208 + $0x6] sm:$0xf]
        %v1901 = vstv %s1899
        %v1902 = vmul.f32 %v1901, %v1900
        %v1903 = vadd.f32 %v1898, %v1902
        %s1904 = sld [smem:[#allocation9 + $0xa0]]
        %v1905 = vstv %s1904
        %v1906 = vmul.f32 %v1905, %v1900
        %1908 = vrot.lane.b32.xlu0 %v1906, 127
        %v1909 = vpop.permute.xlu0 %1908
        %v1911 = vadd.f32 %v1903, %v1909
        %s1912 = sld [smem:[#allocation9 + $0xa7]]
        %v1913 = vstv %s1912
        %v1914 = vmul.f32 %v1913, %v1900
        %1916 = vrot.lane.b32.xlu0 %v1914, 126
        %v1917 = vpop.permute.xlu0 %1916
        %v1919 = vadd.f32 %v1911, %v1917
        %s1920 = sld [smem:[#allocation9 + $0xae]]
        %v1921 = vstv %s1920
        %v1922 = vmul.f32 %v1921, %v1900
        %1924 = vrot.lane.b32.xlu0 %v1922, 125
        %v1925 = vpop.permute.xlu0 %1924
        %v1927 = vadd.f32 %v1919, %v1925
        %s1928 = sld [smem:[#allocation9 + $0xb5]]
        %v1929 = vstv %s1928
        %v1930 = vmul.f32 %v1929, %v1900
        %1932 = vrot.lane.b32.xlu0 %v1930, 124
        %v1933 = vpop.permute.xlu0 %1932
        %v1935 = vadd.f32 %v1927, %v1933
        %s1936 = sld [smem:[#allocation9 + $0xbc]]
        %v1937 = vstv %s1936
        %v1938 = vmul.f32 %v1937, %v1900
        %1940 = vrot.lane.b32.xlu0 %v1938, 123
        %v1941 = vpop.permute.xlu0 %1940
        %v1943 = vadd.f32 %v1935, %v1941
        %s1944 = sld [smem:[#allocation9 + $0xc3]]
        %v1945 = vstv %s1944
        %v1946 = vmul.f32 %v1945, %v1900
        %1948 = vrot.lane.b32.xlu0 %v1946, 122
        %v1949 = vpop.permute.xlu0 %1948
        %v1951 = vadd.f32 %v1943, %v1949
        %s1952 = sld [smem:[#allocation10 + $0x2]]
        %s1953 = sld [smem:[#allocation10 + $0x3]]
        %v1954 = vstv %s1952
        %v1955 = vmul.f32 %v1951, %v1954
        %v1956 = vstv %s1953
        %v1957 = vadd.f32 %v1955, %v1956
        %v1958 = vsub.f32 0.0, %v1957
        %v1959 = vmul.f32 %v1958, 1.442695
        %v1960 = vpow.pop %v1959
        %v1961 = vadd.f32 %v1960, 1.0
        %v1962 = vrcp.pop %v1961
        %v1963 = vmul.f32 %v1961, %v1962
        %v1964 = vsub.f32 1.0, %v1963
        %v1965 = vmul.f32 %v1962, %v1964
        %v1966 = vadd.f32 %v1962, %v1965
        %vm1967 = vweird.f32 %v1961
        %vm1968 = vweird.f32 %v1962
        %vm1969 = vmor %vm1967, %vm1968
        %v1970 = vsel %vm1969, %v1962, %v1966
        %v1971 = vand.u32 2147483647, %v1961
        %vm1972 = vcmp.eq.f32.partialorder %v1971, 8.507059e+37
        %v1973 = vand.u32 %v1961, 2147483648
        %v1974 = vor.u32 1.1754944e-38, %v1973
        %v1975 = vsel %vm1972, %v1974, %v1970
        %v1976 = vmul.f32 1.0, %v1975
        %v1977 = vmax.f32 %v227, %v245
        %v1978 = vmax.f32 %v236, %v254
        %v1979 = vmax.f32 %v1977, %v1978
        %v1980 = vmax.f32 %v228, %v246
        %v1981 = vmax.f32 %v237, %v255
        %v1982 = vmax.f32 %v1980, %v1981
        %v1983 = vadd.f32 %v263, %v272
        %v1984 = vadd.f32 %v1983, %v281
        %v1985 = vadd.f32 %v1984, %v290
        %v1986 = vadd.f32 %v264, %v273
        %v1987 = vadd.f32 %v1986, %v282
        %v1988 = vadd.f32 %v1987, %v291
        %v1989 = vrcp.pop 4.0
        %v1990 = vmul.f32 4.0, %v1989
        %v1991 = vsub.f32 1.0, %v1990
        %v1992 = vmul.f32 %v1989, %v1991
        %v1993 = vadd.f32 %v1989, %v1992
        %vm1994 = vweird.f32 %v1989
        %v1995 = vsel %vm1994, %v1989, %v1993
        %v1996 = vmul.f32 %v1985, %v1995
        %v1997 = vmul.f32 %v1988, %v1995
        %1998 = vst.msk [vmem:[#allocation4] sm:$0xff] %vm310, 0.0
        %1999 = vst.msk [vmem:[#allocation4 + $0x8] sm:$0xff] %vm310, 0.0
        %vm2000 = vcmask 177152
        %2001 = vst.msk [vmem:[#allocation4 + $0x10] sm:$0x3f] %vm2000, 0.0
        %2002 = vst.msk [vmem:[#allocation4 + $0x18] sm:$0xff] %vm310, 0.0
        %2003 = vst.msk [vmem:[#allocation4 + $0x20] sm:$0xff] %vm310, 0.0
        %2004 = vst.msk [vmem:[#allocation4 + $0x28] sm:$0x3f] %vm2000, 0.0
        %2007 = vrot.lane.b32.xlu0 %v1979, 3
        %v2008 = vpop.permute.xlu0 %2007
        %2009 = vrot.lane.b32.xlu0 %v1982, 3
        %v2010 = vpop.permute.xlu0 %2009
        %vm2013 = vcmask 154648
        %2014 = vst.msk [vmem:[#allocation4 + $0x3] sm:$0xff] %vm2013, %v2008
        %2015 = vst.msk [vmem:[#allocation4 + $0xb] sm:$0xff] %vm2013, %v2010
        %2018 = vrot.lane.b32.xlu0 %v1996, 3
        %v2019 = vpop.permute.xlu0 %2018
        %2020 = vrot.lane.b32.xlu0 %v1997, 3
        %v2021 = vpop.permute.xlu0 %2020
        %s2024 = scalar_lea.vmem [#allocation4], 24
        %2025 = vst.msk [vmem:[%s2024 + $0x3] sm:$0xff] %vm2013, %v2019
        %2026 = vst.msk [vmem:[%s2024 + $0xb] sm:$0xff] %vm2013, %v2021
        %s2027 = sld [smem:[#allocation9 + $0xc4]]
        %v2028 = vld [vmem:[#allocation4] sm:$0xff]
        %v2029 = vld [vmem:[#allocation4 + $0x8] sm:$0xff]
        %v2030 = vstv %s2027
        %v2031 = vmul.f32 %v2030, %v2028
        %v2032 = vmul.f32 %v2030, %v2029
        %v2033 = vadd.f32 %v2031, 0.0
        %v2034 = vadd.f32 %v2032, 0.0
        %s2035 = sld [smem:[#allocation9 + $0xc5]]
        %v2036 = vstv %s2035
        %v2037 = vmul.f32 %v2036, %v2028
        %v2038 = vmul.f32 %v2036, %v2029
        %2041 = vrot.lane.b32.xlu0 %v2037, 127
        %v2042 = vpop.permute.xlu0 %2041
        %2043 = vrot.lane.b32.xlu0 %v2038, 127
        %v2044 = vpop.permute.xlu0 %2043
        %v2047 = vadd.f32 %v2033, %v2042
        %v2048 = vadd.f32 %v2034, %v2044
        %s2049 = sld [smem:[#allocation9 + $0xc6]]
        %v2050 = vstv %s2049
        %v2051 = vmul.f32 %v2050, %v2028
        %v2052 = vmul.f32 %v2050, %v2029
        %2055 = vrot.lane.b32.xlu0 %v2051, 126
        %v2056 = vpop.permute.xlu0 %2055
        %2057 = vrot.lane.b32.xlu0 %v2052, 126
        %v2058 = vpop.permute.xlu0 %2057
        %v2061 = vadd.f32 %v2047, %v2056
        %v2062 = vadd.f32 %v2048, %v2058
        %s2063 = sld [smem:[#allocation9 + $0xc7]]
        %v2064 = vstv %s2063
        %v2065 = vmul.f32 %v2064, %v2028
        %v2066 = vmul.f32 %v2064, %v2029
        %2069 = vrot.lane.b32.xlu0 %v2065, 125
        %v2070 = vpop.permute.xlu0 %2069
        %2071 = vrot.lane.b32.xlu0 %v2066, 125
        %v2072 = vpop.permute.xlu0 %2071
        %v2075 = vadd.f32 %v2061, %v2070
        %v2076 = vadd.f32 %v2062, %v2072
        %s2077 = sld [smem:[#allocation9 + $0xc8]]
        %v2078 = vstv %s2077
        %v2079 = vmul.f32 %v2078, %v2028
        %v2080 = vmul.f32 %v2078, %v2029
        %2083 = vrot.lane.b32.xlu0 %v2079, 124
        %v2084 = vpop.permute.xlu0 %2083
        %2085 = vrot.lane.b32.xlu0 %v2080, 124
        %v2086 = vpop.permute.xlu0 %2085
        %v2089 = vadd.f32 %v2075, %v2084
        %v2090 = vadd.f32 %v2076, %v2086
        %s2091 = sld [smem:[#allocation9 + $0xc9]]
        %v2092 = vstv %s2091
        %v2093 = vmul.f32 %v2092, %v2028
        %v2094 = vmul.f32 %v2092, %v2029
        %2097 = vrot.lane.b32.xlu0 %v2093, 123
        %v2098 = vpop.permute.xlu0 %2097
        %2099 = vrot.lane.b32.xlu0 %v2094, 123
        %v2100 = vpop.permute.xlu0 %2099
        %v2103 = vadd.f32 %v2089, %v2098
        %v2104 = vadd.f32 %v2090, %v2100
        %s2105 = sld [smem:[#allocation9 + $0xca]]
        %v2106 = vstv %s2105
        %v2107 = vmul.f32 %v2106, %v2028
        %v2108 = vmul.f32 %v2106, %v2029
        %2111 = vrot.lane.b32.xlu0 %v2107, 122
        %v2112 = vpop.permute.xlu0 %2111
        %2113 = vrot.lane.b32.xlu0 %v2108, 122
        %v2114 = vpop.permute.xlu0 %2113
        %v2117 = vadd.f32 %v2103, %v2112
        %v2118 = vadd.f32 %v2104, %v2114
        %s2119 = sld [smem:[#allocation9 + $0xcb]]
        %v2120 = vld [vmem:[#allocation4 + $0x1] sm:$0xff]
        %v2121 = vld [vmem:[#allocation4 + $0x9] sm:$0xff]
        %v2122 = vstv %s2119
        %v2123 = vmul.f32 %v2122, %v2120
        %v2124 = vmul.f32 %v2122, %v2121
        %v2125 = vadd.f32 %v2117, %v2123
        %v2126 = vadd.f32 %v2118, %v2124
        %s2127 = sld [smem:[#allocation9 + $0xcc]]
        %v2128 = vstv %s2127
        %v2129 = vmul.f32 %v2128, %v2120
        %v2130 = vmul.f32 %v2128, %v2121
        %2133 = vrot.lane.b32.xlu0 %v2129, 127
        %v2134 = vpop.permute.xlu0 %2133
        %2135 = vrot.lane.b32.xlu0 %v2130, 127
        %v2136 = vpop.permute.xlu0 %2135
        %v2139 = vadd.f32 %v2125, %v2134
        %v2140 = vadd.f32 %v2126, %v2136
        %s2141 = sld [smem:[#allocation9 + $0xcd]]
        %v2142 = vstv %s2141
        %v2143 = vmul.f32 %v2142, %v2120
        %v2144 = vmul.f32 %v2142, %v2121
        %2147 = vrot.lane.b32.xlu0 %v2143, 126
        %v2148 = vpop.permute.xlu0 %2147
        %2149 = vrot.lane.b32.xlu0 %v2144, 126
        %v2150 = vpop.permute.xlu0 %2149
        %v2153 = vadd.f32 %v2139, %v2148
        %v2154 = vadd.f32 %v2140, %v2150
        %s2155 = sld [smem:[#allocation9 + $0xce]]
        %v2156 = vstv %s2155
        %v2157 = vmul.f32 %v2156, %v2120
        %v2158 = vmul.f32 %v2156, %v2121
        %2161 = vrot.lane.b32.xlu0 %v2157, 125
        %v2162 = vpop.permute.xlu0 %2161
        %2163 = vrot.lane.b32.xlu0 %v2158, 125
        %v2164 = vpop.permute.xlu0 %2163
        %v2167 = vadd.f32 %v2153, %v2162
        %v2168 = vadd.f32 %v2154, %v2164
        %s2169 = sld [smem:[#allocation9 + $0xcf]]
        %v2170 = vstv %s2169
        %v2171 = vmul.f32 %v2170, %v2120
        %v2172 = vmul.f32 %v2170, %v2121
        %2175 = vrot.lane.b32.xlu0 %v2171, 124
        %v2176 = vpop.permute.xlu0 %2175
        %2177 = vrot.lane.b32.xlu0 %v2172, 124
        %v2178 = vpop.permute.xlu0 %2177
        %v2181 = vadd.f32 %v2167, %v2176
        %v2182 = vadd.f32 %v2168, %v2178
        %s2183 = sld [smem:[#allocation9 + $0xd0]]
        %v2184 = vstv %s2183
        %v2185 = vmul.f32 %v2184, %v2120
        %v2186 = vmul.f32 %v2184, %v2121
        %2189 = vrot.lane.b32.xlu0 %v2185, 123
        %v2190 = vpop.permute.xlu0 %2189
        %2191 = vrot.lane.b32.xlu0 %v2186, 123
        %v2192 = vpop.permute.xlu0 %2191
        %v2195 = vadd.f32 %v2181, %v2190
        %v2196 = vadd.f32 %v2182, %v2192
        %s2197 = sld [smem:[#allocation9 + $0xd1]]
        %v2198 = vstv %s2197
        %v2199 = vmul.f32 %v2198, %v2120
        %v2200 = vmul.f32 %v2198, %v2121
        %2203 = vrot.lane.b32.xlu0 %v2199, 122
        %v2204 = vpop.permute.xlu0 %2203
        %2205 = vrot.lane.b32.xlu0 %v2200, 122
        %v2206 = vpop.permute.xlu0 %2205
        %v2209 = vadd.f32 %v2195, %v2204
        %v2210 = vadd.f32 %v2196, %v2206
        %s2211 = sld [smem:[#allocation9 + $0xd2]]
        %v2212 = vld [vmem:[#allocation4 + $0x2] sm:$0xff]
        %v2213 = vld [vmem:[#allocation4 + $0xa] sm:$0xff]
        %v2214 = vstv %s2211
        %v2215 = vmul.f32 %v2214, %v2212
        %v2216 = vmul.f32 %v2214, %v2213
        %v2217 = vadd.f32 %v2209, %v2215
        %v2218 = vadd.f32 %v2210, %v2216
        %s2219 = sld [smem:[#allocation9 + $0xd3]]
        %v2220 = vstv %s2219
        %v2221 = vmul.f32 %v2220, %v2212
        %v2222 = vmul.f32 %v2220, %v2213
        %2225 = vrot.lane.b32.xlu0 %v2221, 127
        %v2226 = vpop.permute.xlu0 %2225
        %2227 = vrot.lane.b32.xlu0 %v2222, 127
        %v2228 = vpop.permute.xlu0 %2227
        %v2231 = vadd.f32 %v2217, %v2226
        %v2232 = vadd.f32 %v2218, %v2228
        %s2233 = sld [smem:[#allocation9 + $0xd4]]
        %v2234 = vstv %s2233
        %v2235 = vmul.f32 %v2234, %v2212
        %v2236 = vmul.f32 %v2234, %v2213
        %2239 = vrot.lane.b32.xlu0 %v2235, 126
        %v2240 = vpop.permute.xlu0 %2239
        %2241 = vrot.lane.b32.xlu0 %v2236, 126
        %v2242 = vpop.permute.xlu0 %2241
        %v2245 = vadd.f32 %v2231, %v2240
        %v2246 = vadd.f32 %v2232, %v2242
        %s2247 = sld [smem:[#allocation9 + $0xd5]]
        %v2248 = vstv %s2247
        %v2249 = vmul.f32 %v2248, %v2212
        %v2250 = vmul.f32 %v2248, %v2213
        %2253 = vrot.lane.b32.xlu0 %v2249, 125
        %v2254 = vpop.permute.xlu0 %2253
        %2255 = vrot.lane.b32.xlu0 %v2250, 125
        %v2256 = vpop.permute.xlu0 %2255
        %v2259 = vadd.f32 %v2245, %v2254
        %v2260 = vadd.f32 %v2246, %v2256
        %s2261 = sld [smem:[#allocation9 + $0xd6]]
        %v2262 = vstv %s2261
        %v2263 = vmul.f32 %v2262, %v2212
        %v2264 = vmul.f32 %v2262, %v2213
        %2267 = vrot.lane.b32.xlu0 %v2263, 124
        %v2268 = vpop.permute.xlu0 %2267
        %2269 = vrot.lane.b32.xlu0 %v2264, 124
        %v2270 = vpop.permute.xlu0 %2269
        %v2273 = vadd.f32 %v2259, %v2268
        %v2274 = vadd.f32 %v2260, %v2270
        %s2275 = sld [smem:[#allocation9 + $0xd7]]
        %v2276 = vstv %s2275
        %v2277 = vmul.f32 %v2276, %v2212
        %v2278 = vmul.f32 %v2276, %v2213
        %2281 = vrot.lane.b32.xlu0 %v2277, 123
        %v2282 = vpop.permute.xlu0 %2281
        %2283 = vrot.lane.b32.xlu0 %v2278, 123
        %v2284 = vpop.permute.xlu0 %2283
        %v2287 = vadd.f32 %v2273, %v2282
        %v2288 = vadd.f32 %v2274, %v2284
        %s2289 = sld [smem:[#allocation9 + $0xd8]]
        %v2290 = vstv %s2289
        %v2291 = vmul.f32 %v2290, %v2212
        %v2292 = vmul.f32 %v2290, %v2213
        %2295 = vrot.lane.b32.xlu0 %v2291, 122
        %v2296 = vpop.permute.xlu0 %2295
        %2297 = vrot.lane.b32.xlu0 %v2292, 122
        %v2298 = vpop.permute.xlu0 %2297
        %v2301 = vadd.f32 %v2287, %v2296
        %v2302 = vadd.f32 %v2288, %v2298
        %s2303 = sld [smem:[#allocation9 + $0xd9]]
        %v2304 = vld [vmem:[#allocation4 + $0x3] sm:$0xff]
        %v2305 = vld [vmem:[#allocation4 + $0xb] sm:$0xff]
        %v2306 = vstv %s2303
        %v2307 = vmul.f32 %v2306, %v2304
        %v2308 = vmul.f32 %v2306, %v2305
        %v2309 = vadd.f32 %v2301, %v2307
        %v2310 = vadd.f32 %v2302, %v2308
        %s2311 = sld [smem:[#allocation9 + $0xda]]
        %v2312 = vstv %s2311
        %v2313 = vmul.f32 %v2312, %v2304
        %v2314 = vmul.f32 %v2312, %v2305
        %2317 = vrot.lane.b32.xlu0 %v2313, 127
        %v2318 = vpop.permute.xlu0 %2317
        %2319 = vrot.lane.b32.xlu0 %v2314, 127
        %v2320 = vpop.permute.xlu0 %2319
        %v2323 = vadd.f32 %v2309, %v2318
        %v2324 = vadd.f32 %v2310, %v2320
        %s2325 = sld [smem:[#allocation9 + $0xdb]]
        %v2326 = vstv %s2325
        %v2327 = vmul.f32 %v2326, %v2304
        %v2328 = vmul.f32 %v2326, %v2305
        %2331 = vrot.lane.b32.xlu0 %v2327, 126
        %v2332 = vpop.permute.xlu0 %2331
        %2333 = vrot.lane.b32.xlu0 %v2328, 126
        %v2334 = vpop.permute.xlu0 %2333
        %v2337 = vadd.f32 %v2323, %v2332
        %v2338 = vadd.f32 %v2324, %v2334
        %s2339 = sld [smem:[#allocation9 + $0xdc]]
        %v2340 = vstv %s2339
        %v2341 = vmul.f32 %v2340, %v2304
        %v2342 = vmul.f32 %v2340, %v2305
        %2345 = vrot.lane.b32.xlu0 %v2341, 125
        %v2346 = vpop.permute.xlu0 %2345
        %2347 = vrot.lane.b32.xlu0 %v2342, 125
        %v2348 = vpop.permute.xlu0 %2347
        %v2351 = vadd.f32 %v2337, %v2346
        %v2352 = vadd.f32 %v2338, %v2348
        %s2353 = sld [smem:[#allocation9 + $0xdd]]
        %v2354 = vstv %s2353
        %v2355 = vmul.f32 %v2354, %v2304
        %v2356 = vmul.f32 %v2354, %v2305
        %2359 = vrot.lane.b32.xlu0 %v2355, 124
        %v2360 = vpop.permute.xlu0 %2359
        %2361 = vrot.lane.b32.xlu0 %v2356, 124
        %v2362 = vpop.permute.xlu0 %2361
        %v2365 = vadd.f32 %v2351, %v2360
        %v2366 = vadd.f32 %v2352, %v2362
        %s2367 = sld [smem:[#allocation9 + $0xde]]
        %v2368 = vstv %s2367
        %v2369 = vmul.f32 %v2368, %v2304
        %v2370 = vmul.f32 %v2368, %v2305
        %2373 = vrot.lane.b32.xlu0 %v2369, 123
        %v2374 = vpop.permute.xlu0 %2373
        %2375 = vrot.lane.b32.xlu0 %v2370, 123
        %v2376 = vpop.permute.xlu0 %2375
        %v2379 = vadd.f32 %v2365, %v2374
        %v2380 = vadd.f32 %v2366, %v2376
        %s2381 = sld [smem:[#allocation9 + $0xdf]]
        %v2382 = vstv %s2381
        %v2383 = vmul.f32 %v2382, %v2304
        %v2384 = vmul.f32 %v2382, %v2305
        %2387 = vrot.lane.b32.xlu0 %v2383, 122
        %v2388 = vpop.permute.xlu0 %2387
        %2389 = vrot.lane.b32.xlu0 %v2384, 122
        %v2390 = vpop.permute.xlu0 %2389
        %v2393 = vadd.f32 %v2379, %v2388
        %v2394 = vadd.f32 %v2380, %v2390
        %s2395 = sld [smem:[#allocation9 + $0xe0]]
        %v2396 = vld [vmem:[#allocation4 + $0x4] sm:$0xff]
        %v2397 = vld [vmem:[#allocation4 + $0xc] sm:$0xff]
        %v2398 = vstv %s2395
        %v2399 = vmul.f32 %v2398, %v2396
        %v2400 = vmul.f32 %v2398, %v2397
        %v2401 = vadd.f32 %v2393, %v2399
        %v2402 = vadd.f32 %v2394, %v2400
        %s2403 = sld [smem:[#allocation9 + $0xe1]]
        %v2404 = vstv %s2403
        %v2405 = vmul.f32 %v2404, %v2396
        %v2406 = vmul.f32 %v2404, %v2397
        %2409 = vrot.lane.b32.xlu0 %v2405, 127
        %v2410 = vpop.permute.xlu0 %2409
        %2411 = vrot.lane.b32.xlu0 %v2406, 127
        %v2412 = vpop.permute.xlu0 %2411
        %v2415 = vadd.f32 %v2401, %v2410
        %v2416 = vadd.f32 %v2402, %v2412
        %s2417 = sld [smem:[#allocation9 + $0xe2]]
        %v2418 = vstv %s2417
        %v2419 = vmul.f32 %v2418, %v2396
        %v2420 = vmul.f32 %v2418, %v2397
        %2423 = vrot.lane.b32.xlu0 %v2419, 126
        %v2424 = vpop.permute.xlu0 %2423
        %2425 = vrot.lane.b32.xlu0 %v2420, 126
        %v2426 = vpop.permute.xlu0 %2425
        %v2429 = vadd.f32 %v2415, %v2424
        %v2430 = vadd.f32 %v2416, %v2426
        %s2431 = sld [smem:[#allocation9 + $0xe3]]
        %v2432 = vstv %s2431
        %v2433 = vmul.f32 %v2432, %v2396
        %v2434 = vmul.f32 %v2432, %v2397
        %2437 = vrot.lane.b32.xlu0 %v2433, 125
        %v2438 = vpop.permute.xlu0 %2437
        %2439 = vrot.lane.b32.xlu0 %v2434, 125
        %v2440 = vpop.permute.xlu0 %2439
        %v2443 = vadd.f32 %v2429, %v2438
        %v2444 = vadd.f32 %v2430, %v2440
        %s2445 = sld [smem:[#allocation9 + $0xe4]]
        %v2446 = vstv %s2445
        %v2447 = vmul.f32 %v2446, %v2396
        %v2448 = vmul.f32 %v2446, %v2397
        %2451 = vrot.lane.b32.xlu0 %v2447, 124
        %v2452 = vpop.permute.xlu0 %2451
        %2453 = vrot.lane.b32.xlu0 %v2448, 124
        %v2454 = vpop.permute.xlu0 %2453
        %v2457 = vadd.f32 %v2443, %v2452
        %v2458 = vadd.f32 %v2444, %v2454
        %s2459 = sld [smem:[#allocation9 + $0xe5]]
        %v2460 = vstv %s2459
        %v2461 = vmul.f32 %v2460, %v2396
        %v2462 = vmul.f32 %v2460, %v2397
        %2465 = vrot.lane.b32.xlu0 %v2461, 123
        %v2466 = vpop.permute.xlu0 %2465
        %2467 = vrot.lane.b32.xlu0 %v2462, 123
        %v2468 = vpop.permute.xlu0 %2467
        %v2471 = vadd.f32 %v2457, %v2466
        %v2472 = vadd.f32 %v2458, %v2468
        %s2473 = sld [smem:[#allocation9 + $0xe6]]
        %v2474 = vstv %s2473
        %v2475 = vmul.f32 %v2474, %v2396
        %v2476 = vmul.f32 %v2474, %v2397
        %2479 = vrot.lane.b32.xlu0 %v2475, 122
        %v2480 = vpop.permute.xlu0 %2479
        %2481 = vrot.lane.b32.xlu0 %v2476, 122
        %v2482 = vpop.permute.xlu0 %2481
        %v2485 = vadd.f32 %v2471, %v2480
        %v2486 = vadd.f32 %v2472, %v2482
        %s2487 = sld [smem:[#allocation9 + $0xe7]]
        %v2488 = vld [vmem:[#allocation4 + $0x5] sm:$0xff]
        %v2489 = vld [vmem:[#allocation4 + $0xd] sm:$0xff]
        %v2490 = vstv %s2487
        %v2491 = vmul.f32 %v2490, %v2488
        %v2492 = vmul.f32 %v2490, %v2489
        %v2493 = vadd.f32 %v2485, %v2491
        %v2494 = vadd.f32 %v2486, %v2492
        %s2495 = sld [smem:[#allocation9 + $0xe8]]
        %v2496 = vstv %s2495
        %v2497 = vmul.f32 %v2496, %v2488
        %v2498 = vmul.f32 %v2496, %v2489
        %2501 = vrot.lane.b32.xlu0 %v2497, 127
        %v2502 = vpop.permute.xlu0 %2501
        %2503 = vrot.lane.b32.xlu0 %v2498, 127
        %v2504 = vpop.permute.xlu0 %2503
        %v2507 = vadd.f32 %v2493, %v2502
        %v2508 = vadd.f32 %v2494, %v2504
        %s2509 = sld [smem:[#allocation9 + $0xe9]]
        %v2510 = vstv %s2509
        %v2511 = vmul.f32 %v2510, %v2488
        %v2512 = vmul.f32 %v2510, %v2489
        %2515 = vrot.lane.b32.xlu0 %v2511, 126
        %v2516 = vpop.permute.xlu0 %2515
        %2517 = vrot.lane.b32.xlu0 %v2512, 126
        %v2518 = vpop.permute.xlu0 %2517
        %v2521 = vadd.f32 %v2507, %v2516
        %v2522 = vadd.f32 %v2508, %v2518
        %s2523 = sld [smem:[#allocation9 + $0xea]]
        %v2524 = vstv %s2523
        %v2525 = vmul.f32 %v2524, %v2488
        %v2526 = vmul.f32 %v2524, %v2489
        %2529 = vrot.lane.b32.xlu0 %v2525, 125
        %v2530 = vpop.permute.xlu0 %2529
        %2531 = vrot.lane.b32.xlu0 %v2526, 125
        %v2532 = vpop.permute.xlu0 %2531
        %v2535 = vadd.f32 %v2521, %v2530
        %v2536 = vadd.f32 %v2522, %v2532
        %s2537 = sld [smem:[#allocation9 + $0xeb]]
        %v2538 = vstv %s2537
        %v2539 = vmul.f32 %v2538, %v2488
        %v2540 = vmul.f32 %v2538, %v2489
        %2543 = vrot.lane.b32.xlu0 %v2539, 124
        %v2544 = vpop.permute.xlu0 %2543
        %2545 = vrot.lane.b32.xlu0 %v2540, 124
        %v2546 = vpop.permute.xlu0 %2545
        %v2549 = vadd.f32 %v2535, %v2544
        %v2550 = vadd.f32 %v2536, %v2546
        %s2551 = sld [smem:[#allocation9 + $0xec]]
        %v2552 = vstv %s2551
        %v2553 = vmul.f32 %v2552, %v2488
        %v2554 = vmul.f32 %v2552, %v2489
        %2557 = vrot.lane.b32.xlu0 %v2553, 123
        %v2558 = vpop.permute.xlu0 %2557
        %2559 = vrot.lane.b32.xlu0 %v2554, 123
        %v2560 = vpop.permute.xlu0 %2559
        %v2563 = vadd.f32 %v2549, %v2558
        %v2564 = vadd.f32 %v2550, %v2560
        %s2565 = sld [smem:[#allocation9 + $0xed]]
        %v2566 = vstv %s2565
        %v2567 = vmul.f32 %v2566, %v2488
        %v2568 = vmul.f32 %v2566, %v2489
        %2571 = vrot.lane.b32.xlu0 %v2567, 122
        %v2572 = vpop.permute.xlu0 %2571
        %2573 = vrot.lane.b32.xlu0 %v2568, 122
        %v2574 = vpop.permute.xlu0 %2573
        %v2577 = vadd.f32 %v2563, %v2572
        %v2578 = vadd.f32 %v2564, %v2574
        %s2579 = sld [smem:[#allocation9 + $0xee]]
        %v2580 = vld [vmem:[#allocation4 + $0x6] sm:$0xff]
        %v2581 = vld [vmem:[#allocation4 + $0xe] sm:$0xff]
        %v2582 = vstv %s2579
        %v2583 = vmul.f32 %v2582, %v2580
        %v2584 = vmul.f32 %v2582, %v2581
        %v2585 = vadd.f32 %v2577, %v2583
        %v2586 = vadd.f32 %v2578, %v2584
        %s2587 = sld [smem:[#allocation9 + $0xef]]
        %v2588 = vstv %s2587
        %v2589 = vmul.f32 %v2588, %v2580
        %v2590 = vmul.f32 %v2588, %v2581
        %2593 = vrot.lane.b32.xlu0 %v2589, 127
        %v2594 = vpop.permute.xlu0 %2593
        %2595 = vrot.lane.b32.xlu0 %v2590, 127
        %v2596 = vpop.permute.xlu0 %2595
        %v2599 = vadd.f32 %v2585, %v2594
        %v2600 = vadd.f32 %v2586, %v2596
        %s2601 = sld [smem:[#allocation9 + $0xf0]]
        %v2602 = vstv %s2601
        %v2603 = vmul.f32 %v2602, %v2580
        %v2604 = vmul.f32 %v2602, %v2581
        %2607 = vrot.lane.b32.xlu0 %v2603, 126
        %v2608 = vpop.permute.xlu0 %2607
        %2609 = vrot.lane.b32.xlu0 %v2604, 126
        %v2610 = vpop.permute.xlu0 %2609
        %v2613 = vadd.f32 %v2599, %v2608
        %v2614 = vadd.f32 %v2600, %v2610
        %s2615 = sld [smem:[#allocation9 + $0xf1]]
        %v2616 = vstv %s2615
        %v2617 = vmul.f32 %v2616, %v2580
        %v2618 = vmul.f32 %v2616, %v2581
        %2621 = vrot.lane.b32.xlu0 %v2617, 125
        %v2622 = vpop.permute.xlu0 %2621
        %2623 = vrot.lane.b32.xlu0 %v2618, 125
        %v2624 = vpop.permute.xlu0 %2623
        %v2627 = vadd.f32 %v2613, %v2622
        %v2628 = vadd.f32 %v2614, %v2624
        %s2629 = sld [smem:[#allocation9 + $0xf2]]
        %v2630 = vstv %s2629
        %v2631 = vmul.f32 %v2630, %v2580
        %v2632 = vmul.f32 %v2630, %v2581
        %2635 = vrot.lane.b32.xlu0 %v2631, 124
        %v2636 = vpop.permute.xlu0 %2635
        %2637 = vrot.lane.b32.xlu0 %v2632, 124
        %v2638 = vpop.permute.xlu0 %2637
        %v2641 = vadd.f32 %v2627, %v2636
        %v2642 = vadd.f32 %v2628, %v2638
        %s2643 = sld [smem:[#allocation9 + $0xf3]]
        %v2644 = vstv %s2643
        %v2645 = vmul.f32 %v2644, %v2580
        %v2646 = vmul.f32 %v2644, %v2581
        %2649 = vrot.lane.b32.xlu0 %v2645, 123
        %v2650 = vpop.permute.xlu0 %2649
        %2651 = vrot.lane.b32.xlu0 %v2646, 123
        %v2652 = vpop.permute.xlu0 %2651
        %v2655 = vadd.f32 %v2641, %v2650
        %v2656 = vadd.f32 %v2642, %v2652
        %s2657 = sld [smem:[#allocation9 + $0xf4]]
        %v2658 = vstv %s2657
        %v2659 = vmul.f32 %v2658, %v2580
        %v2660 = vmul.f32 %v2658, %v2581
        %2663 = vrot.lane.b32.xlu0 %v2659, 122
        %v2664 = vpop.permute.xlu0 %2663
        %2665 = vrot.lane.b32.xlu0 %v2660, 122
        %v2666 = vpop.permute.xlu0 %2665
        %v2669 = vadd.f32 %v2655, %v2664
        %v2670 = vadd.f32 %v2656, %v2666
        %s2671 = sld [smem:[#allocation9 + $0xf5]]
        %v2672 = vld [vmem:[%s2024] sm:$0xff]
        %v2673 = vld [vmem:[%s2024 + $0x8] sm:$0xff]
        %v2674 = vstv %s2671
        %v2675 = vmul.f32 %v2674, %v2672
        %v2676 = vmul.f32 %v2674, %v2673
        %v2677 = vadd.f32 %v2669, %v2675
        %v2678 = vadd.f32 %v2670, %v2676
        %s2679 = sld [smem:[#allocation9 + $0xf6]]
        %v2680 = vstv %s2679
        %v2681 = vmul.f32 %v2680, %v2672
        %v2682 = vmul.f32 %v2680, %v2673
        %2685 = vrot.lane.b32.xlu0 %v2681, 127
        %v2686 = vpop.permute.xlu0 %2685
        %2687 = vrot.lane.b32.xlu0 %v2682, 127
        %v2688 = vpop.permute.xlu0 %2687
        %v2691 = vadd.f32 %v2677, %v2686
        %v2692 = vadd.f32 %v2678, %v2688
        %s2693 = sld [smem:[#allocation9 + $0xf7]]
        %v2694 = vstv %s2693
        %v2695 = vmul.f32 %v2694, %v2672
        %v2696 = vmul.f32 %v2694, %v2673
        %2699 = vrot.lane.b32.xlu0 %v2695, 126
        %v2700 = vpop.permute.xlu0 %2699
        %2701 = vrot.lane.b32.xlu0 %v2696, 126
        %v2702 = vpop.permute.xlu0 %2701
        %v2705 = vadd.f32 %v2691, %v2700
        %v2706 = vadd.f32 %v2692, %v2702
        %s2707 = sld [smem:[#allocation9 + $0xf8]]
        %v2708 = vstv %s2707
        %v2709 = vmul.f32 %v2708, %v2672
        %v2710 = vmul.f32 %v2708, %v2673
        %2713 = vrot.lane.b32.xlu0 %v2709, 125
        %v2714 = vpop.permute.xlu0 %2713
        %2715 = vrot.lane.b32.xlu0 %v2710, 125
        %v2716 = vpop.permute.xlu0 %2715
        %v2719 = vadd.f32 %v2705, %v2714
        %v2720 = vadd.f32 %v2706, %v2716
        %s2721 = sld [smem:[#allocation9 + $0xf9]]
        %v2722 = vstv %s2721
        %v2723 = vmul.f32 %v2722, %v2672
        %v2724 = vmul.f32 %v2722, %v2673
        %2727 = vrot.lane.b32.xlu0 %v2723, 124
        %v2728 = vpop.permute.xlu0 %2727
        %2729 = vrot.lane.b32.xlu0 %v2724, 124
        %v2730 = vpop.permute.xlu0 %2729
        %v2733 = vadd.f32 %v2719, %v2728
        %v2734 = vadd.f32 %v2720, %v2730
        %s2735 = sld [smem:[#allocation9 + $0xfa]]
        %v2736 = vstv %s2735
        %v2737 = vmul.f32 %v2736, %v2672
        %v2738 = vmul.f32 %v2736, %v2673
        %2741 = vrot.lane.b32.xlu0 %v2737, 123
        %v2742 = vpop.permute.xlu0 %2741
        %2743 = vrot.lane.b32.xlu0 %v2738, 123
        %v2744 = vpop.permute.xlu0 %2743
        %v2747 = vadd.f32 %v2733, %v2742
        %v2748 = vadd.f32 %v2734, %v2744
        %s2749 = sld [smem:[#allocation9 + $0xfb]]
        %v2750 = vstv %s2749
        %v2751 = vmul.f32 %v2750, %v2672
        %v2752 = vmul.f32 %v2750, %v2673
        %2755 = vrot.lane.b32.xlu0 %v2751, 122
        %v2756 = vpop.permute.xlu0 %2755
        %2757 = vrot.lane.b32.xlu0 %v2752, 122
        %v2758 = vpop.permute.xlu0 %2757
        %v2761 = vadd.f32 %v2747, %v2756
        %v2762 = vadd.f32 %v2748, %v2758
        %s2763 = sld [smem:[#allocation9 + $0xfc]]
        %v2764 = vld [vmem:[%s2024 + $0x1] sm:$0xff]
        %v2765 = vld [vmem:[%s2024 + $0x9] sm:$0xff]
        %v2766 = vstv %s2763
        %v2767 = vmul.f32 %v2766, %v2764
        %v2768 = vmul.f32 %v2766, %v2765
        %v2769 = vadd.f32 %v2761, %v2767
        %v2770 = vadd.f32 %v2762, %v2768
        %s2771 = sld [smem:[#allocation9 + $0xfd]]
        %v2772 = vstv %s2771
        %v2773 = vmul.f32 %v2772, %v2764
        %v2774 = vmul.f32 %v2772, %v2765
        %2777 = vrot.lane.b32.xlu0 %v2773, 127
        %v2778 = vpop.permute.xlu0 %2777
        %2779 = vrot.lane.b32.xlu0 %v2774, 127
        %v2780 = vpop.permute.xlu0 %2779
        %v2783 = vadd.f32 %v2769, %v2778
        %v2784 = vadd.f32 %v2770, %v2780
        %s2785 = sld [smem:[#allocation9 + $0xfe]]
        %v2786 = vstv %s2785
        %v2787 = vmul.f32 %v2786, %v2764
        %v2788 = vmul.f32 %v2786, %v2765
        %2791 = vrot.lane.b32.xlu0 %v2787, 126
        %v2792 = vpop.permute.xlu0 %2791
        %2793 = vrot.lane.b32.xlu0 %v2788, 126
        %v2794 = vpop.permute.xlu0 %2793
        %v2797 = vadd.f32 %v2783, %v2792
        %v2798 = vadd.f32 %v2784, %v2794
        %s2799 = sld [smem:[#allocation9 + $0xff]]
        %v2800 = vstv %s2799
        %v2801 = vmul.f32 %v2800, %v2764
        %v2802 = vmul.f32 %v2800, %v2765
        %2805 = vrot.lane.b32.xlu0 %v2801, 125
        %v2806 = vpop.permute.xlu0 %2805
        %2807 = vrot.lane.b32.xlu0 %v2802, 125
        %v2808 = vpop.permute.xlu0 %2807
        %v2811 = vadd.f32 %v2797, %v2806
        %v2812 = vadd.f32 %v2798, %v2808
        %s2813 = sld [smem:[#allocation9 + $0x100]]
        %v2814 = vstv %s2813
        %v2815 = vmul.f32 %v2814, %v2764
        %v2816 = vmul.f32 %v2814, %v2765
        %2819 = vrot.lane.b32.xlu0 %v2815, 124
        %v2820 = vpop.permute.xlu0 %2819
        %2821 = vrot.lane.b32.xlu0 %v2816, 124
        %v2822 = vpop.permute.xlu0 %2821
        %v2825 = vadd.f32 %v2811, %v2820
        %v2826 = vadd.f32 %v2812, %v2822
        %s2827 = sld [smem:[#allocation9 + $0x101]]
        %v2828 = vstv %s2827
        %v2829 = vmul.f32 %v2828, %v2764
        %v2830 = vmul.f32 %v2828, %v2765
        %2833 = vrot.lane.b32.xlu0 %v2829, 123
        %v2834 = vpop.permute.xlu0 %2833
        %2835 = vrot.lane.b32.xlu0 %v2830, 123
        %v2836 = vpop.permute.xlu0 %2835
        %v2839 = vadd.f32 %v2825, %v2834
        %v2840 = vadd.f32 %v2826, %v2836
        %s2841 = sld [smem:[#allocation9 + $0x102]]
        %v2842 = vstv %s2841
        %v2843 = vmul.f32 %v2842, %v2764
        %v2844 = vmul.f32 %v2842, %v2765
        %2847 = vrot.lane.b32.xlu0 %v2843, 122
        %v2848 = vpop.permute.xlu0 %2847
        %2849 = vrot.lane.b32.xlu0 %v2844, 122
        %v2850 = vpop.permute.xlu0 %2849
        %v2853 = vadd.f32 %v2839, %v2848
        %v2854 = vadd.f32 %v2840, %v2850
        %s2855 = sld [smem:[#allocation9 + $0x103]]
        %v2856 = vld [vmem:[%s2024 + $0x2] sm:$0xff]
        %v2857 = vld [vmem:[%s2024 + $0xa] sm:$0xff]
        %v2858 = vstv %s2855
        %v2859 = vmul.f32 %v2858, %v2856
        %v2860 = vmul.f32 %v2858, %v2857
        %v2861 = vadd.f32 %v2853, %v2859
        %v2862 = vadd.f32 %v2854, %v2860
        %s2863 = sld [smem:[#allocation9 + $0x104]]
        %v2864 = vstv %s2863
        %v2865 = vmul.f32 %v2864, %v2856
        %v2866 = vmul.f32 %v2864, %v2857
        %2869 = vrot.lane.b32.xlu0 %v2865, 127
        %v2870 = vpop.permute.xlu0 %2869
        %2871 = vrot.lane.b32.xlu0 %v2866, 127
        %v2872 = vpop.permute.xlu0 %2871
        %v2875 = vadd.f32 %v2861, %v2870
        %v2876 = vadd.f32 %v2862, %v2872
        %s2877 = sld [smem:[#allocation9 + $0x105]]
        %v2878 = vstv %s2877
        %v2879 = vmul.f32 %v2878, %v2856
        %v2880 = vmul.f32 %v2878, %v2857
        %2883 = vrot.lane.b32.xlu0 %v2879, 126
        %v2884 = vpop.permute.xlu0 %2883
        %2885 = vrot.lane.b32.xlu0 %v2880, 126
        %v2886 = vpop.permute.xlu0 %2885
        %v2889 = vadd.f32 %v2875, %v2884
        %v2890 = vadd.f32 %v2876, %v2886
        %s2891 = sld [smem:[#allocation9 + $0x106]]
        %v2892 = vstv %s2891
        %v2893 = vmul.f32 %v2892, %v2856
        %v2894 = vmul.f32 %v2892, %v2857
        %2897 = vrot.lane.b32.xlu0 %v2893, 125
        %v2898 = vpop.permute.xlu0 %2897
        %2899 = vrot.lane.b32.xlu0 %v2894, 125
        %v2900 = vpop.permute.xlu0 %2899
        %v2903 = vadd.f32 %v2889, %v2898
        %v2904 = vadd.f32 %v2890, %v2900
        %s2905 = sld [smem:[#allocation9 + $0x107]]
        %v2906 = vstv %s2905
        %v2907 = vmul.f32 %v2906, %v2856
        %v2908 = vmul.f32 %v2906, %v2857
        %2911 = vrot.lane.b32.xlu0 %v2907, 124
        %v2912 = vpop.permute.xlu0 %2911
        %2913 = vrot.lane.b32.xlu0 %v2908, 124
        %v2914 = vpop.permute.xlu0 %2913
        %v2917 = vadd.f32 %v2903, %v2912
        %v2918 = vadd.f32 %v2904, %v2914
        %s2919 = sld [smem:[#allocation9 + $0x108]]
        %v2920 = vstv %s2919
        %v2921 = vmul.f32 %v2920, %v2856
        %v2922 = vmul.f32 %v2920, %v2857
        %2925 = vrot.lane.b32.xlu0 %v2921, 123
        %v2926 = vpop.permute.xlu0 %2925
        %2927 = vrot.lane.b32.xlu0 %v2922, 123
        %v2928 = vpop.permute.xlu0 %2927
        %v2931 = vadd.f32 %v2917, %v2926
        %v2932 = vadd.f32 %v2918, %v2928
        %s2933 = sld [smem:[#allocation9 + $0x109]]
        %v2934 = vstv %s2933
        %v2935 = vmul.f32 %v2934, %v2856
        %v2936 = vmul.f32 %v2934, %v2857
        %2939 = vrot.lane.b32.xlu0 %v2935, 122
        %v2940 = vpop.permute.xlu0 %2939
        %2941 = vrot.lane.b32.xlu0 %v2936, 122
        %v2942 = vpop.permute.xlu0 %2941
        %v2945 = vadd.f32 %v2931, %v2940
        %v2946 = vadd.f32 %v2932, %v2942
        %s2947 = sld [smem:[#allocation9 + $0x10a]]
        %v2948 = vld [vmem:[%s2024 + $0x3] sm:$0xff]
        %v2949 = vld [vmem:[%s2024 + $0xb] sm:$0xff]
        %v2950 = vstv %s2947
        %v2951 = vmul.f32 %v2950, %v2948
        %v2952 = vmul.f32 %v2950, %v2949
        %v2953 = vadd.f32 %v2945, %v2951
        %v2954 = vadd.f32 %v2946, %v2952
        %s2955 = sld [smem:[#allocation9 + $0x10b]]
        %v2956 = vstv %s2955
        %v2957 = vmul.f32 %v2956, %v2948
        %v2958 = vmul.f32 %v2956, %v2949
        %2961 = vrot.lane.b32.xlu0 %v2957, 127
        %v2962 = vpop.permute.xlu0 %2961
        %2963 = vrot.lane.b32.xlu0 %v2958, 127
        %v2964 = vpop.permute.xlu0 %2963
        %v2967 = vadd.f32 %v2953, %v2962
        %v2968 = vadd.f32 %v2954, %v2964
        %s2969 = sld [smem:[#allocation9 + $0x10c]]
        %v2970 = vstv %s2969
        %v2971 = vmul.f32 %v2970, %v2948
        %v2972 = vmul.f32 %v2970, %v2949
        %2975 = vrot.lane.b32.xlu0 %v2971, 126
        %v2976 = vpop.permute.xlu0 %2975
        %2977 = vrot.lane.b32.xlu0 %v2972, 126
        %v2978 = vpop.permute.xlu0 %2977
        %v2981 = vadd.f32 %v2967, %v2976
        %v2982 = vadd.f32 %v2968, %v2978
        %s2983 = sld [smem:[#allocation9 + $0x10d]]
        %v2984 = vstv %s2983
        %v2985 = vmul.f32 %v2984, %v2948
        %v2986 = vmul.f32 %v2984, %v2949
        %2989 = vrot.lane.b32.xlu0 %v2985, 125
        %v2990 = vpop.permute.xlu0 %2989
        %2991 = vrot.lane.b32.xlu0 %v2986, 125
        %v2992 = vpop.permute.xlu0 %2991
        %v2995 = vadd.f32 %v2981, %v2990
        %v2996 = vadd.f32 %v2982, %v2992
        %s2997 = sld [smem:[#allocation9 + $0x10e]]
        %v2998 = vstv %s2997
        %v2999 = vmul.f32 %v2998, %v2948
        %v3000 = vmul.f32 %v2998, %v2949
        %3003 = vrot.lane.b32.xlu0 %v2999, 124
        %v3004 = vpop.permute.xlu0 %3003
        %3005 = vrot.lane.b32.xlu0 %v3000, 124
        %v3006 = vpop.permute.xlu0 %3005
        %v3009 = vadd.f32 %v2995, %v3004
        %v3010 = vadd.f32 %v2996, %v3006
        %s3011 = sld [smem:[#allocation9 + $0x10f]]
        %v3012 = vstv %s3011
        %v3013 = vmul.f32 %v3012, %v2948
        %v3014 = vmul.f32 %v3012, %v2949
        %3017 = vrot.lane.b32.xlu0 %v3013, 123
        %v3018 = vpop.permute.xlu0 %3017
        %3019 = vrot.lane.b32.xlu0 %v3014, 123
        %v3020 = vpop.permute.xlu0 %3019
        %v3023 = vadd.f32 %v3009, %v3018
        %v3024 = vadd.f32 %v3010, %v3020
        %s3025 = sld [smem:[#allocation9 + $0x110]]
        %v3026 = vstv %s3025
        %v3027 = vmul.f32 %v3026, %v2948
        %v3028 = vmul.f32 %v3026, %v2949
        %3031 = vrot.lane.b32.xlu0 %v3027, 122
        %v3032 = vpop.permute.xlu0 %3031
        %3033 = vrot.lane.b32.xlu0 %v3028, 122
        %v3034 = vpop.permute.xlu0 %3033
        %v3037 = vadd.f32 %v3023, %v3032
        %v3038 = vadd.f32 %v3024, %v3034
        %s3039 = sld [smem:[#allocation9 + $0x111]]
        %v3040 = vld [vmem:[%s2024 + $0x4] sm:$0xff]
        %v3041 = vld [vmem:[%s2024 + $0xc] sm:$0xff]
        %v3042 = vstv %s3039
        %v3043 = vmul.f32 %v3042, %v3040
        %v3044 = vmul.f32 %v3042, %v3041
        %v3045 = vadd.f32 %v3037, %v3043
        %v3046 = vadd.f32 %v3038, %v3044
        %s3047 = sld [smem:[#allocation9 + $0x112]]
        %v3048 = vstv %s3047
        %v3049 = vmul.f32 %v3048, %v3040
        %v3050 = vmul.f32 %v3048, %v3041
        %3053 = vrot.lane.b32.xlu0 %v3049, 127
        %v3054 = vpop.permute.xlu0 %3053
        %3055 = vrot.lane.b32.xlu0 %v3050, 127
        %v3056 = vpop.permute.xlu0 %3055
        %v3059 = vadd.f32 %v3045, %v3054
        %v3060 = vadd.f32 %v3046, %v3056
        %s3061 = sld [smem:[#allocation9 + $0x113]]
        %v3062 = vstv %s3061
        %v3063 = vmul.f32 %v3062, %v3040
        %v3064 = vmul.f32 %v3062, %v3041
        %3067 = vrot.lane.b32.xlu0 %v3063, 126
        %v3068 = vpop.permute.xlu0 %3067
        %3069 = vrot.lane.b32.xlu0 %v3064, 126
        %v3070 = vpop.permute.xlu0 %3069
        %v3073 = vadd.f32 %v3059, %v3068
        %v3074 = vadd.f32 %v3060, %v3070
        %s3075 = sld [smem:[#allocation9 + $0x114]]
        %v3076 = vstv %s3075
        %v3077 = vmul.f32 %v3076, %v3040
        %v3078 = vmul.f32 %v3076, %v3041
        %3081 = vrot.lane.b32.xlu0 %v3077, 125
        %v3082 = vpop.permute.xlu0 %3081
        %3083 = vrot.lane.b32.xlu0 %v3078, 125
        %v3084 = vpop.permute.xlu0 %3083
        %v3087 = vadd.f32 %v3073, %v3082
        %v3088 = vadd.f32 %v3074, %v3084
        %s3089 = sld [smem:[#allocation9 + $0x115]]
        %v3090 = vstv %s3089
        %v3091 = vmul.f32 %v3090, %v3040
        %v3092 = vmul.f32 %v3090, %v3041
        %3095 = vrot.lane.b32.xlu0 %v3091, 124
        %v3096 = vpop.permute.xlu0 %3095
        %3097 = vrot.lane.b32.xlu0 %v3092, 124
        %v3098 = vpop.permute.xlu0 %3097
        %v3101 = vadd.f32 %v3087, %v3096
        %v3102 = vadd.f32 %v3088, %v3098
        %s3103 = sld [smem:[#allocation9 + $0x116]]
        %v3104 = vstv %s3103
        %v3105 = vmul.f32 %v3104, %v3040
        %v3106 = vmul.f32 %v3104, %v3041
        %3109 = vrot.lane.b32.xlu0 %v3105, 123
        %v3110 = vpop.permute.xlu0 %3109
        %3111 = vrot.lane.b32.xlu0 %v3106, 123
        %v3112 = vpop.permute.xlu0 %3111
        %v3115 = vadd.f32 %v3101, %v3110
        %v3116 = vadd.f32 %v3102, %v3112
        %s3117 = sld [smem:[#allocation9 + $0x117]]
        %v3118 = vstv %s3117
        %v3119 = vmul.f32 %v3118, %v3040
        %v3120 = vmul.f32 %v3118, %v3041
        %3123 = vrot.lane.b32.xlu0 %v3119, 122
        %v3124 = vpop.permute.xlu0 %3123
        %3125 = vrot.lane.b32.xlu0 %v3120, 122
        %v3126 = vpop.permute.xlu0 %3125
        %v3129 = vadd.f32 %v3115, %v3124
        %v3130 = vadd.f32 %v3116, %v3126
        %s3131 = sld [smem:[#allocation9 + $0x118]]
        %v3132 = vld [vmem:[%s2024 + $0x5] sm:$0xff]
        %v3133 = vld [vmem:[%s2024 + $0xd] sm:$0xff]
        %v3134 = vstv %s3131
        %v3135 = vmul.f32 %v3134, %v3132
        %v3136 = vmul.f32 %v3134, %v3133
        %v3137 = vadd.f32 %v3129, %v3135
        %v3138 = vadd.f32 %v3130, %v3136
        %s3139 = sld [smem:[#allocation9 + $0x119]]
        %v3140 = vstv %s3139
        %v3141 = vmul.f32 %v3140, %v3132
        %v3142 = vmul.f32 %v3140, %v3133
        %3145 = vrot.lane.b32.xlu0 %v3141, 127
        %v3146 = vpop.permute.xlu0 %3145
        %3147 = vrot.lane.b32.xlu0 %v3142, 127
        %v3148 = vpop.permute.xlu0 %3147
        %v3151 = vadd.f32 %v3137, %v3146
        %v3152 = vadd.f32 %v3138, %v3148
        %s3153 = sld [smem:[#allocation9 + $0x11a]]
        %v3154 = vstv %s3153
        %v3155 = vmul.f32 %v3154, %v3132
        %v3156 = vmul.f32 %v3154, %v3133
        %3159 = vrot.lane.b32.xlu0 %v3155, 126
        %v3160 = vpop.permute.xlu0 %3159
        %3161 = vrot.lane.b32.xlu0 %v3156, 126
        %v3162 = vpop.permute.xlu0 %3161
        %v3165 = vadd.f32 %v3151, %v3160
        %v3166 = vadd.f32 %v3152, %v3162
        %s3167 = sld [smem:[#allocation9 + $0x11b]]
        %v3168 = vstv %s3167
        %v3169 = vmul.f32 %v3168, %v3132
        %v3170 = vmul.f32 %v3168, %v3133
        %3173 = vrot.lane.b32.xlu0 %v3169, 125
        %v3174 = vpop.permute.xlu0 %3173
        %3175 = vrot.lane.b32.xlu0 %v3170, 125
        %v3176 = vpop.permute.xlu0 %3175
        %v3179 = vadd.f32 %v3165, %v3174
        %v3180 = vadd.f32 %v3166, %v3176
        %s3181 = sld [smem:[#allocation9 + $0x11c]]
        %v3182 = vstv %s3181
        %v3183 = vmul.f32 %v3182, %v3132
        %v3184 = vmul.f32 %v3182, %v3133
        %3187 = vrot.lane.b32.xlu0 %v3183, 124
        %v3188 = vpop.permute.xlu0 %3187
        %3189 = vrot.lane.b32.xlu0 %v3184, 124
        %v3190 = vpop.permute.xlu0 %3189
        %v3193 = vadd.f32 %v3179, %v3188
        %v3194 = vadd.f32 %v3180, %v3190
        %s3195 = sld [smem:[#allocation9 + $0x11d]]
        %v3196 = vstv %s3195
        %v3197 = vmul.f32 %v3196, %v3132
        %v3198 = vmul.f32 %v3196, %v3133
        %3201 = vrot.lane.b32.xlu0 %v3197, 123
        %v3202 = vpop.permute.xlu0 %3201
        %3203 = vrot.lane.b32.xlu0 %v3198, 123
        %v3204 = vpop.permute.xlu0 %3203
        %v3207 = vadd.f32 %v3193, %v3202
        %v3208 = vadd.f32 %v3194, %v3204
        %s3209 = sld [smem:[#allocation9 + $0x11e]]
        %v3210 = vstv %s3209
        %v3211 = vmul.f32 %v3210, %v3132
        %v3212 = vmul.f32 %v3210, %v3133
        %3215 = vrot.lane.b32.xlu0 %v3211, 122
        %v3216 = vpop.permute.xlu0 %3215
        %3217 = vrot.lane.b32.xlu0 %v3212, 122
        %v3218 = vpop.permute.xlu0 %3217
        %v3221 = vadd.f32 %v3207, %v3216
        %v3222 = vadd.f32 %v3208, %v3218
        %s3223 = sld [smem:[#allocation9 + $0x11f]]
        %v3224 = vld [vmem:[%s2024 + $0x6] sm:$0xff]
        %v3225 = vld [vmem:[%s2024 + $0xe] sm:$0xff]
        %v3226 = vstv %s3223
        %v3227 = vmul.f32 %v3226, %v3224
        %v3228 = vmul.f32 %v3226, %v3225
        %v3229 = vadd.f32 %v3221, %v3227
        %v3230 = vadd.f32 %v3222, %v3228
        %s3231 = sld [smem:[#allocation9 + $0x120]]
        %v3232 = vstv %s3231
        %v3233 = vmul.f32 %v3232, %v3224
        %v3234 = vmul.f32 %v3232, %v3225
        %3237 = vrot.lane.b32.xlu0 %v3233, 127
        %v3238 = vpop.permute.xlu0 %3237
        %3239 = vrot.lane.b32.xlu0 %v3234, 127
        %v3240 = vpop.permute.xlu0 %3239
        %v3243 = vadd.f32 %v3229, %v3238
        %v3244 = vadd.f32 %v3230, %v3240
        %s3245 = sld [smem:[#allocation9 + $0x121]]
        %v3246 = vstv %s3245
        %v3247 = vmul.f32 %v3246, %v3224
        %v3248 = vmul.f32 %v3246, %v3225
        %3251 = vrot.lane.b32.xlu0 %v3247, 126
        %v3252 = vpop.permute.xlu0 %3251
        %3253 = vrot.lane.b32.xlu0 %v3248, 126
        %v3254 = vpop.permute.xlu0 %3253
        %v3257 = vadd.f32 %v3243, %v3252
        %v3258 = vadd.f32 %v3244, %v3254
        %s3259 = sld [smem:[#allocation9 + $0x122]]
        %v3260 = vstv %s3259
        %v3261 = vmul.f32 %v3260, %v3224
        %v3262 = vmul.f32 %v3260, %v3225
        %3265 = vrot.lane.b32.xlu0 %v3261, 125
        %v3266 = vpop.permute.xlu0 %3265
        %3267 = vrot.lane.b32.xlu0 %v3262, 125
        %v3268 = vpop.permute.xlu0 %3267
        %v3271 = vadd.f32 %v3257, %v3266
        %v3272 = vadd.f32 %v3258, %v3268
        %s3273 = sld [smem:[#allocation9 + $0x123]]
        %v3274 = vstv %s3273
        %v3275 = vmul.f32 %v3274, %v3224
        %v3276 = vmul.f32 %v3274, %v3225
        %3279 = vrot.lane.b32.xlu0 %v3275, 124
        %v3280 = vpop.permute.xlu0 %3279
        %3281 = vrot.lane.b32.xlu0 %v3276, 124
        %v3282 = vpop.permute.xlu0 %3281
        %v3285 = vadd.f32 %v3271, %v3280
        %v3286 = vadd.f32 %v3272, %v3282
        %s3287 = sld [smem:[#allocation9 + $0x124]]
        %v3288 = vstv %s3287
        %v3289 = vmul.f32 %v3288, %v3224
        %v3290 = vmul.f32 %v3288, %v3225
        %3293 = vrot.lane.b32.xlu0 %v3289, 123
        %v3294 = vpop.permute.xlu0 %3293
        %3295 = vrot.lane.b32.xlu0 %v3290, 123
        %v3296 = vpop.permute.xlu0 %3295
        %v3299 = vadd.f32 %v3285, %v3294
        %v3300 = vadd.f32 %v3286, %v3296
        %s3301 = sld [smem:[#allocation9 + $0x125]]
        %v3302 = vstv %s3301
        %v3303 = vmul.f32 %v3302, %v3224
        %v3304 = vmul.f32 %v3302, %v3225
        %3307 = vrot.lane.b32.xlu0 %v3303, 122
        %v3308 = vpop.permute.xlu0 %3307
        %3309 = vrot.lane.b32.xlu0 %v3304, 122
        %v3310 = vpop.permute.xlu0 %3309
        %v3313 = vadd.f32 %v3299, %v3308
        %v3314 = vadd.f32 %v3300, %v3310
        %s3315 = sld [smem:[#allocation10 + $0x4]]
        %s3316 = sld [smem:[#allocation10 + $0x5]]
        %v3317 = vstv %s3315
        %v3318 = vmul.f32 %v3313, %v3317
        %v3319 = vmul.f32 %v3314, %v3317
        %v3320 = vstv %s3316
        %v3321 = vadd.f32 %v3318, %v3320
        %v3322 = vadd.f32 %v3319, %v3320
        %v3323 = vsub.f32 0.0, %v3321
        %v3324 = vsub.f32 0.0, %v3322
        %v3325 = vmul.f32 %v3323, 1.442695
        %v3326 = vpow.pop %v3325
        %v3327 = vmul.f32 %v3324, 1.442695
        %v3328 = vpow.pop %v3327
        %v3329 = vadd.f32 %v3326, 1.0
        %v3330 = vadd.f32 %v3328, 1.0
        %v3331 = vrcp.pop %v3329
        %v3332 = vmul.f32 %v3329, %v3331
        %v3333 = vsub.f32 1.0, %v3332
        %v3334 = vmul.f32 %v3331, %v3333
        %v3335 = vadd.f32 %v3331, %v3334
        %vm3336 = vweird.f32 %v3329
        %vm3337 = vweird.f32 %v3331
        %vm3338 = vmor %vm3336, %vm3337
        %v3339 = vsel %vm3338, %v3331, %v3335
        %v3340 = vand.u32 2147483647, %v3329
        %vm3341 = vcmp.eq.f32.partialorder %v3340, 8.507059e+37
        %v3342 = vand.u32 %v3329, 2147483648
        %v3343 = vor.u32 1.1754944e-38, %v3342
        %v3344 = vsel %vm3341, %v3343, %v3339
        %v3345 = vmul.f32 1.0, %v3344
        %v3346 = vrcp.pop %v3330
        %v3347 = vmul.f32 %v3330, %v3346
        %v3348 = vsub.f32 1.0, %v3347
        %v3349 = vmul.f32 %v3346, %v3348
        %v3350 = vadd.f32 %v3346, %v3349
        %vm3351 = vweird.f32 %v3330
        %vm3352 = vweird.f32 %v3346
        %vm3353 = vmor %vm3351, %vm3352
        %v3354 = vsel %vm3353, %v3346, %v3350
        %v3355 = vand.u32 2147483647, %v3330
        %vm3356 = vcmp.eq.f32.partialorder %v3355, 8.507059e+37
        %v3357 = vand.u32 %v3330, 2147483648
        %v3358 = vor.u32 1.1754944e-38, %v3357
        %v3359 = vsel %vm3356, %v3358, %v3354
        %v3360 = vmul.f32 1.0, %v3359
        %v3362 = vrot.slane %v1109, 1
        %v3363 = vrot.slane %v1109, 2
        %v3364 = vrot.slane %v1109, 3
        %v3365 = vperm.slane %v1109, 0
        %v3366 = vperm.slane %v3362, 0
        %v3367 = vperm.slane %v3363, 0
        %v3368 = vperm.slane %v3364, 0
        %v3373 = vadd.f32 %v3345, %v3365
        %v3374 = vadd.f32 %v3360, %v3365
        %v3375 = vadd.f32 %v3345, %v3366
        %v3376 = vadd.f32 %v3360, %v3366
        %v3377 = vadd.f32 %v3345, %v3367
        %v3378 = vadd.f32 %v3360, %v3367
        %v3379 = vadd.f32 %v3345, %v3368
        %v3380 = vadd.f32 %v3360, %v3368
        %v3381 = vperm.slane %v1976, 0
        %v3382 = vlaneseq
        %v3383 = vshrl.u32 %v3382, 7
        %3385 = vset.pattern.permute.xlu0 %v3383
        %3386 = vperm.xlu0 %3385, %v3381
        %v3387 = vpop.permute.xlu0 %3386
        %v3388 = vlaneseq
        %v3389 = vshrl.u32 %v3388, 7
        %v3390 = vadd.s32 %v3389, 8
        %3391 = vset.pattern.permute.xlu0 %v3390
        %3392 = vperm.xlu0 %3391, %v3381
        %v3393 = vpop.permute.xlu0 %3392
        %v3394 = vperm.slane %v1976, 1
        %v3395 = vlaneseq
        %v3396 = vshrl.u32 %v3395, 7
        %3398 = vset.pattern.permute.xlu0 %v3396
        %3399 = vperm.xlu0 %3398, %v3394
        %v3400 = vpop.permute.xlu0 %3399
        %v3401 = vlaneseq
        %v3402 = vshrl.u32 %v3401, 7
        %v3403 = vadd.s32 %v3402, 8
        %3404 = vset.pattern.permute.xlu0 %v3403
        %3405 = vperm.xlu0 %3404, %v3394
        %v3406 = vpop.permute.xlu0 %3405
        %v3407 = vperm.slane %v1976, 2
        %v3408 = vlaneseq
        %v3409 = vshrl.u32 %v3408, 7
        %3411 = vset.pattern.permute.xlu0 %v3409
        %3412 = vperm.xlu0 %3411, %v3407
        %v3413 = vpop.permute.xlu0 %3412
        %v3414 = vlaneseq
        %v3415 = vshrl.u32 %v3414, 7
        %v3416 = vadd.s32 %v3415, 8
        %3417 = vset.pattern.permute.xlu0 %v3416
        %3418 = vperm.xlu0 %3417, %v3407
        %v3419 = vpop.permute.xlu0 %3418
        %v3420 = vperm.slane %v1976, 3
        %v3421 = vlaneseq
        %v3422 = vshrl.u32 %v3421, 7
        %3424 = vset.pattern.permute.xlu0 %v3422
        %3425 = vperm.xlu0 %3424, %v3420
        %v3426 = vpop.permute.xlu0 %3425
        %v3427 = vlaneseq
        %v3428 = vshrl.u32 %v3427, 7
        %v3429 = vadd.s32 %v3428, 8
        %3430 = vset.pattern.permute.xlu0 %v3429
        %3431 = vperm.xlu0 %3430, %v3420
        %v3432 = vpop.permute.xlu0 %3431
        %v3433 = vadd.f32 %v3373, %v3387
        %v3434 = vadd.f32 %v3374, %v3393
        %v3435 = vadd.f32 %v3375, %v3400
        %v3436 = vadd.f32 %v3376, %v3406
        %v3437 = vadd.f32 %v3377, %v3413
        %v3438 = vadd.f32 %v3378, %v3419
        %v3439 = vadd.f32 %v3379, %v3426
        %v3440 = vadd.f32 %v3380, %v3432
        %v3441 = vmul.f32 %v218, %v3433
        %v3442 = vmul.f32 %v219, %v3434
        %v3443 = vmul.f32 %v220, %v3435
        %v3444 = vmul.f32 %v221, %v3436
        %v3445 = vmul.f32 %v222, %v3437
        %v3446 = vmul.f32 %v223, %v3438
        %v3447 = vmul.f32 %v224, %v3439
        %v3448 = vmul.f32 %v225, %v3440
        %v3449 = vmul.f32 %v3441, 0.33333334
        %v3450 = vmul.f32 %v3442, 0.33333334
        %v3451 = vmul.f32 %v3443, 0.33333334
        %v3452 = vmul.f32 %v3444, 0.33333334
        %v3453 = vmul.f32 %v3445, 0.33333334
        %v3454 = vmul.f32 %v3446, 0.33333334
        %v3455 = vmul.f32 %v3447, 0.33333334
        %v3456 = vmul.f32 %v3448, 0.33333334
        %3457 = vst.msk [vmem:[%s217] sm:$0xff] %vm226, %v3449
        %3458 = vst.msk [vmem:[%s217 + $0x8] sm:$0xff] %vm226, %v3450
        %3459 = vst.msk [vmem:[%s217 + $0x10] sm:$0xff] %vm226, %v3451
        %3460 = vst.msk [vmem:[%s217 + $0x18] sm:$0xff] %vm226, %v3452
        %3461 = vst.msk [vmem:[%s217 + $0x20] sm:$0xff] %vm226, %v3453
        %3462 = vst.msk [vmem:[%s217 + $0x28] sm:$0xff] %vm226, %v3454
        %3463 = vst.msk [vmem:[%s217 + $0x30] sm:$0xff] %vm226, %v3455
        %3464 = vst.msk [vmem:[%s217 + $0x38] sm:$0xff] %vm226, %v3456
        %s3465 = sand.u32 %s98, 1
        %s3466 = scalar_lea.sflag [#allocation7], %s3465
        %s3467 = sand.u32 %s98, 1
        %s3468 = smul.addr %s3467, 64
        %s3469 = scalar_lea.vmem [#allocation12], %s3468
        // Predicated region
        $region45: #{triplet_attention.1} parent=31 // pred_check
          %p3470 = pneg %p108
        $region46: #{triplet_attention.1} parent=31 // pred_check_branch
          %3472 = sbr.rel (%p3470) target = $region48
        $region47: #{triplet_attention.1} parent=31 // pred_region
          %3474 = vsyncadd %s3466, 0
          %s3475 = smul.addr %s22, 8
          %s3476 = smul.addr %s3475, 8
          %s3477 = scalar_lea.hbm %s3, %s3476
          %s3478 = sshll.u32 %s3469, 4
          %s3479 = int_to_ptr.vmem [resolvable:$true] %s3478
          %s3480 = sshll.u32 %s3477, 4
          %s3481 = int_to_ptr.hbm [resolvable:$true] %s3480
          %3486 = dma.vmem_to_hbm [thread:$0]  %s3479, 1024, %s3481, %s3466, 128, 128, 8
        $region48: #{triplet_attention.1} parent=31 // pred_fallthru
          _
      $region32: #{triplet_attention.1} parent=5 // pred_fallthru
        _
      %p3487 = scmp.le.s32.totalorder 2, %s17
      // Predicated region
      $region49: #{triplet_attention.1} parent=5 // pred_check
        %p3488 = pneg %p3487
      $region50: #{triplet_attention.1} parent=5 // pred_check_branch
        %3490 = sbr.rel (%p3488) target = $region52
      $region51: #{triplet_attention.1} parent=5 // pred_region
        %s3491 = ssub.s32 %s17, 2
        // Predicated region
        $region53: #{triplet_attention.1} parent=51 // pred_check
          %p3492 = pneg %p114
        $region54: #{triplet_attention.1} parent=51 // pred_check_branch
          %3494 = sbr.rel (%p3492) target = $region56
        $region55: #{triplet_attention.1} parent=51 // pred_region
          %s3495 = sand.u32 %s99, 1
          %s3496 = scalar_lea.sflag [#allocation7], %s3495
          %s3497 = sand.u32 %s99, 1
          %s3498 = smul.addr %s3497, 64
          %s3499 = scalar_lea.vmem [#allocation12], %s3498
          %3501 = dma.done %s3496, 1024
        $region56: #{triplet_attention.1} parent=51 // pred_fallthru
          _
      $region52: #{triplet_attention.1} parent=5 // pred_fallthru
        _
    $region6: #{triplet_attention.1} parent=1 // loop_footer
      %s21 = sadd.s32 1, %s17
    $region7: #{triplet_attention.1} parent=1 // loop_footer_branch
      %16 = sbr.rel target = $region3
    $region8: #{triplet_attention.1} parent=1 // loop_exit
      _
    %3502 = vsyncpa [#allocation6], 1
    %s3503 = scalar_lea.sflag [#allocation6], 1
    %3504 = vsyncpa %s3503, 1
    %3505 = vsyncpa [#allocation7], 1
    %s3506 = scalar_lea.sflag [#allocation7], 1
    %3507 = vsyncpa %s3506, 1
    %3508 = vsyncpa [#allocation8], 1
    %s3509 = scalar_lea.sflag [#allocation8], 1
    %3510 = vsyncpa %s3509, 1
    %3511 = vsyncpa [#allocation11], 1

</llo_original>
